<compile_context>
chip_gen: v5e
topology: v5e:2x2
jax: 0.10.0
libtpu: 0.0.40
codegen_flags: <defaults>
</compile_context>

<pallas_src>
import functools

import jax
import jax.numpy as jnp
from jax import lax
from jax.experimental import pallas as pl
from jax.experimental.pallas import tpu as pltpu


# -----------------------------------------------------------------------------
# Fused kernel: one grid step per batch element.
# -----------------------------------------------------------------------------
def _disc_fused_kernel(x_ref, wt_ref, bt_ref, gam_ref, bet_ref, grp_ref,
                       wcls_ref, bcls_ref, out_ref, pad_ref, col_ref,
                       *, num_convs, num_groups, eps, target, with_loss):
    _, H, W, C = x_ref.shape
    HW = H * W
    Cg = C // num_groups
    inv_n = 1.0 / float(HW * Cg)

    # Zero the padded scratch once per grid step: the 1-pixel border must stay
    # zero; the interior is fully overwritten before every use.
    pad_ref[...] = jnp.zeros_like(pad_ref)

    grp = grp_ref[...]                                  # (C, C) same-group 0/1

    def im2col(cur):
        # cur: (H, W, C) -> returns the (H*W, 9*C) im2col block.
        pad_ref[1:H + 1, 1:W + 1, :] = cur
        xp = pad_ref[...]                               # (H+2, W+2, C)
        for ky in range(3):
            for kx in range(3):
                t = ky * 3 + kx
                col_ref[:, t * C:(t + 1) * C] = (
                    xp[ky:ky + H, kx:kx + W, :].reshape(HW, C))
        return col_ref[...]                             # (HW, 9C)

    cur = x_ref[0]                                      # (H, W, C) f32

    for l in range(num_convs):
        # 3x3 conv as a single K=9*C matmul on the MXU.
        col = im2col(cur)
        acc = jnp.dot(col, wt_ref[l], preferred_element_type=jnp.float32)
        acc = acc + bt_ref[l]                           # (HW, C)

        # GroupNorm(num_groups, C): per-channel sums -> group stats via the
        # constant block-diagonal same-group matrix (two tiny 1-row matmuls),
        # two-pass variance.
        s = jnp.sum(acc, axis=0, keepdims=True)         # (1, C)
        mu_c = jnp.dot(s, grp, preferred_element_type=jnp.float32) * inv_n
        d = acc - mu_c
        sq = jnp.sum(d * d, axis=0, keepdims=True)      # (1, C)
        var_c = jnp.dot(sq, grp, preferred_element_type=jnp.float32) * inv_n
        y = d * lax.rsqrt(var_c + eps) * gam_ref[l] + bet_ref[l]
        y = jnp.maximum(y, 0.0)                         # ReLU
        cur = y.reshape(H, W, C)

    if with_loss:
        # Classifier conv (C->1) as VPU broadcast-multiply + lane reduction,
        # fused with the stable BCE-with-logits partial sum for this batch
        # element. `target` is a static Python constant.
        col = im2col(cur)
        z = jnp.sum(col * wcls_ref[...], axis=-1, keepdims=True)  # (HW, 1)
        z = z + bcls_ref[...]
        l_px = (jnp.maximum(z, 0.0) - z * target
                + jnp.log(1.0 + jnp.exp(-jnp.abs(z))))
        out_ref[...] = jnp.sum(l_px, keepdims=True).reshape(1, 1, 1)
    else:
        out_ref[...] = cur.reshape(1, H, W, C)


def _build_disc_call(B, H, W, C, L, *, with_loss, target):
    K9 = 9 * C
    kernel = functools.partial(
        _disc_fused_kernel, num_convs=L, num_groups=32, eps=1e-5,
        target=target, with_loss=with_loss)
    if with_loss:
        out_shape = jax.ShapeDtypeStruct((B, 1, 1), jnp.float32)
        out_spec = pl.BlockSpec((1, 1, 1), lambda bi: (bi, 0, 0))
    else:
        out_shape = jax.ShapeDtypeStruct((B, H, W, C), jnp.float32)
        out_spec = pl.BlockSpec((1, H, W, C), lambda bi: (bi, 0, 0, 0))
    return pl.pallas_call(
        kernel,
        out_shape=out_shape,
        grid_spec=pltpu.PrefetchScalarGridSpec(
            num_scalar_prefetch=0,
            grid=(B,),
            in_specs=[
                pl.BlockSpec((1, H, W, C), lambda bi: (bi, 0, 0, 0)),  # x
                pl.BlockSpec((L, K9, C), lambda bi: (0, 0, 0)),        # tower W
                pl.BlockSpec((L, 1, C), lambda bi: (0, 0, 0)),         # tower b
                pl.BlockSpec((L, 1, C), lambda bi: (0, 0, 0)),         # GN gamma
                pl.BlockSpec((L, 1, C), lambda bi: (0, 0, 0)),         # GN beta
                pl.BlockSpec((C, C), lambda bi: (0, 0)),               # group mat
                pl.BlockSpec((1, K9), lambda bi: (0, 0)),              # cls W row
                pl.BlockSpec((1, 1), lambda bi: (0, 0)),               # cls b
            ],
            out_specs=out_spec,
            scratch_shapes=[
                pltpu.VMEM((H + 2, W + 2, C), jnp.float32),   # padded activation
                pltpu.VMEM((H * W, K9), jnp.float32),         # im2col block
            ],
        ),
        compiler_params=pltpu.CompilerParams(
            dimension_semantics=("parallel",),
            vmem_limit_bytes=32 * 1024 * 1024,
        ),
    )


# -----------------------------------------------------------------------------
# Parameter init (matches the PyTorch __init__: conv weights N(0, 0.01),
# conv biases 0, GroupNorm weight=1 / bias=0 defaults).
# -----------------------------------------------------------------------------
def init_params(key, in_channels=64, num_convs=2):
    params = {"tower": []}
    for _ in range(num_convs):
        key, k = jax.random.split(key)
        w = 0.01 * jax.random.normal(
            k, (3, 3, in_channels, in_channels), jnp.float32)   # HWIO
        b = jnp.zeros((1, in_channels), jnp.float32)
        gamma = jnp.ones((1, in_channels), jnp.float32)
        beta = jnp.zeros((1, in_channels), jnp.float32)
        params["tower"].append((w, b, gamma, beta))
    key, k = jax.random.split(key)
    params["cls_w"] = 0.01 * jax.random.normal(
        k, (3, 3, in_channels, 1), jnp.float32)                 # HWIO
    params["cls_b"] = jnp.zeros((1, 1), jnp.float32)
    return params


# -----------------------------------------------------------------------------
# Public forward (accepts NCHW like the PyTorch module). `target` must be a
# static Python number (it is baked into the kernel, as in the module spec).
# -----------------------------------------------------------------------------
def discriminator_forward(params, feature_nchw, target, grl=True):
    assert target in (0, 1, 0.1, 0.9)
    x = jnp.transpose(feature_nchw, (0, 2, 3, 1)).astype(jnp.float32)  # NHWC
    B, H, W, C = x.shape
    assert C % 32 == 0, "GroupNorm(32, C) requires C divisible by 32"
    tower = params["tower"]
    L = len(tower)
    K9 = 9 * C

    # Stack per-layer parameters into fused operands.
    w_t = jnp.stack([w.reshape(K9, C) for (w, _, _, _) in tower])     # (L,9C,C)
    b_t = jnp.stack([b.reshape(1, C) for (_, b, _, _) in tower])      # (L,1,C)
    g_t = jnp.stack([g.reshape(1, C) for (_, _, g, _) in tower])      # (L,1,C)
    be_t = jnp.stack([bt.reshape(1, C) for (_, _, _, bt) in tower])   # (L,1,C)

    # Constant block-diagonal "same group" matrix for GroupNorm statistics.
    Cg = C // 32
    ch = jnp.arange(C)
    grp = (ch[:, None] // Cg == ch[None, :] // Cg).astype(jnp.float32)  # (C,C)

    w_cls = params["cls_w"].reshape(1, K9)                            # (1,9C)
    b_cls = params["cls_b"].reshape(1, 1)

    call = _build_disc_call(B, H, W, C, L, with_loss=grl, target=float(target))
    out = call(x, w_t, b_t, g_t, be_t, grp, w_cls, b_cls)

    if grl:
        # per-batch partial sums -> BCEWithLogitsLoss(reduction="mean")
        return jnp.sum(out) / (B * H * W)
    return jnp.transpose(out, (0, 3, 1, 2))   # back to NCHW, like `return x`


# -----------------------------------------------------------------------------
# Pure-JAX reference for validation (returns loss and the tower output).
# -----------------------------------------------------------------------------
def ref_forward(params, feature_nchw, target):
    x = jnp.transpose(feature_nchw, (0, 2, 3, 1)).astype(jnp.float32)
    dn = ("NHWC", "HWIO", "NHWC")
    for (w, b, gamma, beta) in params["tower"]:
        x = lax.conv_general_dilated(x, w, (1, 1), "SAME",
                                     dimension_numbers=dn) + b
        B, H, W, C = x.shape
        G, Cg = 32, C // 32
        xg = x.reshape(B, H * W, G, Cg)
        mu = xg.mean(axis=(1, 3), keepdims=True)
        var = ((xg - mu) ** 2).mean(axis=(1, 3), keepdims=True)
        xn = ((xg - mu) / jnp.sqrt(var + 1e-5)).reshape(B, H, W, C)
        x = jnp.maximum(xn * gamma + beta, 0.0)
    z = lax.conv_general_dilated(x, params["cls_w"], (1, 1), "SAME",
                                 dimension_numbers=dn) + params["cls_b"]
    l = jnp.maximum(z, 0.0) - z * target + jnp.log(1.0 + jnp.exp(-jnp.abs(z)))
    return jnp.mean(l), x


if __name__ == "__main__":
    key = jax.random.PRNGKey(0)
    key, kf = jax.random.split(key)
    # Small shapes: batch=2, channels=64 (divisible by 32 groups), 16x16.
    feature = jax.random.normal(kf, (2, 64, 16, 16), jnp.float32)  # NCHW
    params = init_params(key, in_channels=64, num_convs=2)
    target = 0.9

    # grl=True path: scalar BCE-with-logits loss.
    loss = discriminator_forward(params, feature, target, grl=True)
    loss = jax.block_until_ready(loss)

    # grl=False path: tower output (NCHW).
    x_tower = discriminator_forward(params, feature, target, grl=False)
    x_tower = jax.block_until_ready(x_tower)

    ref_loss, ref_x = ref_forward(params, feature, target)
    ref_loss = jax.block_until_ready(ref_loss)

    assert abs(float(loss) - float(ref_loss)) < 1e-3, (float(loss),
                                                       float(ref_loss))
    ref_x_nchw = jnp.transpose(ref_x, (0, 3, 1, 2))
    max_err = float(jnp.max(jnp.abs(x_tower - ref_x_nchw)))
    assert max_err < 1e-3, max_err

    print("KERNEL_OK")
</pallas_src>

<mosaic_0001>
module attributes {stable_mosaic.version = 11 : i64} {
  func.func @_disc_fused_kernel(%arg0: i32, %arg1: memref<1x16x16x64xf32, #tpu.memory_space<vmem>>, %arg2: memref<2x576x64xf32, #tpu.memory_space<vmem>>, %arg3: memref<2x1x64xf32, #tpu.memory_space<vmem>>, %arg4: memref<2x1x64xf32, #tpu.memory_space<vmem>>, %arg5: memref<2x1x64xf32, #tpu.memory_space<vmem>>, %arg6: memref<64x64xf32, #tpu.memory_space<vmem>>, %arg7: memref<1x576xf32, #tpu.memory_space<vmem>>, %arg8: memref<1x1xf32, #tpu.memory_space<vmem>>, %arg9: memref<1x1x1xf32, #tpu.memory_space<vmem>>, %arg10: memref<18x18x64xf32, #tpu.memory_space<vmem>>, %arg11: memref<256x576xf32, #tpu.memory_space<vmem>>) attributes {dimension_semantics = [#tpu.dimension_semantics<parallel>], iteration_bounds = array<i64: 2>, scalar_prefetch = 0 : i64, scratch_operands = 2 : i64, tpu.core_type = #tpu.core_type<tc>, window_params = [{transform_indices = @transform_0, window_bounds = array<i64: 1, 16, 16, 64>}, {pipeline_mode = #tpu.pipeline_mode<synchronous>, transform_indices = @transform_1, window_bounds = array<i64: 2, 576, 64>}, {pipeline_mode = #tpu.pipeline_mode<synchronous>, transform_indices = @transform_2, window_bounds = array<i64: 2, 1, 64>}, {pipeline_mode = #tpu.pipeline_mode<synchronous>, transform_indices = @transform_3, window_bounds = array<i64: 2, 1, 64>}, {pipeline_mode = #tpu.pipeline_mode<synchronous>, transform_indices = @transform_4, window_bounds = array<i64: 2, 1, 64>}, {pipeline_mode = #tpu.pipeline_mode<synchronous>, transform_indices = @transform_5, window_bounds = array<i64: 64, 64>}, {pipeline_mode = #tpu.pipeline_mode<synchronous>, transform_indices = @transform_6, window_bounds = array<i64: 1, 576>}, {pipeline_mode = #tpu.pipeline_mode<synchronous>, transform_indices = @transform_7, window_bounds = array<i64: 1, 1>}, {transform_indices = @transform_8, window_bounds = array<i64: 1, 1, 1>}]} {
    %cst = arith.constant 0.000000e+00 : f32
    %0 = vector.broadcast %cst : f32 to vector<18x18x64xf32>
    %c0 = arith.constant 0 : index
    %c0_0 = arith.constant 0 : index
    %c0_1 = arith.constant 0 : index
    %1 = vector.load %arg10[%c0, %c0_0, %c0_1] : memref<18x18x64xf32, #tpu.memory_space<vmem>>, vector<18x18x64xf32>
    tpu.vector_store %arg10[%c0, %c0_0, %c0_1], %0 {strides = array<i32>} : memref<18x18x64xf32, #tpu.memory_space<vmem>>, vector<18x18x64xf32>,
    %c0_2 = arith.constant 0 : index
    %c0_3 = arith.constant 0 : index
    %2 = vector.load %arg6[%c0_2, %c0_3] : memref<64x64xf32, #tpu.memory_space<vmem>>, vector<64x64xf32>
    %c0_4 = arith.constant 0 : index
    %c0_5 = arith.constant 0 : index
    %c0_6 = arith.constant 0 : index
    %c0_7 = arith.constant 0 : index
    %3 = vector.load %arg1[%c0_4, %c0_5, %c0_6, %c0_7] : memref<1x16x16x64xf32, #tpu.memory_space<vmem>>, vector<1x16x16x64xf32>
    %4 = vector.shape_cast %3 : vector<1x16x16x64xf32> to vector<16x16x64xf32>
    %c1 = arith.constant 1 : index
    %c1_8 = arith.constant 1 : index
    %c0_9 = arith.constant 0 : index
    %5 = vector.load %arg10[%c1, %c1_8, %c0_9] : memref<18x18x64xf32, #tpu.memory_space<vmem>>, vector<16x16x64xf32>
    tpu.vector_store %arg10[%c1, %c1_8, %c0_9], %4 {strides = array<i32>} : memref<18x18x64xf32, #tpu.memory_space<vmem>>, vector<16x16x64xf32>,
    %c0_10 = arith.constant 0 : index
    %c0_11 = arith.constant 0 : index
    %c0_12 = arith.constant 0 : index
    %6 = vector.load %arg10[%c0_10, %c0_11, %c0_12] : memref<18x18x64xf32, #tpu.memory_space<vmem>>, vector<18x18x64xf32>
    %7 = vector.extract_strided_slice %6 {offsets = [0, 0, 0], sizes = [16, 16, 64], strides = [1, 1, 1]} : vector<18x18x64xf32> to vector<16x16x64xf32>
    %8 = vector.shape_cast %7 : vector<16x16x64xf32> to vector<256x64xf32>
    %c0_13 = arith.constant 0 : index
    %c0_14 = arith.constant 0 : index
    %9 = vector.load %arg11[%c0_13, %c0_14] : memref<256x576xf32, #tpu.memory_space<vmem>>, vector<256x64xf32>
    tpu.vector_store %arg11[%c0_13, %c0_14], %8 {strides = array<i32>} : memref<256x576xf32, #tpu.memory_space<vmem>>, vector<256x64xf32>,
    %10 = vector.extract_strided_slice %6 {offsets = [0, 1, 0], sizes = [16, 16, 64], strides = [1, 1, 1]} : vector<18x18x64xf32> to vector<16x16x64xf32>
    %11 = vector.shape_cast %10 : vector<16x16x64xf32> to vector<256x64xf32>
    %c0_15 = arith.constant 0 : index
    %c64 = arith.constant 64 : index
    %12 = vector.load %arg11[%c0_15, %c64] : memref<256x576xf32, #tpu.memory_space<vmem>>, vector<256x64xf32>
    tpu.vector_store %arg11[%c0_15, %c64], %11 {strides = array<i32>} : memref<256x576xf32, #tpu.memory_space<vmem>>, vector<256x64xf32>,
    %13 = vector.extract_strided_slice %6 {offsets = [0, 2, 0], sizes = [16, 16, 64], strides = [1, 1, 1]} : vector<18x18x64xf32> to vector<16x16x64xf32>
    %14 = vector.shape_cast %13 : vector<16x16x64xf32> to vector<256x64xf32>
    %c0_16 = arith.constant 0 : index
    %c128 = arith.constant 128 : index
    %15 = vector.load %arg11[%c0_16, %c128] : memref<256x576xf32, #tpu.memory_space<vmem>>, vector<256x64xf32>
    tpu.vector_store %arg11[%c0_16, %c128], %14 {strides = array<i32>} : memref<256x576xf32, #tpu.memory_space<vmem>>, vector<256x64xf32>,
    %16 = vector.extract_strided_slice %6 {offsets = [1, 0, 0], sizes = [16, 16, 64], strides = [1, 1, 1]} : vector<18x18x64xf32> to vector<16x16x64xf32>
    %17 = vector.shape_cast %16 : vector<16x16x64xf32> to vector<256x64xf32>
    %c0_17 = arith.constant 0 : index
    %c192 = arith.constant 192 : index
    %18 = vector.load %arg11[%c0_17, %c192] : memref<256x576xf32, #tpu.memory_space<vmem>>, vector<256x64xf32>
    tpu.vector_store %arg11[%c0_17, %c192], %17 {strides = array<i32>} : memref<256x576xf32, #tpu.memory_space<vmem>>, vector<256x64xf32>,
    %19 = vector.extract_strided_slice %6 {offsets = [1, 1, 0], sizes = [16, 16, 64], strides = [1, 1, 1]} : vector<18x18x64xf32> to vector<16x16x64xf32>
    %20 = vector.shape_cast %19 : vector<16x16x64xf32> to vector<256x64xf32>
    %c0_18 = arith.constant 0 : index
    %c256 = arith.constant 256 : index
    %21 = vector.load %arg11[%c0_18, %c256] : memref<256x576xf32, #tpu.memory_space<vmem>>, vector<256x64xf32>
    tpu.vector_store %arg11[%c0_18, %c256], %20 {strides = array<i32>} : memref<256x576xf32, #tpu.memory_space<vmem>>, vector<256x64xf32>,
    %22 = vector.extract_strided_slice %6 {offsets = [1, 2, 0], sizes = [16, 16, 64], strides = [1, 1, 1]} : vector<18x18x64xf32> to vector<16x16x64xf32>
    %23 = vector.shape_cast %22 : vector<16x16x64xf32> to vector<256x64xf32>
    %c0_19 = arith.constant 0 : index
    %c320 = arith.constant 320 : index
    %24 = vector.load %arg11[%c0_19, %c320] : memref<256x576xf32, #tpu.memory_space<vmem>>, vector<256x64xf32>
    tpu.vector_store %arg11[%c0_19, %c320], %23 {strides = array<i32>} : memref<256x576xf32, #tpu.memory_space<vmem>>, vector<256x64xf32>,
    %25 = vector.extract_strided_slice %6 {offsets = [2, 0, 0], sizes = [16, 16, 64], strides = [1, 1, 1]} : vector<18x18x64xf32> to vector<16x16x64xf32>
    %26 = vector.shape_cast %25 : vector<16x16x64xf32> to vector<256x64xf32>
    %c0_20 = arith.constant 0 : index
    %c384 = arith.constant 384 : index
    %27 = vector.load %arg11[%c0_20, %c384] : memref<256x576xf32, #tpu.memory_space<vmem>>, vector<256x64xf32>
    tpu.vector_store %arg11[%c0_20, %c384], %26 {strides = array<i32>} : memref<256x576xf32, #tpu.memory_space<vmem>>, vector<256x64xf32>,
    %28 = vector.extract_strided_slice %6 {offsets = [2, 1, 0], sizes = [16, 16, 64], strides = [1, 1, 1]} : vector<18x18x64xf32> to vector<16x16x64xf32>
    %29 = vector.shape_cast %28 : vector<16x16x64xf32> to vector<256x64xf32>
    %c0_21 = arith.constant 0 : index
    %c448 = arith.constant 448 : index
    %30 = vector.load %arg11[%c0_21, %c448] : memref<256x576xf32, #tpu.memory_space<vmem>>, vector<256x64xf32>
    tpu.vector_store %arg11[%c0_21, %c448], %29 {strides = array<i32>} : memref<256x576xf32, #tpu.memory_space<vmem>>, vector<256x64xf32>,
    %31 = vector.extract_strided_slice %6 {offsets = [2, 2, 0], sizes = [16, 16, 64], strides = [1, 1, 1]} : vector<18x18x64xf32> to vector<16x16x64xf32>
    %32 = vector.shape_cast %31 : vector<16x16x64xf32> to vector<256x64xf32>
    %c0_22 = arith.constant 0 : index
    %c512 = arith.constant 512 : index
    %33 = vector.load %arg11[%c0_22, %c512] : memref<256x576xf32, #tpu.memory_space<vmem>>, vector<256x64xf32>
    tpu.vector_store %arg11[%c0_22, %c512], %32 {strides = array<i32>} : memref<256x576xf32, #tpu.memory_space<vmem>>, vector<256x64xf32>,
    %c0_23 = arith.constant 0 : index
    %c0_24 = arith.constant 0 : index
    %34 = vector.load %arg11[%c0_23, %c0_24] : memref<256x576xf32, #tpu.memory_space<vmem>>, vector<256x576xf32>
    %c0_25 = arith.constant 0 : index
    %c0_26 = arith.constant 0 : index
    %c0_27 = arith.constant 0 : index
    %35 = vector.load %arg2[%c0_25, %c0_26, %c0_27] : memref<2x576x64xf32, #tpu.memory_space<vmem>>, vector<1x576x64xf32>
    %36 = vector.shape_cast %35 : vector<1x576x64xf32> to vector<576x64xf32>
    %cst_28 = arith.constant dense<0.000000e+00> : vector<256x64xf32>
    %37 = tpu.matmul %34, %36, %cst_28 {dimension_numbers = #tpu.dot_dimension_numbers<[1], [0], [0], [1], [0, 0, 1, 1], [], []>} : vector<256x576xf32>, vector<576x64xf32>, vector<256x64xf32> -> vector<256x64xf32>
    %c0_29 = arith.constant 0 : index
    %c0_30 = arith.constant 0 : index
    %c0_31 = arith.constant 0 : index
    %38 = vector.load %arg3[%c0_29, %c0_30, %c0_31] : memref<2x1x64xf32, #tpu.memory_space<vmem>>, vector<1x1x64xf32>
    %39 = vector.shape_cast %38 : vector<1x1x64xf32> to vector<1x64xf32>
    %40 = vector.broadcast %39 : vector<1x64xf32> to vector<256x64xf32>
    %41 = arith.addf %37, %40 : vector<256x64xf32>
    %cst_32 = arith.constant dense<0.000000e+00> : vector<64xf32>
    %42 = vector.multi_reduction <add>, %41, %cst_32 [0] : vector<256x64xf32> to vector<64xf32>
    %43 = vector.shape_cast %42 : vector<64xf32> to vector<1x64xf32>
    %cst_33 = arith.constant dense<0.000000e+00> : vector<1x64xf32>
    %44 = tpu.matmul %43, %2, %cst_33 {dimension_numbers = #tpu.dot_dimension_numbers<[1], [0], [0], [1], [0, 0, 1, 1], [], []>} : vector<1x64xf32>, vector<64x64xf32>, vector<1x64xf32> -> vector<1x64xf32>
    %cst_34 = arith.constant 0.001953125 : f32
    %45 = vector.broadcast %cst_34 : f32 to vector<1x64xf32>
    %46 = arith.mulf %44, %45 : vector<1x64xf32>
    %47 = vector.broadcast %46 : vector<1x64xf32> to vector<256x64xf32>
    %48 = arith.subf %41, %47 : vector<256x64xf32>
    %49 = arith.mulf %48, %48 : vector<256x64xf32>
    %cst_35 = arith.constant dense<0.000000e+00> : vector<64xf32>
    %50 = vector.multi_reduction <add>, %49, %cst_35 [0] : vector<256x64xf32> to vector<64xf32>
    %51 = vector.shape_cast %50 : vector<64xf32> to vector<1x64xf32>
    %cst_36 = arith.constant dense<0.000000e+00> : vector<1x64xf32>
    %52 = tpu.matmul %51, %2, %cst_36 {dimension_numbers = #tpu.dot_dimension_numbers<[1], [0], [0], [1], [0, 0, 1, 1], [], []>} : vector<1x64xf32>, vector<64x64xf32>, vector<1x64xf32> -> vector<1x64xf32>
    %cst_37 = arith.constant 0.001953125 : f32
    %53 = vector.broadcast %cst_37 : f32 to vector<1x64xf32>
    %54 = arith.mulf %52, %53 : vector<1x64xf32>
    %cst_38 = arith.constant 9.99999974E-6 : f32
    %55 = vector.broadcast %cst_38 : f32 to vector<1x64xf32>
    %56 = arith.addf %54, %55 : vector<1x64xf32>
    %57 = math.rsqrt %56 : vector<1x64xf32>
    %58 = vector.broadcast %57 : vector<1x64xf32> to vector<256x64xf32>
    %59 = arith.mulf %48, %58 : vector<256x64xf32>
    %c0_39 = arith.constant 0 : index
    %c0_40 = arith.constant 0 : index
    %c0_41 = arith.constant 0 : index
    %60 = vector.load %arg4[%c0_39, %c0_40, %c0_41] : memref<2x1x64xf32, #tpu.memory_space<vmem>>, vector<1x1x64xf32>
    %61 = vector.shape_cast %60 : vector<1x1x64xf32> to vector<1x64xf32>
    %62 = vector.broadcast %61 : vector<1x64xf32> to vector<256x64xf32>
    %63 = arith.mulf %59, %62 : vector<256x64xf32>
    %c0_42 = arith.constant 0 : index
    %c0_43 = arith.constant 0 : index
    %c0_44 = arith.constant 0 : index
    %64 = vector.load %arg5[%c0_42, %c0_43, %c0_44] : memref<2x1x64xf32, #tpu.memory_space<vmem>>, vector<1x1x64xf32>
    %65 = vector.shape_cast %64 : vector<1x1x64xf32> to vector<1x64xf32>
    %66 = vector.broadcast %65 : vector<1x64xf32> to vector<256x64xf32>
    %67 = arith.addf %63, %66 : vector<256x64xf32>
    %cst_45 = arith.constant 0.000000e+00 : f32
    %68 = vector.broadcast %cst_45 : f32 to vector<256x64xf32>
    %69 = arith.maximumf %67, %68 : vector<256x64xf32>
    %70 = vector.shape_cast %69 : vector<256x64xf32> to vector<16x16x64xf32>
    %c1_46 = arith.constant 1 : index
    %c1_47 = arith.constant 1 : index
    %c0_48 = arith.constant 0 : index
    %71 = vector.load %arg10[%c1_46, %c1_47, %c0_48] : memref<18x18x64xf32, #tpu.memory_space<vmem>>, vector<16x16x64xf32>
    tpu.vector_store %arg10[%c1_46, %c1_47, %c0_48], %70 {strides = array<i32>} : memref<18x18x64xf32, #tpu.memory_space<vmem>>, vector<16x16x64xf32>,
    %c0_49 = arith.constant 0 : index
    %c0_50 = arith.constant 0 : index
    %c0_51 = arith.constant 0 : index
    %72 = vector.load %arg10[%c0_49, %c0_50, %c0_51] : memref<18x18x64xf32, #tpu.memory_space<vmem>>, vector<18x18x64xf32>
    %73 = vector.extract_strided_slice %72 {offsets = [0, 0, 0], sizes = [16, 16, 64], strides = [1, 1, 1]} : vector<18x18x64xf32> to vector<16x16x64xf32>
    %74 = vector.shape_cast %73 : vector<16x16x64xf32> to vector<256x64xf32>
    %c0_52 = arith.constant 0 : index
    %c0_53 = arith.constant 0 : index
    %75 = vector.load %arg11[%c0_52, %c0_53] : memref<256x576xf32, #tpu.memory_space<vmem>>, vector<256x64xf32>
    tpu.vector_store %arg11[%c0_52, %c0_53], %74 {strides = array<i32>} : memref<256x576xf32, #tpu.memory_space<vmem>>, vector<256x64xf32>,
    %76 = vector.extract_strided_slice %72 {offsets = [0, 1, 0], sizes = [16, 16, 64], strides = [1, 1, 1]} : vector<18x18x64xf32> to vector<16x16x64xf32>
    %77 = vector.shape_cast %76 : vector<16x16x64xf32> to vector<256x64xf32>
    %c0_54 = arith.constant 0 : index
    %c64_55 = arith.constant 64 : index
    %78 = vector.load %arg11[%c0_54, %c64_55] : memref<256x576xf32, #tpu.memory_space<vmem>>, vector<256x64xf32>
    tpu.vector_store %arg11[%c0_54, %c64_55], %77 {strides = array<i32>} : memref<256x576xf32, #tpu.memory_space<vmem>>, vector<256x64xf32>,
    %79 = vector.extract_strided_slice %72 {offsets = [0, 2, 0], sizes = [16, 16, 64], strides = [1, 1, 1]} : vector<18x18x64xf32> to vector<16x16x64xf32>
    %80 = vector.shape_cast %79 : vector<16x16x64xf32> to vector<256x64xf32>
    %c0_56 = arith.constant 0 : index
    %c128_57 = arith.constant 128 : index
    %81 = vector.load %arg11[%c0_56, %c128_57] : memref<256x576xf32, #tpu.memory_space<vmem>>, vector<256x64xf32>
    tpu.vector_store %arg11[%c0_56, %c128_57], %80 {strides = array<i32>} : memref<256x576xf32, #tpu.memory_space<vmem>>, vector<256x64xf32>,
    %82 = vector.extract_strided_slice %72 {offsets = [1, 0, 0], sizes = [16, 16, 64], strides = [1, 1, 1]} : vector<18x18x64xf32> to vector<16x16x64xf32>
    %83 = vector.shape_cast %82 : vector<16x16x64xf32> to vector<256x64xf32>
    %c0_58 = arith.constant 0 : index
    %c192_59 = arith.constant 192 : index
    %84 = vector.load %arg11[%c0_58, %c192_59] : memref<256x576xf32, #tpu.memory_space<vmem>>, vector<256x64xf32>
    tpu.vector_store %arg11[%c0_58, %c192_59], %83 {strides = array<i32>} : memref<256x576xf32, #tpu.memory_space<vmem>>, vector<256x64xf32>,
    %85 = vector.extract_strided_slice %72 {offsets = [1, 1, 0], sizes = [16, 16, 64], strides = [1, 1, 1]} : vector<18x18x64xf32> to vector<16x16x64xf32>
    %86 = vector.shape_cast %85 : vector<16x16x64xf32> to vector<256x64xf32>
    %c0_60 = arith.constant 0 : index
    %c256_61 = arith.constant 256 : index
    %87 = vector.load %arg11[%c0_60, %c256_61] : memref<256x576xf32, #tpu.memory_space<vmem>>, vector<256x64xf32>
    tpu.vector_store %arg11[%c0_60, %c256_61], %86 {strides = array<i32>} : memref<256x576xf32, #tpu.memory_space<vmem>>, vector<256x64xf32>,
    %88 = vector.extract_strided_slice %72 {offsets = [1, 2, 0], sizes = [16, 16, 64], strides = [1, 1, 1]} : vector<18x18x64xf32> to vector<16x16x64xf32>
    %89 = vector.shape_cast %88 : vector<16x16x64xf32> to vector<256x64xf32>
    %c0_62 = arith.constant 0 : index
    %c320_63 = arith.constant 320 : index
    %90 = vector.load %arg11[%c0_62, %c320_63] : memref<256x576xf32, #tpu.memory_space<vmem>>, vector<256x64xf32>
    tpu.vector_store %arg11[%c0_62, %c320_63], %89 {strides = array<i32>} : memref<256x576xf32, #tpu.memory_space<vmem>>, vector<256x64xf32>,
    %91 = vector.extract_strided_slice %72 {offsets = [2, 0, 0], sizes = [16, 16, 64], strides = [1, 1, 1]} : vector<18x18x64xf32> to vector<16x16x64xf32>
    %92 = vector.shape_cast %91 : vector<16x16x64xf32> to vector<256x64xf32>
    %c0_64 = arith.constant 0 : index
    %c384_65 = arith.constant 384 : index
    %93 = vector.load %arg11[%c0_64, %c384_65] : memref<256x576xf32, #tpu.memory_space<vmem>>, vector<256x64xf32>
    tpu.vector_store %arg11[%c0_64, %c384_65], %92 {strides = array<i32>} : memref<256x576xf32, #tpu.memory_space<vmem>>, vector<256x64xf32>,
    %94 = vector.extract_strided_slice %72 {offsets = [2, 1, 0], sizes = [16, 16, 64], strides = [1, 1, 1]} : vector<18x18x64xf32> to vector<16x16x64xf32>
    %95 = vector.shape_cast %94 : vector<16x16x64xf32> to vector<256x64xf32>
    %c0_66 = arith.constant 0 : index
    %c448_67 = arith.constant 448 : index
    %96 = vector.load %arg11[%c0_66, %c448_67] : memref<256x576xf32, #tpu.memory_space<vmem>>, vector<256x64xf32>
    tpu.vector_store %arg11[%c0_66, %c448_67], %95 {strides = array<i32>} : memref<256x576xf32, #tpu.memory_space<vmem>>, vector<256x64xf32>,
    %97 = vector.extract_strided_slice %72 {offsets = [2, 2, 0], sizes = [16, 16, 64], strides = [1, 1, 1]} : vector<18x18x64xf32> to vector<16x16x64xf32>
    %98 = vector.shape_cast %97 : vector<16x16x64xf32> to vector<256x64xf32>
    %c0_68 = arith.constant 0 : index
    %c512_69 = arith.constant 512 : index
    %99 = vector.load %arg11[%c0_68, %c512_69] : memref<256x576xf32, #tpu.memory_space<vmem>>, vector<256x64xf32>
    tpu.vector_store %arg11[%c0_68, %c512_69], %98 {strides = array<i32>} : memref<256x576xf32, #tpu.memory_space<vmem>>, vector<256x64xf32>,
    %c0_70 = arith.constant 0 : index
    %c0_71 = arith.constant 0 : index
    %100 = vector.load %arg11[%c0_70, %c0_71] : memref<256x576xf32, #tpu.memory_space<vmem>>, vector<256x576xf32>
    %c1_72 = arith.constant 1 : index
    %c0_73 = arith.constant 0 : index
    %c0_74 = arith.constant 0 : index
    %101 = vector.load %arg2[%c1_72, %c0_73, %c0_74] : memref<2x576x64xf32, #tpu.memory_space<vmem>>, vector<1x576x64xf32>
    %102 = vector.shape_cast %101 : vector<1x576x64xf32> to vector<576x64xf32>
    %cst_75 = arith.constant dense<0.000000e+00> : vector<256x64xf32>
    %103 = tpu.matmul %100, %102, %cst_75 {dimension_numbers = #tpu.dot_dimension_numbers<[1], [0], [0], [1], [0, 0, 1, 1], [], []>} : vector<256x576xf32>, vector<576x64xf32>, vector<256x64xf32> -> vector<256x64xf32>
    %c1_76 = arith.constant 1 : index
    %c0_77 = arith.constant 0 : index
    %c0_78 = arith.constant 0 : index
    %104 = vector.load %arg3[%c1_76, %c0_77, %c0_78] : memref<2x1x64xf32, #tpu.memory_space<vmem>>, vector<1x1x64xf32>
    %105 = vector.shape_cast %104 : vector<1x1x64xf32> to vector<1x64xf32>
    %106 = vector.broadcast %105 : vector<1x64xf32> to vector<256x64xf32>
    %107 = arith.addf %103, %106 : vector<256x64xf32>
    %cst_79 = arith.constant dense<0.000000e+00> : vector<64xf32>
    %108 = vector.multi_reduction <add>, %107, %cst_79 [0] : vector<256x64xf32> to vector<64xf32>
    %109 = vector.shape_cast %108 : vector<64xf32> to vector<1x64xf32>
    %cst_80 = arith.constant dense<0.000000e+00> : vector<1x64xf32>
    %110 = tpu.matmul %109, %2, %cst_80 {dimension_numbers = #tpu.dot_dimension_numbers<[1], [0], [0], [1], [0, 0, 1, 1], [], []>} : vector<1x64xf32>, vector<64x64xf32>, vector<1x64xf32> -> vector<1x64xf32>
    %cst_81 = arith.constant 0.001953125 : f32
    %111 = vector.broadcast %cst_81 : f32 to vector<1x64xf32>
    %112 = arith.mulf %110, %111 : vector<1x64xf32>
    %113 = vector.broadcast %112 : vector<1x64xf32> to vector<256x64xf32>
    %114 = arith.subf %107, %113 : vector<256x64xf32>
    %115 = arith.mulf %114, %114 : vector<256x64xf32>
    %cst_82 = arith.constant dense<0.000000e+00> : vector<64xf32>
    %116 = vector.multi_reduction <add>, %115, %cst_82 [0] : vector<256x64xf32> to vector<64xf32>
    %117 = vector.shape_cast %116 : vector<64xf32> to vector<1x64xf32>
    %cst_83 = arith.constant dense<0.000000e+00> : vector<1x64xf32>
    %118 = tpu.matmul %117, %2, %cst_83 {dimension_numbers = #tpu.dot_dimension_numbers<[1], [0], [0], [1], [0, 0, 1, 1], [], []>} : vector<1x64xf32>, vector<64x64xf32>, vector<1x64xf32> -> vector<1x64xf32>
    %cst_84 = arith.constant 0.001953125 : f32
    %119 = vector.broadcast %cst_84 : f32 to vector<1x64xf32>
    %120 = arith.mulf %118, %119 : vector<1x64xf32>
    %cst_85 = arith.constant 9.99999974E-6 : f32
    %121 = vector.broadcast %cst_85 : f32 to vector<1x64xf32>
    %122 = arith.addf %120, %121 : vector<1x64xf32>
    %123 = math.rsqrt %122 : vector<1x64xf32>
    %124 = vector.broadcast %123 : vector<1x64xf32> to vector<256x64xf32>
    %125 = arith.mulf %114, %124 : vector<256x64xf32>
    %c1_86 = arith.constant 1 : index
    %c0_87 = arith.constant 0 : index
    %c0_88 = arith.constant 0 : index
    %126 = vector.load %arg4[%c1_86, %c0_87, %c0_88] : memref<2x1x64xf32, #tpu.memory_space<vmem>>, vector<1x1x64xf32>
    %127 = vector.shape_cast %126 : vector<1x1x64xf32> to vector<1x64xf32>
    %128 = vector.broadcast %127 : vector<1x64xf32> to vector<256x64xf32>
    %129 = arith.mulf %125, %128 : vector<256x64xf32>
    %c1_89 = arith.constant 1 : index
    %c0_90 = arith.constant 0 : index
    %c0_91 = arith.constant 0 : index
    %130 = vector.load %arg5[%c1_89, %c0_90, %c0_91] : memref<2x1x64xf32, #tpu.memory_space<vmem>>, vector<1x1x64xf32>
    %131 = vector.shape_cast %130 : vector<1x1x64xf32> to vector<1x64xf32>
    %132 = vector.broadcast %131 : vector<1x64xf32> to vector<256x64xf32>
    %133 = arith.addf %129, %132 : vector<256x64xf32>
    %cst_92 = arith.constant 0.000000e+00 : f32
    %134 = vector.broadcast %cst_92 : f32 to vector<256x64xf32>
    %135 = arith.maximumf %133, %134 : vector<256x64xf32>
    %136 = vector.shape_cast %135 : vector<256x64xf32> to vector<16x16x64xf32>
    %c1_93 = arith.constant 1 : index
    %c1_94 = arith.constant 1 : index
    %c0_95 = arith.constant 0 : index
    %137 = vector.load %arg10[%c1_93, %c1_94, %c0_95] : memref<18x18x64xf32, #tpu.memory_space<vmem>>, vector<16x16x64xf32>
    tpu.vector_store %arg10[%c1_93, %c1_94, %c0_95], %136 {strides = array<i32>} : memref<18x18x64xf32, #tpu.memory_space<vmem>>, vector<16x16x64xf32>,
    %c0_96 = arith.constant 0 : index
    %c0_97 = arith.constant 0 : index
    %c0_98 = arith.constant 0 : index
    %138 = vector.load %arg10[%c0_96, %c0_97, %c0_98] : memref<18x18x64xf32, #tpu.memory_space<vmem>>, vector<18x18x64xf32>
    %139 = vector.extract_strided_slice %138 {offsets = [0, 0, 0], sizes = [16, 16, 64], strides = [1, 1, 1]} : vector<18x18x64xf32> to vector<16x16x64xf32>
    %140 = vector.shape_cast %139 : vector<16x16x64xf32> to vector<256x64xf32>
    %c0_99 = arith.constant 0 : index
    %c0_100 = arith.constant 0 : index
    %141 = vector.load %arg11[%c0_99, %c0_100] : memref<256x576xf32, #tpu.memory_space<vmem>>, vector<256x64xf32>
    tpu.vector_store %arg11[%c0_99, %c0_100], %140 {strides = array<i32>} : memref<256x576xf32, #tpu.memory_space<vmem>>, vector<256x64xf32>,
    %142 = vector.extract_strided_slice %138 {offsets = [0, 1, 0], sizes = [16, 16, 64], strides = [1, 1, 1]} : vector<18x18x64xf32> to vector<16x16x64xf32>
    %143 = vector.shape_cast %142 : vector<16x16x64xf32> to vector<256x64xf32>
    %c0_101 = arith.constant 0 : index
    %c64_102 = arith.constant 64 : index
    %144 = vector.load %arg11[%c0_101, %c64_102] : memref<256x576xf32, #tpu.memory_space<vmem>>, vector<256x64xf32>
    tpu.vector_store %arg11[%c0_101, %c64_102], %143 {strides = array<i32>} : memref<256x576xf32, #tpu.memory_space<vmem>>, vector<256x64xf32>,
    %145 = vector.extract_strided_slice %138 {offsets = [0, 2, 0], sizes = [16, 16, 64], strides = [1, 1, 1]} : vector<18x18x64xf32> to vector<16x16x64xf32>
    %146 = vector.shape_cast %145 : vector<16x16x64xf32> to vector<256x64xf32>
    %c0_103 = arith.constant 0 : index
    %c128_104 = arith.constant 128 : index
    %147 = vector.load %arg11[%c0_103, %c128_104] : memref<256x576xf32, #tpu.memory_space<vmem>>, vector<256x64xf32>
    tpu.vector_store %arg11[%c0_103, %c128_104], %146 {strides = array<i32>} : memref<256x576xf32, #tpu.memory_space<vmem>>, vector<256x64xf32>,
    %148 = vector.extract_strided_slice %138 {offsets = [1, 0, 0], sizes = [16, 16, 64], strides = [1, 1, 1]} : vector<18x18x64xf32> to vector<16x16x64xf32>
    %149 = vector.shape_cast %148 : vector<16x16x64xf32> to vector<256x64xf32>
    %c0_105 = arith.constant 0 : index
    %c192_106 = arith.constant 192 : index
    %150 = vector.load %arg11[%c0_105, %c192_106] : memref<256x576xf32, #tpu.memory_space<vmem>>, vector<256x64xf32>
    tpu.vector_store %arg11[%c0_105, %c192_106], %149 {strides = array<i32>} : memref<256x576xf32, #tpu.memory_space<vmem>>, vector<256x64xf32>,
    %151 = vector.extract_strided_slice %138 {offsets = [1, 1, 0], sizes = [16, 16, 64], strides = [1, 1, 1]} : vector<18x18x64xf32> to vector<16x16x64xf32>
    %152 = vector.shape_cast %151 : vector<16x16x64xf32> to vector<256x64xf32>
    %c0_107 = arith.constant 0 : index
    %c256_108 = arith.constant 256 : index
    %153 = vector.load %arg11[%c0_107, %c256_108] : memref<256x576xf32, #tpu.memory_space<vmem>>, vector<256x64xf32>
    tpu.vector_store %arg11[%c0_107, %c256_108], %152 {strides = array<i32>} : memref<256x576xf32, #tpu.memory_space<vmem>>, vector<256x64xf32>,
    %154 = vector.extract_strided_slice %138 {offsets = [1, 2, 0], sizes = [16, 16, 64], strides = [1, 1, 1]} : vector<18x18x64xf32> to vector<16x16x64xf32>
    %155 = vector.shape_cast %154 : vector<16x16x64xf32> to vector<256x64xf32>
    %c0_109 = arith.constant 0 : index
    %c320_110 = arith.constant 320 : index
    %156 = vector.load %arg11[%c0_109, %c320_110] : memref<256x576xf32, #tpu.memory_space<vmem>>, vector<256x64xf32>
    tpu.vector_store %arg11[%c0_109, %c320_110], %155 {strides = array<i32>} : memref<256x576xf32, #tpu.memory_space<vmem>>, vector<256x64xf32>,
    %157 = vector.extract_strided_slice %138 {offsets = [2, 0, 0], sizes = [16, 16, 64], strides = [1, 1, 1]} : vector<18x18x64xf32> to vector<16x16x64xf32>
    %158 = vector.shape_cast %157 : vector<16x16x64xf32> to vector<256x64xf32>
    %c0_111 = arith.constant 0 : index
    %c384_112 = arith.constant 384 : index
    %159 = vector.load %arg11[%c0_111, %c384_112] : memref<256x576xf32, #tpu.memory_space<vmem>>, vector<256x64xf32>
    tpu.vector_store %arg11[%c0_111, %c384_112], %158 {strides = array<i32>} : memref<256x576xf32, #tpu.memory_space<vmem>>, vector<256x64xf32>,
    %160 = vector.extract_strided_slice %138 {offsets = [2, 1, 0], sizes = [16, 16, 64], strides = [1, 1, 1]} : vector<18x18x64xf32> to vector<16x16x64xf32>
    %161 = vector.shape_cast %160 : vector<16x16x64xf32> to vector<256x64xf32>
    %c0_113 = arith.constant 0 : index
    %c448_114 = arith.constant 448 : index
    %162 = vector.load %arg11[%c0_113, %c448_114] : memref<256x576xf32, #tpu.memory_space<vmem>>, vector<256x64xf32>
    tpu.vector_store %arg11[%c0_113, %c448_114], %161 {strides = array<i32>} : memref<256x576xf32, #tpu.memory_space<vmem>>, vector<256x64xf32>,
    %163 = vector.extract_strided_slice %138 {offsets = [2, 2, 0], sizes = [16, 16, 64], strides = [1, 1, 1]} : vector<18x18x64xf32> to vector<16x16x64xf32>
    %164 = vector.shape_cast %163 : vector<16x16x64xf32> to vector<256x64xf32>
    %c0_115 = arith.constant 0 : index
    %c512_116 = arith.constant 512 : index
    %165 = vector.load %arg11[%c0_115, %c512_116] : memref<256x576xf32, #tpu.memory_space<vmem>>, vector<256x64xf32>
    tpu.vector_store %arg11[%c0_115, %c512_116], %164 {strides = array<i32>} : memref<256x576xf32, #tpu.memory_space<vmem>>, vector<256x64xf32>,
    %c0_117 = arith.constant 0 : index
    %c0_118 = arith.constant 0 : index
    %166 = vector.load %arg11[%c0_117, %c0_118] : memref<256x576xf32, #tpu.memory_space<vmem>>, vector<256x576xf32>
    %c0_119 = arith.constant 0 : index
    %c0_120 = arith.constant 0 : index
    %167 = vector.load %arg7[%c0_119, %c0_120] : memref<1x576xf32, #tpu.memory_space<vmem>>, vector<1x576xf32>
    %168 = vector.broadcast %167 : vector<1x576xf32> to vector<256x576xf32>
    %169 = arith.mulf %166, %168 : vector<256x576xf32>
    %cst_121 = arith.constant dense<0.000000e+00> : vector<256xf32>
    %170 = vector.multi_reduction <add>, %169, %cst_121 [1] : vector<256x576xf32> to vector<256xf32>
    %171 = vector.shape_cast %170 : vector<256xf32> to vector<256x1xf32>
    %c0_122 = arith.constant 0 : index
    %c0_123 = arith.constant 0 : index
    %172 = vector.load %arg8[%c0_122, %c0_123] : memref<1x1xf32, #tpu.memory_space<vmem>>, vector<1x1xf32>
    %173 = vector.broadcast %172 : vector<1x1xf32> to vector<256x1xf32>
    %174 = arith.addf %171, %173 : vector<256x1xf32>
    %cst_124 = arith.constant 0.000000e+00 : f32
    %175 = vector.broadcast %cst_124 : f32 to vector<256x1xf32>
    %176 = arith.maximumf %174, %175 : vector<256x1xf32>
    %cst_125 = arith.constant 0.899999976 : f32
    %177 = vector.broadcast %cst_125 : f32 to vector<256x1xf32>
    %178 = arith.mulf %174, %177 : vector<256x1xf32>
    %179 = arith.subf %176, %178 : vector<256x1xf32>
    %180 = math.absf %174 : vector<256x1xf32>
    %cst_126 = arith.constant 0.000000e+00 : f32
    %181 = vector.broadcast %cst_126 : f32 to vector<256x1xf32>
    %182 = arith.subf %181, %180 : vector<256x1xf32>
    %183 = math.exp %182 : vector<256x1xf32>
    %cst_127 = arith.constant 1.000000e+00 : f32
    %184 = vector.broadcast %cst_127 : f32 to vector<256x1xf32>
    %185 = arith.addf %184, %183 : vector<256x1xf32>
    %186 = math.log %185 : vector<256x1xf32>
    %187 = arith.addf %179, %186 : vector<256x1xf32>
    %188 = vector.shape_cast %187 : vector<256x1xf32> to vector<1x256x1xf32>
    %cst_128 = arith.constant dense<0.000000e+00> : vector<1xf32>
    %189 = vector.multi_reduction <add>, %188, %cst_128 [1, 2] : vector<1x256x1xf32> to vector<1xf32>
    %190 = vector.shape_cast %189 : vector<1xf32> to vector<1x1x1xf32>
    %191 = vector.extract %190[0, 0, 0] : f32 from vector<1x1x1xf32>
    %192 = vector.broadcast %191 : f32 to vector<1x1xf32>
    %193 = vector.shape_cast %192 : vector<1x1xf32> to vector<1x1x1xf32>
    %c0_129 = arith.constant 0 : index
    %c0_130 = arith.constant 0 : index
    %c0_131 = arith.constant 0 : index
    %194 = vector.load %arg9[%c0_129, %c0_130, %c0_131] : memref<1x1x1xf32, #tpu.memory_space<vmem>>, vector<1x1x1xf32>
    tpu.vector_store %arg9[%c0_129, %c0_130, %c0_131], %193 {strides = array<i32>} : memref<1x1x1xf32, #tpu.memory_space<vmem>>, vector<1x1x1xf32>,
    return
  }
  func.func @transform_0(%arg0: i32) -> (i32, i32, i32, i32) {
    %c0_i32 = arith.constant 0 : i32
    %c0_i32_0 = arith.constant 0 : i32
    %c0_i32_1 = arith.constant 0 : i32
    %c0_i32_2 = arith.constant 0 : i32
    return %arg0, %c0_i32, %c0_i32_0, %c0_i32_1 : i32, i32, i32, i32
  }
  func.func @transform_1(%arg0: i32) -> (i32, i32, i32) {
    %c0_i32 = arith.constant 0 : i32
    %c0_i32_0 = arith.constant 0 : i32
    %c0_i32_1 = arith.constant 0 : i32
    %c0_i32_2 = arith.constant 0 : i32
    return %c0_i32, %c0_i32_0, %c0_i32_1 : i32, i32, i32
  }
  func.func @transform_2(%arg0: i32) -> (i32, i32, i32) {
    %c0_i32 = arith.constant 0 : i32
    %c0_i32_0 = arith.constant 0 : i32
    %c0_i32_1 = arith.constant 0 : i32
    %c0_i32_2 = arith.constant 0 : i32
    return %c0_i32, %c0_i32_0, %c0_i32_1 : i32, i32, i32
  }
  func.func @transform_3(%arg0: i32) -> (i32, i32, i32) {
    %c0_i32 = arith.constant 0 : i32
    %c0_i32_0 = arith.constant 0 : i32
    %c0_i32_1 = arith.constant 0 : i32
    %c0_i32_2 = arith.constant 0 : i32
    return %c0_i32, %c0_i32_0, %c0_i32_1 : i32, i32, i32
  }
  func.func @transform_4(%arg0: i32) -> (i32, i32, i32) {
    %c0_i32 = arith.constant 0 : i32
    %c0_i32_0 = arith.constant 0 : i32
    %c0_i32_1 = arith.constant 0 : i32
    %c0_i32_2 = arith.constant 0 : i32
    return %c0_i32, %c0_i32_0, %c0_i32_1 : i32, i32, i32
  }
  func.func @transform_5(%arg0: i32) -> (i32, i32) {
    %c0_i32 = arith.constant 0 : i32
    %c0_i32_0 = arith.constant 0 : i32
    %c0_i32_1 = arith.constant 0 : i32
    return %c0_i32, %c0_i32_0 : i32, i32
  }
  func.func @transform_6(%arg0: i32) -> (i32, i32) {
    %c0_i32 = arith.constant 0 : i32
    %c0_i32_0 = arith.constant 0 : i32
    %c0_i32_1 = arith.constant 0 : i32
    return %c0_i32, %c0_i32_0 : i32, i32
  }
  func.func @transform_7(%arg0: i32) -> (i32, i32) {
    %c0_i32 = arith.constant 0 : i32
    %c0_i32_0 = arith.constant 0 : i32
    %c0_i32_1 = arith.constant 0 : i32
    return %c0_i32, %c0_i32_0 : i32, i32
  }
  func.func @transform_8(%arg0: i32) -> (i32, i32, i32) {
    %c0_i32 = arith.constant 0 : i32
    %c0_i32_0 = arith.constant 0 : i32
    %c0_i32_1 = arith.constant 0 : i32
    return %arg0, %c0_i32, %c0_i32_0 : i32, i32, i32
  }
}

</mosaic_0001>

<llo_original>
// kernel: tpu_custom_call.1
$region0: #{tpu_custom_call.1}
  #allocation0 [shape = 'u32[]', space=smem, size = 0x4, offset = 0x4, fixed_abs, tag = 'smem constant byte address 0x4 - core index']
  #allocation1 [shape = 'u32[72,128]{1,0:T(1,128)}', space=vmem, size = 0x9000, scoped, tag = 'internal scratch']
  #allocation2 [shape = 'f32[18,18,64]{2,1,0:T(8,128)}', space=vmem, size = 0x36000, scoped, tag = 'scratch operand']
  #allocation3 [shape = 'f32[256,576]{1,0:T(8,128)}', space=vmem, size = 0xa0000, scoped, tag = 'scratch operand']
  #allocation4 [shape = 'f32[1,1]{1,0:T(1,128)S(1)}', space=vmem, size = 0x200, scoped, tag = 'scoped memory for tpu_custom_call.1']
  %s0 = inlined_call_operand.vmem [shape: f32[2,16,16,64], index: 0, kind: input, shape index: {}]
  %s1 = inlined_call_operand.vmem [shape: f32[2,576,64], index: 1, kind: input, shape index: {}]
  %s2 = inlined_call_operand.vmem [shape: f32[2,1,64], index: 2, kind: input, shape index: {}]
  %s3 = inlined_call_operand.vmem [shape: f32[2,1,64], index: 3, kind: input, shape index: {}]
  %s4 = inlined_call_operand.vmem [shape: f32[2,1,64], index: 4, kind: input, shape index: {}]
  %s5 = inlined_call_operand.vmem [shape: f32[64,64], index: 5, kind: input, shape index: {}]
  %s6 = inlined_call_operand.vmem [shape: f32[1,576], index: 6, kind: input, shape index: {}]
  %s7 = inlined_call_operand.<no memory space> [shape: f32[1,1], index: 7, kind: input, shape index: {}]
  %s8 = inlined_call_operand.vmem [shape: f32[2,1,1], index: 8, kind: output, shape index: {}]
  %s9 = sld [smem:[#allocation0]]
  $region65: #{tpu_custom_call.1} parent=0
    _
  %s11 = ssub.s32 1, %s9
  %s12 = scalar_select 0, %s11, %s9
  %v13 = vstv %s7
  %14 = vst [vmem:[#allocation4] sm:$0x1] %v13
  loop: start=0, step=1, limit=4
  $region2: #{tpu_custom_call.1} parent=0 // loop_pre_header
    _
  $region3: #{tpu_custom_call.1} parent=0 // loop_header
    %s16 = sphi 0, %s20
    %p17 = scmp.ge.s32.totalorder %s16, 4
    %s26 = sphi 0, %s28
    %s29 = sphi 0, %s26
    %s30 = sphi 0, %s29
    %s46 = sphi 0, %s30
    %s50 = sphi 0, %s50
    %s52 = sphi 0, %s50
    %s53 = sphi 0, %s52
    %s67 = sphi 0, %s53
    %s71 = sphi 0, %s71
    %s73 = sphi 0, %s71
    %s74 = sphi 0, %s73
    %s88 = sphi 0, %s74
    %s92 = sphi 0, %s92
    %s94 = sphi 0, %s92
    %s95 = sphi 0, %s94
    %s109 = sphi 0, %s95
    %s113 = sphi 0, %s113
    %s115 = sphi 0, %s113
    %s116 = sphi 0, %s115
    %s130 = sphi 0, %s116
    %s134 = sphi 0, %s134
    %s136 = sphi 0, %s134
    %s137 = sphi 0, %s136
    %s151 = sphi 0, %s137
    %s155 = sphi 0, %s155
    %s157 = sphi 0, %s155
    %s158 = sphi 0, %s157
    %s172 = sphi 0, %s158
    %s176 = sphi 0, %s176
    %s178 = sphi 0, %s176
    %s179 = sphi 0, %s178
    %s193 = sphi 0, %s179
    %s199 = sphi 0, %s201
    %s202 = sphi 0, %s199
    %s203 = sphi 0, %s202
    %s219 = sphi 0, %s203
  $region4: #{tpu_custom_call.1} parent=0 // loop_header_branch
    %19 = sbr.rel (%p17) target = $region8
  $region5: #{tpu_custom_call.1} parent=0 // loop_body
    %s21 = ssub.s32 %s16, 1
    %s22 = ssub.s32 %s16, 2
    %s23 = sadd.s32 %s16, 1
    %s24 = ssub.s32 %s16, %s23
    %p25 = scmp.eq.s32.totalorder %s24, 0
    %s27 = sadd.s32 %s26, 1
    %s28 = scalar_select %p25, %s26, %s27
    %p31 = pneg %p25
    %p32 = scmp.eq.s32.totalorder %s16, 1
    %p33 = por %p31, %p32
    %p34 = scmp.ne.s32.totalorder %s26, %s29
    %p35 = scmp.eq.s32.totalorder %s16, 0
    %p36 = por %p34, %p35
    %p37 = scmp.ne.s32.totalorder %s26, %s29
    %p38 = scmp.eq.s32.totalorder %s21, 1
    %p39 = por %p37, %p38
    %p40 = scmp.ne.s32.totalorder %s29, %s30
    %p41 = scmp.eq.s32.totalorder %s21, 0
    %p42 = por %p40, %p41
    %p43 = scmp.ne.s32.totalorder %s29, %s30
    %p44 = scmp.eq.s32.totalorder %s22, 1
    %p45 = por %p43, %p44
    %p47 = scmp.ne.s32.totalorder %s30, %s46
    %p48 = scmp.eq.s32.totalorder %s22, 0
    %p49 = por %p47, %p48
    %s51 = sadd.s32 %s50, 1
    %p54 = scmp.eq.s32.totalorder %s16, 1
    %p55 = scmp.ne.s32.totalorder %s50, %s52
    %p56 = scmp.eq.s32.totalorder %s16, 0
    %p57 = por %p55, %p56
    %p58 = scmp.ne.s32.totalorder %s50, %s52
    %p59 = scmp.eq.s32.totalorder %s21, 1
    %p60 = por %p58, %p59
    %p61 = scmp.ne.s32.totalorder %s52, %s53
    %p62 = scmp.eq.s32.totalorder %s21, 0
    %p63 = por %p61, %p62
    %p64 = scmp.ne.s32.totalorder %s52, %s53
    %p65 = scmp.eq.s32.totalorder %s22, 1
    %p66 = por %p64, %p65
    %p68 = scmp.ne.s32.totalorder %s53, %s67
    %p69 = scmp.eq.s32.totalorder %s22, 0
    %p70 = por %p68, %p69
    %s72 = sadd.s32 %s71, 1
    %p75 = scmp.eq.s32.totalorder %s16, 1
    %p76 = scmp.ne.s32.totalorder %s71, %s73
    %p77 = scmp.eq.s32.totalorder %s16, 0
    %p78 = por %p76, %p77
    %p79 = scmp.ne.s32.totalorder %s71, %s73
    %p80 = scmp.eq.s32.totalorder %s21, 1
    %p81 = por %p79, %p80
    %p82 = scmp.ne.s32.totalorder %s73, %s74
    %p83 = scmp.eq.s32.totalorder %s21, 0
    %p84 = por %p82, %p83
    %p85 = scmp.ne.s32.totalorder %s73, %s74
    %p86 = scmp.eq.s32.totalorder %s22, 1
    %p87 = por %p85, %p86
    %p89 = scmp.ne.s32.totalorder %s74, %s88
    %p90 = scmp.eq.s32.totalorder %s22, 0
    %p91 = por %p89, %p90
    %s93 = sadd.s32 %s92, 1
    %p96 = scmp.eq.s32.totalorder %s16, 1
    %p97 = scmp.ne.s32.totalorder %s92, %s94
    %p98 = scmp.eq.s32.totalorder %s16, 0
    %p99 = por %p97, %p98
    %p100 = scmp.ne.s32.totalorder %s92, %s94
    %p101 = scmp.eq.s32.totalorder %s21, 1
    %p102 = por %p100, %p101
    %p103 = scmp.ne.s32.totalorder %s94, %s95
    %p104 = scmp.eq.s32.totalorder %s21, 0
    %p105 = por %p103, %p104
    %p106 = scmp.ne.s32.totalorder %s94, %s95
    %p107 = scmp.eq.s32.totalorder %s22, 1
    %p108 = por %p106, %p107
    %p110 = scmp.ne.s32.totalorder %s95, %s109
    %p111 = scmp.eq.s32.totalorder %s22, 0
    %p112 = por %p110, %p111
    %s114 = sadd.s32 %s113, 1
    %p117 = scmp.eq.s32.totalorder %s16, 1
    %p118 = scmp.ne.s32.totalorder %s113, %s115
    %p119 = scmp.eq.s32.totalorder %s16, 0
    %p120 = por %p118, %p119
    %p121 = scmp.ne.s32.totalorder %s113, %s115
    %p122 = scmp.eq.s32.totalorder %s21, 1
    %p123 = por %p121, %p122
    %p124 = scmp.ne.s32.totalorder %s115, %s116
    %p125 = scmp.eq.s32.totalorder %s21, 0
    %p126 = por %p124, %p125
    %p127 = scmp.ne.s32.totalorder %s115, %s116
    %p128 = scmp.eq.s32.totalorder %s22, 1
    %p129 = por %p127, %p128
    %p131 = scmp.ne.s32.totalorder %s116, %s130
    %p132 = scmp.eq.s32.totalorder %s22, 0
    %p133 = por %p131, %p132
    %s135 = sadd.s32 %s134, 1
    %p138 = scmp.eq.s32.totalorder %s16, 1
    %p139 = scmp.ne.s32.totalorder %s134, %s136
    %p140 = scmp.eq.s32.totalorder %s16, 0
    %p141 = por %p139, %p140
    %p142 = scmp.ne.s32.totalorder %s134, %s136
    %p143 = scmp.eq.s32.totalorder %s21, 1
    %p144 = por %p142, %p143
    %p145 = scmp.ne.s32.totalorder %s136, %s137
    %p146 = scmp.eq.s32.totalorder %s21, 0
    %p147 = por %p145, %p146
    %p148 = scmp.ne.s32.totalorder %s136, %s137
    %p149 = scmp.eq.s32.totalorder %s22, 1
    %p150 = por %p148, %p149
    %p152 = scmp.ne.s32.totalorder %s137, %s151
    %p153 = scmp.eq.s32.totalorder %s22, 0
    %p154 = por %p152, %p153
    %s156 = sadd.s32 %s155, 1
    %p159 = scmp.eq.s32.totalorder %s16, 1
    %p160 = scmp.ne.s32.totalorder %s155, %s157
    %p161 = scmp.eq.s32.totalorder %s16, 0
    %p162 = por %p160, %p161
    %p163 = scmp.ne.s32.totalorder %s155, %s157
    %p164 = scmp.eq.s32.totalorder %s21, 1
    %p165 = por %p163, %p164
    %p166 = scmp.ne.s32.totalorder %s157, %s158
    %p167 = scmp.eq.s32.totalorder %s21, 0
    %p168 = por %p166, %p167
    %p169 = scmp.ne.s32.totalorder %s157, %s158
    %p170 = scmp.eq.s32.totalorder %s22, 1
    %p171 = por %p169, %p170
    %p173 = scmp.ne.s32.totalorder %s158, %s172
    %p174 = scmp.eq.s32.totalorder %s22, 0
    %p175 = por %p173, %p174
    %s177 = sadd.s32 %s176, 1
    %p180 = scmp.eq.s32.totalorder %s16, 1
    %p181 = scmp.ne.s32.totalorder %s176, %s178
    %p182 = scmp.eq.s32.totalorder %s16, 0
    %p183 = por %p181, %p182
    %p184 = scmp.ne.s32.totalorder %s176, %s178
    %p185 = scmp.eq.s32.totalorder %s21, 1
    %p186 = por %p184, %p185
    %p187 = scmp.ne.s32.totalorder %s178, %s179
    %p188 = scmp.eq.s32.totalorder %s21, 0
    %p189 = por %p187, %p188
    %p190 = scmp.ne.s32.totalorder %s178, %s179
    %p191 = scmp.eq.s32.totalorder %s22, 1
    %p192 = por %p190, %p191
    %p194 = scmp.ne.s32.totalorder %s179, %s193
    %p195 = scmp.eq.s32.totalorder %s22, 0
    %p196 = por %p194, %p195
    %s197 = ssub.s32 %s16, %s23
    %p198 = scmp.eq.s32.totalorder %s197, 0
    %s200 = sadd.s32 %s199, 1
    %s201 = scalar_select %p198, %s199, %s200
    %p204 = pneg %p198
    %p205 = scmp.eq.s32.totalorder %s16, 1
    %p206 = por %p204, %p205
    %p207 = scmp.ne.s32.totalorder %s199, %s202
    %p208 = scmp.eq.s32.totalorder %s16, 0
    %p209 = por %p207, %p208
    %p210 = scmp.ne.s32.totalorder %s199, %s202
    %p211 = scmp.eq.s32.totalorder %s21, 1
    %p212 = por %p210, %p211
    %p213 = scmp.ne.s32.totalorder %s202, %s203
    %p214 = scmp.eq.s32.totalorder %s21, 0
    %p215 = por %p213, %p214
    %p216 = scmp.ne.s32.totalorder %s202, %s203
    %p217 = scmp.eq.s32.totalorder %s22, 1
    %p218 = por %p216, %p217
    %p220 = scmp.ne.s32.totalorder %s203, %s219
    %p221 = scmp.eq.s32.totalorder %s22, 0
    %p222 = por %p220, %p221
    %p223 = scmp.le.s32.totalorder 1, %s16
    %p224 = scmp.lt.s32.totalorder %s16, 3
    %p225 = pnand %p223, %p224
    %p226 = pneg %p225
    // Predicated region
    $region9: #{tpu_custom_call.1} parent=5 // pred_check
      _
    $region10: #{tpu_custom_call.1} parent=5 // pred_check_branch
      %228 = sbr.rel (%p225) target = $region12
    $region11: #{tpu_custom_call.1} parent=5 // pred_region
      %s229 = ssub.s32 %s16, 1
      // Predicated region
      $region13: #{tpu_custom_call.1} parent=11 // pred_check
        %p230 = pneg %p63
      $region14: #{tpu_custom_call.1} parent=11 // pred_check_branch
        %232 = sbr.rel (%p230) target = $region16
      $region15: #{tpu_custom_call.1} parent=11 // pred_region
        _
      $region16: #{tpu_custom_call.1} parent=11 // pred_fallthru
        _
      // Predicated region
      $region17: #{tpu_custom_call.1} parent=11 // pred_check
        %p233 = pneg %p84
      $region18: #{tpu_custom_call.1} parent=11 // pred_check_branch
        %235 = sbr.rel (%p233) target = $region20
      $region19: #{tpu_custom_call.1} parent=11 // pred_region
        _
      $region20: #{tpu_custom_call.1} parent=11 // pred_fallthru
        _
      // Predicated region
      $region21: #{tpu_custom_call.1} parent=11 // pred_check
        %p236 = pneg %p105
      $region22: #{tpu_custom_call.1} parent=11 // pred_check_branch
        %238 = sbr.rel (%p236) target = $region24
      $region23: #{tpu_custom_call.1} parent=11 // pred_region
        _
      $region24: #{tpu_custom_call.1} parent=11 // pred_fallthru
        _
      // Predicated region
      $region25: #{tpu_custom_call.1} parent=11 // pred_check
        %p239 = pneg %p126
      $region26: #{tpu_custom_call.1} parent=11 // pred_check_branch
        %241 = sbr.rel (%p239) target = $region28
      $region27: #{tpu_custom_call.1} parent=11 // pred_region
        _
      $region28: #{tpu_custom_call.1} parent=11 // pred_fallthru
        _
      // Predicated region
      $region29: #{tpu_custom_call.1} parent=11 // pred_check
        %p242 = pneg %p147
      $region30: #{tpu_custom_call.1} parent=11 // pred_check_branch
        %244 = sbr.rel (%p242) target = $region32
      $region31: #{tpu_custom_call.1} parent=11 // pred_region
        _
      $region32: #{tpu_custom_call.1} parent=11 // pred_fallthru
        _
      // Predicated region
      $region33: #{tpu_custom_call.1} parent=11 // pred_check
        %p245 = pneg %p168
      $region34: #{tpu_custom_call.1} parent=11 // pred_check_branch
        %247 = sbr.rel (%p245) target = $region36
      $region35: #{tpu_custom_call.1} parent=11 // pred_region
        _
      $region36: #{tpu_custom_call.1} parent=11 // pred_fallthru
        _
      // Predicated region
      $region37: #{tpu_custom_call.1} parent=11 // pred_check
        %p248 = pneg %p189
      $region38: #{tpu_custom_call.1} parent=11 // pred_check_branch
        %250 = sbr.rel (%p248) target = $region40
      $region39: #{tpu_custom_call.1} parent=11 // pred_region
        _
      $region40: #{tpu_custom_call.1} parent=11 // pred_fallthru
        _
    $region12: #{tpu_custom_call.1} parent=5 // pred_fallthru
      _
    %p251 = scmp.lt.s32.totalorder %s16, 2
    // Predicated region
    $region41: #{tpu_custom_call.1} parent=5 // pred_check
      %p252 = pneg %p251
    $region42: #{tpu_custom_call.1} parent=5 // pred_check_branch
      %254 = sbr.rel (%p252) target = $region44
    $region43: #{tpu_custom_call.1} parent=5 // pred_region
      // Predicated region
      $region45: #{tpu_custom_call.1} parent=43 // pred_check
        %p255 = pneg %p36
      $region46: #{tpu_custom_call.1} parent=43 // pred_check_branch
        %257 = sbr.rel (%p255) target = $region48
      $region47: #{tpu_custom_call.1} parent=43 // pred_region
        %p258 = scmp.lt.s32.totalorder %s16, 1
        %s259 = scalar_select %p258, %s16, 1
        %s260 = smul.addr %s259, 32
        %s261 = smul.addr %s260, 8
        %s262 = scalar_lea.vmem %s0, %s261
      $region48: #{tpu_custom_call.1} parent=43 // pred_fallthru
        _
    $region44: #{tpu_custom_call.1} parent=5 // pred_fallthru
      _
    %p263 = scmp.le.s32.totalorder 1, %s16
    %p264 = scmp.lt.s32.totalorder %s16, 3
    %p265 = pnand %p263, %p264
    %p266 = pneg %p265
    // Predicated region
    $region49: #{tpu_custom_call.1} parent=5 // pred_check
      _
    $region50: #{tpu_custom_call.1} parent=5 // pred_check_branch
      %268 = sbr.rel (%p265) target = $region52
    $region51: #{tpu_custom_call.1} parent=5 // pred_region
      %s269 = ssub.s32 %s16, 1
      %p270 = scmp.lt.s32.totalorder %s21, 1
      %s271 = scalar_select %p270, %s21, 1
      %s272 = smul.addr %s271, 32
      %s273 = smul.addr %s272, 8
      %s274 = scalar_lea.vmem %s0, %s273
      %p275 = pneg %p42
      %p276 = pneg %p39
      %p277 = pneg %p63
      %p278 = pneg %p60
      %p279 = pneg %p84
      %p280 = pneg %p81
      %p281 = pneg %p105
      %p282 = pneg %p102
      %p283 = pneg %p126
      %p284 = pneg %p123
      %p285 = pneg %p147
      %p286 = pneg %p144
      %p287 = pneg %p168
      %p288 = pneg %p165
      %p289 = pneg %p189
      %p290 = pneg %p186
      %p291 = pneg %p215
      %p292 = pneg %p212
      %p293 = scmp.lt.s32.totalorder %s21, 1
      %s294 = scalar_select %p293, %s21, 1
      %s295 = scalar_lea.vmem %s8, %s294
      %p296 = scmp.lt.s32.totalorder %s21, 1
      %s297 = scalar_select %p296, %s21, 1
      %s298 = smul.addr %s297, 32
      %s299 = smul.addr %s298, 8
      %s300 = scalar_lea.vmem %s0, %s299
      %p301 = scmp.lt.s32.totalorder %s21, 1
      %s302 = scalar_select %p301, %s21, 1
      %s303 = scalar_lea.vmem %s8, %s302
      %vm304 = vcmask 523264
      %305 = vst.msk [vmem:[#allocation2] sm:$0xff] %vm304, 0.0
      %306 = vst.msk [vmem:[#allocation2 + $0x8] sm:$0xff] %vm304, 0.0
      %vm307 = vcmask 517120
      %308 = vst.msk [vmem:[#allocation2 + $0x10] sm:$0x3] %vm307, 0.0
      %309 = vst.msk [vmem:[#allocation2 + $0x18] sm:$0xff] %vm304, 0.0
      %310 = vst.msk [vmem:[#allocation2 + $0x20] sm:$0xff] %vm304, 0.0
      %311 = vst.msk [vmem:[#allocation2 + $0x28] sm:$0x3] %vm307, 0.0
      %312 = vst.msk [vmem:[#allocation2 + $0x30] sm:$0xff] %vm304, 0.0
      %313 = vst.msk [vmem:[#allocation2 + $0x38] sm:$0xff] %vm304, 0.0
      %314 = vst.msk [vmem:[#allocation2 + $0x40] sm:$0x3] %vm307, 0.0
      %315 = vst.msk [vmem:[#allocation2 + $0x48] sm:$0xff] %vm304, 0.0
      %316 = vst.msk [vmem:[#allocation2 + $0x50] sm:$0xff] %vm304, 0.0
      %317 = vst.msk [vmem:[#allocation2 + $0x58] sm:$0x3] %vm307, 0.0
      %318 = vst.msk [vmem:[#allocation2 + $0x60] sm:$0xff] %vm304, 0.0
      %319 = vst.msk [vmem:[#allocation2 + $0x68] sm:$0xff] %vm304, 0.0
      %320 = vst.msk [vmem:[#allocation2 + $0x70] sm:$0x3] %vm307, 0.0
      %321 = vst.msk [vmem:[#allocation2 + $0x78] sm:$0xff] %vm304, 0.0
      %322 = vst.msk [vmem:[#allocation2 + $0x80] sm:$0xff] %vm304, 0.0
      %323 = vst.msk [vmem:[#allocation2 + $0x88] sm:$0x3] %vm307, 0.0
      %324 = vst.msk [vmem:[#allocation2 + $0x90] sm:$0xff] %vm304, 0.0
      %325 = vst.msk [vmem:[#allocation2 + $0x98] sm:$0xff] %vm304, 0.0
      %326 = vst.msk [vmem:[#allocation2 + $0xa0] sm:$0x3] %vm307, 0.0
      %327 = vst.msk [vmem:[#allocation2 + $0xa8] sm:$0xff] %vm304, 0.0
      %328 = vst.msk [vmem:[#allocation2 + $0xb0] sm:$0xff] %vm304, 0.0
      %329 = vst.msk [vmem:[#allocation2 + $0xb8] sm:$0x3] %vm307, 0.0
      %330 = vst.msk [vmem:[#allocation2 + $0xc0] sm:$0xff] %vm304, 0.0
      %331 = vst.msk [vmem:[#allocation2 + $0xc8] sm:$0xff] %vm304, 0.0
      %332 = vst.msk [vmem:[#allocation2 + $0xd0] sm:$0x3] %vm307, 0.0
      %333 = vst.msk [vmem:[#allocation2 + $0xd8] sm:$0xff] %vm304, 0.0
      %334 = vst.msk [vmem:[#allocation2 + $0xe0] sm:$0xff] %vm304, 0.0
      %335 = vst.msk [vmem:[#allocation2 + $0xe8] sm:$0x3] %vm307, 0.0
      %336 = vst.msk [vmem:[#allocation2 + $0xf0] sm:$0xff] %vm304, 0.0
      %337 = vst.msk [vmem:[#allocation2 + $0xf8] sm:$0xff] %vm304, 0.0
      %338 = vst.msk [vmem:[#allocation2 + $0x100] sm:$0x3] %vm307, 0.0
      %339 = vst.msk [vmem:[#allocation2 + $0x108] sm:$0xff] %vm304, 0.0
      %340 = vst.msk [vmem:[#allocation2 + $0x110] sm:$0xff] %vm304, 0.0
      %341 = vst.msk [vmem:[#allocation2 + $0x118] sm:$0x3] %vm307, 0.0
      %342 = vst.msk [vmem:[#allocation2 + $0x120] sm:$0xff] %vm304, 0.0
      %343 = vst.msk [vmem:[#allocation2 + $0x128] sm:$0xff] %vm304, 0.0
      %344 = vst.msk [vmem:[#allocation2 + $0x130] sm:$0x3] %vm307, 0.0
      %345 = vst.msk [vmem:[#allocation2 + $0x138] sm:$0xff] %vm304, 0.0
      %346 = vst.msk [vmem:[#allocation2 + $0x140] sm:$0xff] %vm304, 0.0
      %347 = vst.msk [vmem:[#allocation2 + $0x148] sm:$0x3] %vm307, 0.0
      %348 = vst.msk [vmem:[#allocation2 + $0x150] sm:$0xff] %vm304, 0.0
      %349 = vst.msk [vmem:[#allocation2 + $0x158] sm:$0xff] %vm304, 0.0
      %350 = vst.msk [vmem:[#allocation2 + $0x160] sm:$0x3] %vm307, 0.0
      %351 = vst.msk [vmem:[#allocation2 + $0x168] sm:$0xff] %vm304, 0.0
      %352 = vst.msk [vmem:[#allocation2 + $0x170] sm:$0xff] %vm304, 0.0
      %353 = vst.msk [vmem:[#allocation2 + $0x178] sm:$0x3] %vm307, 0.0
      %354 = vst.msk [vmem:[#allocation2 + $0x180] sm:$0xff] %vm304, 0.0
      %355 = vst.msk [vmem:[#allocation2 + $0x188] sm:$0xff] %vm304, 0.0
      %356 = vst.msk [vmem:[#allocation2 + $0x190] sm:$0x3] %vm307, 0.0
      %357 = vst.msk [vmem:[#allocation2 + $0x198] sm:$0xff] %vm304, 0.0
      %358 = vst.msk [vmem:[#allocation2 + $0x1a0] sm:$0xff] %vm304, 0.0
      %359 = vst.msk [vmem:[#allocation2 + $0x1a8] sm:$0x3] %vm307, 0.0
      %v360 = vld [vmem:[%s5] sm:$0xff]
      %v361 = vld [vmem:[%s5 + $0x8] sm:$0xff]
      %v362 = vld [vmem:[%s5 + $0x10] sm:$0xff]
      %v363 = vld [vmem:[%s5 + $0x18] sm:$0xff]
      %v364 = vld [vmem:[%s5 + $0x20] sm:$0xff]
      %v365 = vld [vmem:[%s5 + $0x28] sm:$0xff]
      %v366 = vld [vmem:[%s5 + $0x30] sm:$0xff]
      %v367 = vld [vmem:[%s5 + $0x38] sm:$0xff]
      %v368 = vld [vmem:[%s300] sm:$0xff]
      %v369 = vld [vmem:[%s300 + $0x8] sm:$0xff]
      %v370 = vld [vmem:[%s300 + $0x10] sm:$0xff]
      %v371 = vld [vmem:[%s300 + $0x18] sm:$0xff]
      %v372 = vld [vmem:[%s300 + $0x20] sm:$0xff]
      %v373 = vld [vmem:[%s300 + $0x28] sm:$0xff]
      %v374 = vld [vmem:[%s300 + $0x30] sm:$0xff]
      %v375 = vld [vmem:[%s300 + $0x38] sm:$0xff]
      %v376 = vld [vmem:[%s300 + $0x40] sm:$0xff]
      %v377 = vld [vmem:[%s300 + $0x48] sm:$0xff]
      %v378 = vld [vmem:[%s300 + $0x50] sm:$0xff]
      %v379 = vld [vmem:[%s300 + $0x58] sm:$0xff]
      %v380 = vld [vmem:[%s300 + $0x60] sm:$0xff]
      %v381 = vld [vmem:[%s300 + $0x68] sm:$0xff]
      %v382 = vld [vmem:[%s300 + $0x70] sm:$0xff]
      %v383 = vld [vmem:[%s300 + $0x78] sm:$0xff]
      %v384 = vld [vmem:[%s300 + $0x80] sm:$0xff]
      %v385 = vld [vmem:[%s300 + $0x88] sm:$0xff]
      %v386 = vld [vmem:[%s300 + $0x90] sm:$0xff]
      %v387 = vld [vmem:[%s300 + $0x98] sm:$0xff]
      %v388 = vld [vmem:[%s300 + $0xa0] sm:$0xff]
      %v389 = vld [vmem:[%s300 + $0xa8] sm:$0xff]
      %v390 = vld [vmem:[%s300 + $0xb0] sm:$0xff]
      %v391 = vld [vmem:[%s300 + $0xb8] sm:$0xff]
      %v392 = vld [vmem:[%s300 + $0xc0] sm:$0xff]
      %v393 = vld [vmem:[%s300 + $0xc8] sm:$0xff]
      %v394 = vld [vmem:[%s300 + $0xd0] sm:$0xff]
      %v395 = vld [vmem:[%s300 + $0xd8] sm:$0xff]
      %v396 = vld [vmem:[%s300 + $0xe0] sm:$0xff]
      %v397 = vld [vmem:[%s300 + $0xe8] sm:$0xff]
      %v398 = vld [vmem:[%s300 + $0xf0] sm:$0xff]
      %v399 = vld [vmem:[%s300 + $0xf8] sm:$0xff]
      %s400 = scalar_lea.vmem [#allocation2], 24
      %401 = vst.msk [vmem:[%s400 + $0x1] sm:$0xff] %vm304, %v368
      %402 = vst.msk [vmem:[%s400 + $0x9] sm:$0xff] %vm304, %v369
      %403 = vst.msk [vmem:[%s400 + $0x19] sm:$0xff] %vm304, %v370
      %404 = vst.msk [vmem:[%s400 + $0x21] sm:$0xff] %vm304, %v371
      %405 = vst.msk [vmem:[%s400 + $0x31] sm:$0xff] %vm304, %v372
      %406 = vst.msk [vmem:[%s400 + $0x39] sm:$0xff] %vm304, %v373
      %407 = vst.msk [vmem:[%s400 + $0x49] sm:$0xff] %vm304, %v374
      %408 = vst.msk [vmem:[%s400 + $0x51] sm:$0xff] %vm304, %v375
      %409 = vst.msk [vmem:[%s400 + $0x61] sm:$0xff] %vm304, %v376
      %410 = vst.msk [vmem:[%s400 + $0x69] sm:$0xff] %vm304, %v377
      %411 = vst.msk [vmem:[%s400 + $0x79] sm:$0xff] %vm304, %v378
      %412 = vst.msk [vmem:[%s400 + $0x81] sm:$0xff] %vm304, %v379
      %413 = vst.msk [vmem:[%s400 + $0x91] sm:$0xff] %vm304, %v380
      %414 = vst.msk [vmem:[%s400 + $0x99] sm:$0xff] %vm304, %v381
      %415 = vst.msk [vmem:[%s400 + $0xa9] sm:$0xff] %vm304, %v382
      %416 = vst.msk [vmem:[%s400 + $0xb1] sm:$0xff] %vm304, %v383
      %417 = vst.msk [vmem:[%s400 + $0xc1] sm:$0xff] %vm304, %v384
      %418 = vst.msk [vmem:[%s400 + $0xc9] sm:$0xff] %vm304, %v385
      %419 = vst.msk [vmem:[%s400 + $0xd9] sm:$0xff] %vm304, %v386
      %420 = vst.msk [vmem:[%s400 + $0xe1] sm:$0xff] %vm304, %v387
      %421 = vst.msk [vmem:[%s400 + $0xf1] sm:$0xff] %vm304, %v388
      %422 = vst.msk [vmem:[%s400 + $0xf9] sm:$0xff] %vm304, %v389
      %423 = vst.msk [vmem:[%s400 + $0x109] sm:$0xff] %vm304, %v390
      %424 = vst.msk [vmem:[%s400 + $0x111] sm:$0xff] %vm304, %v391
      %425 = vst.msk [vmem:[%s400 + $0x121] sm:$0xff] %vm304, %v392
      %426 = vst.msk [vmem:[%s400 + $0x129] sm:$0xff] %vm304, %v393
      %427 = vst.msk [vmem:[%s400 + $0x139] sm:$0xff] %vm304, %v394
      %428 = vst.msk [vmem:[%s400 + $0x141] sm:$0xff] %vm304, %v395
      %429 = vst.msk [vmem:[%s400 + $0x151] sm:$0xff] %vm304, %v396
      %430 = vst.msk [vmem:[%s400 + $0x159] sm:$0xff] %vm304, %v397
      %431 = vst.msk [vmem:[%s400 + $0x169] sm:$0xff] %vm304, %v398
      %432 = vst.msk [vmem:[%s400 + $0x171] sm:$0xff] %vm304, %v399
      %v433 = vld [vmem:[#allocation2] sm:$0xff]
      %v434 = vld [vmem:[#allocation2 + $0x8] sm:$0xff]
      %v435 = vld [vmem:[#allocation2 + $0x10] sm:$0x3]
      %v436 = vld [vmem:[#allocation2 + $0x18] sm:$0xff]
      %v437 = vld [vmem:[#allocation2 + $0x20] sm:$0xff]
      %v438 = vld [vmem:[#allocation2 + $0x28] sm:$0x3]
      %v439 = vld [vmem:[#allocation2 + $0x30] sm:$0xff]
      %v440 = vld [vmem:[#allocation2 + $0x38] sm:$0xff]
      %v441 = vld [vmem:[#allocation2 + $0x40] sm:$0x3]
      %v442 = vld [vmem:[#allocation2 + $0x48] sm:$0xff]
      %v443 = vld [vmem:[#allocation2 + $0x50] sm:$0xff]
      %v444 = vld [vmem:[#allocation2 + $0x58] sm:$0x3]
      %v445 = vld [vmem:[#allocation2 + $0x60] sm:$0xff]
      %v446 = vld [vmem:[#allocation2 + $0x68] sm:$0xff]
      %v447 = vld [vmem:[#allocation2 + $0x70] sm:$0x3]
      %v448 = vld [vmem:[#allocation2 + $0x78] sm:$0xff]
      %v449 = vld [vmem:[#allocation2 + $0x80] sm:$0xff]
      %v450 = vld [vmem:[#allocation2 + $0x88] sm:$0x3]
      %v451 = vld [vmem:[#allocation2 + $0x90] sm:$0xff]
      %v452 = vld [vmem:[#allocation2 + $0x98] sm:$0xff]
      %v453 = vld [vmem:[#allocation2 + $0xa0] sm:$0x3]
      %v454 = vld [vmem:[#allocation2 + $0xa8] sm:$0xff]
      %v455 = vld [vmem:[#allocation2 + $0xb0] sm:$0xff]
      %v456 = vld [vmem:[#allocation2 + $0xb8] sm:$0x3]
      %v457 = vld [vmem:[#allocation2 + $0xc0] sm:$0xff]
      %v458 = vld [vmem:[#allocation2 + $0xc8] sm:$0xff]
      %v459 = vld [vmem:[#allocation2 + $0xd0] sm:$0x3]
      %v460 = vld [vmem:[#allocation2 + $0xd8] sm:$0xff]
      %v461 = vld [vmem:[#allocation2 + $0xe0] sm:$0xff]
      %v462 = vld [vmem:[#allocation2 + $0xe8] sm:$0x3]
      %v463 = vld [vmem:[#allocation2 + $0xf0] sm:$0xff]
      %v464 = vld [vmem:[#allocation2 + $0xf8] sm:$0xff]
      %v465 = vld [vmem:[#allocation2 + $0x100] sm:$0x3]
      %v466 = vld [vmem:[#allocation2 + $0x108] sm:$0xff]
      %v467 = vld [vmem:[#allocation2 + $0x110] sm:$0xff]
      %v468 = vld [vmem:[#allocation2 + $0x118] sm:$0x3]
      %v469 = vld [vmem:[#allocation2 + $0x120] sm:$0xff]
      %v470 = vld [vmem:[#allocation2 + $0x128] sm:$0xff]
      %v471 = vld [vmem:[#allocation2 + $0x130] sm:$0x3]
      %v472 = vld [vmem:[#allocation2 + $0x138] sm:$0xff]
      %v473 = vld [vmem:[#allocation2 + $0x140] sm:$0xff]
      %v474 = vld [vmem:[#allocation2 + $0x148] sm:$0x3]
      %v475 = vld [vmem:[#allocation2 + $0x150] sm:$0xff]
      %v476 = vld [vmem:[#allocation2 + $0x158] sm:$0xff]
      %v477 = vld [vmem:[#allocation2 + $0x160] sm:$0x3]
      %v478 = vld [vmem:[#allocation2 + $0x168] sm:$0xff]
      %v479 = vld [vmem:[#allocation2 + $0x170] sm:$0xff]
      %v480 = vld [vmem:[#allocation2 + $0x178] sm:$0x3]
      %v481 = vld [vmem:[#allocation2 + $0x180] sm:$0xff]
      %v482 = vld [vmem:[#allocation2 + $0x188] sm:$0xff]
      %v483 = vld [vmem:[#allocation2 + $0x190] sm:$0x3]
      %v484 = vld [vmem:[#allocation2 + $0x198] sm:$0xff]
      %v485 = vld [vmem:[#allocation2 + $0x1a0] sm:$0xff]
      %v486 = vld [vmem:[#allocation2 + $0x1a8] sm:$0x3]
      %487 = vst.msk [vmem:[#allocation3] sm:$0xff] %vm304, %v433
      %488 = vst.msk [vmem:[#allocation3 + $0x28] sm:$0xff] %vm304, %v434
      %489 = vst.msk [vmem:[#allocation3 + $0x50] sm:$0xff] %vm304, %v436
      %490 = vst.msk [vmem:[#allocation3 + $0x78] sm:$0xff] %vm304, %v437
      %491 = vst.msk [vmem:[#allocation3 + $0xa0] sm:$0xff] %vm304, %v439
      %492 = vst.msk [vmem:[#allocation3 + $0xc8] sm:$0xff] %vm304, %v440
      %493 = vst.msk [vmem:[#allocation3 + $0xf0] sm:$0xff] %vm304, %v442
      %494 = vst.msk [vmem:[#allocation3 + $0x118] sm:$0xff] %vm304, %v443
      %495 = vst.msk [vmem:[#allocation3 + $0x140] sm:$0xff] %vm304, %v445
      %496 = vst.msk [vmem:[#allocation3 + $0x168] sm:$0xff] %vm304, %v446
      %497 = vst.msk [vmem:[#allocation3 + $0x190] sm:$0xff] %vm304, %v448
      %498 = vst.msk [vmem:[#allocation3 + $0x1b8] sm:$0xff] %vm304, %v449
      %499 = vst.msk [vmem:[#allocation3 + $0x1e0] sm:$0xff] %vm304, %v451
      %500 = vst.msk [vmem:[#allocation3 + $0x208] sm:$0xff] %vm304, %v452
      %501 = vst.msk [vmem:[#allocation3 + $0x230] sm:$0xff] %vm304, %v454
      %502 = vst.msk [vmem:[#allocation3 + $0x258] sm:$0xff] %vm304, %v455
      %503 = vst.msk [vmem:[#allocation3 + $0x280] sm:$0xff] %vm304, %v457
      %504 = vst.msk [vmem:[#allocation3 + $0x2a8] sm:$0xff] %vm304, %v458
      %505 = vst.msk [vmem:[#allocation3 + $0x2d0] sm:$0xff] %vm304, %v460
      %506 = vst.msk [vmem:[#allocation3 + $0x2f8] sm:$0xff] %vm304, %v461
      %507 = vst.msk [vmem:[#allocation3 + $0x320] sm:$0xff] %vm304, %v463
      %508 = vst.msk [vmem:[#allocation3 + $0x348] sm:$0xff] %vm304, %v464
      %509 = vst.msk [vmem:[#allocation3 + $0x370] sm:$0xff] %vm304, %v466
      %510 = vst.msk [vmem:[#allocation3 + $0x398] sm:$0xff] %vm304, %v467
      %511 = vst.msk [vmem:[#allocation3 + $0x3c0] sm:$0xff] %vm304, %v469
      %512 = vst.msk [vmem:[#allocation3 + $0x3e8] sm:$0xff] %vm304, %v470
      %513 = vst.msk [vmem:[#allocation3 + $0x410] sm:$0xff] %vm304, %v472
      %514 = vst.msk [vmem:[#allocation3 + $0x438] sm:$0xff] %vm304, %v473
      %515 = vst.msk [vmem:[#allocation3 + $0x460] sm:$0xff] %vm304, %v475
      %516 = vst.msk [vmem:[#allocation3 + $0x488] sm:$0xff] %vm304, %v476
      %517 = vst.msk [vmem:[#allocation3 + $0x4b0] sm:$0xff] %vm304, %v478
      %518 = vst.msk [vmem:[#allocation3 + $0x4d8] sm:$0xff] %vm304, %v479
      %vm567 = vcmask 1046528
      %v568 = vrot.slane %v433, 1
      %v569 = vrot.slane %v434, 1
      %v570 = vsel %vm567, %v568, %v569
      %v571 = vrot.slane %v435, 1
      %v572 = vsel %vm567, %v569, %v571
      %v573 = vrot.slane %v436, 1
      %v574 = vrot.slane %v437, 1
      %v575 = vsel %vm567, %v573, %v574
      %v576 = vrot.slane %v438, 1
      %v577 = vsel %vm567, %v574, %v576
      %v578 = vrot.slane %v439, 1
      %v579 = vrot.slane %v440, 1
      %v580 = vsel %vm567, %v578, %v579
      %v581 = vrot.slane %v441, 1
      %v582 = vsel %vm567, %v579, %v581
      %v583 = vrot.slane %v442, 1
      %v584 = vrot.slane %v443, 1
      %v585 = vsel %vm567, %v583, %v584
      %v586 = vrot.slane %v444, 1
      %v587 = vsel %vm567, %v584, %v586
      %v588 = vrot.slane %v445, 1
      %v589 = vrot.slane %v446, 1
      %v590 = vsel %vm567, %v588, %v589
      %v591 = vrot.slane %v447, 1
      %v592 = vsel %vm567, %v589, %v591
      %v593 = vrot.slane %v448, 1
      %v594 = vrot.slane %v449, 1
      %v595 = vsel %vm567, %v593, %v594
      %v596 = vrot.slane %v450, 1
      %v597 = vsel %vm567, %v594, %v596
      %v598 = vrot.slane %v451, 1
      %v599 = vrot.slane %v452, 1
      %v600 = vsel %vm567, %v598, %v599
      %v601 = vrot.slane %v453, 1
      %v602 = vsel %vm567, %v599, %v601
      %v603 = vrot.slane %v454, 1
      %v604 = vrot.slane %v455, 1
      %v605 = vsel %vm567, %v603, %v604
      %v606 = vrot.slane %v456, 1
      %v607 = vsel %vm567, %v604, %v606
      %v608 = vrot.slane %v457, 1
      %v609 = vrot.slane %v458, 1
      %v610 = vsel %vm567, %v608, %v609
      %v611 = vrot.slane %v459, 1
      %v612 = vsel %vm567, %v609, %v611
      %v613 = vrot.slane %v460, 1
      %v614 = vrot.slane %v461, 1
      %v615 = vsel %vm567, %v613, %v614
      %v616 = vrot.slane %v462, 1
      %v617 = vsel %vm567, %v614, %v616
      %v618 = vrot.slane %v463, 1
      %v619 = vrot.slane %v464, 1
      %v620 = vsel %vm567, %v618, %v619
      %v621 = vrot.slane %v465, 1
      %v622 = vsel %vm567, %v619, %v621
      %v623 = vrot.slane %v466, 1
      %v624 = vrot.slane %v467, 1
      %v625 = vsel %vm567, %v623, %v624
      %v626 = vrot.slane %v468, 1
      %v627 = vsel %vm567, %v624, %v626
      %v628 = vrot.slane %v469, 1
      %v629 = vrot.slane %v470, 1
      %v630 = vsel %vm567, %v628, %v629
      %v631 = vrot.slane %v471, 1
      %v632 = vsel %vm567, %v629, %v631
      %v633 = vrot.slane %v472, 1
      %v634 = vrot.slane %v473, 1
      %v635 = vsel %vm567, %v633, %v634
      %v636 = vrot.slane %v474, 1
      %v637 = vsel %vm567, %v634, %v636
      %v638 = vrot.slane %v475, 1
      %v639 = vrot.slane %v476, 1
      %v640 = vsel %vm567, %v638, %v639
      %v641 = vrot.slane %v477, 1
      %v642 = vsel %vm567, %v639, %v641
      %v643 = vrot.slane %v478, 1
      %v644 = vrot.slane %v479, 1
      %v645 = vsel %vm567, %v643, %v644
      %v646 = vrot.slane %v480, 1
      %v647 = vsel %vm567, %v644, %v646
      %648 = vrot.lane.b32.xlu0 %v570, 64
      %v649 = vpop.permute.xlu0 %648
      %650 = vrot.lane.b32.xlu0 %v572, 64
      %v651 = vpop.permute.xlu0 %650
      %652 = vrot.lane.b32.xlu0 %v575, 64
      %v653 = vpop.permute.xlu0 %652
      %654 = vrot.lane.b32.xlu0 %v577, 64
      %v655 = vpop.permute.xlu0 %654
      %656 = vrot.lane.b32.xlu0 %v580, 64
      %v657 = vpop.permute.xlu0 %656
      %658 = vrot.lane.b32.xlu0 %v582, 64
      %v659 = vpop.permute.xlu0 %658
      %660 = vrot.lane.b32.xlu0 %v585, 64
      %v661 = vpop.permute.xlu0 %660
      %662 = vrot.lane.b32.xlu0 %v587, 64
      %v663 = vpop.permute.xlu0 %662
      %664 = vrot.lane.b32.xlu0 %v590, 64
      %v665 = vpop.permute.xlu0 %664
      %666 = vrot.lane.b32.xlu0 %v592, 64
      %v667 = vpop.permute.xlu0 %666
      %668 = vrot.lane.b32.xlu0 %v595, 64
      %v669 = vpop.permute.xlu0 %668
      %670 = vrot.lane.b32.xlu0 %v597, 64
      %v671 = vpop.permute.xlu0 %670
      %672 = vrot.lane.b32.xlu0 %v600, 64
      %v673 = vpop.permute.xlu0 %672
      %674 = vrot.lane.b32.xlu0 %v602, 64
      %v675 = vpop.permute.xlu0 %674
      %676 = vrot.lane.b32.xlu0 %v605, 64
      %v677 = vpop.permute.xlu0 %676
      %678 = vrot.lane.b32.xlu0 %v607, 64
      %v679 = vpop.permute.xlu0 %678
      %680 = vrot.lane.b32.xlu0 %v610, 64
      %v681 = vpop.permute.xlu0 %680
      %682 = vrot.lane.b32.xlu0 %v612, 64
      %v683 = vpop.permute.xlu0 %682
      %684 = vrot.lane.b32.xlu0 %v615, 64
      %v685 = vpop.permute.xlu0 %684
      %686 = vrot.lane.b32.xlu0 %v617, 64
      %v687 = vpop.permute.xlu0 %686
      %688 = vrot.lane.b32.xlu0 %v620, 64
      %v689 = vpop.permute.xlu0 %688
      %690 = vrot.lane.b32.xlu0 %v622, 64
      %v691 = vpop.permute.xlu0 %690
      %692 = vrot.lane.b32.xlu0 %v625, 64
      %v693 = vpop.permute.xlu0 %692
      %694 = vrot.lane.b32.xlu0 %v627, 64
      %v695 = vpop.permute.xlu0 %694
      %696 = vrot.lane.b32.xlu0 %v630, 64
      %v697 = vpop.permute.xlu0 %696
      %698 = vrot.lane.b32.xlu0 %v632, 64
      %v699 = vpop.permute.xlu0 %698
      %700 = vrot.lane.b32.xlu0 %v635, 64
      %v701 = vpop.permute.xlu0 %700
      %702 = vrot.lane.b32.xlu0 %v637, 64
      %v703 = vpop.permute.xlu0 %702
      %704 = vrot.lane.b32.xlu0 %v640, 64
      %v705 = vpop.permute.xlu0 %704
      %706 = vrot.lane.b32.xlu0 %v642, 64
      %v707 = vpop.permute.xlu0 %706
      %708 = vrot.lane.b32.xlu0 %v645, 64
      %v709 = vpop.permute.xlu0 %708
      %710 = vrot.lane.b32.xlu0 %v647, 64
      %v711 = vpop.permute.xlu0 %710
      %vm744 = vcmask 1048064
      %745 = vst.msk [vmem:[#allocation3] sm:$0xff] %vm744, %v649
      %746 = vst.msk [vmem:[#allocation3 + $0x28] sm:$0xff] %vm744, %v651
      %747 = vst.msk [vmem:[#allocation3 + $0x50] sm:$0xff] %vm744, %v653
      %748 = vst.msk [vmem:[#allocation3 + $0x78] sm:$0xff] %vm744, %v655
      %749 = vst.msk [vmem:[#allocation3 + $0xa0] sm:$0xff] %vm744, %v657
      %750 = vst.msk [vmem:[#allocation3 + $0xc8] sm:$0xff] %vm744, %v659
      %751 = vst.msk [vmem:[#allocation3 + $0xf0] sm:$0xff] %vm744, %v661
      %752 = vst.msk [vmem:[#allocation3 + $0x118] sm:$0xff] %vm744, %v663
      %753 = vst.msk [vmem:[#allocation3 + $0x140] sm:$0xff] %vm744, %v665
      %754 = vst.msk [vmem:[#allocation3 + $0x168] sm:$0xff] %vm744, %v667
      %755 = vst.msk [vmem:[#allocation3 + $0x190] sm:$0xff] %vm744, %v669
      %756 = vst.msk [vmem:[#allocation3 + $0x1b8] sm:$0xff] %vm744, %v671
      %757 = vst.msk [vmem:[#allocation3 + $0x1e0] sm:$0xff] %vm744, %v673
      %758 = vst.msk [vmem:[#allocation3 + $0x208] sm:$0xff] %vm744, %v675
      %759 = vst.msk [vmem:[#allocation3 + $0x230] sm:$0xff] %vm744, %v677
      %760 = vst.msk [vmem:[#allocation3 + $0x258] sm:$0xff] %vm744, %v679
      %761 = vst.msk [vmem:[#allocation3 + $0x280] sm:$0xff] %vm744, %v681
      %762 = vst.msk [vmem:[#allocation3 + $0x2a8] sm:$0xff] %vm744, %v683
      %763 = vst.msk [vmem:[#allocation3 + $0x2d0] sm:$0xff] %vm744, %v685
      %764 = vst.msk [vmem:[#allocation3 + $0x2f8] sm:$0xff] %vm744, %v687
      %765 = vst.msk [vmem:[#allocation3 + $0x320] sm:$0xff] %vm744, %v689
      %766 = vst.msk [vmem:[#allocation3 + $0x348] sm:$0xff] %vm744, %v691
      %767 = vst.msk [vmem:[#allocation3 + $0x370] sm:$0xff] %vm744, %v693
      %768 = vst.msk [vmem:[#allocation3 + $0x398] sm:$0xff] %vm744, %v695
      %769 = vst.msk [vmem:[#allocation3 + $0x3c0] sm:$0xff] %vm744, %v697
      %770 = vst.msk [vmem:[#allocation3 + $0x3e8] sm:$0xff] %vm744, %v699
      %771 = vst.msk [vmem:[#allocation3 + $0x410] sm:$0xff] %vm744, %v701
      %772 = vst.msk [vmem:[#allocation3 + $0x438] sm:$0xff] %vm744, %v703
      %773 = vst.msk [vmem:[#allocation3 + $0x460] sm:$0xff] %vm744, %v705
      %774 = vst.msk [vmem:[#allocation3 + $0x488] sm:$0xff] %vm744, %v707
      %775 = vst.msk [vmem:[#allocation3 + $0x4b0] sm:$0xff] %vm744, %v709
      %776 = vst.msk [vmem:[#allocation3 + $0x4d8] sm:$0xff] %vm744, %v711
      %vm777 = vcmask 1045504
      %v778 = vrot.slane %v433, 2
      %v779 = vrot.slane %v434, 2
      %v780 = vsel %vm777, %v778, %v779
      %v781 = vrot.slane %v435, 2
      %v782 = vsel %vm777, %v779, %v781
      %v783 = vrot.slane %v436, 2
      %v784 = vrot.slane %v437, 2
      %v785 = vsel %vm777, %v783, %v784
      %v786 = vrot.slane %v438, 2
      %v787 = vsel %vm777, %v784, %v786
      %v788 = vrot.slane %v439, 2
      %v789 = vrot.slane %v440, 2
      %v790 = vsel %vm777, %v788, %v789
      %v791 = vrot.slane %v441, 2
      %v792 = vsel %vm777, %v789, %v791
      %v793 = vrot.slane %v442, 2
      %v794 = vrot.slane %v443, 2
      %v795 = vsel %vm777, %v793, %v794
      %v796 = vrot.slane %v444, 2
      %v797 = vsel %vm777, %v794, %v796
      %v798 = vrot.slane %v445, 2
      %v799 = vrot.slane %v446, 2
      %v800 = vsel %vm777, %v798, %v799
      %v801 = vrot.slane %v447, 2
      %v802 = vsel %vm777, %v799, %v801
      %v803 = vrot.slane %v448, 2
      %v804 = vrot.slane %v449, 2
      %v805 = vsel %vm777, %v803, %v804
      %v806 = vrot.slane %v450, 2
      %v807 = vsel %vm777, %v804, %v806
      %v808 = vrot.slane %v451, 2
      %v809 = vrot.slane %v452, 2
      %v810 = vsel %vm777, %v808, %v809
      %v811 = vrot.slane %v453, 2
      %v812 = vsel %vm777, %v809, %v811
      %v813 = vrot.slane %v454, 2
      %v814 = vrot.slane %v455, 2
      %v815 = vsel %vm777, %v813, %v814
      %v816 = vrot.slane %v456, 2
      %v817 = vsel %vm777, %v814, %v816
      %v818 = vrot.slane %v457, 2
      %v819 = vrot.slane %v458, 2
      %v820 = vsel %vm777, %v818, %v819
      %v821 = vrot.slane %v459, 2
      %v822 = vsel %vm777, %v819, %v821
      %v823 = vrot.slane %v460, 2
      %v824 = vrot.slane %v461, 2
      %v825 = vsel %vm777, %v823, %v824
      %v826 = vrot.slane %v462, 2
      %v827 = vsel %vm777, %v824, %v826
      %v828 = vrot.slane %v463, 2
      %v829 = vrot.slane %v464, 2
      %v830 = vsel %vm777, %v828, %v829
      %v831 = vrot.slane %v465, 2
      %v832 = vsel %vm777, %v829, %v831
      %v833 = vrot.slane %v466, 2
      %v834 = vrot.slane %v467, 2
      %v835 = vsel %vm777, %v833, %v834
      %v836 = vrot.slane %v468, 2
      %v837 = vsel %vm777, %v834, %v836
      %v838 = vrot.slane %v469, 2
      %v839 = vrot.slane %v470, 2
      %v840 = vsel %vm777, %v838, %v839
      %v841 = vrot.slane %v471, 2
      %v842 = vsel %vm777, %v839, %v841
      %v843 = vrot.slane %v472, 2
      %v844 = vrot.slane %v473, 2
      %v845 = vsel %vm777, %v843, %v844
      %v846 = vrot.slane %v474, 2
      %v847 = vsel %vm777, %v844, %v846
      %v848 = vrot.slane %v475, 2
      %v849 = vrot.slane %v476, 2
      %v850 = vsel %vm777, %v848, %v849
      %v851 = vrot.slane %v477, 2
      %v852 = vsel %vm777, %v849, %v851
      %v853 = vrot.slane %v478, 2
      %v854 = vrot.slane %v479, 2
      %v855 = vsel %vm777, %v853, %v854
      %v856 = vrot.slane %v480, 2
      %v857 = vsel %vm777, %v854, %v856
      %890 = vst.msk [vmem:[#allocation3 + $0x8] sm:$0xff] %vm304, %v780
      %891 = vst.msk [vmem:[#allocation3 + $0x30] sm:$0xff] %vm304, %v782
      %892 = vst.msk [vmem:[#allocation3 + $0x58] sm:$0xff] %vm304, %v785
      %893 = vst.msk [vmem:[#allocation3 + $0x80] sm:$0xff] %vm304, %v787
      %894 = vst.msk [vmem:[#allocation3 + $0xa8] sm:$0xff] %vm304, %v790
      %895 = vst.msk [vmem:[#allocation3 + $0xd0] sm:$0xff] %vm304, %v792
      %896 = vst.msk [vmem:[#allocation3 + $0xf8] sm:$0xff] %vm304, %v795
      %897 = vst.msk [vmem:[#allocation3 + $0x120] sm:$0xff] %vm304, %v797
      %898 = vst.msk [vmem:[#allocation3 + $0x148] sm:$0xff] %vm304, %v800
      %899 = vst.msk [vmem:[#allocation3 + $0x170] sm:$0xff] %vm304, %v802
      %900 = vst.msk [vmem:[#allocation3 + $0x198] sm:$0xff] %vm304, %v805
      %901 = vst.msk [vmem:[#allocation3 + $0x1c0] sm:$0xff] %vm304, %v807
      %902 = vst.msk [vmem:[#allocation3 + $0x1e8] sm:$0xff] %vm304, %v810
      %903 = vst.msk [vmem:[#allocation3 + $0x210] sm:$0xff] %vm304, %v812
      %904 = vst.msk [vmem:[#allocation3 + $0x238] sm:$0xff] %vm304, %v815
      %905 = vst.msk [vmem:[#allocation3 + $0x260] sm:$0xff] %vm304, %v817
      %906 = vst.msk [vmem:[#allocation3 + $0x288] sm:$0xff] %vm304, %v820
      %907 = vst.msk [vmem:[#allocation3 + $0x2b0] sm:$0xff] %vm304, %v822
      %908 = vst.msk [vmem:[#allocation3 + $0x2d8] sm:$0xff] %vm304, %v825
      %909 = vst.msk [vmem:[#allocation3 + $0x300] sm:$0xff] %vm304, %v827
      %910 = vst.msk [vmem:[#allocation3 + $0x328] sm:$0xff] %vm304, %v830
      %911 = vst.msk [vmem:[#allocation3 + $0x350] sm:$0xff] %vm304, %v832
      %912 = vst.msk [vmem:[#allocation3 + $0x378] sm:$0xff] %vm304, %v835
      %913 = vst.msk [vmem:[#allocation3 + $0x3a0] sm:$0xff] %vm304, %v837
      %914 = vst.msk [vmem:[#allocation3 + $0x3c8] sm:$0xff] %vm304, %v840
      %915 = vst.msk [vmem:[#allocation3 + $0x3f0] sm:$0xff] %vm304, %v842
      %916 = vst.msk [vmem:[#allocation3 + $0x418] sm:$0xff] %vm304, %v845
      %917 = vst.msk [vmem:[#allocation3 + $0x440] sm:$0xff] %vm304, %v847
      %918 = vst.msk [vmem:[#allocation3 + $0x468] sm:$0xff] %vm304, %v850
      %919 = vst.msk [vmem:[#allocation3 + $0x490] sm:$0xff] %vm304, %v852
      %920 = vst.msk [vmem:[#allocation3 + $0x4b8] sm:$0xff] %vm304, %v855
      %921 = vst.msk [vmem:[#allocation3 + $0x4e0] sm:$0xff] %vm304, %v857
      %924 = vrot.lane.b32.xlu0 %v436, 64
      %v925 = vpop.permute.xlu0 %924
      %926 = vrot.lane.b32.xlu0 %v437, 64
      %v927 = vpop.permute.xlu0 %926
      %928 = vrot.lane.b32.xlu0 %v439, 64
      %v929 = vpop.permute.xlu0 %928
      %930 = vrot.lane.b32.xlu0 %v440, 64
      %v931 = vpop.permute.xlu0 %930
      %932 = vrot.lane.b32.xlu0 %v442, 64
      %v933 = vpop.permute.xlu0 %932
      %934 = vrot.lane.b32.xlu0 %v443, 64
      %v935 = vpop.permute.xlu0 %934
      %936 = vrot.lane.b32.xlu0 %v445, 64
      %v937 = vpop.permute.xlu0 %936
      %938 = vrot.lane.b32.xlu0 %v446, 64
      %v939 = vpop.permute.xlu0 %938
      %940 = vrot.lane.b32.xlu0 %v448, 64
      %v941 = vpop.permute.xlu0 %940
      %942 = vrot.lane.b32.xlu0 %v449, 64
      %v943 = vpop.permute.xlu0 %942
      %944 = vrot.lane.b32.xlu0 %v451, 64
      %v945 = vpop.permute.xlu0 %944
      %946 = vrot.lane.b32.xlu0 %v452, 64
      %v947 = vpop.permute.xlu0 %946
      %948 = vrot.lane.b32.xlu0 %v454, 64
      %v949 = vpop.permute.xlu0 %948
      %950 = vrot.lane.b32.xlu0 %v455, 64
      %v951 = vpop.permute.xlu0 %950
      %952 = vrot.lane.b32.xlu0 %v457, 64
      %v953 = vpop.permute.xlu0 %952
      %954 = vrot.lane.b32.xlu0 %v458, 64
      %v955 = vpop.permute.xlu0 %954
      %956 = vrot.lane.b32.xlu0 %v460, 64
      %v957 = vpop.permute.xlu0 %956
      %958 = vrot.lane.b32.xlu0 %v461, 64
      %v959 = vpop.permute.xlu0 %958
      %960 = vrot.lane.b32.xlu0 %v463, 64
      %v961 = vpop.permute.xlu0 %960
      %962 = vrot.lane.b32.xlu0 %v464, 64
      %v963 = vpop.permute.xlu0 %962
      %964 = vrot.lane.b32.xlu0 %v466, 64
      %v965 = vpop.permute.xlu0 %964
      %966 = vrot.lane.b32.xlu0 %v467, 64
      %v967 = vpop.permute.xlu0 %966
      %968 = vrot.lane.b32.xlu0 %v469, 64
      %v969 = vpop.permute.xlu0 %968
      %970 = vrot.lane.b32.xlu0 %v470, 64
      %v971 = vpop.permute.xlu0 %970
      %972 = vrot.lane.b32.xlu0 %v472, 64
      %v973 = vpop.permute.xlu0 %972
      %974 = vrot.lane.b32.xlu0 %v473, 64
      %v975 = vpop.permute.xlu0 %974
      %976 = vrot.lane.b32.xlu0 %v475, 64
      %v977 = vpop.permute.xlu0 %976
      %978 = vrot.lane.b32.xlu0 %v476, 64
      %v979 = vpop.permute.xlu0 %978
      %980 = vrot.lane.b32.xlu0 %v478, 64
      %v981 = vpop.permute.xlu0 %980
      %982 = vrot.lane.b32.xlu0 %v479, 64
      %v983 = vpop.permute.xlu0 %982
      %984 = vrot.lane.b32.xlu0 %v481, 64
      %v985 = vpop.permute.xlu0 %984
      %986 = vrot.lane.b32.xlu0 %v482, 64
      %v987 = vpop.permute.xlu0 %986
      %1020 = vst.msk [vmem:[#allocation3 + $0x8] sm:$0xff] %vm744, %v925
      %1021 = vst.msk [vmem:[#allocation3 + $0x30] sm:$0xff] %vm744, %v927
      %1022 = vst.msk [vmem:[#allocation3 + $0x58] sm:$0xff] %vm744, %v929
      %1023 = vst.msk [vmem:[#allocation3 + $0x80] sm:$0xff] %vm744, %v931
      %1024 = vst.msk [vmem:[#allocation3 + $0xa8] sm:$0xff] %vm744, %v933
      %1025 = vst.msk [vmem:[#allocation3 + $0xd0] sm:$0xff] %vm744, %v935
      %1026 = vst.msk [vmem:[#allocation3 + $0xf8] sm:$0xff] %vm744, %v937
      %1027 = vst.msk [vmem:[#allocation3 + $0x120] sm:$0xff] %vm744, %v939
      %1028 = vst.msk [vmem:[#allocation3 + $0x148] sm:$0xff] %vm744, %v941
      %1029 = vst.msk [vmem:[#allocation3 + $0x170] sm:$0xff] %vm744, %v943
      %1030 = vst.msk [vmem:[#allocation3 + $0x198] sm:$0xff] %vm744, %v945
      %1031 = vst.msk [vmem:[#allocation3 + $0x1c0] sm:$0xff] %vm744, %v947
      %1032 = vst.msk [vmem:[#allocation3 + $0x1e8] sm:$0xff] %vm744, %v949
      %1033 = vst.msk [vmem:[#allocation3 + $0x210] sm:$0xff] %vm744, %v951
      %1034 = vst.msk [vmem:[#allocation3 + $0x238] sm:$0xff] %vm744, %v953
      %1035 = vst.msk [vmem:[#allocation3 + $0x260] sm:$0xff] %vm744, %v955
      %1036 = vst.msk [vmem:[#allocation3 + $0x288] sm:$0xff] %vm744, %v957
      %1037 = vst.msk [vmem:[#allocation3 + $0x2b0] sm:$0xff] %vm744, %v959
      %1038 = vst.msk [vmem:[#allocation3 + $0x2d8] sm:$0xff] %vm744, %v961
      %1039 = vst.msk [vmem:[#allocation3 + $0x300] sm:$0xff] %vm744, %v963
      %1040 = vst.msk [vmem:[#allocation3 + $0x328] sm:$0xff] %vm744, %v965
      %1041 = vst.msk [vmem:[#allocation3 + $0x350] sm:$0xff] %vm744, %v967
      %1042 = vst.msk [vmem:[#allocation3 + $0x378] sm:$0xff] %vm744, %v969
      %1043 = vst.msk [vmem:[#allocation3 + $0x3a0] sm:$0xff] %vm744, %v971
      %1044 = vst.msk [vmem:[#allocation3 + $0x3c8] sm:$0xff] %vm744, %v973
      %1045 = vst.msk [vmem:[#allocation3 + $0x3f0] sm:$0xff] %vm744, %v975
      %1046 = vst.msk [vmem:[#allocation3 + $0x418] sm:$0xff] %vm744, %v977
      %1047 = vst.msk [vmem:[#allocation3 + $0x440] sm:$0xff] %vm744, %v979
      %1048 = vst.msk [vmem:[#allocation3 + $0x468] sm:$0xff] %vm744, %v981
      %1049 = vst.msk [vmem:[#allocation3 + $0x490] sm:$0xff] %vm744, %v983
      %1050 = vst.msk [vmem:[#allocation3 + $0x4b8] sm:$0xff] %vm744, %v985
      %1051 = vst.msk [vmem:[#allocation3 + $0x4e0] sm:$0xff] %vm744, %v987
      %v1053 = vrot.slane %v481, 1
      %v1054 = vrot.slane %v482, 1
      %v1055 = vsel %vm567, %v1053, %v1054
      %v1056 = vrot.slane %v483, 1
      %v1057 = vsel %vm567, %v1054, %v1056
      %1090 = vst.msk [vmem:[#allocation3 + $0x10] sm:$0xff] %vm304, %v575
      %1091 = vst.msk [vmem:[#allocation3 + $0x38] sm:$0xff] %vm304, %v577
      %1092 = vst.msk [vmem:[#allocation3 + $0x60] sm:$0xff] %vm304, %v580
      %1093 = vst.msk [vmem:[#allocation3 + $0x88] sm:$0xff] %vm304, %v582
      %1094 = vst.msk [vmem:[#allocation3 + $0xb0] sm:$0xff] %vm304, %v585
      %1095 = vst.msk [vmem:[#allocation3 + $0xd8] sm:$0xff] %vm304, %v587
      %1096 = vst.msk [vmem:[#allocation3 + $0x100] sm:$0xff] %vm304, %v590
      %1097 = vst.msk [vmem:[#allocation3 + $0x128] sm:$0xff] %vm304, %v592
      %1098 = vst.msk [vmem:[#allocation3 + $0x150] sm:$0xff] %vm304, %v595
      %1099 = vst.msk [vmem:[#allocation3 + $0x178] sm:$0xff] %vm304, %v597
      %1100 = vst.msk [vmem:[#allocation3 + $0x1a0] sm:$0xff] %vm304, %v600
      %1101 = vst.msk [vmem:[#allocation3 + $0x1c8] sm:$0xff] %vm304, %v602
      %1102 = vst.msk [vmem:[#allocation3 + $0x1f0] sm:$0xff] %vm304, %v605
      %1103 = vst.msk [vmem:[#allocation3 + $0x218] sm:$0xff] %vm304, %v607
      %1104 = vst.msk [vmem:[#allocation3 + $0x240] sm:$0xff] %vm304, %v610
      %1105 = vst.msk [vmem:[#allocation3 + $0x268] sm:$0xff] %vm304, %v612
      %1106 = vst.msk [vmem:[#allocation3 + $0x290] sm:$0xff] %vm304, %v615
      %1107 = vst.msk [vmem:[#allocation3 + $0x2b8] sm:$0xff] %vm304, %v617
      %1108 = vst.msk [vmem:[#allocation3 + $0x2e0] sm:$0xff] %vm304, %v620
      %1109 = vst.msk [vmem:[#allocation3 + $0x308] sm:$0xff] %vm304, %v622
      %1110 = vst.msk [vmem:[#allocation3 + $0x330] sm:$0xff] %vm304, %v625
      %1111 = vst.msk [vmem:[#allocation3 + $0x358] sm:$0xff] %vm304, %v627
      %1112 = vst.msk [vmem:[#allocation3 + $0x380] sm:$0xff] %vm304, %v630
      %1113 = vst.msk [vmem:[#allocation3 + $0x3a8] sm:$0xff] %vm304, %v632
      %1114 = vst.msk [vmem:[#allocation3 + $0x3d0] sm:$0xff] %vm304, %v635
      %1115 = vst.msk [vmem:[#allocation3 + $0x3f8] sm:$0xff] %vm304, %v637
      %1116 = vst.msk [vmem:[#allocation3 + $0x420] sm:$0xff] %vm304, %v640
      %1117 = vst.msk [vmem:[#allocation3 + $0x448] sm:$0xff] %vm304, %v642
      %1118 = vst.msk [vmem:[#allocation3 + $0x470] sm:$0xff] %vm304, %v645
      %1119 = vst.msk [vmem:[#allocation3 + $0x498] sm:$0xff] %vm304, %v647
      %1120 = vst.msk [vmem:[#allocation3 + $0x4c0] sm:$0xff] %vm304, %v1055
      %1121 = vst.msk [vmem:[#allocation3 + $0x4e8] sm:$0xff] %vm304, %v1057
      %v1122 = vrot.slane %v481, 2
      %v1123 = vrot.slane %v482, 2
      %v1124 = vsel %vm777, %v1122, %v1123
      %v1125 = vrot.slane %v483, 2
      %v1126 = vsel %vm777, %v1123, %v1125
      %1127 = vrot.lane.b32.xlu0 %v785, 64
      %v1128 = vpop.permute.xlu0 %1127
      %1129 = vrot.lane.b32.xlu0 %v787, 64
      %v1130 = vpop.permute.xlu0 %1129
      %1131 = vrot.lane.b32.xlu0 %v790, 64
      %v1132 = vpop.permute.xlu0 %1131
      %1133 = vrot.lane.b32.xlu0 %v792, 64
      %v1134 = vpop.permute.xlu0 %1133
      %1135 = vrot.lane.b32.xlu0 %v795, 64
      %v1136 = vpop.permute.xlu0 %1135
      %1137 = vrot.lane.b32.xlu0 %v797, 64
      %v1138 = vpop.permute.xlu0 %1137
      %1139 = vrot.lane.b32.xlu0 %v800, 64
      %v1140 = vpop.permute.xlu0 %1139
      %1141 = vrot.lane.b32.xlu0 %v802, 64
      %v1142 = vpop.permute.xlu0 %1141
      %1143 = vrot.lane.b32.xlu0 %v805, 64
      %v1144 = vpop.permute.xlu0 %1143
      %1145 = vrot.lane.b32.xlu0 %v807, 64
      %v1146 = vpop.permute.xlu0 %1145
      %1147 = vrot.lane.b32.xlu0 %v810, 64
      %v1148 = vpop.permute.xlu0 %1147
      %1149 = vrot.lane.b32.xlu0 %v812, 64
      %v1150 = vpop.permute.xlu0 %1149
      %1151 = vrot.lane.b32.xlu0 %v815, 64
      %v1152 = vpop.permute.xlu0 %1151
      %1153 = vrot.lane.b32.xlu0 %v817, 64
      %v1154 = vpop.permute.xlu0 %1153
      %1155 = vrot.lane.b32.xlu0 %v820, 64
      %v1156 = vpop.permute.xlu0 %1155
      %1157 = vrot.lane.b32.xlu0 %v822, 64
      %v1158 = vpop.permute.xlu0 %1157
      %1159 = vrot.lane.b32.xlu0 %v825, 64
      %v1160 = vpop.permute.xlu0 %1159
      %1161 = vrot.lane.b32.xlu0 %v827, 64
      %v1162 = vpop.permute.xlu0 %1161
      %1163 = vrot.lane.b32.xlu0 %v830, 64
      %v1164 = vpop.permute.xlu0 %1163
      %1165 = vrot.lane.b32.xlu0 %v832, 64
      %v1166 = vpop.permute.xlu0 %1165
      %1167 = vrot.lane.b32.xlu0 %v835, 64
      %v1168 = vpop.permute.xlu0 %1167
      %1169 = vrot.lane.b32.xlu0 %v837, 64
      %v1170 = vpop.permute.xlu0 %1169
      %1171 = vrot.lane.b32.xlu0 %v840, 64
      %v1172 = vpop.permute.xlu0 %1171
      %1173 = vrot.lane.b32.xlu0 %v842, 64
      %v1174 = vpop.permute.xlu0 %1173
      %1175 = vrot.lane.b32.xlu0 %v845, 64
      %v1176 = vpop.permute.xlu0 %1175
      %1177 = vrot.lane.b32.xlu0 %v847, 64
      %v1178 = vpop.permute.xlu0 %1177
      %1179 = vrot.lane.b32.xlu0 %v850, 64
      %v1180 = vpop.permute.xlu0 %1179
      %1181 = vrot.lane.b32.xlu0 %v852, 64
      %v1182 = vpop.permute.xlu0 %1181
      %1183 = vrot.lane.b32.xlu0 %v855, 64
      %v1184 = vpop.permute.xlu0 %1183
      %1185 = vrot.lane.b32.xlu0 %v857, 64
      %v1186 = vpop.permute.xlu0 %1185
      %1187 = vrot.lane.b32.xlu0 %v1124, 64
      %v1188 = vpop.permute.xlu0 %1187
      %1189 = vrot.lane.b32.xlu0 %v1126, 64
      %v1190 = vpop.permute.xlu0 %1189
      %1223 = vst.msk [vmem:[#allocation3 + $0x10] sm:$0xff] %vm744, %v1128
      %1224 = vst.msk [vmem:[#allocation3 + $0x38] sm:$0xff] %vm744, %v1130
      %1225 = vst.msk [vmem:[#allocation3 + $0x60] sm:$0xff] %vm744, %v1132
      %1226 = vst.msk [vmem:[#allocation3 + $0x88] sm:$0xff] %vm744, %v1134
      %1227 = vst.msk [vmem:[#allocation3 + $0xb0] sm:$0xff] %vm744, %v1136
      %1228 = vst.msk [vmem:[#allocation3 + $0xd8] sm:$0xff] %vm744, %v1138
      %1229 = vst.msk [vmem:[#allocation3 + $0x100] sm:$0xff] %vm744, %v1140
      %1230 = vst.msk [vmem:[#allocation3 + $0x128] sm:$0xff] %vm744, %v1142
      %1231 = vst.msk [vmem:[#allocation3 + $0x150] sm:$0xff] %vm744, %v1144
      %1232 = vst.msk [vmem:[#allocation3 + $0x178] sm:$0xff] %vm744, %v1146
      %1233 = vst.msk [vmem:[#allocation3 + $0x1a0] sm:$0xff] %vm744, %v1148
      %1234 = vst.msk [vmem:[#allocation3 + $0x1c8] sm:$0xff] %vm744, %v1150
      %1235 = vst.msk [vmem:[#allocation3 + $0x1f0] sm:$0xff] %vm744, %v1152
      %1236 = vst.msk [vmem:[#allocation3 + $0x218] sm:$0xff] %vm744, %v1154
      %1237 = vst.msk [vmem:[#allocation3 + $0x240] sm:$0xff] %vm744, %v1156
      %1238 = vst.msk [vmem:[#allocation3 + $0x268] sm:$0xff] %vm744, %v1158
      %1239 = vst.msk [vmem:[#allocation3 + $0x290] sm:$0xff] %vm744, %v1160
      %1240 = vst.msk [vmem:[#allocation3 + $0x2b8] sm:$0xff] %vm744, %v1162
      %1241 = vst.msk [vmem:[#allocation3 + $0x2e0] sm:$0xff] %vm744, %v1164
      %1242 = vst.msk [vmem:[#allocation3 + $0x308] sm:$0xff] %vm744, %v1166
      %1243 = vst.msk [vmem:[#allocation3 + $0x330] sm:$0xff] %vm744, %v1168
      %1244 = vst.msk [vmem:[#allocation3 + $0x358] sm:$0xff] %vm744, %v1170
      %1245 = vst.msk [vmem:[#allocation3 + $0x380] sm:$0xff] %vm744, %v1172
      %1246 = vst.msk [vmem:[#allocation3 + $0x3a8] sm:$0xff] %vm744, %v1174
      %1247 = vst.msk [vmem:[#allocation3 + $0x3d0] sm:$0xff] %vm744, %v1176
      %1248 = vst.msk [vmem:[#allocation3 + $0x3f8] sm:$0xff] %vm744, %v1178
      %1249 = vst.msk [vmem:[#allocation3 + $0x420] sm:$0xff] %vm744, %v1180
      %1250 = vst.msk [vmem:[#allocation3 + $0x448] sm:$0xff] %vm744, %v1182
      %1251 = vst.msk [vmem:[#allocation3 + $0x470] sm:$0xff] %vm744, %v1184
      %1252 = vst.msk [vmem:[#allocation3 + $0x498] sm:$0xff] %vm744, %v1186
      %1253 = vst.msk [vmem:[#allocation3 + $0x4c0] sm:$0xff] %vm744, %v1188
      %1254 = vst.msk [vmem:[#allocation3 + $0x4e8] sm:$0xff] %vm744, %v1190
      %1255 = vst.msk [vmem:[#allocation3 + $0x18] sm:$0xff] %vm304, %v439
      %1256 = vst.msk [vmem:[#allocation3 + $0x40] sm:$0xff] %vm304, %v440
      %1257 = vst.msk [vmem:[#allocation3 + $0x68] sm:$0xff] %vm304, %v442
      %1258 = vst.msk [vmem:[#allocation3 + $0x90] sm:$0xff] %vm304, %v443
      %1259 = vst.msk [vmem:[#allocation3 + $0xb8] sm:$0xff] %vm304, %v445
      %1260 = vst.msk [vmem:[#allocation3 + $0xe0] sm:$0xff] %vm304, %v446
      %1261 = vst.msk [vmem:[#allocation3 + $0x108] sm:$0xff] %vm304, %v448
      %1262 = vst.msk [vmem:[#allocation3 + $0x130] sm:$0xff] %vm304, %v449
      %1263 = vst.msk [vmem:[#allocation3 + $0x158] sm:$0xff] %vm304, %v451
      %1264 = vst.msk [vmem:[#allocation3 + $0x180] sm:$0xff] %vm304, %v452
      %1265 = vst.msk [vmem:[#allocation3 + $0x1a8] sm:$0xff] %vm304, %v454
      %1266 = vst.msk [vmem:[#allocation3 + $0x1d0] sm:$0xff] %vm304, %v455
      %1267 = vst.msk [vmem:[#allocation3 + $0x1f8] sm:$0xff] %vm304, %v457
      %1268 = vst.msk [vmem:[#allocation3 + $0x220] sm:$0xff] %vm304, %v458
      %1269 = vst.msk [vmem:[#allocation3 + $0x248] sm:$0xff] %vm304, %v460
      %1270 = vst.msk [vmem:[#allocation3 + $0x270] sm:$0xff] %vm304, %v461
      %1271 = vst.msk [vmem:[#allocation3 + $0x298] sm:$0xff] %vm304, %v463
      %1272 = vst.msk [vmem:[#allocation3 + $0x2c0] sm:$0xff] %vm304, %v464
      %1273 = vst.msk [vmem:[#allocation3 + $0x2e8] sm:$0xff] %vm304, %v466
      %1274 = vst.msk [vmem:[#allocation3 + $0x310] sm:$0xff] %vm304, %v467
      %1275 = vst.msk [vmem:[#allocation3 + $0x338] sm:$0xff] %vm304, %v469
      %1276 = vst.msk [vmem:[#allocation3 + $0x360] sm:$0xff] %vm304, %v470
      %1277 = vst.msk [vmem:[#allocation3 + $0x388] sm:$0xff] %vm304, %v472
      %1278 = vst.msk [vmem:[#allocation3 + $0x3b0] sm:$0xff] %vm304, %v473
      %1279 = vst.msk [vmem:[#allocation3 + $0x3d8] sm:$0xff] %vm304, %v475
      %1280 = vst.msk [vmem:[#allocation3 + $0x400] sm:$0xff] %vm304, %v476
      %1281 = vst.msk [vmem:[#allocation3 + $0x428] sm:$0xff] %vm304, %v478
      %1282 = vst.msk [vmem:[#allocation3 + $0x450] sm:$0xff] %vm304, %v479
      %1283 = vst.msk [vmem:[#allocation3 + $0x478] sm:$0xff] %vm304, %v481
      %1284 = vst.msk [vmem:[#allocation3 + $0x4a0] sm:$0xff] %vm304, %v482
      %1285 = vst.msk [vmem:[#allocation3 + $0x4c8] sm:$0xff] %vm304, %v484
      %1286 = vst.msk [vmem:[#allocation3 + $0x4f0] sm:$0xff] %vm304, %v485
      %v1290 = vrot.slane %v484, 1
      %v1291 = vrot.slane %v485, 1
      %v1292 = vsel %vm567, %v1290, %v1291
      %v1293 = vrot.slane %v486, 1
      %v1294 = vsel %vm567, %v1291, %v1293
      %1295 = vrot.lane.b32.xlu0 %v1055, 64
      %v1296 = vpop.permute.xlu0 %1295
      %1297 = vrot.lane.b32.xlu0 %v1057, 64
      %v1298 = vpop.permute.xlu0 %1297
      %1299 = vrot.lane.b32.xlu0 %v1292, 64
      %v1300 = vpop.permute.xlu0 %1299
      %1301 = vrot.lane.b32.xlu0 %v1294, 64
      %v1302 = vpop.permute.xlu0 %1301
      %1307 = vst.msk [vmem:[#allocation3 + $0x18] sm:$0xff] %vm744, %v657
      %1308 = vst.msk [vmem:[#allocation3 + $0x40] sm:$0xff] %vm744, %v659
      %1309 = vst.msk [vmem:[#allocation3 + $0x68] sm:$0xff] %vm744, %v661
      %1310 = vst.msk [vmem:[#allocation3 + $0x90] sm:$0xff] %vm744, %v663
      %1311 = vst.msk [vmem:[#allocation3 + $0xb8] sm:$0xff] %vm744, %v665
      %1312 = vst.msk [vmem:[#allocation3 + $0xe0] sm:$0xff] %vm744, %v667
      %1313 = vst.msk [vmem:[#allocation3 + $0x108] sm:$0xff] %vm744, %v669
      %1314 = vst.msk [vmem:[#allocation3 + $0x130] sm:$0xff] %vm744, %v671
      %1315 = vst.msk [vmem:[#allocation3 + $0x158] sm:$0xff] %vm744, %v673
      %1316 = vst.msk [vmem:[#allocation3 + $0x180] sm:$0xff] %vm744, %v675
      %1317 = vst.msk [vmem:[#allocation3 + $0x1a8] sm:$0xff] %vm744, %v677
      %1318 = vst.msk [vmem:[#allocation3 + $0x1d0] sm:$0xff] %vm744, %v679
      %1319 = vst.msk [vmem:[#allocation3 + $0x1f8] sm:$0xff] %vm744, %v681
      %1320 = vst.msk [vmem:[#allocation3 + $0x220] sm:$0xff] %vm744, %v683
      %1321 = vst.msk [vmem:[#allocation3 + $0x248] sm:$0xff] %vm744, %v685
      %1322 = vst.msk [vmem:[#allocation3 + $0x270] sm:$0xff] %vm744, %v687
      %1323 = vst.msk [vmem:[#allocation3 + $0x298] sm:$0xff] %vm744, %v689
      %1324 = vst.msk [vmem:[#allocation3 + $0x2c0] sm:$0xff] %vm744, %v691
      %1325 = vst.msk [vmem:[#allocation3 + $0x2e8] sm:$0xff] %vm744, %v693
      %1326 = vst.msk [vmem:[#allocation3 + $0x310] sm:$0xff] %vm744, %v695
      %1327 = vst.msk [vmem:[#allocation3 + $0x338] sm:$0xff] %vm744, %v697
      %1328 = vst.msk [vmem:[#allocation3 + $0x360] sm:$0xff] %vm744, %v699
      %1329 = vst.msk [vmem:[#allocation3 + $0x388] sm:$0xff] %vm744, %v701
      %1330 = vst.msk [vmem:[#allocation3 + $0x3b0] sm:$0xff] %vm744, %v703
      %1331 = vst.msk [vmem:[#allocation3 + $0x3d8] sm:$0xff] %vm744, %v705
      %1332 = vst.msk [vmem:[#allocation3 + $0x400] sm:$0xff] %vm744, %v707
      %1333 = vst.msk [vmem:[#allocation3 + $0x428] sm:$0xff] %vm744, %v709
      %1334 = vst.msk [vmem:[#allocation3 + $0x450] sm:$0xff] %vm744, %v711
      %1335 = vst.msk [vmem:[#allocation3 + $0x478] sm:$0xff] %vm744, %v1296
      %1336 = vst.msk [vmem:[#allocation3 + $0x4a0] sm:$0xff] %vm744, %v1298
      %1337 = vst.msk [vmem:[#allocation3 + $0x4c8] sm:$0xff] %vm744, %v1300
      %1338 = vst.msk [vmem:[#allocation3 + $0x4f0] sm:$0xff] %vm744, %v1302
      %v1339 = vrot.slane %v484, 2
      %v1340 = vrot.slane %v485, 2
      %v1341 = vsel %vm777, %v1339, %v1340
      %v1342 = vrot.slane %v486, 2
      %v1343 = vsel %vm777, %v1340, %v1342
      %1348 = vst.msk [vmem:[#allocation3 + $0x20] sm:$0xff] %vm304, %v790
      %1349 = vst.msk [vmem:[#allocation3 + $0x48] sm:$0xff] %vm304, %v792
      %1350 = vst.msk [vmem:[#allocation3 + $0x70] sm:$0xff] %vm304, %v795
      %1351 = vst.msk [vmem:[#allocation3 + $0x98] sm:$0xff] %vm304, %v797
      %1352 = vst.msk [vmem:[#allocation3 + $0xc0] sm:$0xff] %vm304, %v800
      %1353 = vst.msk [vmem:[#allocation3 + $0xe8] sm:$0xff] %vm304, %v802
      %1354 = vst.msk [vmem:[#allocation3 + $0x110] sm:$0xff] %vm304, %v805
      %1355 = vst.msk [vmem:[#allocation3 + $0x138] sm:$0xff] %vm304, %v807
      %1356 = vst.msk [vmem:[#allocation3 + $0x160] sm:$0xff] %vm304, %v810
      %1357 = vst.msk [vmem:[#allocation3 + $0x188] sm:$0xff] %vm304, %v812
      %1358 = vst.msk [vmem:[#allocation3 + $0x1b0] sm:$0xff] %vm304, %v815
      %1359 = vst.msk [vmem:[#allocation3 + $0x1d8] sm:$0xff] %vm304, %v817
      %1360 = vst.msk [vmem:[#allocation3 + $0x200] sm:$0xff] %vm304, %v820
      %1361 = vst.msk [vmem:[#allocation3 + $0x228] sm:$0xff] %vm304, %v822
      %1362 = vst.msk [vmem:[#allocation3 + $0x250] sm:$0xff] %vm304, %v825
      %1363 = vst.msk [vmem:[#allocation3 + $0x278] sm:$0xff] %vm304, %v827
      %1364 = vst.msk [vmem:[#allocation3 + $0x2a0] sm:$0xff] %vm304, %v830
      %1365 = vst.msk [vmem:[#allocation3 + $0x2c8] sm:$0xff] %vm304, %v832
      %1366 = vst.msk [vmem:[#allocation3 + $0x2f0] sm:$0xff] %vm304, %v835
      %1367 = vst.msk [vmem:[#allocation3 + $0x318] sm:$0xff] %vm304, %v837
      %1368 = vst.msk [vmem:[#allocation3 + $0x340] sm:$0xff] %vm304, %v840
      %1369 = vst.msk [vmem:[#allocation3 + $0x368] sm:$0xff] %vm304, %v842
      %1370 = vst.msk [vmem:[#allocation3 + $0x390] sm:$0xff] %vm304, %v845
      %1371 = vst.msk [vmem:[#allocation3 + $0x3b8] sm:$0xff] %vm304, %v847
      %1372 = vst.msk [vmem:[#allocation3 + $0x3e0] sm:$0xff] %vm304, %v850
      %1373 = vst.msk [vmem:[#allocation3 + $0x408] sm:$0xff] %vm304, %v852
      %1374 = vst.msk [vmem:[#allocation3 + $0x430] sm:$0xff] %vm304, %v855
      %1375 = vst.msk [vmem:[#allocation3 + $0x458] sm:$0xff] %vm304, %v857
      %1376 = vst.msk [vmem:[#allocation3 + $0x480] sm:$0xff] %vm304, %v1124
      %1377 = vst.msk [vmem:[#allocation3 + $0x4a8] sm:$0xff] %vm304, %v1126
      %1378 = vst.msk [vmem:[#allocation3 + $0x4d0] sm:$0xff] %vm304, %v1341
      %1379 = vst.msk [vmem:[#allocation3 + $0x4f8] sm:$0xff] %vm304, %v1343
      %v1380 = vld [vmem:[#allocation3] sm:$0xff]
      %v1381 = vld [vmem:[#allocation3 + $0x8] sm:$0xff]
      %v1382 = vld [vmem:[#allocation3 + $0x10] sm:$0xff]
      %v1383 = vld [vmem:[#allocation3 + $0x18] sm:$0xff]
      %v1384 = vld [vmem:[#allocation3 + $0x20] sm:$0xff]
      %v1385 = vld [vmem:[#allocation3 + $0x28] sm:$0xff]
      %v1386 = vld [vmem:[#allocation3 + $0x30] sm:$0xff]
      %v1387 = vld [vmem:[#allocation3 + $0x38] sm:$0xff]
      %v1388 = vld [vmem:[#allocation3 + $0x40] sm:$0xff]
      %v1389 = vld [vmem:[#allocation3 + $0x48] sm:$0xff]
      %v1390 = vld [vmem:[#allocation3 + $0x50] sm:$0xff]
      %v1391 = vld [vmem:[#allocation3 + $0x58] sm:$0xff]
      %v1392 = vld [vmem:[#allocation3 + $0x60] sm:$0xff]
      %v1393 = vld [vmem:[#allocation3 + $0x68] sm:$0xff]
      %v1394 = vld [vmem:[#allocation3 + $0x70] sm:$0xff]
      %v1395 = vld [vmem:[#allocation3 + $0x78] sm:$0xff]
      %v1396 = vld [vmem:[#allocation3 + $0x80] sm:$0xff]
      %v1397 = vld [vmem:[#allocation3 + $0x88] sm:$0xff]
      %v1398 = vld [vmem:[#allocation3 + $0x90] sm:$0xff]
      %v1399 = vld [vmem:[#allocation3 + $0x98] sm:$0xff]
      %v1400 = vld [vmem:[#allocation3 + $0xa0] sm:$0xff]
      %v1401 = vld [vmem:[#allocation3 + $0xa8] sm:$0xff]
      %v1402 = vld [vmem:[#allocation3 + $0xb0] sm:$0xff]
      %v1403 = vld [vmem:[#allocation3 + $0xb8] sm:$0xff]
      %v1404 = vld [vmem:[#allocation3 + $0xc0] sm:$0xff]
      %v1405 = vld [vmem:[#allocation3 + $0xc8] sm:$0xff]
      %v1406 = vld [vmem:[#allocation3 + $0xd0] sm:$0xff]
      %v1407 = vld [vmem:[#allocation3 + $0xd8] sm:$0xff]
      %v1408 = vld [vmem:[#allocation3 + $0xe0] sm:$0xff]
      %v1409 = vld [vmem:[#allocation3 + $0xe8] sm:$0xff]
      %v1410 = vld [vmem:[#allocation3 + $0xf0] sm:$0xff]
      %v1411 = vld [vmem:[#allocation3 + $0xf8] sm:$0xff]
      %v1412 = vld [vmem:[#allocation3 + $0x100] sm:$0xff]
      %v1413 = vld [vmem:[#allocation3 + $0x108] sm:$0xff]
      %v1414 = vld [vmem:[#allocation3 + $0x110] sm:$0xff]
      %v1415 = vld [vmem:[#allocation3 + $0x118] sm:$0xff]
      %v1416 = vld [vmem:[#allocation3 + $0x120] sm:$0xff]
      %v1417 = vld [vmem:[#allocation3 + $0x128] sm:$0xff]
      %v1418 = vld [vmem:[#allocation3 + $0x130] sm:$0xff]
      %v1419 = vld [vmem:[#allocation3 + $0x138] sm:$0xff]
      %v1420 = vld [vmem:[#allocation3 + $0x140] sm:$0xff]
      %v1421 = vld [vmem:[#allocation3 + $0x148] sm:$0xff]
      %v1422 = vld [vmem:[#allocation3 + $0x150] sm:$0xff]
      %v1423 = vld [vmem:[#allocation3 + $0x158] sm:$0xff]
      %v1424 = vld [vmem:[#allocation3 + $0x160] sm:$0xff]
      %v1425 = vld [vmem:[#allocation3 + $0x168] sm:$0xff]
      %v1426 = vld [vmem:[#allocation3 + $0x170] sm:$0xff]
      %v1427 = vld [vmem:[#allocation3 + $0x178] sm:$0xff]
      %v1428 = vld [vmem:[#allocation3 + $0x180] sm:$0xff]
      %v1429 = vld [vmem:[#allocation3 + $0x188] sm:$0xff]
      %v1430 = vld [vmem:[#allocation3 + $0x190] sm:$0xff]
      %v1431 = vld [vmem:[#allocation3 + $0x198] sm:$0xff]
      %v1432 = vld [vmem:[#allocation3 + $0x1a0] sm:$0xff]
      %v1433 = vld [vmem:[#allocation3 + $0x1a8] sm:$0xff]
      %v1434 = vld [vmem:[#allocation3 + $0x1b0] sm:$0xff]
      %v1435 = vld [vmem:[#allocation3 + $0x1b8] sm:$0xff]
      %v1436 = vld [vmem:[#allocation3 + $0x1c0] sm:$0xff]
      %v1437 = vld [vmem:[#allocation3 + $0x1c8] sm:$0xff]
      %v1438 = vld [vmem:[#allocation3 + $0x1d0] sm:$0xff]
      %v1439 = vld [vmem:[#allocation3 + $0x1d8] sm:$0xff]
      %v1440 = vld [vmem:[#allocation3 + $0x1e0] sm:$0xff]
      %v1441 = vld [vmem:[#allocation3 + $0x1e8] sm:$0xff]
      %v1442 = vld [vmem:[#allocation3 + $0x1f0] sm:$0xff]
      %v1443 = vld [vmem:[#allocation3 + $0x1f8] sm:$0xff]
      %v1444 = vld [vmem:[#allocation3 + $0x200] sm:$0xff]
      %v1445 = vld [vmem:[#allocation3 + $0x208] sm:$0xff]
      %v1446 = vld [vmem:[#allocation3 + $0x210] sm:$0xff]
      %v1447 = vld [vmem:[#allocation3 + $0x218] sm:$0xff]
      %v1448 = vld [vmem:[#allocation3 + $0x220] sm:$0xff]
      %v1449 = vld [vmem:[#allocation3 + $0x228] sm:$0xff]
      %v1450 = vld [vmem:[#allocation3 + $0x230] sm:$0xff]
      %v1451 = vld [vmem:[#allocation3 + $0x238] sm:$0xff]
      %v1452 = vld [vmem:[#allocation3 + $0x240] sm:$0xff]
      %v1453 = vld [vmem:[#allocation3 + $0x248] sm:$0xff]
      %v1454 = vld [vmem:[#allocation3 + $0x250] sm:$0xff]
      %v1455 = vld [vmem:[#allocation3 + $0x258] sm:$0xff]
      %v1456 = vld [vmem:[#allocation3 + $0x260] sm:$0xff]
      %v1457 = vld [vmem:[#allocation3 + $0x268] sm:$0xff]
      %v1458 = vld [vmem:[#allocation3 + $0x270] sm:$0xff]
      %v1459 = vld [vmem:[#allocation3 + $0x278] sm:$0xff]
      %v1460 = vld [vmem:[#allocation3 + $0x280] sm:$0xff]
      %v1461 = vld [vmem:[#allocation3 + $0x288] sm:$0xff]
      %v1462 = vld [vmem:[#allocation3 + $0x290] sm:$0xff]
      %v1463 = vld [vmem:[#allocation3 + $0x298] sm:$0xff]
      %v1464 = vld [vmem:[#allocation3 + $0x2a0] sm:$0xff]
      %v1465 = vld [vmem:[#allocation3 + $0x2a8] sm:$0xff]
      %v1466 = vld [vmem:[#allocation3 + $0x2b0] sm:$0xff]
      %v1467 = vld [vmem:[#allocation3 + $0x2b8] sm:$0xff]
      %v1468 = vld [vmem:[#allocation3 + $0x2c0] sm:$0xff]
      %v1469 = vld [vmem:[#allocation3 + $0x2c8] sm:$0xff]
      %v1470 = vld [vmem:[#allocation3 + $0x2d0] sm:$0xff]
      %v1471 = vld [vmem:[#allocation3 + $0x2d8] sm:$0xff]
      %v1472 = vld [vmem:[#allocation3 + $0x2e0] sm:$0xff]
      %v1473 = vld [vmem:[#allocation3 + $0x2e8] sm:$0xff]
      %v1474 = vld [vmem:[#allocation3 + $0x2f0] sm:$0xff]
      %v1475 = vld [vmem:[#allocation3 + $0x2f8] sm:$0xff]
      %v1476 = vld [vmem:[#allocation3 + $0x300] sm:$0xff]
      %v1477 = vld [vmem:[#allocation3 + $0x308] sm:$0xff]
      %v1478 = vld [vmem:[#allocation3 + $0x310] sm:$0xff]
      %v1479 = vld [vmem:[#allocation3 + $0x318] sm:$0xff]
      %v1480 = vld [vmem:[#allocation3 + $0x320] sm:$0xff]
      %v1481 = vld [vmem:[#allocation3 + $0x328] sm:$0xff]
      %v1482 = vld [vmem:[#allocation3 + $0x330] sm:$0xff]
      %v1483 = vld [vmem:[#allocation3 + $0x338] sm:$0xff]
      %v1484 = vld [vmem:[#allocation3 + $0x340] sm:$0xff]
      %v1485 = vld [vmem:[#allocation3 + $0x348] sm:$0xff]
      %v1486 = vld [vmem:[#allocation3 + $0x350] sm:$0xff]
      %v1487 = vld [vmem:[#allocation3 + $0x358] sm:$0xff]
      %v1488 = vld [vmem:[#allocation3 + $0x360] sm:$0xff]
      %v1489 = vld [vmem:[#allocation3 + $0x368] sm:$0xff]
      %v1490 = vld [vmem:[#allocation3 + $0x370] sm:$0xff]
      %v1491 = vld [vmem:[#allocation3 + $0x378] sm:$0xff]
      %v1492 = vld [vmem:[#allocation3 + $0x380] sm:$0xff]
      %v1493 = vld [vmem:[#allocation3 + $0x388] sm:$0xff]
      %v1494 = vld [vmem:[#allocation3 + $0x390] sm:$0xff]
      %v1495 = vld [vmem:[#allocation3 + $0x398] sm:$0xff]
      %v1496 = vld [vmem:[#allocation3 + $0x3a0] sm:$0xff]
      %v1497 = vld [vmem:[#allocation3 + $0x3a8] sm:$0xff]
      %v1498 = vld [vmem:[#allocation3 + $0x3b0] sm:$0xff]
      %v1499 = vld [vmem:[#allocation3 + $0x3b8] sm:$0xff]
      %v1500 = vld [vmem:[#allocation3 + $0x3c0] sm:$0xff]
      %v1501 = vld [vmem:[#allocation3 + $0x3c8] sm:$0xff]
      %v1502 = vld [vmem:[#allocation3 + $0x3d0] sm:$0xff]
      %v1503 = vld [vmem:[#allocation3 + $0x3d8] sm:$0xff]
      %v1504 = vld [vmem:[#allocation3 + $0x3e0] sm:$0xff]
      %v1505 = vld [vmem:[#allocation3 + $0x3e8] sm:$0xff]
      %v1506 = vld [vmem:[#allocation3 + $0x3f0] sm:$0xff]
      %v1507 = vld [vmem:[#allocation3 + $0x3f8] sm:$0xff]
      %v1508 = vld [vmem:[#allocation3 + $0x400] sm:$0xff]
      %v1509 = vld [vmem:[#allocation3 + $0x408] sm:$0xff]
      %v1510 = vld [vmem:[#allocation3 + $0x410] sm:$0xff]
      %v1511 = vld [vmem:[#allocation3 + $0x418] sm:$0xff]
      %v1512 = vld [vmem:[#allocation3 + $0x420] sm:$0xff]
      %v1513 = vld [vmem:[#allocation3 + $0x428] sm:$0xff]
      %v1514 = vld [vmem:[#allocation3 + $0x430] sm:$0xff]
      %v1515 = vld [vmem:[#allocation3 + $0x438] sm:$0xff]
      %v1516 = vld [vmem:[#allocation3 + $0x440] sm:$0xff]
      %v1517 = vld [vmem:[#allocation3 + $0x448] sm:$0xff]
      %v1518 = vld [vmem:[#allocation3 + $0x450] sm:$0xff]
      %v1519 = vld [vmem:[#allocation3 + $0x458] sm:$0xff]
      %v1520 = vld [vmem:[#allocation3 + $0x460] sm:$0xff]
      %v1521 = vld [vmem:[#allocation3 + $0x468] sm:$0xff]
      %v1522 = vld [vmem:[#allocation3 + $0x470] sm:$0xff]
      %v1523 = vld [vmem:[#allocation3 + $0x478] sm:$0xff]
      %v1524 = vld [vmem:[#allocation3 + $0x480] sm:$0xff]
      %v1525 = vld [vmem:[#allocation3 + $0x488] sm:$0xff]
      %v1526 = vld [vmem:[#allocation3 + $0x490] sm:$0xff]
      %v1527 = vld [vmem:[#allocation3 + $0x498] sm:$0xff]
      %v1528 = vld [vmem:[#allocation3 + $0x4a0] sm:$0xff]
      %v1529 = vld [vmem:[#allocation3 + $0x4a8] sm:$0xff]
      %v1530 = vld [vmem:[#allocation3 + $0x4b0] sm:$0xff]
      %v1531 = vld [vmem:[#allocation3 + $0x4b8] sm:$0xff]
      %v1532 = vld [vmem:[#allocation3 + $0x4c0] sm:$0xff]
      %v1533 = vld [vmem:[#allocation3 + $0x4c8] sm:$0xff]
      %v1534 = vld [vmem:[#allocation3 + $0x4d0] sm:$0xff]
      %v1535 = vld [vmem:[#allocation3 + $0x4d8] sm:$0xff]
      %v1536 = vld [vmem:[#allocation3 + $0x4e0] sm:$0xff]
      %v1537 = vld [vmem:[#allocation3 + $0x4e8] sm:$0xff]
      %v1538 = vld [vmem:[#allocation3 + $0x4f0] sm:$0xff]
      %v1539 = vld [vmem:[#allocation3 + $0x4f8] sm:$0xff]
      %v1540 = vld [vmem:[%s1] sm:$0xff]
      %v1541 = vld [vmem:[%s1 + $0x8] sm:$0xff]
      %v1542 = vld [vmem:[%s1 + $0x10] sm:$0xff]
      %v1543 = vld [vmem:[%s1 + $0x18] sm:$0xff]
      %v1544 = vld [vmem:[%s1 + $0x20] sm:$0xff]
      %v1545 = vld [vmem:[%s1 + $0x28] sm:$0xff]
      %v1546 = vld [vmem:[%s1 + $0x30] sm:$0xff]
      %v1547 = vld [vmem:[%s1 + $0x38] sm:$0xff]
      %v1548 = vld [vmem:[%s1 + $0x40] sm:$0xff]
      %v1549 = vld [vmem:[%s1 + $0x48] sm:$0xff]
      %v1550 = vld [vmem:[%s1 + $0x50] sm:$0xff]
      %v1551 = vld [vmem:[%s1 + $0x58] sm:$0xff]
      %v1552 = vld [vmem:[%s1 + $0x60] sm:$0xff]
      %v1553 = vld [vmem:[%s1 + $0x68] sm:$0xff]
      %v1554 = vld [vmem:[%s1 + $0x70] sm:$0xff]
      %v1555 = vld [vmem:[%s1 + $0x78] sm:$0xff]
      %v1556 = vld [vmem:[%s1 + $0x80] sm:$0xff]
      %v1557 = vld [vmem:[%s1 + $0x88] sm:$0xff]
      %v1558 = vld [vmem:[%s1 + $0x90] sm:$0xff]
      %v1559 = vld [vmem:[%s1 + $0x98] sm:$0xff]
      %v1560 = vld [vmem:[%s1 + $0xa0] sm:$0xff]
      %v1561 = vld [vmem:[%s1 + $0xa8] sm:$0xff]
      %v1562 = vld [vmem:[%s1 + $0xb0] sm:$0xff]
      %v1563 = vld [vmem:[%s1 + $0xb8] sm:$0xff]
      %v1564 = vld [vmem:[%s1 + $0xc0] sm:$0xff]
      %v1565 = vld [vmem:[%s1 + $0xc8] sm:$0xff]
      %v1566 = vld [vmem:[%s1 + $0xd0] sm:$0xff]
      %v1567 = vld [vmem:[%s1 + $0xd8] sm:$0xff]
      %v1568 = vld [vmem:[%s1 + $0xe0] sm:$0xff]
      %v1569 = vld [vmem:[%s1 + $0xe8] sm:$0xff]
      %v1570 = vld [vmem:[%s1 + $0xf0] sm:$0xff]
      %v1571 = vld [vmem:[%s1 + $0xf8] sm:$0xff]
      %v1572 = vld [vmem:[%s1 + $0x100] sm:$0xff]
      %v1573 = vld [vmem:[%s1 + $0x108] sm:$0xff]
      %v1574 = vld [vmem:[%s1 + $0x110] sm:$0xff]
      %v1575 = vld [vmem:[%s1 + $0x118] sm:$0xff]
      %v1576 = vld [vmem:[%s1 + $0x120] sm:$0xff]
      %v1577 = vld [vmem:[%s1 + $0x128] sm:$0xff]
      %v1578 = vld [vmem:[%s1 + $0x130] sm:$0xff]
      %v1579 = vld [vmem:[%s1 + $0x138] sm:$0xff]
      %v1580 = vld [vmem:[%s1 + $0x140] sm:$0xff]
      %v1581 = vld [vmem:[%s1 + $0x148] sm:$0xff]
      %v1582 = vld [vmem:[%s1 + $0x150] sm:$0xff]
      %v1583 = vld [vmem:[%s1 + $0x158] sm:$0xff]
      %v1584 = vld [vmem:[%s1 + $0x160] sm:$0xff]
      %v1585 = vld [vmem:[%s1 + $0x168] sm:$0xff]
      %v1586 = vld [vmem:[%s1 + $0x170] sm:$0xff]
      %v1587 = vld [vmem:[%s1 + $0x178] sm:$0xff]
      %v1588 = vld [vmem:[%s1 + $0x180] sm:$0xff]
      %v1589 = vld [vmem:[%s1 + $0x188] sm:$0xff]
      %v1590 = vld [vmem:[%s1 + $0x190] sm:$0xff]
      %v1591 = vld [vmem:[%s1 + $0x198] sm:$0xff]
      %v1592 = vld [vmem:[%s1 + $0x1a0] sm:$0xff]
      %v1593 = vld [vmem:[%s1 + $0x1a8] sm:$0xff]
      %v1594 = vld [vmem:[%s1 + $0x1b0] sm:$0xff]
      %v1595 = vld [vmem:[%s1 + $0x1b8] sm:$0xff]
      %v1596 = vld [vmem:[%s1 + $0x1c0] sm:$0xff]
      %v1597 = vld [vmem:[%s1 + $0x1c8] sm:$0xff]
      %v1598 = vld [vmem:[%s1 + $0x1d0] sm:$0xff]
      %v1599 = vld [vmem:[%s1 + $0x1d8] sm:$0xff]
      %v1600 = vld [vmem:[%s1 + $0x1e0] sm:$0xff]
      %v1601 = vld [vmem:[%s1 + $0x1e8] sm:$0xff]
      %v1602 = vld [vmem:[%s1 + $0x1f0] sm:$0xff]
      %v1603 = vld [vmem:[%s1 + $0x1f8] sm:$0xff]
      %v1604 = vld [vmem:[%s1 + $0x200] sm:$0xff]
      %v1605 = vld [vmem:[%s1 + $0x208] sm:$0xff]
      %v1606 = vld [vmem:[%s1 + $0x210] sm:$0xff]
      %v1607 = vld [vmem:[%s1 + $0x218] sm:$0xff]
      %v1608 = vld [vmem:[%s1 + $0x220] sm:$0xff]
      %v1609 = vld [vmem:[%s1 + $0x228] sm:$0xff]
      %v1610 = vld [vmem:[%s1 + $0x230] sm:$0xff]
      %v1611 = vld [vmem:[%s1 + $0x238] sm:$0xff]
      %v1612 = vld [vmem:[%s2] sm:$0x1]
      %v1614 = vperm.slane %v1612, 0
      %v1617 = vsel %vm304, %v1384, 0
      %v1620 = vsel %vm304, %v1389, 0
      %v1623 = vsel %vm304, %v1394, 0
      %v1626 = vsel %vm304, %v1399, 0
      %v1629 = vsel %vm304, %v1404, 0
      %v1632 = vsel %vm304, %v1409, 0
      %v1635 = vsel %vm304, %v1414, 0
      %v1638 = vsel %vm304, %v1419, 0
      %v1641 = vsel %vm304, %v1424, 0
      %v1644 = vsel %vm304, %v1429, 0
      %v1647 = vsel %vm304, %v1434, 0
      %v1650 = vsel %vm304, %v1439, 0
      %v1653 = vsel %vm304, %v1444, 0
      %v1656 = vsel %vm304, %v1449, 0
      %v1659 = vsel %vm304, %v1454, 0
      %v1662 = vsel %vm304, %v1459, 0
      %v1665 = vsel %vm304, %v1464, 0
      %v1668 = vsel %vm304, %v1469, 0
      %v1671 = vsel %vm304, %v1474, 0
      %v1674 = vsel %vm304, %v1479, 0
      %v1677 = vsel %vm304, %v1484, 0
      %v1680 = vsel %vm304, %v1489, 0
      %v1683 = vsel %vm304, %v1494, 0
      %v1686 = vsel %vm304, %v1499, 0
      %v1689 = vsel %vm304, %v1504, 0
      %v1692 = vsel %vm304, %v1509, 0
      %v1695 = vsel %vm304, %v1514, 0
      %v1698 = vsel %vm304, %v1519, 0
      %v1701 = vsel %vm304, %v1524, 0
      %v1704 = vsel %vm304, %v1529, 0
      %v1707 = vsel %vm304, %v1534, 0
      %v1710 = vsel %vm304, %v1539, 0
      %1712 = vmatpush.msra.mxu0 %v1555
      %1713 = vmatpush.msra.mxu0 %v1554
      %1714 = vmatpush.msra.mxu0 %v1553
      %1715 = vmatpush.msra.mxu0 %v1552
      %1716 = vmatpush.msra.mxu0 %v1551
      %1717 = vmatpush.msra.mxu0 %v1550
      %1718 = vmatpush.msra.mxu0 %v1549
      %1719 = vmatpush.msra.mxu0 %v1548
      %1720 = vmatpush.msra.mxu0 %v1547
      %1721 = vmatpush.msra.mxu0 %v1546
      %1722 = vmatpush.msra.mxu0 %v1545
      %1723 = vmatpush.msra.mxu0 %v1544
      %1724 = vmatpush.msra.mxu0 %v1543
      %1725 = vmatpush.msra.mxu0 %v1542
      %1726 = vmatpush.msra.mxu0 %v1541
      %1727 = vmatpush.msra.mxu0 %v1540
      %1728 = vmatmul.f32.gmra.mxu0 %v1380
      %v1729 = vpop.f32.mrf.mxu0
      %v1730 = vadd.f32 %v1614, %v1729
      %1731 = vmatmul.f32.gmra.mxu0 %v1385
      %v1732 = vpop.f32.mrf.mxu0
      %v1733 = vadd.f32 %v1614, %v1732
      %1734 = vmatmul.f32.gmra.mxu0 %v1390
      %v1735 = vpop.f32.mrf.mxu0
      %v1736 = vadd.f32 %v1614, %v1735
      %1737 = vmatmul.f32.gmra.mxu0 %v1395
      %v1738 = vpop.f32.mrf.mxu0
      %v1739 = vadd.f32 %v1614, %v1738
      %1740 = vmatmul.f32.gmra.mxu0 %v1400
      %v1741 = vpop.f32.mrf.mxu0
      %v1742 = vadd.f32 %v1614, %v1741
      %1743 = vmatmul.f32.gmra.mxu0 %v1405
      %v1744 = vpop.f32.mrf.mxu0
      %v1745 = vadd.f32 %v1614, %v1744
      %1746 = vmatmul.f32.gmra.mxu0 %v1410
      %v1747 = vpop.f32.mrf.mxu0
      %v1748 = vadd.f32 %v1614, %v1747
      %1749 = vmatmul.f32.gmra.mxu0 %v1415
      %v1750 = vpop.f32.mrf.mxu0
      %v1751 = vadd.f32 %v1614, %v1750
      %1752 = vmatmul.f32.gmra.mxu0 %v1420
      %v1753 = vpop.f32.mrf.mxu0
      %v1754 = vadd.f32 %v1614, %v1753
      %1755 = vmatmul.f32.gmra.mxu0 %v1425
      %v1756 = vpop.f32.mrf.mxu0
      %v1757 = vadd.f32 %v1614, %v1756
      %1758 = vmatmul.f32.gmra.mxu0 %v1430
      %v1759 = vpop.f32.mrf.mxu0
      %v1760 = vadd.f32 %v1614, %v1759
      %1761 = vmatmul.f32.gmra.mxu0 %v1435
      %v1762 = vpop.f32.mrf.mxu0
      %v1763 = vadd.f32 %v1614, %v1762
      %1764 = vmatmul.f32.gmra.mxu0 %v1440
      %v1765 = vpop.f32.mrf.mxu0
      %v1766 = vadd.f32 %v1614, %v1765
      %1767 = vmatmul.f32.gmra.mxu0 %v1445
      %v1768 = vpop.f32.mrf.mxu0
      %v1769 = vadd.f32 %v1614, %v1768
      %1770 = vmatmul.f32.gmra.mxu0 %v1450
      %v1771 = vpop.f32.mrf.mxu0
      %v1772 = vadd.f32 %v1614, %v1771
      %1773 = vmatmul.f32.gmra.mxu0 %v1455
      %v1774 = vpop.f32.mrf.mxu0
      %v1775 = vadd.f32 %v1614, %v1774
      %1776 = vmatmul.f32.gmra.mxu0 %v1460
      %v1777 = vpop.f32.mrf.mxu0
      %v1778 = vadd.f32 %v1614, %v1777
      %1779 = vmatmul.f32.gmra.mxu0 %v1465
      %v1780 = vpop.f32.mrf.mxu0
      %v1781 = vadd.f32 %v1614, %v1780
      %1782 = vmatmul.f32.gmra.mxu0 %v1470
      %v1783 = vpop.f32.mrf.mxu0
      %v1784 = vadd.f32 %v1614, %v1783
      %1785 = vmatmul.f32.gmra.mxu0 %v1475
      %v1786 = vpop.f32.mrf.mxu0
      %v1787 = vadd.f32 %v1614, %v1786
      %1788 = vmatmul.f32.gmra.mxu0 %v1480
      %v1789 = vpop.f32.mrf.mxu0
      %v1790 = vadd.f32 %v1614, %v1789
      %1791 = vmatmul.f32.gmra.mxu0 %v1485
      %v1792 = vpop.f32.mrf.mxu0
      %v1793 = vadd.f32 %v1614, %v1792
      %1794 = vmatmul.f32.gmra.mxu0 %v1490
      %v1795 = vpop.f32.mrf.mxu0
      %v1796 = vadd.f32 %v1614, %v1795
      %1797 = vmatmul.f32.gmra.mxu0 %v1495
      %v1798 = vpop.f32.mrf.mxu0
      %v1799 = vadd.f32 %v1614, %v1798
      %1800 = vmatmul.f32.gmra.mxu0 %v1500
      %v1801 = vpop.f32.mrf.mxu0
      %v1802 = vadd.f32 %v1614, %v1801
      %1803 = vmatmul.f32.gmra.mxu0 %v1505
      %v1804 = vpop.f32.mrf.mxu0
      %v1805 = vadd.f32 %v1614, %v1804
      %1806 = vmatmul.f32.gmra.mxu0 %v1510
      %v1807 = vpop.f32.mrf.mxu0
      %v1808 = vadd.f32 %v1614, %v1807
      %1809 = vmatmul.f32.gmra.mxu0 %v1515
      %v1810 = vpop.f32.mrf.mxu0
      %v1811 = vadd.f32 %v1614, %v1810
      %1812 = vmatmul.f32.gmra.mxu0 %v1520
      %v1813 = vpop.f32.mrf.mxu0
      %v1814 = vadd.f32 %v1614, %v1813
      %1815 = vmatmul.f32.gmra.mxu0 %v1525
      %v1816 = vpop.f32.mrf.mxu0
      %v1817 = vadd.f32 %v1614, %v1816
      %1818 = vmatmul.f32.gmra.mxu0 %v1530
      %v1819 = vpop.f32.mrf.mxu0
      %v1820 = vadd.f32 %v1614, %v1819
      %1821 = vmatmul.f32.gmra.mxu0 %v1535
      %v1822 = vpop.f32.mrf.mxu0
      %v1823 = vadd.f32 %v1614, %v1822
      %1824 = vdwg.mxu0
      %1825 = vmatpush.msra.mxu0 %v1571
      %1826 = vmatpush.msra.mxu0 %v1570
      %1827 = vmatpush.msra.mxu0 %v1569
      %1828 = vmatpush.msra.mxu0 %v1568
      %1829 = vmatpush.msra.mxu0 %v1567
      %1830 = vmatpush.msra.mxu0 %v1566
      %1831 = vmatpush.msra.mxu0 %v1565
      %1832 = vmatpush.msra.mxu0 %v1564
      %1833 = vmatpush.msra.mxu0 %v1563
      %1834 = vmatpush.msra.mxu0 %v1562
      %1835 = vmatpush.msra.mxu0 %v1561
      %1836 = vmatpush.msra.mxu0 %v1560
      %1837 = vmatpush.msra.mxu0 %v1559
      %1838 = vmatpush.msra.mxu0 %v1558
      %1839 = vmatpush.msra.mxu0 %v1557
      %1840 = vmatpush.msra.mxu0 %v1556
      %1841 = vmatmul.f32.gmra.mxu0 %v1381
      %v1842 = vpop.f32.mrf.mxu0
      %v1843 = vadd.f32 %v1730, %v1842
      %1844 = vmatmul.f32.gmra.mxu0 %v1386
      %v1845 = vpop.f32.mrf.mxu0
      %v1846 = vadd.f32 %v1733, %v1845
      %1847 = vmatmul.f32.gmra.mxu0 %v1391
      %v1848 = vpop.f32.mrf.mxu0
      %v1849 = vadd.f32 %v1736, %v1848
      %1850 = vmatmul.f32.gmra.mxu0 %v1396
      %v1851 = vpop.f32.mrf.mxu0
      %v1852 = vadd.f32 %v1739, %v1851
      %1853 = vmatmul.f32.gmra.mxu0 %v1401
      %v1854 = vpop.f32.mrf.mxu0
      %v1855 = vadd.f32 %v1742, %v1854
      %1856 = vmatmul.f32.gmra.mxu0 %v1406
      %v1857 = vpop.f32.mrf.mxu0
      %v1858 = vadd.f32 %v1745, %v1857
      %1859 = vmatmul.f32.gmra.mxu0 %v1411
      %v1860 = vpop.f32.mrf.mxu0
      %v1861 = vadd.f32 %v1748, %v1860
      %1862 = vmatmul.f32.gmra.mxu0 %v1416
      %v1863 = vpop.f32.mrf.mxu0
      %v1864 = vadd.f32 %v1751, %v1863
      %1865 = vmatmul.f32.gmra.mxu0 %v1421
      %v1866 = vpop.f32.mrf.mxu0
      %v1867 = vadd.f32 %v1754, %v1866
      %1868 = vmatmul.f32.gmra.mxu0 %v1426
      %v1869 = vpop.f32.mrf.mxu0
      %v1870 = vadd.f32 %v1757, %v1869
      %1871 = vmatmul.f32.gmra.mxu0 %v1431
      %v1872 = vpop.f32.mrf.mxu0
      %v1873 = vadd.f32 %v1760, %v1872
      %1874 = vmatmul.f32.gmra.mxu0 %v1436
      %v1875 = vpop.f32.mrf.mxu0
      %v1876 = vadd.f32 %v1763, %v1875
      %1877 = vmatmul.f32.gmra.mxu0 %v1441
      %v1878 = vpop.f32.mrf.mxu0
      %v1879 = vadd.f32 %v1766, %v1878
      %1880 = vmatmul.f32.gmra.mxu0 %v1446
      %v1881 = vpop.f32.mrf.mxu0
      %v1882 = vadd.f32 %v1769, %v1881
      %1883 = vmatmul.f32.gmra.mxu0 %v1451
      %v1884 = vpop.f32.mrf.mxu0
      %v1885 = vadd.f32 %v1772, %v1884
      %1886 = vmatmul.f32.gmra.mxu0 %v1456
      %v1887 = vpop.f32.mrf.mxu0
      %v1888 = vadd.f32 %v1775, %v1887
      %1889 = vmatmul.f32.gmra.mxu0 %v1461
      %v1890 = vpop.f32.mrf.mxu0
      %v1891 = vadd.f32 %v1778, %v1890
      %1892 = vmatmul.f32.gmra.mxu0 %v1466
      %v1893 = vpop.f32.mrf.mxu0
      %v1894 = vadd.f32 %v1781, %v1893
      %1895 = vmatmul.f32.gmra.mxu0 %v1471
      %v1896 = vpop.f32.mrf.mxu0
      %v1897 = vadd.f32 %v1784, %v1896
      %1898 = vmatmul.f32.gmra.mxu0 %v1476
      %v1899 = vpop.f32.mrf.mxu0
      %v1900 = vadd.f32 %v1787, %v1899
      %1901 = vmatmul.f32.gmra.mxu0 %v1481
      %v1902 = vpop.f32.mrf.mxu0
      %v1903 = vadd.f32 %v1790, %v1902
      %1904 = vmatmul.f32.gmra.mxu0 %v1486
      %v1905 = vpop.f32.mrf.mxu0
      %v1906 = vadd.f32 %v1793, %v1905
      %1907 = vmatmul.f32.gmra.mxu0 %v1491
      %v1908 = vpop.f32.mrf.mxu0
      %v1909 = vadd.f32 %v1796, %v1908
      %1910 = vmatmul.f32.gmra.mxu0 %v1496
      %v1911 = vpop.f32.mrf.mxu0
      %v1912 = vadd.f32 %v1799, %v1911
      %1913 = vmatmul.f32.gmra.mxu0 %v1501
      %v1914 = vpop.f32.mrf.mxu0
      %v1915 = vadd.f32 %v1802, %v1914
      %1916 = vmatmul.f32.gmra.mxu0 %v1506
      %v1917 = vpop.f32.mrf.mxu0
      %v1918 = vadd.f32 %v1805, %v1917
      %1919 = vmatmul.f32.gmra.mxu0 %v1511
      %v1920 = vpop.f32.mrf.mxu0
      %v1921 = vadd.f32 %v1808, %v1920
      %1922 = vmatmul.f32.gmra.mxu0 %v1516
      %v1923 = vpop.f32.mrf.mxu0
      %v1924 = vadd.f32 %v1811, %v1923
      %1925 = vmatmul.f32.gmra.mxu0 %v1521
      %v1926 = vpop.f32.mrf.mxu0
      %v1927 = vadd.f32 %v1814, %v1926
      %1928 = vmatmul.f32.gmra.mxu0 %v1526
      %v1929 = vpop.f32.mrf.mxu0
      %v1930 = vadd.f32 %v1817, %v1929
      %1931 = vmatmul.f32.gmra.mxu0 %v1531
      %v1932 = vpop.f32.mrf.mxu0
      %v1933 = vadd.f32 %v1820, %v1932
      %1934 = vmatmul.f32.gmra.mxu0 %v1536
      %v1935 = vpop.f32.mrf.mxu0
      %v1936 = vadd.f32 %v1823, %v1935
      %1937 = vdwg.mxu0
      %1938 = vmatpush.msra.mxu0 %v1587
      %1939 = vmatpush.msra.mxu0 %v1586
      %1940 = vmatpush.msra.mxu0 %v1585
      %1941 = vmatpush.msra.mxu0 %v1584
      %1942 = vmatpush.msra.mxu0 %v1583
      %1943 = vmatpush.msra.mxu0 %v1582
      %1944 = vmatpush.msra.mxu0 %v1581
      %1945 = vmatpush.msra.mxu0 %v1580
      %1946 = vmatpush.msra.mxu0 %v1579
      %1947 = vmatpush.msra.mxu0 %v1578
      %1948 = vmatpush.msra.mxu0 %v1577
      %1949 = vmatpush.msra.mxu0 %v1576
      %1950 = vmatpush.msra.mxu0 %v1575
      %1951 = vmatpush.msra.mxu0 %v1574
      %1952 = vmatpush.msra.mxu0 %v1573
      %1953 = vmatpush.msra.mxu0 %v1572
      %1954 = vmatmul.f32.gmra.mxu0 %v1382
      %v1955 = vpop.f32.mrf.mxu0
      %v1956 = vadd.f32 %v1843, %v1955
      %1957 = vmatmul.f32.gmra.mxu0 %v1387
      %v1958 = vpop.f32.mrf.mxu0
      %v1959 = vadd.f32 %v1846, %v1958
      %1960 = vmatmul.f32.gmra.mxu0 %v1392
      %v1961 = vpop.f32.mrf.mxu0
      %v1962 = vadd.f32 %v1849, %v1961
      %1963 = vmatmul.f32.gmra.mxu0 %v1397
      %v1964 = vpop.f32.mrf.mxu0
      %v1965 = vadd.f32 %v1852, %v1964
      %1966 = vmatmul.f32.gmra.mxu0 %v1402
      %v1967 = vpop.f32.mrf.mxu0
      %v1968 = vadd.f32 %v1855, %v1967
      %1969 = vmatmul.f32.gmra.mxu0 %v1407
      %v1970 = vpop.f32.mrf.mxu0
      %v1971 = vadd.f32 %v1858, %v1970
      %1972 = vmatmul.f32.gmra.mxu0 %v1412
      %v1973 = vpop.f32.mrf.mxu0
      %v1974 = vadd.f32 %v1861, %v1973
      %1975 = vmatmul.f32.gmra.mxu0 %v1417
      %v1976 = vpop.f32.mrf.mxu0
      %v1977 = vadd.f32 %v1864, %v1976
      %1978 = vmatmul.f32.gmra.mxu0 %v1422
      %v1979 = vpop.f32.mrf.mxu0
      %v1980 = vadd.f32 %v1867, %v1979
      %1981 = vmatmul.f32.gmra.mxu0 %v1427
      %v1982 = vpop.f32.mrf.mxu0
      %v1983 = vadd.f32 %v1870, %v1982
      %1984 = vmatmul.f32.gmra.mxu0 %v1432
      %v1985 = vpop.f32.mrf.mxu0
      %v1986 = vadd.f32 %v1873, %v1985
      %1987 = vmatmul.f32.gmra.mxu0 %v1437
      %v1988 = vpop.f32.mrf.mxu0
      %v1989 = vadd.f32 %v1876, %v1988
      %1990 = vmatmul.f32.gmra.mxu0 %v1442
      %v1991 = vpop.f32.mrf.mxu0
      %v1992 = vadd.f32 %v1879, %v1991
      %1993 = vmatmul.f32.gmra.mxu0 %v1447
      %v1994 = vpop.f32.mrf.mxu0
      %v1995 = vadd.f32 %v1882, %v1994
      %1996 = vmatmul.f32.gmra.mxu0 %v1452
      %v1997 = vpop.f32.mrf.mxu0
      %v1998 = vadd.f32 %v1885, %v1997
      %1999 = vmatmul.f32.gmra.mxu0 %v1457
      %v2000 = vpop.f32.mrf.mxu0
      %v2001 = vadd.f32 %v1888, %v2000
      %2002 = vmatmul.f32.gmra.mxu0 %v1462
      %v2003 = vpop.f32.mrf.mxu0
      %v2004 = vadd.f32 %v1891, %v2003
      %2005 = vmatmul.f32.gmra.mxu0 %v1467
      %v2006 = vpop.f32.mrf.mxu0
      %v2007 = vadd.f32 %v1894, %v2006
      %2008 = vmatmul.f32.gmra.mxu0 %v1472
      %v2009 = vpop.f32.mrf.mxu0
      %v2010 = vadd.f32 %v1897, %v2009
      %2011 = vmatmul.f32.gmra.mxu0 %v1477
      %v2012 = vpop.f32.mrf.mxu0
      %v2013 = vadd.f32 %v1900, %v2012
      %2014 = vmatmul.f32.gmra.mxu0 %v1482
      %v2015 = vpop.f32.mrf.mxu0
      %v2016 = vadd.f32 %v1903, %v2015
      %2017 = vmatmul.f32.gmra.mxu0 %v1487
      %v2018 = vpop.f32.mrf.mxu0
      %v2019 = vadd.f32 %v1906, %v2018
      %2020 = vmatmul.f32.gmra.mxu0 %v1492
      %v2021 = vpop.f32.mrf.mxu0
      %v2022 = vadd.f32 %v1909, %v2021
      %2023 = vmatmul.f32.gmra.mxu0 %v1497
      %v2024 = vpop.f32.mrf.mxu0
      %v2025 = vadd.f32 %v1912, %v2024
      %2026 = vmatmul.f32.gmra.mxu0 %v1502
      %v2027 = vpop.f32.mrf.mxu0
      %v2028 = vadd.f32 %v1915, %v2027
      %2029 = vmatmul.f32.gmra.mxu0 %v1507
      %v2030 = vpop.f32.mrf.mxu0
      %v2031 = vadd.f32 %v1918, %v2030
      %2032 = vmatmul.f32.gmra.mxu0 %v1512
      %v2033 = vpop.f32.mrf.mxu0
      %v2034 = vadd.f32 %v1921, %v2033
      %2035 = vmatmul.f32.gmra.mxu0 %v1517
      %v2036 = vpop.f32.mrf.mxu0
      %v2037 = vadd.f32 %v1924, %v2036
      %2038 = vmatmul.f32.gmra.mxu0 %v1522
      %v2039 = vpop.f32.mrf.mxu0
      %v2040 = vadd.f32 %v1927, %v2039
      %2041 = vmatmul.f32.gmra.mxu0 %v1527
      %v2042 = vpop.f32.mrf.mxu0
      %v2043 = vadd.f32 %v1930, %v2042
      %2044 = vmatmul.f32.gmra.mxu0 %v1532
      %v2045 = vpop.f32.mrf.mxu0
      %v2046 = vadd.f32 %v1933, %v2045
      %2047 = vmatmul.f32.gmra.mxu0 %v1537
      %v2048 = vpop.f32.mrf.mxu0
      %v2049 = vadd.f32 %v1936, %v2048
      %2050 = vdwg.mxu0
      %2051 = vmatpush.msra.mxu0 %v1603
      %2052 = vmatpush.msra.mxu0 %v1602
      %2053 = vmatpush.msra.mxu0 %v1601
      %2054 = vmatpush.msra.mxu0 %v1600
      %2055 = vmatpush.msra.mxu0 %v1599
      %2056 = vmatpush.msra.mxu0 %v1598
      %2057 = vmatpush.msra.mxu0 %v1597
      %2058 = vmatpush.msra.mxu0 %v1596
      %2059 = vmatpush.msra.mxu0 %v1595
      %2060 = vmatpush.msra.mxu0 %v1594
      %2061 = vmatpush.msra.mxu0 %v1593
      %2062 = vmatpush.msra.mxu0 %v1592
      %2063 = vmatpush.msra.mxu0 %v1591
      %2064 = vmatpush.msra.mxu0 %v1590
      %2065 = vmatpush.msra.mxu0 %v1589
      %2066 = vmatpush.msra.mxu0 %v1588
      %2067 = vmatmul.f32.gmra.mxu0 %v1383
      %v2068 = vpop.f32.mrf.mxu0
      %v2069 = vadd.f32 %v1956, %v2068
      %2070 = vmatmul.f32.gmra.mxu0 %v1388
      %v2071 = vpop.f32.mrf.mxu0
      %v2072 = vadd.f32 %v1959, %v2071
      %2073 = vmatmul.f32.gmra.mxu0 %v1393
      %v2074 = vpop.f32.mrf.mxu0
      %v2075 = vadd.f32 %v1962, %v2074
      %2076 = vmatmul.f32.gmra.mxu0 %v1398
      %v2077 = vpop.f32.mrf.mxu0
      %v2078 = vadd.f32 %v1965, %v2077
      %2079 = vmatmul.f32.gmra.mxu0 %v1403
      %v2080 = vpop.f32.mrf.mxu0
      %v2081 = vadd.f32 %v1968, %v2080
      %2082 = vmatmul.f32.gmra.mxu0 %v1408
      %v2083 = vpop.f32.mrf.mxu0
      %v2084 = vadd.f32 %v1971, %v2083
      %2085 = vmatmul.f32.gmra.mxu0 %v1413
      %v2086 = vpop.f32.mrf.mxu0
      %v2087 = vadd.f32 %v1974, %v2086
      %2088 = vmatmul.f32.gmra.mxu0 %v1418
      %v2089 = vpop.f32.mrf.mxu0
      %v2090 = vadd.f32 %v1977, %v2089
      %2091 = vmatmul.f32.gmra.mxu0 %v1423
      %v2092 = vpop.f32.mrf.mxu0
      %v2093 = vadd.f32 %v1980, %v2092
      %2094 = vmatmul.f32.gmra.mxu0 %v1428
      %v2095 = vpop.f32.mrf.mxu0
      %v2096 = vadd.f32 %v1983, %v2095
      %2097 = vmatmul.f32.gmra.mxu0 %v1433
      %v2098 = vpop.f32.mrf.mxu0
      %v2099 = vadd.f32 %v1986, %v2098
      %2100 = vmatmul.f32.gmra.mxu0 %v1438
      %v2101 = vpop.f32.mrf.mxu0
      %v2102 = vadd.f32 %v1989, %v2101
      %2103 = vmatmul.f32.gmra.mxu0 %v1443
      %v2104 = vpop.f32.mrf.mxu0
      %v2105 = vadd.f32 %v1992, %v2104
      %2106 = vmatmul.f32.gmra.mxu0 %v1448
      %v2107 = vpop.f32.mrf.mxu0
      %v2108 = vadd.f32 %v1995, %v2107
      %2109 = vmatmul.f32.gmra.mxu0 %v1453
      %v2110 = vpop.f32.mrf.mxu0
      %v2111 = vadd.f32 %v1998, %v2110
      %2112 = vmatmul.f32.gmra.mxu0 %v1458
      %v2113 = vpop.f32.mrf.mxu0
      %v2114 = vadd.f32 %v2001, %v2113
      %2115 = vmatmul.f32.gmra.mxu0 %v1463
      %v2116 = vpop.f32.mrf.mxu0
      %v2117 = vadd.f32 %v2004, %v2116
      %2118 = vmatmul.f32.gmra.mxu0 %v1468
      %v2119 = vpop.f32.mrf.mxu0
      %v2120 = vadd.f32 %v2007, %v2119
      %2121 = vmatmul.f32.gmra.mxu0 %v1473
      %v2122 = vpop.f32.mrf.mxu0
      %v2123 = vadd.f32 %v2010, %v2122
      %2124 = vmatmul.f32.gmra.mxu0 %v1478
      %v2125 = vpop.f32.mrf.mxu0
      %v2126 = vadd.f32 %v2013, %v2125
      %2127 = vmatmul.f32.gmra.mxu0 %v1483
      %v2128 = vpop.f32.mrf.mxu0
      %v2129 = vadd.f32 %v2016, %v2128
      %2130 = vmatmul.f32.gmra.mxu0 %v1488
      %v2131 = vpop.f32.mrf.mxu0
      %v2132 = vadd.f32 %v2019, %v2131
      %2133 = vmatmul.f32.gmra.mxu0 %v1493
      %v2134 = vpop.f32.mrf.mxu0
      %v2135 = vadd.f32 %v2022, %v2134
      %2136 = vmatmul.f32.gmra.mxu0 %v1498
      %v2137 = vpop.f32.mrf.mxu0
      %v2138 = vadd.f32 %v2025, %v2137
      %2139 = vmatmul.f32.gmra.mxu0 %v1503
      %v2140 = vpop.f32.mrf.mxu0
      %v2141 = vadd.f32 %v2028, %v2140
      %2142 = vmatmul.f32.gmra.mxu0 %v1508
      %v2143 = vpop.f32.mrf.mxu0
      %v2144 = vadd.f32 %v2031, %v2143
      %2145 = vmatmul.f32.gmra.mxu0 %v1513
      %v2146 = vpop.f32.mrf.mxu0
      %v2147 = vadd.f32 %v2034, %v2146
      %2148 = vmatmul.f32.gmra.mxu0 %v1518
      %v2149 = vpop.f32.mrf.mxu0
      %v2150 = vadd.f32 %v2037, %v2149
      %2151 = vmatmul.f32.gmra.mxu0 %v1523
      %v2152 = vpop.f32.mrf.mxu0
      %v2153 = vadd.f32 %v2040, %v2152
      %2154 = vmatmul.f32.gmra.mxu0 %v1528
      %v2155 = vpop.f32.mrf.mxu0
      %v2156 = vadd.f32 %v2043, %v2155
      %2157 = vmatmul.f32.gmra.mxu0 %v1533
      %v2158 = vpop.f32.mrf.mxu0
      %v2159 = vadd.f32 %v2046, %v2158
      %2160 = vmatmul.f32.gmra.mxu0 %v1538
      %v2161 = vpop.f32.mrf.mxu0
      %v2162 = vadd.f32 %v2049, %v2161
      %2163 = vdwg.mxu0
      %2164 = vmatpush.msra.mxu0 0.0
      %2165 = vmatpush.msra.mxu0 0.0
      %2166 = vmatpush.msra.mxu0 0.0
      %2167 = vmatpush.msra.mxu0 0.0
      %2168 = vmatpush.msra.mxu0 0.0
      %2169 = vmatpush.msra.mxu0 0.0
      %2170 = vmatpush.msra.mxu0 0.0
      %2171 = vmatpush.msra.mxu0 0.0
      %2172 = vmatpush.msra.mxu0 %v1611
      %2173 = vmatpush.msra.mxu0 %v1610
      %2174 = vmatpush.msra.mxu0 %v1609
      %2175 = vmatpush.msra.mxu0 %v1608
      %2176 = vmatpush.msra.mxu0 %v1607
      %2177 = vmatpush.msra.mxu0 %v1606
      %2178 = vmatpush.msra.mxu0 %v1605
      %2179 = vmatpush.msra.mxu0 %v1604
      %2180 = vmatmul.f32.gmra.mxu0 %v1617
      %v2181 = vpop.f32.mrf.mxu0
      %v2182 = vadd.f32 %v2069, %v2181
      %2183 = vmatmul.f32.gmra.mxu0 %v1620
      %v2184 = vpop.f32.mrf.mxu0
      %v2185 = vadd.f32 %v2072, %v2184
      %2186 = vmatmul.f32.gmra.mxu0 %v1623
      %v2187 = vpop.f32.mrf.mxu0
      %v2188 = vadd.f32 %v2075, %v2187
      %2189 = vmatmul.f32.gmra.mxu0 %v1626
      %v2190 = vpop.f32.mrf.mxu0
      %v2191 = vadd.f32 %v2078, %v2190
      %2192 = vmatmul.f32.gmra.mxu0 %v1629
      %v2193 = vpop.f32.mrf.mxu0
      %v2194 = vadd.f32 %v2081, %v2193
      %2195 = vmatmul.f32.gmra.mxu0 %v1632
      %v2196 = vpop.f32.mrf.mxu0
      %v2197 = vadd.f32 %v2084, %v2196
      %2198 = vmatmul.f32.gmra.mxu0 %v1635
      %v2199 = vpop.f32.mrf.mxu0
      %v2200 = vadd.f32 %v2087, %v2199
      %2201 = vmatmul.f32.gmra.mxu0 %v1638
      %v2202 = vpop.f32.mrf.mxu0
      %v2203 = vadd.f32 %v2090, %v2202
      %2204 = vmatmul.f32.gmra.mxu0 %v1641
      %v2205 = vpop.f32.mrf.mxu0
      %v2206 = vadd.f32 %v2093, %v2205
      %2207 = vmatmul.f32.gmra.mxu0 %v1644
      %v2208 = vpop.f32.mrf.mxu0
      %v2209 = vadd.f32 %v2096, %v2208
      %2210 = vmatmul.f32.gmra.mxu0 %v1647
      %v2211 = vpop.f32.mrf.mxu0
      %v2212 = vadd.f32 %v2099, %v2211
      %2213 = vmatmul.f32.gmra.mxu0 %v1650
      %v2214 = vpop.f32.mrf.mxu0
      %v2215 = vadd.f32 %v2102, %v2214
      %2216 = vmatmul.f32.gmra.mxu0 %v1653
      %v2217 = vpop.f32.mrf.mxu0
      %v2218 = vadd.f32 %v2105, %v2217
      %2219 = vmatmul.f32.gmra.mxu0 %v1656
      %v2220 = vpop.f32.mrf.mxu0
      %v2221 = vadd.f32 %v2108, %v2220
      %2222 = vmatmul.f32.gmra.mxu0 %v1659
      %v2223 = vpop.f32.mrf.mxu0
      %v2224 = vadd.f32 %v2111, %v2223
      %2225 = vmatmul.f32.gmra.mxu0 %v1662
      %v2226 = vpop.f32.mrf.mxu0
      %v2227 = vadd.f32 %v2114, %v2226
      %2228 = vmatmul.f32.gmra.mxu0 %v1665
      %v2229 = vpop.f32.mrf.mxu0
      %v2230 = vadd.f32 %v2117, %v2229
      %2231 = vmatmul.f32.gmra.mxu0 %v1668
      %v2232 = vpop.f32.mrf.mxu0
      %v2233 = vadd.f32 %v2120, %v2232
      %2234 = vmatmul.f32.gmra.mxu0 %v1671
      %v2235 = vpop.f32.mrf.mxu0
      %v2236 = vadd.f32 %v2123, %v2235
      %2237 = vmatmul.f32.gmra.mxu0 %v1674
      %v2238 = vpop.f32.mrf.mxu0
      %v2239 = vadd.f32 %v2126, %v2238
      %2240 = vmatmul.f32.gmra.mxu0 %v1677
      %v2241 = vpop.f32.mrf.mxu0
      %v2242 = vadd.f32 %v2129, %v2241
      %2243 = vmatmul.f32.gmra.mxu0 %v1680
      %v2244 = vpop.f32.mrf.mxu0
      %v2245 = vadd.f32 %v2132, %v2244
      %2246 = vmatmul.f32.gmra.mxu0 %v1683
      %v2247 = vpop.f32.mrf.mxu0
      %v2248 = vadd.f32 %v2135, %v2247
      %2249 = vmatmul.f32.gmra.mxu0 %v1686
      %v2250 = vpop.f32.mrf.mxu0
      %v2251 = vadd.f32 %v2138, %v2250
      %2252 = vmatmul.f32.gmra.mxu0 %v1689
      %v2253 = vpop.f32.mrf.mxu0
      %v2254 = vadd.f32 %v2141, %v2253
      %2255 = vmatmul.f32.gmra.mxu0 %v1692
      %v2256 = vpop.f32.mrf.mxu0
      %v2257 = vadd.f32 %v2144, %v2256
      %2258 = vmatmul.f32.gmra.mxu0 %v1695
      %v2259 = vpop.f32.mrf.mxu0
      %v2260 = vadd.f32 %v2147, %v2259
      %2261 = vmatmul.f32.gmra.mxu0 %v1698
      %v2262 = vpop.f32.mrf.mxu0
      %v2263 = vadd.f32 %v2150, %v2262
      %2264 = vmatmul.f32.gmra.mxu0 %v1701
      %v2265 = vpop.f32.mrf.mxu0
      %v2266 = vadd.f32 %v2153, %v2265
      %2267 = vmatmul.f32.gmra.mxu0 %v1704
      %v2268 = vpop.f32.mrf.mxu0
      %v2269 = vadd.f32 %v2156, %v2268
      %2270 = vmatmul.f32.gmra.mxu0 %v1707
      %v2271 = vpop.f32.mrf.mxu0
      %v2272 = vadd.f32 %v2159, %v2271
      %2273 = vmatmul.f32.gmra.mxu0 %v1710
      %v2274 = vpop.f32.mrf.mxu0
      %v2275 = vadd.f32 %v2162, %v2274
      %2276 = vdwg.mxu0
      %v2277 = vsel %vm304, %v2182, 0.0
      %v2278 = vsel %vm304, %v2185, 0.0
      %v2279 = vadd.f32 %v2277, %v2278
      %v2280 = vsel %vm304, %v2188, 0.0
      %v2281 = vadd.f32 %v2279, %v2280
      %v2282 = vsel %vm304, %v2191, 0.0
      %v2283 = vadd.f32 %v2281, %v2282
      %v2284 = vsel %vm304, %v2194, 0.0
      %v2285 = vadd.f32 %v2283, %v2284
      %v2286 = vsel %vm304, %v2197, 0.0
      %v2287 = vadd.f32 %v2285, %v2286
      %v2288 = vsel %vm304, %v2200, 0.0
      %v2289 = vadd.f32 %v2287, %v2288
      %v2290 = vsel %vm304, %v2203, 0.0
      %v2291 = vadd.f32 %v2289, %v2290
      %v2292 = vsel %vm304, %v2206, 0.0
      %v2293 = vadd.f32 %v2291, %v2292
      %v2294 = vsel %vm304, %v2209, 0.0
      %v2295 = vadd.f32 %v2293, %v2294
      %v2296 = vsel %vm304, %v2212, 0.0
      %v2297 = vadd.f32 %v2295, %v2296
      %v2298 = vsel %vm304, %v2215, 0.0
      %v2299 = vadd.f32 %v2297, %v2298
      %v2300 = vsel %vm304, %v2218, 0.0
      %v2301 = vadd.f32 %v2299, %v2300
      %v2302 = vsel %vm304, %v2221, 0.0
      %v2303 = vadd.f32 %v2301, %v2302
      %v2304 = vsel %vm304, %v2224, 0.0
      %v2305 = vadd.f32 %v2303, %v2304
      %v2306 = vsel %vm304, %v2227, 0.0
      %v2307 = vadd.f32 %v2305, %v2306
      %v2308 = vsel %vm304, %v2230, 0.0
      %v2309 = vadd.f32 %v2307, %v2308
      %v2310 = vsel %vm304, %v2233, 0.0
      %v2311 = vadd.f32 %v2309, %v2310
      %v2312 = vsel %vm304, %v2236, 0.0
      %v2313 = vadd.f32 %v2311, %v2312
      %v2314 = vsel %vm304, %v2239, 0.0
      %v2315 = vadd.f32 %v2313, %v2314
      %v2316 = vsel %vm304, %v2242, 0.0
      %v2317 = vadd.f32 %v2315, %v2316
      %v2318 = vsel %vm304, %v2245, 0.0
      %v2319 = vadd.f32 %v2317, %v2318
      %v2320 = vsel %vm304, %v2248, 0.0
      %v2321 = vadd.f32 %v2319, %v2320
      %v2322 = vsel %vm304, %v2251, 0.0
      %v2323 = vadd.f32 %v2321, %v2322
      %v2324 = vsel %vm304, %v2254, 0.0
      %v2325 = vadd.f32 %v2323, %v2324
      %v2326 = vsel %vm304, %v2257, 0.0
      %v2327 = vadd.f32 %v2325, %v2326
      %v2328 = vsel %vm304, %v2260, 0.0
      %v2329 = vadd.f32 %v2327, %v2328
      %v2330 = vsel %vm304, %v2263, 0.0
      %v2331 = vadd.f32 %v2329, %v2330
      %v2332 = vsel %vm304, %v2266, 0.0
      %v2333 = vadd.f32 %v2331, %v2332
      %v2334 = vsel %vm304, %v2269, 0.0
      %v2335 = vadd.f32 %v2333, %v2334
      %v2336 = vsel %vm304, %v2272, 0.0
      %v2337 = vadd.f32 %v2335, %v2336
      %v2338 = vsel %vm304, %v2275, 0.0
      %v2339 = vadd.f32 %v2337, %v2338
      %v2340 = vrot.slane %v2339, 4
      %v2341 = vadd.f32 %v2339, %v2340
      %v2342 = vrot.slane %v2341, 2
      %v2343 = vadd.f32 %v2341, %v2342
      %v2344 = vrot.slane %v2343, 1
      %v2345 = vadd.f32 %v2343, %v2344
      %v2347 = vsel %vm304, %v2345, 0
      %2349 = vmatpush.msra.mxu0 0.0
      %2350 = vmatpush.msra.mxu0 0.0
      %2351 = vmatpush.msra.mxu0 0.0
      %2352 = vmatpush.msra.mxu0 0.0
      %2353 = vmatpush.msra.mxu0 0.0
      %2354 = vmatpush.msra.mxu0 0.0
      %2355 = vmatpush.msra.mxu0 0.0
      %2356 = vmatpush.msra.mxu0 0.0
      %2357 = vmatpush.msra.mxu0 %v367
      %2358 = vmatpush.msra.mxu0 %v366
      %2359 = vmatpush.msra.mxu0 %v365
      %2360 = vmatpush.msra.mxu0 %v364
      %2361 = vmatpush.msra.mxu0 %v363
      %2362 = vmatpush.msra.mxu0 %v362
      %2363 = vmatpush.msra.mxu0 %v361
      %2364 = vmatpush.msra.mxu0 %v360
      %2365 = vmatmul.f32.gmra.mxu0 %v2347
      %v2366 = vpop.f32.mrf.mxu0
      %v2367 = vadd.f32 0.0, %v2366
      %2368 = vdwg.mxu0
      %v2369 = vmul.f32 %v2367, 0.001953125
      %v2370 = vperm.slane %v2369, 0
      %v2371 = vsub.f32 %v2182, %v2370
      %v2372 = vsub.f32 %v2185, %v2370
      %v2373 = vsub.f32 %v2188, %v2370
      %v2374 = vsub.f32 %v2191, %v2370
      %v2375 = vsub.f32 %v2194, %v2370
      %v2376 = vsub.f32 %v2197, %v2370
      %v2377 = vsub.f32 %v2200, %v2370
      %v2378 = vsub.f32 %v2203, %v2370
      %v2379 = vsub.f32 %v2206, %v2370
      %v2380 = vsub.f32 %v2209, %v2370
      %v2381 = vsub.f32 %v2212, %v2370
      %v2382 = vsub.f32 %v2215, %v2370
      %v2383 = vsub.f32 %v2218, %v2370
      %v2384 = vsub.f32 %v2221, %v2370
      %v2385 = vsub.f32 %v2224, %v2370
      %v2386 = vsub.f32 %v2227, %v2370
      %v2387 = vsub.f32 %v2230, %v2370
      %v2388 = vsub.f32 %v2233, %v2370
      %v2389 = vsub.f32 %v2236, %v2370
      %v2390 = vsub.f32 %v2239, %v2370
      %v2391 = vsub.f32 %v2242, %v2370
      %v2392 = vsub.f32 %v2245, %v2370
      %v2393 = vsub.f32 %v2248, %v2370
      %v2394 = vsub.f32 %v2251, %v2370
      %v2395 = vsub.f32 %v2254, %v2370
      %v2396 = vsub.f32 %v2257, %v2370
      %v2397 = vsub.f32 %v2260, %v2370
      %v2398 = vsub.f32 %v2263, %v2370
      %v2399 = vsub.f32 %v2266, %v2370
      %v2400 = vsub.f32 %v2269, %v2370
      %v2401 = vsub.f32 %v2272, %v2370
      %v2402 = vsub.f32 %v2275, %v2370
      %v2403 = vmul.f32 %v2371, %v2371
      %v2404 = vmul.f32 %v2372, %v2372
      %v2405 = vmul.f32 %v2373, %v2373
      %v2406 = vmul.f32 %v2374, %v2374
      %v2407 = vmul.f32 %v2375, %v2375
      %v2408 = vmul.f32 %v2376, %v2376
      %v2409 = vmul.f32 %v2377, %v2377
      %v2410 = vmul.f32 %v2378, %v2378
      %v2411 = vmul.f32 %v2379, %v2379
      %v2412 = vmul.f32 %v2380, %v2380
      %v2413 = vmul.f32 %v2381, %v2381
      %v2414 = vmul.f32 %v2382, %v2382
      %v2415 = vmul.f32 %v2383, %v2383
      %v2416 = vmul.f32 %v2384, %v2384
      %v2417 = vmul.f32 %v2385, %v2385
      %v2418 = vmul.f32 %v2386, %v2386
      %v2419 = vmul.f32 %v2387, %v2387
      %v2420 = vmul.f32 %v2388, %v2388
      %v2421 = vmul.f32 %v2389, %v2389
      %v2422 = vmul.f32 %v2390, %v2390
      %v2423 = vmul.f32 %v2391, %v2391
      %v2424 = vmul.f32 %v2392, %v2392
      %v2425 = vmul.f32 %v2393, %v2393
      %v2426 = vmul.f32 %v2394, %v2394
      %v2427 = vmul.f32 %v2395, %v2395
      %v2428 = vmul.f32 %v2396, %v2396
      %v2429 = vmul.f32 %v2397, %v2397
      %v2430 = vmul.f32 %v2398, %v2398
      %v2431 = vmul.f32 %v2399, %v2399
      %v2432 = vmul.f32 %v2400, %v2400
      %v2433 = vmul.f32 %v2401, %v2401
      %v2434 = vmul.f32 %v2402, %v2402
      %v2435 = vsel %vm304, %v2403, 0.0
      %v2436 = vsel %vm304, %v2404, 0.0
      %v2437 = vadd.f32 %v2435, %v2436
      %v2438 = vsel %vm304, %v2405, 0.0
      %v2439 = vadd.f32 %v2437, %v2438
      %v2440 = vsel %vm304, %v2406, 0.0
      %v2441 = vadd.f32 %v2439, %v2440
      %v2442 = vsel %vm304, %v2407, 0.0
      %v2443 = vadd.f32 %v2441, %v2442
      %v2444 = vsel %vm304, %v2408, 0.0
      %v2445 = vadd.f32 %v2443, %v2444
      %v2446 = vsel %vm304, %v2409, 0.0
      %v2447 = vadd.f32 %v2445, %v2446
      %v2448 = vsel %vm304, %v2410, 0.0
      %v2449 = vadd.f32 %v2447, %v2448
      %v2450 = vsel %vm304, %v2411, 0.0
      %v2451 = vadd.f32 %v2449, %v2450
      %v2452 = vsel %vm304, %v2412, 0.0
      %v2453 = vadd.f32 %v2451, %v2452
      %v2454 = vsel %vm304, %v2413, 0.0
      %v2455 = vadd.f32 %v2453, %v2454
      %v2456 = vsel %vm304, %v2414, 0.0
      %v2457 = vadd.f32 %v2455, %v2456
      %v2458 = vsel %vm304, %v2415, 0.0
      %v2459 = vadd.f32 %v2457, %v2458
      %v2460 = vsel %vm304, %v2416, 0.0
      %v2461 = vadd.f32 %v2459, %v2460
      %v2462 = vsel %vm304, %v2417, 0.0
      %v2463 = vadd.f32 %v2461, %v2462
      %v2464 = vsel %vm304, %v2418, 0.0
      %v2465 = vadd.f32 %v2463, %v2464
      %v2466 = vsel %vm304, %v2419, 0.0
      %v2467 = vadd.f32 %v2465, %v2466
      %v2468 = vsel %vm304, %v2420, 0.0
      %v2469 = vadd.f32 %v2467, %v2468
      %v2470 = vsel %vm304, %v2421, 0.0
      %v2471 = vadd.f32 %v2469, %v2470
      %v2472 = vsel %vm304, %v2422, 0.0
      %v2473 = vadd.f32 %v2471, %v2472
      %v2474 = vsel %vm304, %v2423, 0.0
      %v2475 = vadd.f32 %v2473, %v2474
      %v2476 = vsel %vm304, %v2424, 0.0
      %v2477 = vadd.f32 %v2475, %v2476
      %v2478 = vsel %vm304, %v2425, 0.0
      %v2479 = vadd.f32 %v2477, %v2478
      %v2480 = vsel %vm304, %v2426, 0.0
      %v2481 = vadd.f32 %v2479, %v2480
      %v2482 = vsel %vm304, %v2427, 0.0
      %v2483 = vadd.f32 %v2481, %v2482
      %v2484 = vsel %vm304, %v2428, 0.0
      %v2485 = vadd.f32 %v2483, %v2484
      %v2486 = vsel %vm304, %v2429, 0.0
      %v2487 = vadd.f32 %v2485, %v2486
      %v2488 = vsel %vm304, %v2430, 0.0
      %v2489 = vadd.f32 %v2487, %v2488
      %v2490 = vsel %vm304, %v2431, 0.0
      %v2491 = vadd.f32 %v2489, %v2490
      %v2492 = vsel %vm304, %v2432, 0.0
      %v2493 = vadd.f32 %v2491, %v2492
      %v2494 = vsel %vm304, %v2433, 0.0
      %v2495 = vadd.f32 %v2493, %v2494
      %v2496 = vsel %vm304, %v2434, 0.0
      %v2497 = vadd.f32 %v2495, %v2496
      %v2498 = vrot.slane %v2497, 4
      %v2499 = vadd.f32 %v2497, %v2498
      %v2500 = vrot.slane %v2499, 2
      %v2501 = vadd.f32 %v2499, %v2500
      %v2502 = vrot.slane %v2501, 1
      %v2503 = vadd.f32 %v2501, %v2502
      %v2505 = vsel %vm304, %v2503, 0
      %2507 = vmatpush.msra.mxu0 0.0
      %2508 = vmatpush.msra.mxu0 0.0
      %2509 = vmatpush.msra.mxu0 0.0
      %2510 = vmatpush.msra.mxu0 0.0
      %2511 = vmatpush.msra.mxu0 0.0
      %2512 = vmatpush.msra.mxu0 0.0
      %2513 = vmatpush.msra.mxu0 0.0
      %2514 = vmatpush.msra.mxu0 0.0
      %2515 = vmatpush.msra.mxu0 %v367
      %2516 = vmatpush.msra.mxu0 %v366
      %2517 = vmatpush.msra.mxu0 %v365
      %2518 = vmatpush.msra.mxu0 %v364
      %2519 = vmatpush.msra.mxu0 %v363
      %2520 = vmatpush.msra.mxu0 %v362
      %2521 = vmatpush.msra.mxu0 %v361
      %2522 = vmatpush.msra.mxu0 %v360
      %2523 = vmatmul.f32.gmra.mxu0 %v2505
      %v2524 = vpop.f32.mrf.mxu0
      %v2525 = vadd.f32 0.0, %v2524
      %2526 = vdwg.mxu0
      %v2527 = vmul.f32 %v2525, 0.001953125
      %v2528 = vadd.f32 %v2527, 1e-05
      %v2529 = vrsqrt.pop %v2528
      %v2530 = vmul.f32 %v2529, %v2528
      %v2531 = vmul.f32 %v2530, %v2529
      %v2532 = vmul.f32 0.5, %v2531
      %v2533 = vsub.f32 1.5, %v2532
      %v2534 = vmul.f32 %v2529, %v2533
      %vm2535 = vweird.f32 %v2528
      %vm2536 = vweird.f32 %v2529
      %vm2537 = vmor %vm2535, %vm2536
      %v2538 = vsel %vm2537, %v2529, %v2534
      %v2539 = vperm.slane %v2538, 0
      %v2540 = vmul.f32 %v2371, %v2539
      %v2541 = vmul.f32 %v2372, %v2539
      %v2542 = vmul.f32 %v2373, %v2539
      %v2543 = vmul.f32 %v2374, %v2539
      %v2544 = vmul.f32 %v2375, %v2539
      %v2545 = vmul.f32 %v2376, %v2539
      %v2546 = vmul.f32 %v2377, %v2539
      %v2547 = vmul.f32 %v2378, %v2539
      %v2548 = vmul.f32 %v2379, %v2539
      %v2549 = vmul.f32 %v2380, %v2539
      %v2550 = vmul.f32 %v2381, %v2539
      %v2551 = vmul.f32 %v2382, %v2539
      %v2552 = vmul.f32 %v2383, %v2539
      %v2553 = vmul.f32 %v2384, %v2539
      %v2554 = vmul.f32 %v2385, %v2539
      %v2555 = vmul.f32 %v2386, %v2539
      %v2556 = vmul.f32 %v2387, %v2539
      %v2557 = vmul.f32 %v2388, %v2539
      %v2558 = vmul.f32 %v2389, %v2539
      %v2559 = vmul.f32 %v2390, %v2539
      %v2560 = vmul.f32 %v2391, %v2539
      %v2561 = vmul.f32 %v2392, %v2539
      %v2562 = vmul.f32 %v2393, %v2539
      %v2563 = vmul.f32 %v2394, %v2539
      %v2564 = vmul.f32 %v2395, %v2539
      %v2565 = vmul.f32 %v2396, %v2539
      %v2566 = vmul.f32 %v2397, %v2539
      %v2567 = vmul.f32 %v2398, %v2539
      %v2568 = vmul.f32 %v2399, %v2539
      %v2569 = vmul.f32 %v2400, %v2539
      %v2570 = vmul.f32 %v2401, %v2539
      %v2571 = vmul.f32 %v2402, %v2539
      %v2572 = vld [vmem:[%s3] sm:$0x1]
      %v2574 = vperm.slane %v2572, 0
      %v2576 = vmul.f32 %v2540, %v2574
      %v2577 = vmul.f32 %v2541, %v2574
      %v2578 = vmul.f32 %v2542, %v2574
      %v2579 = vmul.f32 %v2543, %v2574
      %v2580 = vmul.f32 %v2544, %v2574
      %v2581 = vmul.f32 %v2545, %v2574
      %v2582 = vmul.f32 %v2546, %v2574
      %v2583 = vmul.f32 %v2547, %v2574
      %v2584 = vmul.f32 %v2548, %v2574
      %v2585 = vmul.f32 %v2549, %v2574
      %v2586 = vmul.f32 %v2550, %v2574
      %v2587 = vmul.f32 %v2551, %v2574
      %v2588 = vmul.f32 %v2552, %v2574
      %v2589 = vmul.f32 %v2553, %v2574
      %v2590 = vmul.f32 %v2554, %v2574
      %v2591 = vmul.f32 %v2555, %v2574
      %v2592 = vmul.f32 %v2556, %v2574
      %v2593 = vmul.f32 %v2557, %v2574
      %v2594 = vmul.f32 %v2558, %v2574
      %v2595 = vmul.f32 %v2559, %v2574
      %v2596 = vmul.f32 %v2560, %v2574
      %v2597 = vmul.f32 %v2561, %v2574
      %v2598 = vmul.f32 %v2562, %v2574
      %v2599 = vmul.f32 %v2563, %v2574
      %v2600 = vmul.f32 %v2564, %v2574
      %v2601 = vmul.f32 %v2565, %v2574
      %v2602 = vmul.f32 %v2566, %v2574
      %v2603 = vmul.f32 %v2567, %v2574
      %v2604 = vmul.f32 %v2568, %v2574
      %v2605 = vmul.f32 %v2569, %v2574
      %v2606 = vmul.f32 %v2570, %v2574
      %v2607 = vmul.f32 %v2571, %v2574
      %v2608 = vld [vmem:[%s4] sm:$0x1]
      %v2610 = vperm.slane %v2608, 0
      %v2612 = vadd.f32 %v2576, %v2610
      %v2613 = vadd.f32 %v2577, %v2610
      %v2614 = vadd.f32 %v2578, %v2610
      %v2615 = vadd.f32 %v2579, %v2610
      %v2616 = vadd.f32 %v2580, %v2610
      %v2617 = vadd.f32 %v2581, %v2610
      %v2618 = vadd.f32 %v2582, %v2610
      %v2619 = vadd.f32 %v2583, %v2610
      %v2620 = vadd.f32 %v2584, %v2610
      %v2621 = vadd.f32 %v2585, %v2610
      %v2622 = vadd.f32 %v2586, %v2610
      %v2623 = vadd.f32 %v2587, %v2610
      %v2624 = vadd.f32 %v2588, %v2610
      %v2625 = vadd.f32 %v2589, %v2610
      %v2626 = vadd.f32 %v2590, %v2610
      %v2627 = vadd.f32 %v2591, %v2610
      %v2628 = vadd.f32 %v2592, %v2610
      %v2629 = vadd.f32 %v2593, %v2610
      %v2630 = vadd.f32 %v2594, %v2610
      %v2631 = vadd.f32 %v2595, %v2610
      %v2632 = vadd.f32 %v2596, %v2610
      %v2633 = vadd.f32 %v2597, %v2610
      %v2634 = vadd.f32 %v2598, %v2610
      %v2635 = vadd.f32 %v2599, %v2610
      %v2636 = vadd.f32 %v2600, %v2610
      %v2637 = vadd.f32 %v2601, %v2610
      %v2638 = vadd.f32 %v2602, %v2610
      %v2639 = vadd.f32 %v2603, %v2610
      %v2640 = vadd.f32 %v2604, %v2610
      %v2641 = vadd.f32 %v2605, %v2610
      %v2642 = vadd.f32 %v2606, %v2610
      %v2643 = vadd.f32 %v2607, %v2610
      %v2644 = vmax.f32 %v2612, 0.0
      %v2645 = vmax.f32 %v2613, 0.0
      %v2646 = vmax.f32 %v2614, 0.0
      %v2647 = vmax.f32 %v2615, 0.0
      %v2648 = vmax.f32 %v2616, 0.0
      %v2649 = vmax.f32 %v2617, 0.0
      %v2650 = vmax.f32 %v2618, 0.0
      %v2651 = vmax.f32 %v2619, 0.0
      %v2652 = vmax.f32 %v2620, 0.0
      %v2653 = vmax.f32 %v2621, 0.0
      %v2654 = vmax.f32 %v2622, 0.0
      %v2655 = vmax.f32 %v2623, 0.0
      %v2656 = vmax.f32 %v2624, 0.0
      %v2657 = vmax.f32 %v2625, 0.0
      %v2658 = vmax.f32 %v2626, 0.0
      %v2659 = vmax.f32 %v2627, 0.0
      %v2660 = vmax.f32 %v2628, 0.0
      %v2661 = vmax.f32 %v2629, 0.0
      %v2662 = vmax.f32 %v2630, 0.0
      %v2663 = vmax.f32 %v2631, 0.0
      %v2664 = vmax.f32 %v2632, 0.0
      %v2665 = vmax.f32 %v2633, 0.0
      %v2666 = vmax.f32 %v2634, 0.0
      %v2667 = vmax.f32 %v2635, 0.0
      %v2668 = vmax.f32 %v2636, 0.0
      %v2669 = vmax.f32 %v2637, 0.0
      %v2670 = vmax.f32 %v2638, 0.0
      %v2671 = vmax.f32 %v2639, 0.0
      %v2672 = vmax.f32 %v2640, 0.0
      %v2673 = vmax.f32 %v2641, 0.0
      %v2674 = vmax.f32 %v2642, 0.0
      %v2675 = vmax.f32 %v2643, 0.0
      %2676 = vst.msk [vmem:[%s400 + $0x1] sm:$0xff] %vm304, %v2644
      %2677 = vst.msk [vmem:[%s400 + $0x9] sm:$0xff] %vm304, %v2645
      %2678 = vst.msk [vmem:[%s400 + $0x19] sm:$0xff] %vm304, %v2646
      %2679 = vst.msk [vmem:[%s400 + $0x21] sm:$0xff] %vm304, %v2647
      %2680 = vst.msk [vmem:[%s400 + $0x31] sm:$0xff] %vm304, %v2648
      %2681 = vst.msk [vmem:[%s400 + $0x39] sm:$0xff] %vm304, %v2649
      %2682 = vst.msk [vmem:[%s400 + $0x49] sm:$0xff] %vm304, %v2650
      %2683 = vst.msk [vmem:[%s400 + $0x51] sm:$0xff] %vm304, %v2651
      %2684 = vst.msk [vmem:[%s400 + $0x61] sm:$0xff] %vm304, %v2652
      %2685 = vst.msk [vmem:[%s400 + $0x69] sm:$0xff] %vm304, %v2653
      %2686 = vst.msk [vmem:[%s400 + $0x79] sm:$0xff] %vm304, %v2654
      %2687 = vst.msk [vmem:[%s400 + $0x81] sm:$0xff] %vm304, %v2655
      %2688 = vst.msk [vmem:[%s400 + $0x91] sm:$0xff] %vm304, %v2656
      %2689 = vst.msk [vmem:[%s400 + $0x99] sm:$0xff] %vm304, %v2657
      %2690 = vst.msk [vmem:[%s400 + $0xa9] sm:$0xff] %vm304, %v2658
      %2691 = vst.msk [vmem:[%s400 + $0xb1] sm:$0xff] %vm304, %v2659
      %2692 = vst.msk [vmem:[%s400 + $0xc1] sm:$0xff] %vm304, %v2660
      %2693 = vst.msk [vmem:[%s400 + $0xc9] sm:$0xff] %vm304, %v2661
      %2694 = vst.msk [vmem:[%s400 + $0xd9] sm:$0xff] %vm304, %v2662
      %2695 = vst.msk [vmem:[%s400 + $0xe1] sm:$0xff] %vm304, %v2663
      %2696 = vst.msk [vmem:[%s400 + $0xf1] sm:$0xff] %vm304, %v2664
      %2697 = vst.msk [vmem:[%s400 + $0xf9] sm:$0xff] %vm304, %v2665
      %2698 = vst.msk [vmem:[%s400 + $0x109] sm:$0xff] %vm304, %v2666
      %2699 = vst.msk [vmem:[%s400 + $0x111] sm:$0xff] %vm304, %v2667
      %2700 = vst.msk [vmem:[%s400 + $0x121] sm:$0xff] %vm304, %v2668
      %2701 = vst.msk [vmem:[%s400 + $0x129] sm:$0xff] %vm304, %v2669
      %2702 = vst.msk [vmem:[%s400 + $0x139] sm:$0xff] %vm304, %v2670
      %2703 = vst.msk [vmem:[%s400 + $0x141] sm:$0xff] %vm304, %v2671
      %2704 = vst.msk [vmem:[%s400 + $0x151] sm:$0xff] %vm304, %v2672
      %2705 = vst.msk [vmem:[%s400 + $0x159] sm:$0xff] %vm304, %v2673
      %2706 = vst.msk [vmem:[%s400 + $0x169] sm:$0xff] %vm304, %v2674
      %2707 = vst.msk [vmem:[%s400 + $0x171] sm:$0xff] %vm304, %v2675
      %v2708 = vld [vmem:[#allocation2] sm:$0xff]
      %v2709 = vld [vmem:[#allocation2 + $0x8] sm:$0xff]
      %v2710 = vld [vmem:[#allocation2 + $0x10] sm:$0x3]
      %v2711 = vld [vmem:[#allocation2 + $0x18] sm:$0xff]
      %v2712 = vld [vmem:[#allocation2 + $0x20] sm:$0xff]
      %v2713 = vld [vmem:[#allocation2 + $0x28] sm:$0x3]
      %v2714 = vld [vmem:[#allocation2 + $0x30] sm:$0xff]
      %v2715 = vld [vmem:[#allocation2 + $0x38] sm:$0xff]
      %v2716 = vld [vmem:[#allocation2 + $0x40] sm:$0x3]
      %v2717 = vld [vmem:[#allocation2 + $0x48] sm:$0xff]
      %v2718 = vld [vmem:[#allocation2 + $0x50] sm:$0xff]
      %v2719 = vld [vmem:[#allocation2 + $0x58] sm:$0x3]
      %v2720 = vld [vmem:[#allocation2 + $0x60] sm:$0xff]
      %v2721 = vld [vmem:[#allocation2 + $0x68] sm:$0xff]
      %v2722 = vld [vmem:[#allocation2 + $0x70] sm:$0x3]
      %v2723 = vld [vmem:[#allocation2 + $0x78] sm:$0xff]
      %v2724 = vld [vmem:[#allocation2 + $0x80] sm:$0xff]
      %v2725 = vld [vmem:[#allocation2 + $0x88] sm:$0x3]
      %v2726 = vld [vmem:[#allocation2 + $0x90] sm:$0xff]
      %v2727 = vld [vmem:[#allocation2 + $0x98] sm:$0xff]
      %v2728 = vld [vmem:[#allocation2 + $0xa0] sm:$0x3]
      %v2729 = vld [vmem:[#allocation2 + $0xa8] sm:$0xff]
      %v2730 = vld [vmem:[#allocation2 + $0xb0] sm:$0xff]
      %v2731 = vld [vmem:[#allocation2 + $0xb8] sm:$0x3]
      %v2732 = vld [vmem:[#allocation2 + $0xc0] sm:$0xff]
      %v2733 = vld [vmem:[#allocation2 + $0xc8] sm:$0xff]
      %v2734 = vld [vmem:[#allocation2 + $0xd0] sm:$0x3]
      %v2735 = vld [vmem:[#allocation2 + $0xd8] sm:$0xff]
      %v2736 = vld [vmem:[#allocation2 + $0xe0] sm:$0xff]
      %v2737 = vld [vmem:[#allocation2 + $0xe8] sm:$0x3]
      %v2738 = vld [vmem:[#allocation2 + $0xf0] sm:$0xff]
      %v2739 = vld [vmem:[#allocation2 + $0xf8] sm:$0xff]
      %v2740 = vld [vmem:[#allocation2 + $0x100] sm:$0x3]
      %v2741 = vld [vmem:[#allocation2 + $0x108] sm:$0xff]
      %v2742 = vld [vmem:[#allocation2 + $0x110] sm:$0xff]
      %v2743 = vld [vmem:[#allocation2 + $0x118] sm:$0x3]
      %v2744 = vld [vmem:[#allocation2 + $0x120] sm:$0xff]
      %v2745 = vld [vmem:[#allocation2 + $0x128] sm:$0xff]
      %v2746 = vld [vmem:[#allocation2 + $0x130] sm:$0x3]
      %v2747 = vld [vmem:[#allocation2 + $0x138] sm:$0xff]
      %v2748 = vld [vmem:[#allocation2 + $0x140] sm:$0xff]
      %v2749 = vld [vmem:[#allocation2 + $0x148] sm:$0x3]
      %v2750 = vld [vmem:[#allocation2 + $0x150] sm:$0xff]
      %v2751 = vld [vmem:[#allocation2 + $0x158] sm:$0xff]
      %v2752 = vld [vmem:[#allocation2 + $0x160] sm:$0x3]
      %v2753 = vld [vmem:[#allocation2 + $0x168] sm:$0xff]
      %v2754 = vld [vmem:[#allocation2 + $0x170] sm:$0xff]
      %v2755 = vld [vmem:[#allocation2 + $0x178] sm:$0x3]
      %v2756 = vld [vmem:[#allocation2 + $0x180] sm:$0xff]
      %v2757 = vld [vmem:[#allocation2 + $0x188] sm:$0xff]
      %v2758 = vld [vmem:[#allocation2 + $0x190] sm:$0x3]
      %v2759 = vld [vmem:[#allocation2 + $0x198] sm:$0xff]
      %v2760 = vld [vmem:[#allocation2 + $0x1a0] sm:$0xff]
      %v2761 = vld [vmem:[#allocation2 + $0x1a8] sm:$0x3]
      %2762 = vst.msk [vmem:[#allocation3] sm:$0xff] %vm304, %v2708
      %2763 = vst.msk [vmem:[#allocation3 + $0x28] sm:$0xff] %vm304, %v2709
      %2764 = vst.msk [vmem:[#allocation3 + $0x50] sm:$0xff] %vm304, %v2711
      %2765 = vst.msk [vmem:[#allocation3 + $0x78] sm:$0xff] %vm304, %v2712
      %2766 = vst.msk [vmem:[#allocation3 + $0xa0] sm:$0xff] %vm304, %v2714
      %2767 = vst.msk [vmem:[#allocation3 + $0xc8] sm:$0xff] %vm304, %v2715
      %2768 = vst.msk [vmem:[#allocation3 + $0xf0] sm:$0xff] %vm304, %v2717
      %2769 = vst.msk [vmem:[#allocation3 + $0x118] sm:$0xff] %vm304, %v2718
      %2770 = vst.msk [vmem:[#allocation3 + $0x140] sm:$0xff] %vm304, %v2720
      %2771 = vst.msk [vmem:[#allocation3 + $0x168] sm:$0xff] %vm304, %v2721
      %2772 = vst.msk [vmem:[#allocation3 + $0x190] sm:$0xff] %vm304, %v2723
      %2773 = vst.msk [vmem:[#allocation3 + $0x1b8] sm:$0xff] %vm304, %v2724
      %2774 = vst.msk [vmem:[#allocation3 + $0x1e0] sm:$0xff] %vm304, %v2726
      %2775 = vst.msk [vmem:[#allocation3 + $0x208] sm:$0xff] %vm304, %v2727
      %2776 = vst.msk [vmem:[#allocation3 + $0x230] sm:$0xff] %vm304, %v2729
      %2777 = vst.msk [vmem:[#allocation3 + $0x258] sm:$0xff] %vm304, %v2730
      %2778 = vst.msk [vmem:[#allocation3 + $0x280] sm:$0xff] %vm304, %v2732
      %2779 = vst.msk [vmem:[#allocation3 + $0x2a8] sm:$0xff] %vm304, %v2733
      %2780 = vst.msk [vmem:[#allocation3 + $0x2d0] sm:$0xff] %vm304, %v2735
      %2781 = vst.msk [vmem:[#allocation3 + $0x2f8] sm:$0xff] %vm304, %v2736
      %2782 = vst.msk [vmem:[#allocation3 + $0x320] sm:$0xff] %vm304, %v2738
      %2783 = vst.msk [vmem:[#allocation3 + $0x348] sm:$0xff] %vm304, %v2739
      %2784 = vst.msk [vmem:[#allocation3 + $0x370] sm:$0xff] %vm304, %v2741
      %2785 = vst.msk [vmem:[#allocation3 + $0x398] sm:$0xff] %vm304, %v2742
      %2786 = vst.msk [vmem:[#allocation3 + $0x3c0] sm:$0xff] %vm304, %v2744
      %2787 = vst.msk [vmem:[#allocation3 + $0x3e8] sm:$0xff] %vm304, %v2745
      %2788 = vst.msk [vmem:[#allocation3 + $0x410] sm:$0xff] %vm304, %v2747
      %2789 = vst.msk [vmem:[#allocation3 + $0x438] sm:$0xff] %vm304, %v2748
      %2790 = vst.msk [vmem:[#allocation3 + $0x460] sm:$0xff] %vm304, %v2750
      %2791 = vst.msk [vmem:[#allocation3 + $0x488] sm:$0xff] %vm304, %v2751
      %2792 = vst.msk [vmem:[#allocation3 + $0x4b0] sm:$0xff] %vm304, %v2753
      %2793 = vst.msk [vmem:[#allocation3 + $0x4d8] sm:$0xff] %vm304, %v2754
      %v2842 = vrot.slane %v2708, 1
      %v2843 = vrot.slane %v2709, 1
      %v2844 = vsel %vm567, %v2842, %v2843
      %v2845 = vrot.slane %v2710, 1
      %v2846 = vsel %vm567, %v2843, %v2845
      %v2847 = vrot.slane %v2711, 1
      %v2848 = vrot.slane %v2712, 1
      %v2849 = vsel %vm567, %v2847, %v2848
      %v2850 = vrot.slane %v2713, 1
      %v2851 = vsel %vm567, %v2848, %v2850
      %v2852 = vrot.slane %v2714, 1
      %v2853 = vrot.slane %v2715, 1
      %v2854 = vsel %vm567, %v2852, %v2853
      %v2855 = vrot.slane %v2716, 1
      %v2856 = vsel %vm567, %v2853, %v2855
      %v2857 = vrot.slane %v2717, 1
      %v2858 = vrot.slane %v2718, 1
      %v2859 = vsel %vm567, %v2857, %v2858
      %v2860 = vrot.slane %v2719, 1
      %v2861 = vsel %vm567, %v2858, %v2860
      %v2862 = vrot.slane %v2720, 1
      %v2863 = vrot.slane %v2721, 1
      %v2864 = vsel %vm567, %v2862, %v2863
      %v2865 = vrot.slane %v2722, 1
      %v2866 = vsel %vm567, %v2863, %v2865
      %v2867 = vrot.slane %v2723, 1
      %v2868 = vrot.slane %v2724, 1
      %v2869 = vsel %vm567, %v2867, %v2868
      %v2870 = vrot.slane %v2725, 1
      %v2871 = vsel %vm567, %v2868, %v2870
      %v2872 = vrot.slane %v2726, 1
      %v2873 = vrot.slane %v2727, 1
      %v2874 = vsel %vm567, %v2872, %v2873
      %v2875 = vrot.slane %v2728, 1
      %v2876 = vsel %vm567, %v2873, %v2875
      %v2877 = vrot.slane %v2729, 1
      %v2878 = vrot.slane %v2730, 1
      %v2879 = vsel %vm567, %v2877, %v2878
      %v2880 = vrot.slane %v2731, 1
      %v2881 = vsel %vm567, %v2878, %v2880
      %v2882 = vrot.slane %v2732, 1
      %v2883 = vrot.slane %v2733, 1
      %v2884 = vsel %vm567, %v2882, %v2883
      %v2885 = vrot.slane %v2734, 1
      %v2886 = vsel %vm567, %v2883, %v2885
      %v2887 = vrot.slane %v2735, 1
      %v2888 = vrot.slane %v2736, 1
      %v2889 = vsel %vm567, %v2887, %v2888
      %v2890 = vrot.slane %v2737, 1
      %v2891 = vsel %vm567, %v2888, %v2890
      %v2892 = vrot.slane %v2738, 1
      %v2893 = vrot.slane %v2739, 1
      %v2894 = vsel %vm567, %v2892, %v2893
      %v2895 = vrot.slane %v2740, 1
      %v2896 = vsel %vm567, %v2893, %v2895
      %v2897 = vrot.slane %v2741, 1
      %v2898 = vrot.slane %v2742, 1
      %v2899 = vsel %vm567, %v2897, %v2898
      %v2900 = vrot.slane %v2743, 1
      %v2901 = vsel %vm567, %v2898, %v2900
      %v2902 = vrot.slane %v2744, 1
      %v2903 = vrot.slane %v2745, 1
      %v2904 = vsel %vm567, %v2902, %v2903
      %v2905 = vrot.slane %v2746, 1
      %v2906 = vsel %vm567, %v2903, %v2905
      %v2907 = vrot.slane %v2747, 1
      %v2908 = vrot.slane %v2748, 1
      %v2909 = vsel %vm567, %v2907, %v2908
      %v2910 = vrot.slane %v2749, 1
      %v2911 = vsel %vm567, %v2908, %v2910
      %v2912 = vrot.slane %v2750, 1
      %v2913 = vrot.slane %v2751, 1
      %v2914 = vsel %vm567, %v2912, %v2913
      %v2915 = vrot.slane %v2752, 1
      %v2916 = vsel %vm567, %v2913, %v2915
      %v2917 = vrot.slane %v2753, 1
      %v2918 = vrot.slane %v2754, 1
      %v2919 = vsel %vm567, %v2917, %v2918
      %v2920 = vrot.slane %v2755, 1
      %v2921 = vsel %vm567, %v2918, %v2920
      %2922 = vrot.lane.b32.xlu0 %v2844, 64
      %v2923 = vpop.permute.xlu0 %2922
      %2924 = vrot.lane.b32.xlu0 %v2846, 64
      %v2925 = vpop.permute.xlu0 %2924
      %2926 = vrot.lane.b32.xlu0 %v2849, 64
      %v2927 = vpop.permute.xlu0 %2926
      %2928 = vrot.lane.b32.xlu0 %v2851, 64
      %v2929 = vpop.permute.xlu0 %2928
      %2930 = vrot.lane.b32.xlu0 %v2854, 64
      %v2931 = vpop.permute.xlu0 %2930
      %2932 = vrot.lane.b32.xlu0 %v2856, 64
      %v2933 = vpop.permute.xlu0 %2932
      %2934 = vrot.lane.b32.xlu0 %v2859, 64
      %v2935 = vpop.permute.xlu0 %2934
      %2936 = vrot.lane.b32.xlu0 %v2861, 64
      %v2937 = vpop.permute.xlu0 %2936
      %2938 = vrot.lane.b32.xlu0 %v2864, 64
      %v2939 = vpop.permute.xlu0 %2938
      %2940 = vrot.lane.b32.xlu0 %v2866, 64
      %v2941 = vpop.permute.xlu0 %2940
      %2942 = vrot.lane.b32.xlu0 %v2869, 64
      %v2943 = vpop.permute.xlu0 %2942
      %2944 = vrot.lane.b32.xlu0 %v2871, 64
      %v2945 = vpop.permute.xlu0 %2944
      %2946 = vrot.lane.b32.xlu0 %v2874, 64
      %v2947 = vpop.permute.xlu0 %2946
      %2948 = vrot.lane.b32.xlu0 %v2876, 64
      %v2949 = vpop.permute.xlu0 %2948
      %2950 = vrot.lane.b32.xlu0 %v2879, 64
      %v2951 = vpop.permute.xlu0 %2950
      %2952 = vrot.lane.b32.xlu0 %v2881, 64
      %v2953 = vpop.permute.xlu0 %2952
      %2954 = vrot.lane.b32.xlu0 %v2884, 64
      %v2955 = vpop.permute.xlu0 %2954
      %2956 = vrot.lane.b32.xlu0 %v2886, 64
      %v2957 = vpop.permute.xlu0 %2956
      %2958 = vrot.lane.b32.xlu0 %v2889, 64
      %v2959 = vpop.permute.xlu0 %2958
      %2960 = vrot.lane.b32.xlu0 %v2891, 64
      %v2961 = vpop.permute.xlu0 %2960
      %2962 = vrot.lane.b32.xlu0 %v2894, 64
      %v2963 = vpop.permute.xlu0 %2962
      %2964 = vrot.lane.b32.xlu0 %v2896, 64
      %v2965 = vpop.permute.xlu0 %2964
      %2966 = vrot.lane.b32.xlu0 %v2899, 64
      %v2967 = vpop.permute.xlu0 %2966
      %2968 = vrot.lane.b32.xlu0 %v2901, 64
      %v2969 = vpop.permute.xlu0 %2968
      %2970 = vrot.lane.b32.xlu0 %v2904, 64
      %v2971 = vpop.permute.xlu0 %2970
      %2972 = vrot.lane.b32.xlu0 %v2906, 64
      %v2973 = vpop.permute.xlu0 %2972
      %2974 = vrot.lane.b32.xlu0 %v2909, 64
      %v2975 = vpop.permute.xlu0 %2974
      %2976 = vrot.lane.b32.xlu0 %v2911, 64
      %v2977 = vpop.permute.xlu0 %2976
      %2978 = vrot.lane.b32.xlu0 %v2914, 64
      %v2979 = vpop.permute.xlu0 %2978
      %2980 = vrot.lane.b32.xlu0 %v2916, 64
      %v2981 = vpop.permute.xlu0 %2980
      %2982 = vrot.lane.b32.xlu0 %v2919, 64
      %v2983 = vpop.permute.xlu0 %2982
      %2984 = vrot.lane.b32.xlu0 %v2921, 64
      %v2985 = vpop.permute.xlu0 %2984
      %3018 = vst.msk [vmem:[#allocation3] sm:$0xff] %vm744, %v2923
      %3019 = vst.msk [vmem:[#allocation3 + $0x28] sm:$0xff] %vm744, %v2925
      %3020 = vst.msk [vmem:[#allocation3 + $0x50] sm:$0xff] %vm744, %v2927
      %3021 = vst.msk [vmem:[#allocation3 + $0x78] sm:$0xff] %vm744, %v2929
      %3022 = vst.msk [vmem:[#allocation3 + $0xa0] sm:$0xff] %vm744, %v2931
      %3023 = vst.msk [vmem:[#allocation3 + $0xc8] sm:$0xff] %vm744, %v2933
      %3024 = vst.msk [vmem:[#allocation3 + $0xf0] sm:$0xff] %vm744, %v2935
      %3025 = vst.msk [vmem:[#allocation3 + $0x118] sm:$0xff] %vm744, %v2937
      %3026 = vst.msk [vmem:[#allocation3 + $0x140] sm:$0xff] %vm744, %v2939
      %3027 = vst.msk [vmem:[#allocation3 + $0x168] sm:$0xff] %vm744, %v2941
      %3028 = vst.msk [vmem:[#allocation3 + $0x190] sm:$0xff] %vm744, %v2943
      %3029 = vst.msk [vmem:[#allocation3 + $0x1b8] sm:$0xff] %vm744, %v2945
      %3030 = vst.msk [vmem:[#allocation3 + $0x1e0] sm:$0xff] %vm744, %v2947
      %3031 = vst.msk [vmem:[#allocation3 + $0x208] sm:$0xff] %vm744, %v2949
      %3032 = vst.msk [vmem:[#allocation3 + $0x230] sm:$0xff] %vm744, %v2951
      %3033 = vst.msk [vmem:[#allocation3 + $0x258] sm:$0xff] %vm744, %v2953
      %3034 = vst.msk [vmem:[#allocation3 + $0x280] sm:$0xff] %vm744, %v2955
      %3035 = vst.msk [vmem:[#allocation3 + $0x2a8] sm:$0xff] %vm744, %v2957
      %3036 = vst.msk [vmem:[#allocation3 + $0x2d0] sm:$0xff] %vm744, %v2959
      %3037 = vst.msk [vmem:[#allocation3 + $0x2f8] sm:$0xff] %vm744, %v2961
      %3038 = vst.msk [vmem:[#allocation3 + $0x320] sm:$0xff] %vm744, %v2963
      %3039 = vst.msk [vmem:[#allocation3 + $0x348] sm:$0xff] %vm744, %v2965
      %3040 = vst.msk [vmem:[#allocation3 + $0x370] sm:$0xff] %vm744, %v2967
      %3041 = vst.msk [vmem:[#allocation3 + $0x398] sm:$0xff] %vm744, %v2969
      %3042 = vst.msk [vmem:[#allocation3 + $0x3c0] sm:$0xff] %vm744, %v2971
      %3043 = vst.msk [vmem:[#allocation3 + $0x3e8] sm:$0xff] %vm744, %v2973
      %3044 = vst.msk [vmem:[#allocation3 + $0x410] sm:$0xff] %vm744, %v2975
      %3045 = vst.msk [vmem:[#allocation3 + $0x438] sm:$0xff] %vm744, %v2977
      %3046 = vst.msk [vmem:[#allocation3 + $0x460] sm:$0xff] %vm744, %v2979
      %3047 = vst.msk [vmem:[#allocation3 + $0x488] sm:$0xff] %vm744, %v2981
      %3048 = vst.msk [vmem:[#allocation3 + $0x4b0] sm:$0xff] %vm744, %v2983
      %3049 = vst.msk [vmem:[#allocation3 + $0x4d8] sm:$0xff] %vm744, %v2985
      %v3050 = vrot.slane %v2708, 2
      %v3051 = vrot.slane %v2709, 2
      %v3052 = vsel %vm777, %v3050, %v3051
      %v3053 = vrot.slane %v2710, 2
      %v3054 = vsel %vm777, %v3051, %v3053
      %v3055 = vrot.slane %v2711, 2
      %v3056 = vrot.slane %v2712, 2
      %v3057 = vsel %vm777, %v3055, %v3056
      %v3058 = vrot.slane %v2713, 2
      %v3059 = vsel %vm777, %v3056, %v3058
      %v3060 = vrot.slane %v2714, 2
      %v3061 = vrot.slane %v2715, 2
      %v3062 = vsel %vm777, %v3060, %v3061
      %v3063 = vrot.slane %v2716, 2
      %v3064 = vsel %vm777, %v3061, %v3063
      %v3065 = vrot.slane %v2717, 2
      %v3066 = vrot.slane %v2718, 2
      %v3067 = vsel %vm777, %v3065, %v3066
      %v3068 = vrot.slane %v2719, 2
      %v3069 = vsel %vm777, %v3066, %v3068
      %v3070 = vrot.slane %v2720, 2
      %v3071 = vrot.slane %v2721, 2
      %v3072 = vsel %vm777, %v3070, %v3071
      %v3073 = vrot.slane %v2722, 2
      %v3074 = vsel %vm777, %v3071, %v3073
      %v3075 = vrot.slane %v2723, 2
      %v3076 = vrot.slane %v2724, 2
      %v3077 = vsel %vm777, %v3075, %v3076
      %v3078 = vrot.slane %v2725, 2
      %v3079 = vsel %vm777, %v3076, %v3078
      %v3080 = vrot.slane %v2726, 2
      %v3081 = vrot.slane %v2727, 2
      %v3082 = vsel %vm777, %v3080, %v3081
      %v3083 = vrot.slane %v2728, 2
      %v3084 = vsel %vm777, %v3081, %v3083
      %v3085 = vrot.slane %v2729, 2
      %v3086 = vrot.slane %v2730, 2
      %v3087 = vsel %vm777, %v3085, %v3086
      %v3088 = vrot.slane %v2731, 2
      %v3089 = vsel %vm777, %v3086, %v3088
      %v3090 = vrot.slane %v2732, 2
      %v3091 = vrot.slane %v2733, 2
      %v3092 = vsel %vm777, %v3090, %v3091
      %v3093 = vrot.slane %v2734, 2
      %v3094 = vsel %vm777, %v3091, %v3093
      %v3095 = vrot.slane %v2735, 2
      %v3096 = vrot.slane %v2736, 2
      %v3097 = vsel %vm777, %v3095, %v3096
      %v3098 = vrot.slane %v2737, 2
      %v3099 = vsel %vm777, %v3096, %v3098
      %v3100 = vrot.slane %v2738, 2
      %v3101 = vrot.slane %v2739, 2
      %v3102 = vsel %vm777, %v3100, %v3101
      %v3103 = vrot.slane %v2740, 2
      %v3104 = vsel %vm777, %v3101, %v3103
      %v3105 = vrot.slane %v2741, 2
      %v3106 = vrot.slane %v2742, 2
      %v3107 = vsel %vm777, %v3105, %v3106
      %v3108 = vrot.slane %v2743, 2
      %v3109 = vsel %vm777, %v3106, %v3108
      %v3110 = vrot.slane %v2744, 2
      %v3111 = vrot.slane %v2745, 2
      %v3112 = vsel %vm777, %v3110, %v3111
      %v3113 = vrot.slane %v2746, 2
      %v3114 = vsel %vm777, %v3111, %v3113
      %v3115 = vrot.slane %v2747, 2
      %v3116 = vrot.slane %v2748, 2
      %v3117 = vsel %vm777, %v3115, %v3116
      %v3118 = vrot.slane %v2749, 2
      %v3119 = vsel %vm777, %v3116, %v3118
      %v3120 = vrot.slane %v2750, 2
      %v3121 = vrot.slane %v2751, 2
      %v3122 = vsel %vm777, %v3120, %v3121
      %v3123 = vrot.slane %v2752, 2
      %v3124 = vsel %vm777, %v3121, %v3123
      %v3125 = vrot.slane %v2753, 2
      %v3126 = vrot.slane %v2754, 2
      %v3127 = vsel %vm777, %v3125, %v3126
      %v3128 = vrot.slane %v2755, 2
      %v3129 = vsel %vm777, %v3126, %v3128
      %3162 = vst.msk [vmem:[#allocation3 + $0x8] sm:$0xff] %vm304, %v3052
      %3163 = vst.msk [vmem:[#allocation3 + $0x30] sm:$0xff] %vm304, %v3054
      %3164 = vst.msk [vmem:[#allocation3 + $0x58] sm:$0xff] %vm304, %v3057
      %3165 = vst.msk [vmem:[#allocation3 + $0x80] sm:$0xff] %vm304, %v3059
      %3166 = vst.msk [vmem:[#allocation3 + $0xa8] sm:$0xff] %vm304, %v3062
      %3167 = vst.msk [vmem:[#allocation3 + $0xd0] sm:$0xff] %vm304, %v3064
      %3168 = vst.msk [vmem:[#allocation3 + $0xf8] sm:$0xff] %vm304, %v3067
      %3169 = vst.msk [vmem:[#allocation3 + $0x120] sm:$0xff] %vm304, %v3069
      %3170 = vst.msk [vmem:[#allocation3 + $0x148] sm:$0xff] %vm304, %v3072
      %3171 = vst.msk [vmem:[#allocation3 + $0x170] sm:$0xff] %vm304, %v3074
      %3172 = vst.msk [vmem:[#allocation3 + $0x198] sm:$0xff] %vm304, %v3077
      %3173 = vst.msk [vmem:[#allocation3 + $0x1c0] sm:$0xff] %vm304, %v3079
      %3174 = vst.msk [vmem:[#allocation3 + $0x1e8] sm:$0xff] %vm304, %v3082
      %3175 = vst.msk [vmem:[#allocation3 + $0x210] sm:$0xff] %vm304, %v3084
      %3176 = vst.msk [vmem:[#allocation3 + $0x238] sm:$0xff] %vm304, %v3087
      %3177 = vst.msk [vmem:[#allocation3 + $0x260] sm:$0xff] %vm304, %v3089
      %3178 = vst.msk [vmem:[#allocation3 + $0x288] sm:$0xff] %vm304, %v3092
      %3179 = vst.msk [vmem:[#allocation3 + $0x2b0] sm:$0xff] %vm304, %v3094
      %3180 = vst.msk [vmem:[#allocation3 + $0x2d8] sm:$0xff] %vm304, %v3097
      %3181 = vst.msk [vmem:[#allocation3 + $0x300] sm:$0xff] %vm304, %v3099
      %3182 = vst.msk [vmem:[#allocation3 + $0x328] sm:$0xff] %vm304, %v3102
      %3183 = vst.msk [vmem:[#allocation3 + $0x350] sm:$0xff] %vm304, %v3104
      %3184 = vst.msk [vmem:[#allocation3 + $0x378] sm:$0xff] %vm304, %v3107
      %3185 = vst.msk [vmem:[#allocation3 + $0x3a0] sm:$0xff] %vm304, %v3109
      %3186 = vst.msk [vmem:[#allocation3 + $0x3c8] sm:$0xff] %vm304, %v3112
      %3187 = vst.msk [vmem:[#allocation3 + $0x3f0] sm:$0xff] %vm304, %v3114
      %3188 = vst.msk [vmem:[#allocation3 + $0x418] sm:$0xff] %vm304, %v3117
      %3189 = vst.msk [vmem:[#allocation3 + $0x440] sm:$0xff] %vm304, %v3119
      %3190 = vst.msk [vmem:[#allocation3 + $0x468] sm:$0xff] %vm304, %v3122
      %3191 = vst.msk [vmem:[#allocation3 + $0x490] sm:$0xff] %vm304, %v3124
      %3192 = vst.msk [vmem:[#allocation3 + $0x4b8] sm:$0xff] %vm304, %v3127
      %3193 = vst.msk [vmem:[#allocation3 + $0x4e0] sm:$0xff] %vm304, %v3129
      %3196 = vrot.lane.b32.xlu0 %v2711, 64
      %v3197 = vpop.permute.xlu0 %3196
      %3198 = vrot.lane.b32.xlu0 %v2712, 64
      %v3199 = vpop.permute.xlu0 %3198
      %3200 = vrot.lane.b32.xlu0 %v2714, 64
      %v3201 = vpop.permute.xlu0 %3200
      %3202 = vrot.lane.b32.xlu0 %v2715, 64
      %v3203 = vpop.permute.xlu0 %3202
      %3204 = vrot.lane.b32.xlu0 %v2717, 64
      %v3205 = vpop.permute.xlu0 %3204
      %3206 = vrot.lane.b32.xlu0 %v2718, 64
      %v3207 = vpop.permute.xlu0 %3206
      %3208 = vrot.lane.b32.xlu0 %v2720, 64
      %v3209 = vpop.permute.xlu0 %3208
      %3210 = vrot.lane.b32.xlu0 %v2721, 64
      %v3211 = vpop.permute.xlu0 %3210
      %3212 = vrot.lane.b32.xlu0 %v2723, 64
      %v3213 = vpop.permute.xlu0 %3212
      %3214 = vrot.lane.b32.xlu0 %v2724, 64
      %v3215 = vpop.permute.xlu0 %3214
      %3216 = vrot.lane.b32.xlu0 %v2726, 64
      %v3217 = vpop.permute.xlu0 %3216
      %3218 = vrot.lane.b32.xlu0 %v2727, 64
      %v3219 = vpop.permute.xlu0 %3218
      %3220 = vrot.lane.b32.xlu0 %v2729, 64
      %v3221 = vpop.permute.xlu0 %3220
      %3222 = vrot.lane.b32.xlu0 %v2730, 64
      %v3223 = vpop.permute.xlu0 %3222
      %3224 = vrot.lane.b32.xlu0 %v2732, 64
      %v3225 = vpop.permute.xlu0 %3224
      %3226 = vrot.lane.b32.xlu0 %v2733, 64
      %v3227 = vpop.permute.xlu0 %3226
      %3228 = vrot.lane.b32.xlu0 %v2735, 64
      %v3229 = vpop.permute.xlu0 %3228
      %3230 = vrot.lane.b32.xlu0 %v2736, 64
      %v3231 = vpop.permute.xlu0 %3230
      %3232 = vrot.lane.b32.xlu0 %v2738, 64
      %v3233 = vpop.permute.xlu0 %3232
      %3234 = vrot.lane.b32.xlu0 %v2739, 64
      %v3235 = vpop.permute.xlu0 %3234
      %3236 = vrot.lane.b32.xlu0 %v2741, 64
      %v3237 = vpop.permute.xlu0 %3236
      %3238 = vrot.lane.b32.xlu0 %v2742, 64
      %v3239 = vpop.permute.xlu0 %3238
      %3240 = vrot.lane.b32.xlu0 %v2744, 64
      %v3241 = vpop.permute.xlu0 %3240
      %3242 = vrot.lane.b32.xlu0 %v2745, 64
      %v3243 = vpop.permute.xlu0 %3242
      %3244 = vrot.lane.b32.xlu0 %v2747, 64
      %v3245 = vpop.permute.xlu0 %3244
      %3246 = vrot.lane.b32.xlu0 %v2748, 64
      %v3247 = vpop.permute.xlu0 %3246
      %3248 = vrot.lane.b32.xlu0 %v2750, 64
      %v3249 = vpop.permute.xlu0 %3248
      %3250 = vrot.lane.b32.xlu0 %v2751, 64
      %v3251 = vpop.permute.xlu0 %3250
      %3252 = vrot.lane.b32.xlu0 %v2753, 64
      %v3253 = vpop.permute.xlu0 %3252
      %3254 = vrot.lane.b32.xlu0 %v2754, 64
      %v3255 = vpop.permute.xlu0 %3254
      %3256 = vrot.lane.b32.xlu0 %v2756, 64
      %v3257 = vpop.permute.xlu0 %3256
      %3258 = vrot.lane.b32.xlu0 %v2757, 64
      %v3259 = vpop.permute.xlu0 %3258
      %3292 = vst.msk [vmem:[#allocation3 + $0x8] sm:$0xff] %vm744, %v3197
      %3293 = vst.msk [vmem:[#allocation3 + $0x30] sm:$0xff] %vm744, %v3199
      %3294 = vst.msk [vmem:[#allocation3 + $0x58] sm:$0xff] %vm744, %v3201
      %3295 = vst.msk [vmem:[#allocation3 + $0x80] sm:$0xff] %vm744, %v3203
      %3296 = vst.msk [vmem:[#allocation3 + $0xa8] sm:$0xff] %vm744, %v3205
      %3297 = vst.msk [vmem:[#allocation3 + $0xd0] sm:$0xff] %vm744, %v3207
      %3298 = vst.msk [vmem:[#allocation3 + $0xf8] sm:$0xff] %vm744, %v3209
      %3299 = vst.msk [vmem:[#allocation3 + $0x120] sm:$0xff] %vm744, %v3211
      %3300 = vst.msk [vmem:[#allocation3 + $0x148] sm:$0xff] %vm744, %v3213
      %3301 = vst.msk [vmem:[#allocation3 + $0x170] sm:$0xff] %vm744, %v3215
      %3302 = vst.msk [vmem:[#allocation3 + $0x198] sm:$0xff] %vm744, %v3217
      %3303 = vst.msk [vmem:[#allocation3 + $0x1c0] sm:$0xff] %vm744, %v3219
      %3304 = vst.msk [vmem:[#allocation3 + $0x1e8] sm:$0xff] %vm744, %v3221
      %3305 = vst.msk [vmem:[#allocation3 + $0x210] sm:$0xff] %vm744, %v3223
      %3306 = vst.msk [vmem:[#allocation3 + $0x238] sm:$0xff] %vm744, %v3225
      %3307 = vst.msk [vmem:[#allocation3 + $0x260] sm:$0xff] %vm744, %v3227
      %3308 = vst.msk [vmem:[#allocation3 + $0x288] sm:$0xff] %vm744, %v3229
      %3309 = vst.msk [vmem:[#allocation3 + $0x2b0] sm:$0xff] %vm744, %v3231
      %3310 = vst.msk [vmem:[#allocation3 + $0x2d8] sm:$0xff] %vm744, %v3233
      %3311 = vst.msk [vmem:[#allocation3 + $0x300] sm:$0xff] %vm744, %v3235
      %3312 = vst.msk [vmem:[#allocation3 + $0x328] sm:$0xff] %vm744, %v3237
      %3313 = vst.msk [vmem:[#allocation3 + $0x350] sm:$0xff] %vm744, %v3239
      %3314 = vst.msk [vmem:[#allocation3 + $0x378] sm:$0xff] %vm744, %v3241
      %3315 = vst.msk [vmem:[#allocation3 + $0x3a0] sm:$0xff] %vm744, %v3243
      %3316 = vst.msk [vmem:[#allocation3 + $0x3c8] sm:$0xff] %vm744, %v3245
      %3317 = vst.msk [vmem:[#allocation3 + $0x3f0] sm:$0xff] %vm744, %v3247
      %3318 = vst.msk [vmem:[#allocation3 + $0x418] sm:$0xff] %vm744, %v3249
      %3319 = vst.msk [vmem:[#allocation3 + $0x440] sm:$0xff] %vm744, %v3251
      %3320 = vst.msk [vmem:[#allocation3 + $0x468] sm:$0xff] %vm744, %v3253
      %3321 = vst.msk [vmem:[#allocation3 + $0x490] sm:$0xff] %vm744, %v3255
      %3322 = vst.msk [vmem:[#allocation3 + $0x4b8] sm:$0xff] %vm744, %v3257
      %3323 = vst.msk [vmem:[#allocation3 + $0x4e0] sm:$0xff] %vm744, %v3259
      %v3325 = vrot.slane %v2756, 1
      %v3326 = vrot.slane %v2757, 1
      %v3327 = vsel %vm567, %v3325, %v3326
      %v3328 = vrot.slane %v2758, 1
      %v3329 = vsel %vm567, %v3326, %v3328
      %3362 = vst.msk [vmem:[#allocation3 + $0x10] sm:$0xff] %vm304, %v2849
      %3363 = vst.msk [vmem:[#allocation3 + $0x38] sm:$0xff] %vm304, %v2851
      %3364 = vst.msk [vmem:[#allocation3 + $0x60] sm:$0xff] %vm304, %v2854
      %3365 = vst.msk [vmem:[#allocation3 + $0x88] sm:$0xff] %vm304, %v2856
      %3366 = vst.msk [vmem:[#allocation3 + $0xb0] sm:$0xff] %vm304, %v2859
      %3367 = vst.msk [vmem:[#allocation3 + $0xd8] sm:$0xff] %vm304, %v2861
      %3368 = vst.msk [vmem:[#allocation3 + $0x100] sm:$0xff] %vm304, %v2864
      %3369 = vst.msk [vmem:[#allocation3 + $0x128] sm:$0xff] %vm304, %v2866
      %3370 = vst.msk [vmem:[#allocation3 + $0x150] sm:$0xff] %vm304, %v2869
      %3371 = vst.msk [vmem:[#allocation3 + $0x178] sm:$0xff] %vm304, %v2871
      %3372 = vst.msk [vmem:[#allocation3 + $0x1a0] sm:$0xff] %vm304, %v2874
      %3373 = vst.msk [vmem:[#allocation3 + $0x1c8] sm:$0xff] %vm304, %v2876
      %3374 = vst.msk [vmem:[#allocation3 + $0x1f0] sm:$0xff] %vm304, %v2879
      %3375 = vst.msk [vmem:[#allocation3 + $0x218] sm:$0xff] %vm304, %v2881
      %3376 = vst.msk [vmem:[#allocation3 + $0x240] sm:$0xff] %vm304, %v2884
      %3377 = vst.msk [vmem:[#allocation3 + $0x268] sm:$0xff] %vm304, %v2886
      %3378 = vst.msk [vmem:[#allocation3 + $0x290] sm:$0xff] %vm304, %v2889
      %3379 = vst.msk [vmem:[#allocation3 + $0x2b8] sm:$0xff] %vm304, %v2891
      %3380 = vst.msk [vmem:[#allocation3 + $0x2e0] sm:$0xff] %vm304, %v2894
      %3381 = vst.msk [vmem:[#allocation3 + $0x308] sm:$0xff] %vm304, %v2896
      %3382 = vst.msk [vmem:[#allocation3 + $0x330] sm:$0xff] %vm304, %v2899
      %3383 = vst.msk [vmem:[#allocation3 + $0x358] sm:$0xff] %vm304, %v2901
      %3384 = vst.msk [vmem:[#allocation3 + $0x380] sm:$0xff] %vm304, %v2904
      %3385 = vst.msk [vmem:[#allocation3 + $0x3a8] sm:$0xff] %vm304, %v2906
      %3386 = vst.msk [vmem:[#allocation3 + $0x3d0] sm:$0xff] %vm304, %v2909
      %3387 = vst.msk [vmem:[#allocation3 + $0x3f8] sm:$0xff] %vm304, %v2911
      %3388 = vst.msk [vmem:[#allocation3 + $0x420] sm:$0xff] %vm304, %v2914
      %3389 = vst.msk [vmem:[#allocation3 + $0x448] sm:$0xff] %vm304, %v2916
      %3390 = vst.msk [vmem:[#allocation3 + $0x470] sm:$0xff] %vm304, %v2919
      %3391 = vst.msk [vmem:[#allocation3 + $0x498] sm:$0xff] %vm304, %v2921
      %3392 = vst.msk [vmem:[#allocation3 + $0x4c0] sm:$0xff] %vm304, %v3327
      %3393 = vst.msk [vmem:[#allocation3 + $0x4e8] sm:$0xff] %vm304, %v3329
      %v3394 = vrot.slane %v2756, 2
      %v3395 = vrot.slane %v2757, 2
      %v3396 = vsel %vm777, %v3394, %v3395
      %v3397 = vrot.slane %v2758, 2
      %v3398 = vsel %vm777, %v3395, %v3397
      %3399 = vrot.lane.b32.xlu0 %v3057, 64
      %v3400 = vpop.permute.xlu0 %3399
      %3401 = vrot.lane.b32.xlu0 %v3059, 64
      %v3402 = vpop.permute.xlu0 %3401
      %3403 = vrot.lane.b32.xlu0 %v3062, 64
      %v3404 = vpop.permute.xlu0 %3403
      %3405 = vrot.lane.b32.xlu0 %v3064, 64
      %v3406 = vpop.permute.xlu0 %3405
      %3407 = vrot.lane.b32.xlu0 %v3067, 64
      %v3408 = vpop.permute.xlu0 %3407
      %3409 = vrot.lane.b32.xlu0 %v3069, 64
      %v3410 = vpop.permute.xlu0 %3409
      %3411 = vrot.lane.b32.xlu0 %v3072, 64
      %v3412 = vpop.permute.xlu0 %3411
      %3413 = vrot.lane.b32.xlu0 %v3074, 64
      %v3414 = vpop.permute.xlu0 %3413
      %3415 = vrot.lane.b32.xlu0 %v3077, 64
      %v3416 = vpop.permute.xlu0 %3415
      %3417 = vrot.lane.b32.xlu0 %v3079, 64
      %v3418 = vpop.permute.xlu0 %3417
      %3419 = vrot.lane.b32.xlu0 %v3082, 64
      %v3420 = vpop.permute.xlu0 %3419
      %3421 = vrot.lane.b32.xlu0 %v3084, 64
      %v3422 = vpop.permute.xlu0 %3421
      %3423 = vrot.lane.b32.xlu0 %v3087, 64
      %v3424 = vpop.permute.xlu0 %3423
      %3425 = vrot.lane.b32.xlu0 %v3089, 64
      %v3426 = vpop.permute.xlu0 %3425
      %3427 = vrot.lane.b32.xlu0 %v3092, 64
      %v3428 = vpop.permute.xlu0 %3427
      %3429 = vrot.lane.b32.xlu0 %v3094, 64
      %v3430 = vpop.permute.xlu0 %3429
      %3431 = vrot.lane.b32.xlu0 %v3097, 64
      %v3432 = vpop.permute.xlu0 %3431
      %3433 = vrot.lane.b32.xlu0 %v3099, 64
      %v3434 = vpop.permute.xlu0 %3433
      %3435 = vrot.lane.b32.xlu0 %v3102, 64
      %v3436 = vpop.permute.xlu0 %3435
      %3437 = vrot.lane.b32.xlu0 %v3104, 64
      %v3438 = vpop.permute.xlu0 %3437
      %3439 = vrot.lane.b32.xlu0 %v3107, 64
      %v3440 = vpop.permute.xlu0 %3439
      %3441 = vrot.lane.b32.xlu0 %v3109, 64
      %v3442 = vpop.permute.xlu0 %3441
      %3443 = vrot.lane.b32.xlu0 %v3112, 64
      %v3444 = vpop.permute.xlu0 %3443
      %3445 = vrot.lane.b32.xlu0 %v3114, 64
      %v3446 = vpop.permute.xlu0 %3445
      %3447 = vrot.lane.b32.xlu0 %v3117, 64
      %v3448 = vpop.permute.xlu0 %3447
      %3449 = vrot.lane.b32.xlu0 %v3119, 64
      %v3450 = vpop.permute.xlu0 %3449
      %3451 = vrot.lane.b32.xlu0 %v3122, 64
      %v3452 = vpop.permute.xlu0 %3451
      %3453 = vrot.lane.b32.xlu0 %v3124, 64
      %v3454 = vpop.permute.xlu0 %3453
      %3455 = vrot.lane.b32.xlu0 %v3127, 64
      %v3456 = vpop.permute.xlu0 %3455
      %3457 = vrot.lane.b32.xlu0 %v3129, 64
      %v3458 = vpop.permute.xlu0 %3457
      %3459 = vrot.lane.b32.xlu0 %v3396, 64
      %v3460 = vpop.permute.xlu0 %3459
      %3461 = vrot.lane.b32.xlu0 %v3398, 64
      %v3462 = vpop.permute.xlu0 %3461
      %3495 = vst.msk [vmem:[#allocation3 + $0x10] sm:$0xff] %vm744, %v3400
      %3496 = vst.msk [vmem:[#allocation3 + $0x38] sm:$0xff] %vm744, %v3402
      %3497 = vst.msk [vmem:[#allocation3 + $0x60] sm:$0xff] %vm744, %v3404
      %3498 = vst.msk [vmem:[#allocation3 + $0x88] sm:$0xff] %vm744, %v3406
      %3499 = vst.msk [vmem:[#allocation3 + $0xb0] sm:$0xff] %vm744, %v3408
      %3500 = vst.msk [vmem:[#allocation3 + $0xd8] sm:$0xff] %vm744, %v3410
      %3501 = vst.msk [vmem:[#allocation3 + $0x100] sm:$0xff] %vm744, %v3412
      %3502 = vst.msk [vmem:[#allocation3 + $0x128] sm:$0xff] %vm744, %v3414
      %3503 = vst.msk [vmem:[#allocation3 + $0x150] sm:$0xff] %vm744, %v3416
      %3504 = vst.msk [vmem:[#allocation3 + $0x178] sm:$0xff] %vm744, %v3418
      %3505 = vst.msk [vmem:[#allocation3 + $0x1a0] sm:$0xff] %vm744, %v3420
      %3506 = vst.msk [vmem:[#allocation3 + $0x1c8] sm:$0xff] %vm744, %v3422
      %3507 = vst.msk [vmem:[#allocation3 + $0x1f0] sm:$0xff] %vm744, %v3424
      %3508 = vst.msk [vmem:[#allocation3 + $0x218] sm:$0xff] %vm744, %v3426
      %3509 = vst.msk [vmem:[#allocation3 + $0x240] sm:$0xff] %vm744, %v3428
      %3510 = vst.msk [vmem:[#allocation3 + $0x268] sm:$0xff] %vm744, %v3430
      %3511 = vst.msk [vmem:[#allocation3 + $0x290] sm:$0xff] %vm744, %v3432
      %3512 = vst.msk [vmem:[#allocation3 + $0x2b8] sm:$0xff] %vm744, %v3434
      %3513 = vst.msk [vmem:[#allocation3 + $0x2e0] sm:$0xff] %vm744, %v3436
      %3514 = vst.msk [vmem:[#allocation3 + $0x308] sm:$0xff] %vm744, %v3438
      %3515 = vst.msk [vmem:[#allocation3 + $0x330] sm:$0xff] %vm744, %v3440
      %3516 = vst.msk [vmem:[#allocation3 + $0x358] sm:$0xff] %vm744, %v3442
      %3517 = vst.msk [vmem:[#allocation3 + $0x380] sm:$0xff] %vm744, %v3444
      %3518 = vst.msk [vmem:[#allocation3 + $0x3a8] sm:$0xff] %vm744, %v3446
      %3519 = vst.msk [vmem:[#allocation3 + $0x3d0] sm:$0xff] %vm744, %v3448
      %3520 = vst.msk [vmem:[#allocation3 + $0x3f8] sm:$0xff] %vm744, %v3450
      %3521 = vst.msk [vmem:[#allocation3 + $0x420] sm:$0xff] %vm744, %v3452
      %3522 = vst.msk [vmem:[#allocation3 + $0x448] sm:$0xff] %vm744, %v3454
      %3523 = vst.msk [vmem:[#allocation3 + $0x470] sm:$0xff] %vm744, %v3456
      %3524 = vst.msk [vmem:[#allocation3 + $0x498] sm:$0xff] %vm744, %v3458
      %3525 = vst.msk [vmem:[#allocation3 + $0x4c0] sm:$0xff] %vm744, %v3460
      %3526 = vst.msk [vmem:[#allocation3 + $0x4e8] sm:$0xff] %vm744, %v3462
      %3527 = vst.msk [vmem:[#allocation3 + $0x18] sm:$0xff] %vm304, %v2714
      %3528 = vst.msk [vmem:[#allocation3 + $0x40] sm:$0xff] %vm304, %v2715
      %3529 = vst.msk [vmem:[#allocation3 + $0x68] sm:$0xff] %vm304, %v2717
      %3530 = vst.msk [vmem:[#allocation3 + $0x90] sm:$0xff] %vm304, %v2718
      %3531 = vst.msk [vmem:[#allocation3 + $0xb8] sm:$0xff] %vm304, %v2720
      %3532 = vst.msk [vmem:[#allocation3 + $0xe0] sm:$0xff] %vm304, %v2721
      %3533 = vst.msk [vmem:[#allocation3 + $0x108] sm:$0xff] %vm304, %v2723
      %3534 = vst.msk [vmem:[#allocation3 + $0x130] sm:$0xff] %vm304, %v2724
      %3535 = vst.msk [vmem:[#allocation3 + $0x158] sm:$0xff] %vm304, %v2726
      %3536 = vst.msk [vmem:[#allocation3 + $0x180] sm:$0xff] %vm304, %v2727
      %3537 = vst.msk [vmem:[#allocation3 + $0x1a8] sm:$0xff] %vm304, %v2729
      %3538 = vst.msk [vmem:[#allocation3 + $0x1d0] sm:$0xff] %vm304, %v2730
      %3539 = vst.msk [vmem:[#allocation3 + $0x1f8] sm:$0xff] %vm304, %v2732
      %3540 = vst.msk [vmem:[#allocation3 + $0x220] sm:$0xff] %vm304, %v2733
      %3541 = vst.msk [vmem:[#allocation3 + $0x248] sm:$0xff] %vm304, %v2735
      %3542 = vst.msk [vmem:[#allocation3 + $0x270] sm:$0xff] %vm304, %v2736
      %3543 = vst.msk [vmem:[#allocation3 + $0x298] sm:$0xff] %vm304, %v2738
      %3544 = vst.msk [vmem:[#allocation3 + $0x2c0] sm:$0xff] %vm304, %v2739
      %3545 = vst.msk [vmem:[#allocation3 + $0x2e8] sm:$0xff] %vm304, %v2741
      %3546 = vst.msk [vmem:[#allocation3 + $0x310] sm:$0xff] %vm304, %v2742
      %3547 = vst.msk [vmem:[#allocation3 + $0x338] sm:$0xff] %vm304, %v2744
      %3548 = vst.msk [vmem:[#allocation3 + $0x360] sm:$0xff] %vm304, %v2745
      %3549 = vst.msk [vmem:[#allocation3 + $0x388] sm:$0xff] %vm304, %v2747
      %3550 = vst.msk [vmem:[#allocation3 + $0x3b0] sm:$0xff] %vm304, %v2748
      %3551 = vst.msk [vmem:[#allocation3 + $0x3d8] sm:$0xff] %vm304, %v2750
      %3552 = vst.msk [vmem:[#allocation3 + $0x400] sm:$0xff] %vm304, %v2751
      %3553 = vst.msk [vmem:[#allocation3 + $0x428] sm:$0xff] %vm304, %v2753
      %3554 = vst.msk [vmem:[#allocation3 + $0x450] sm:$0xff] %vm304, %v2754
      %3555 = vst.msk [vmem:[#allocation3 + $0x478] sm:$0xff] %vm304, %v2756
      %3556 = vst.msk [vmem:[#allocation3 + $0x4a0] sm:$0xff] %vm304, %v2757
      %3557 = vst.msk [vmem:[#allocation3 + $0x4c8] sm:$0xff] %vm304, %v2759
      %3558 = vst.msk [vmem:[#allocation3 + $0x4f0] sm:$0xff] %vm304, %v2760
      %v3562 = vrot.slane %v2759, 1
      %v3563 = vrot.slane %v2760, 1
      %v3564 = vsel %vm567, %v3562, %v3563
      %v3565 = vrot.slane %v2761, 1
      %v3566 = vsel %vm567, %v3563, %v3565
      %3567 = vrot.lane.b32.xlu0 %v3327, 64
      %v3568 = vpop.permute.xlu0 %3567
      %3569 = vrot.lane.b32.xlu0 %v3329, 64
      %v3570 = vpop.permute.xlu0 %3569
      %3571 = vrot.lane.b32.xlu0 %v3564, 64
      %v3572 = vpop.permute.xlu0 %3571
      %3573 = vrot.lane.b32.xlu0 %v3566, 64
      %v3574 = vpop.permute.xlu0 %3573
      %3579 = vst.msk [vmem:[#allocation3 + $0x18] sm:$0xff] %vm744, %v2931
      %3580 = vst.msk [vmem:[#allocation3 + $0x40] sm:$0xff] %vm744, %v2933
      %3581 = vst.msk [vmem:[#allocation3 + $0x68] sm:$0xff] %vm744, %v2935
      %3582 = vst.msk [vmem:[#allocation3 + $0x90] sm:$0xff] %vm744, %v2937
      %3583 = vst.msk [vmem:[#allocation3 + $0xb8] sm:$0xff] %vm744, %v2939
      %3584 = vst.msk [vmem:[#allocation3 + $0xe0] sm:$0xff] %vm744, %v2941
      %3585 = vst.msk [vmem:[#allocation3 + $0x108] sm:$0xff] %vm744, %v2943
      %3586 = vst.msk [vmem:[#allocation3 + $0x130] sm:$0xff] %vm744, %v2945
      %3587 = vst.msk [vmem:[#allocation3 + $0x158] sm:$0xff] %vm744, %v2947
      %3588 = vst.msk [vmem:[#allocation3 + $0x180] sm:$0xff] %vm744, %v2949
      %3589 = vst.msk [vmem:[#allocation3 + $0x1a8] sm:$0xff] %vm744, %v2951
      %3590 = vst.msk [vmem:[#allocation3 + $0x1d0] sm:$0xff] %vm744, %v2953
      %3591 = vst.msk [vmem:[#allocation3 + $0x1f8] sm:$0xff] %vm744, %v2955
      %3592 = vst.msk [vmem:[#allocation3 + $0x220] sm:$0xff] %vm744, %v2957
      %3593 = vst.msk [vmem:[#allocation3 + $0x248] sm:$0xff] %vm744, %v2959
      %3594 = vst.msk [vmem:[#allocation3 + $0x270] sm:$0xff] %vm744, %v2961
      %3595 = vst.msk [vmem:[#allocation3 + $0x298] sm:$0xff] %vm744, %v2963
      %3596 = vst.msk [vmem:[#allocation3 + $0x2c0] sm:$0xff] %vm744, %v2965
      %3597 = vst.msk [vmem:[#allocation3 + $0x2e8] sm:$0xff] %vm744, %v2967
      %3598 = vst.msk [vmem:[#allocation3 + $0x310] sm:$0xff] %vm744, %v2969
      %3599 = vst.msk [vmem:[#allocation3 + $0x338] sm:$0xff] %vm744, %v2971
      %3600 = vst.msk [vmem:[#allocation3 + $0x360] sm:$0xff] %vm744, %v2973
      %3601 = vst.msk [vmem:[#allocation3 + $0x388] sm:$0xff] %vm744, %v2975
      %3602 = vst.msk [vmem:[#allocation3 + $0x3b0] sm:$0xff] %vm744, %v2977
      %3603 = vst.msk [vmem:[#allocation3 + $0x3d8] sm:$0xff] %vm744, %v2979
      %3604 = vst.msk [vmem:[#allocation3 + $0x400] sm:$0xff] %vm744, %v2981
      %3605 = vst.msk [vmem:[#allocation3 + $0x428] sm:$0xff] %vm744, %v2983
      %3606 = vst.msk [vmem:[#allocation3 + $0x450] sm:$0xff] %vm744, %v2985
      %3607 = vst.msk [vmem:[#allocation3 + $0x478] sm:$0xff] %vm744, %v3568
      %3608 = vst.msk [vmem:[#allocation3 + $0x4a0] sm:$0xff] %vm744, %v3570
      %3609 = vst.msk [vmem:[#allocation3 + $0x4c8] sm:$0xff] %vm744, %v3572
      %3610 = vst.msk [vmem:[#allocation3 + $0x4f0] sm:$0xff] %vm744, %v3574
      %v3611 = vrot.slane %v2759, 2
      %v3612 = vrot.slane %v2760, 2
      %v3613 = vsel %vm777, %v3611, %v3612
      %v3614 = vrot.slane %v2761, 2
      %v3615 = vsel %vm777, %v3612, %v3614
      %3620 = vst.msk [vmem:[#allocation3 + $0x20] sm:$0xff] %vm304, %v3062
      %3621 = vst.msk [vmem:[#allocation3 + $0x48] sm:$0xff] %vm304, %v3064
      %3622 = vst.msk [vmem:[#allocation3 + $0x70] sm:$0xff] %vm304, %v3067
      %3623 = vst.msk [vmem:[#allocation3 + $0x98] sm:$0xff] %vm304, %v3069
      %3624 = vst.msk [vmem:[#allocation3 + $0xc0] sm:$0xff] %vm304, %v3072
      %3625 = vst.msk [vmem:[#allocation3 + $0xe8] sm:$0xff] %vm304, %v3074
      %3626 = vst.msk [vmem:[#allocation3 + $0x110] sm:$0xff] %vm304, %v3077
      %3627 = vst.msk [vmem:[#allocation3 + $0x138] sm:$0xff] %vm304, %v3079
      %3628 = vst.msk [vmem:[#allocation3 + $0x160] sm:$0xff] %vm304, %v3082
      %3629 = vst.msk [vmem:[#allocation3 + $0x188] sm:$0xff] %vm304, %v3084
      %3630 = vst.msk [vmem:[#allocation3 + $0x1b0] sm:$0xff] %vm304, %v3087
      %3631 = vst.msk [vmem:[#allocation3 + $0x1d8] sm:$0xff] %vm304, %v3089
      %3632 = vst.msk [vmem:[#allocation3 + $0x200] sm:$0xff] %vm304, %v3092
      %3633 = vst.msk [vmem:[#allocation3 + $0x228] sm:$0xff] %vm304, %v3094
      %3634 = vst.msk [vmem:[#allocation3 + $0x250] sm:$0xff] %vm304, %v3097
      %3635 = vst.msk [vmem:[#allocation3 + $0x278] sm:$0xff] %vm304, %v3099
      %3636 = vst.msk [vmem:[#allocation3 + $0x2a0] sm:$0xff] %vm304, %v3102
      %3637 = vst.msk [vmem:[#allocation3 + $0x2c8] sm:$0xff] %vm304, %v3104
      %3638 = vst.msk [vmem:[#allocation3 + $0x2f0] sm:$0xff] %vm304, %v3107
      %3639 = vst.msk [vmem:[#allocation3 + $0x318] sm:$0xff] %vm304, %v3109
      %3640 = vst.msk [vmem:[#allocation3 + $0x340] sm:$0xff] %vm304, %v3112
      %3641 = vst.msk [vmem:[#allocation3 + $0x368] sm:$0xff] %vm304, %v3114
      %3642 = vst.msk [vmem:[#allocation3 + $0x390] sm:$0xff] %vm304, %v3117
      %3643 = vst.msk [vmem:[#allocation3 + $0x3b8] sm:$0xff] %vm304, %v3119
      %3644 = vst.msk [vmem:[#allocation3 + $0x3e0] sm:$0xff] %vm304, %v3122
      %3645 = vst.msk [vmem:[#allocation3 + $0x408] sm:$0xff] %vm304, %v3124
      %3646 = vst.msk [vmem:[#allocation3 + $0x430] sm:$0xff] %vm304, %v3127
      %3647 = vst.msk [vmem:[#allocation3 + $0x458] sm:$0xff] %vm304, %v3129
      %3648 = vst.msk [vmem:[#allocation3 + $0x480] sm:$0xff] %vm304, %v3396
      %3649 = vst.msk [vmem:[#allocation3 + $0x4a8] sm:$0xff] %vm304, %v3398
      %3650 = vst.msk [vmem:[#allocation3 + $0x4d0] sm:$0xff] %vm304, %v3613
      %3651 = vst.msk [vmem:[#allocation3 + $0x4f8] sm:$0xff] %vm304, %v3615
      %v3652 = vld [vmem:[#allocation3] sm:$0xff]
      %v3653 = vld [vmem:[#allocation3 + $0x8] sm:$0xff]
      %v3654 = vld [vmem:[#allocation3 + $0x10] sm:$0xff]
      %v3655 = vld [vmem:[#allocation3 + $0x18] sm:$0xff]
      %v3656 = vld [vmem:[#allocation3 + $0x20] sm:$0xff]
      %v3657 = vld [vmem:[#allocation3 + $0x28] sm:$0xff]
      %v3658 = vld [vmem:[#allocation3 + $0x30] sm:$0xff]
      %v3659 = vld [vmem:[#allocation3 + $0x38] sm:$0xff]
      %v3660 = vld [vmem:[#allocation3 + $0x40] sm:$0xff]
      %v3661 = vld [vmem:[#allocation3 + $0x48] sm:$0xff]
      %v3662 = vld [vmem:[#allocation3 + $0x50] sm:$0xff]
      %v3663 = vld [vmem:[#allocation3 + $0x58] sm:$0xff]
      %v3664 = vld [vmem:[#allocation3 + $0x60] sm:$0xff]
      %v3665 = vld [vmem:[#allocation3 + $0x68] sm:$0xff]
      %v3666 = vld [vmem:[#allocation3 + $0x70] sm:$0xff]
      %v3667 = vld [vmem:[#allocation3 + $0x78] sm:$0xff]
      %v3668 = vld [vmem:[#allocation3 + $0x80] sm:$0xff]
      %v3669 = vld [vmem:[#allocation3 + $0x88] sm:$0xff]
      %v3670 = vld [vmem:[#allocation3 + $0x90] sm:$0xff]
      %v3671 = vld [vmem:[#allocation3 + $0x98] sm:$0xff]
      %v3672 = vld [vmem:[#allocation3 + $0xa0] sm:$0xff]
      %v3673 = vld [vmem:[#allocation3 + $0xa8] sm:$0xff]
      %v3674 = vld [vmem:[#allocation3 + $0xb0] sm:$0xff]
      %v3675 = vld [vmem:[#allocation3 + $0xb8] sm:$0xff]
      %v3676 = vld [vmem:[#allocation3 + $0xc0] sm:$0xff]
      %v3677 = vld [vmem:[#allocation3 + $0xc8] sm:$0xff]
      %v3678 = vld [vmem:[#allocation3 + $0xd0] sm:$0xff]
      %v3679 = vld [vmem:[#allocation3 + $0xd8] sm:$0xff]
      %v3680 = vld [vmem:[#allocation3 + $0xe0] sm:$0xff]
      %v3681 = vld [vmem:[#allocation3 + $0xe8] sm:$0xff]
      %v3682 = vld [vmem:[#allocation3 + $0xf0] sm:$0xff]
      %v3683 = vld [vmem:[#allocation3 + $0xf8] sm:$0xff]
      %v3684 = vld [vmem:[#allocation3 + $0x100] sm:$0xff]
      %v3685 = vld [vmem:[#allocation3 + $0x108] sm:$0xff]
      %v3686 = vld [vmem:[#allocation3 + $0x110] sm:$0xff]
      %v3687 = vld [vmem:[#allocation3 + $0x118] sm:$0xff]
      %v3688 = vld [vmem:[#allocation3 + $0x120] sm:$0xff]
      %v3689 = vld [vmem:[#allocation3 + $0x128] sm:$0xff]
      %v3690 = vld [vmem:[#allocation3 + $0x130] sm:$0xff]
      %v3691 = vld [vmem:[#allocation3 + $0x138] sm:$0xff]
      %v3692 = vld [vmem:[#allocation3 + $0x140] sm:$0xff]
      %v3693 = vld [vmem:[#allocation3 + $0x148] sm:$0xff]
      %v3694 = vld [vmem:[#allocation3 + $0x150] sm:$0xff]
      %v3695 = vld [vmem:[#allocation3 + $0x158] sm:$0xff]
      %v3696 = vld [vmem:[#allocation3 + $0x160] sm:$0xff]
      %v3697 = vld [vmem:[#allocation3 + $0x168] sm:$0xff]
      %v3698 = vld [vmem:[#allocation3 + $0x170] sm:$0xff]
      %v3699 = vld [vmem:[#allocation3 + $0x178] sm:$0xff]
      %v3700 = vld [vmem:[#allocation3 + $0x180] sm:$0xff]
      %v3701 = vld [vmem:[#allocation3 + $0x188] sm:$0xff]
      %v3702 = vld [vmem:[#allocation3 + $0x190] sm:$0xff]
      %v3703 = vld [vmem:[#allocation3 + $0x198] sm:$0xff]
      %v3704 = vld [vmem:[#allocation3 + $0x1a0] sm:$0xff]
      %v3705 = vld [vmem:[#allocation3 + $0x1a8] sm:$0xff]
      %v3706 = vld [vmem:[#allocation3 + $0x1b0] sm:$0xff]
      %v3707 = vld [vmem:[#allocation3 + $0x1b8] sm:$0xff]
      %v3708 = vld [vmem:[#allocation3 + $0x1c0] sm:$0xff]
      %v3709 = vld [vmem:[#allocation3 + $0x1c8] sm:$0xff]
      %v3710 = vld [vmem:[#allocation3 + $0x1d0] sm:$0xff]
      %v3711 = vld [vmem:[#allocation3 + $0x1d8] sm:$0xff]
      %v3712 = vld [vmem:[#allocation3 + $0x1e0] sm:$0xff]
      %v3713 = vld [vmem:[#allocation3 + $0x1e8] sm:$0xff]
      %v3714 = vld [vmem:[#allocation3 + $0x1f0] sm:$0xff]
      %v3715 = vld [vmem:[#allocation3 + $0x1f8] sm:$0xff]
      %v3716 = vld [vmem:[#allocation3 + $0x200] sm:$0xff]
      %v3717 = vld [vmem:[#allocation3 + $0x208] sm:$0xff]
      %v3718 = vld [vmem:[#allocation3 + $0x210] sm:$0xff]
      %v3719 = vld [vmem:[#allocation3 + $0x218] sm:$0xff]
      %v3720 = vld [vmem:[#allocation3 + $0x220] sm:$0xff]
      %v3721 = vld [vmem:[#allocation3 + $0x228] sm:$0xff]
      %v3722 = vld [vmem:[#allocation3 + $0x230] sm:$0xff]
      %v3723 = vld [vmem:[#allocation3 + $0x238] sm:$0xff]
      %v3724 = vld [vmem:[#allocation3 + $0x240] sm:$0xff]
      %v3725 = vld [vmem:[#allocation3 + $0x248] sm:$0xff]
      %v3726 = vld [vmem:[#allocation3 + $0x250] sm:$0xff]
      %v3727 = vld [vmem:[#allocation3 + $0x258] sm:$0xff]
      %v3728 = vld [vmem:[#allocation3 + $0x260] sm:$0xff]
      %v3729 = vld [vmem:[#allocation3 + $0x268] sm:$0xff]
      %v3730 = vld [vmem:[#allocation3 + $0x270] sm:$0xff]
      %v3731 = vld [vmem:[#allocation3 + $0x278] sm:$0xff]
      %v3732 = vld [vmem:[#allocation3 + $0x280] sm:$0xff]
      %v3733 = vld [vmem:[#allocation3 + $0x288] sm:$0xff]
      %v3734 = vld [vmem:[#allocation3 + $0x290] sm:$0xff]
      %v3735 = vld [vmem:[#allocation3 + $0x298] sm:$0xff]
      %v3736 = vld [vmem:[#allocation3 + $0x2a0] sm:$0xff]
      %v3737 = vld [vmem:[#allocation3 + $0x2a8] sm:$0xff]
      %v3738 = vld [vmem:[#allocation3 + $0x2b0] sm:$0xff]
      %v3739 = vld [vmem:[#allocation3 + $0x2b8] sm:$0xff]
      %v3740 = vld [vmem:[#allocation3 + $0x2c0] sm:$0xff]
      %v3741 = vld [vmem:[#allocation3 + $0x2c8] sm:$0xff]
      %v3742 = vld [vmem:[#allocation3 + $0x2d0] sm:$0xff]
      %v3743 = vld [vmem:[#allocation3 + $0x2d8] sm:$0xff]
      %v3744 = vld [vmem:[#allocation3 + $0x2e0] sm:$0xff]
      %v3745 = vld [vmem:[#allocation3 + $0x2e8] sm:$0xff]
      %v3746 = vld [vmem:[#allocation3 + $0x2f0] sm:$0xff]
      %v3747 = vld [vmem:[#allocation3 + $0x2f8] sm:$0xff]
      %v3748 = vld [vmem:[#allocation3 + $0x300] sm:$0xff]
      %v3749 = vld [vmem:[#allocation3 + $0x308] sm:$0xff]
      %v3750 = vld [vmem:[#allocation3 + $0x310] sm:$0xff]
      %v3751 = vld [vmem:[#allocation3 + $0x318] sm:$0xff]
      %v3752 = vld [vmem:[#allocation3 + $0x320] sm:$0xff]
      %v3753 = vld [vmem:[#allocation3 + $0x328] sm:$0xff]
      %v3754 = vld [vmem:[#allocation3 + $0x330] sm:$0xff]
      %v3755 = vld [vmem:[#allocation3 + $0x338] sm:$0xff]
      %v3756 = vld [vmem:[#allocation3 + $0x340] sm:$0xff]
      %v3757 = vld [vmem:[#allocation3 + $0x348] sm:$0xff]
      %v3758 = vld [vmem:[#allocation3 + $0x350] sm:$0xff]
      %v3759 = vld [vmem:[#allocation3 + $0x358] sm:$0xff]
      %v3760 = vld [vmem:[#allocation3 + $0x360] sm:$0xff]
      %v3761 = vld [vmem:[#allocation3 + $0x368] sm:$0xff]
      %v3762 = vld [vmem:[#allocation3 + $0x370] sm:$0xff]
      %v3763 = vld [vmem:[#allocation3 + $0x378] sm:$0xff]
      %v3764 = vld [vmem:[#allocation3 + $0x380] sm:$0xff]
      %v3765 = vld [vmem:[#allocation3 + $0x388] sm:$0xff]
      %v3766 = vld [vmem:[#allocation3 + $0x390] sm:$0xff]
      %v3767 = vld [vmem:[#allocation3 + $0x398] sm:$0xff]
      %v3768 = vld [vmem:[#allocation3 + $0x3a0] sm:$0xff]
      %v3769 = vld [vmem:[#allocation3 + $0x3a8] sm:$0xff]
      %v3770 = vld [vmem:[#allocation3 + $0x3b0] sm:$0xff]
      %v3771 = vld [vmem:[#allocation3 + $0x3b8] sm:$0xff]
      %v3772 = vld [vmem:[#allocation3 + $0x3c0] sm:$0xff]
      %v3773 = vld [vmem:[#allocation3 + $0x3c8] sm:$0xff]
      %v3774 = vld [vmem:[#allocation3 + $0x3d0] sm:$0xff]
      %v3775 = vld [vmem:[#allocation3 + $0x3d8] sm:$0xff]
      %v3776 = vld [vmem:[#allocation3 + $0x3e0] sm:$0xff]
      %v3777 = vld [vmem:[#allocation3 + $0x3e8] sm:$0xff]
      %v3778 = vld [vmem:[#allocation3 + $0x3f0] sm:$0xff]
      %v3779 = vld [vmem:[#allocation3 + $0x3f8] sm:$0xff]
      %v3780 = vld [vmem:[#allocation3 + $0x400] sm:$0xff]
      %v3781 = vld [vmem:[#allocation3 + $0x408] sm:$0xff]
      %v3782 = vld [vmem:[#allocation3 + $0x410] sm:$0xff]
      %v3783 = vld [vmem:[#allocation3 + $0x418] sm:$0xff]
      %v3784 = vld [vmem:[#allocation3 + $0x420] sm:$0xff]
      %v3785 = vld [vmem:[#allocation3 + $0x428] sm:$0xff]
      %v3786 = vld [vmem:[#allocation3 + $0x430] sm:$0xff]
      %v3787 = vld [vmem:[#allocation3 + $0x438] sm:$0xff]
      %v3788 = vld [vmem:[#allocation3 + $0x440] sm:$0xff]
      %v3789 = vld [vmem:[#allocation3 + $0x448] sm:$0xff]
      %v3790 = vld [vmem:[#allocation3 + $0x450] sm:$0xff]
      %v3791 = vld [vmem:[#allocation3 + $0x458] sm:$0xff]
      %v3792 = vld [vmem:[#allocation3 + $0x460] sm:$0xff]
      %v3793 = vld [vmem:[#allocation3 + $0x468] sm:$0xff]
      %v3794 = vld [vmem:[#allocation3 + $0x470] sm:$0xff]
      %v3795 = vld [vmem:[#allocation3 + $0x478] sm:$0xff]
      %v3796 = vld [vmem:[#allocation3 + $0x480] sm:$0xff]
      %v3797 = vld [vmem:[#allocation3 + $0x488] sm:$0xff]
      %v3798 = vld [vmem:[#allocation3 + $0x490] sm:$0xff]
      %v3799 = vld [vmem:[#allocation3 + $0x498] sm:$0xff]
      %v3800 = vld [vmem:[#allocation3 + $0x4a0] sm:$0xff]
      %v3801 = vld [vmem:[#allocation3 + $0x4a8] sm:$0xff]
      %v3802 = vld [vmem:[#allocation3 + $0x4b0] sm:$0xff]
      %v3803 = vld [vmem:[#allocation3 + $0x4b8] sm:$0xff]
      %v3804 = vld [vmem:[#allocation3 + $0x4c0] sm:$0xff]
      %v3805 = vld [vmem:[#allocation3 + $0x4c8] sm:$0xff]
      %v3806 = vld [vmem:[#allocation3 + $0x4d0] sm:$0xff]
      %v3807 = vld [vmem:[#allocation3 + $0x4d8] sm:$0xff]
      %v3808 = vld [vmem:[#allocation3 + $0x4e0] sm:$0xff]
      %v3809 = vld [vmem:[#allocation3 + $0x4e8] sm:$0xff]
      %v3810 = vld [vmem:[#allocation3 + $0x4f0] sm:$0xff]
      %v3811 = vld [vmem:[#allocation3 + $0x4f8] sm:$0xff]
      %s3812 = scalar_lea.vmem %s1, 576
      %v3813 = vld [vmem:[%s3812] sm:$0xff]
      %v3814 = vld [vmem:[%s3812 + $0x8] sm:$0xff]
      %v3815 = vld [vmem:[%s3812 + $0x10] sm:$0xff]
      %v3816 = vld [vmem:[%s3812 + $0x18] sm:$0xff]
      %v3817 = vld [vmem:[%s3812 + $0x20] sm:$0xff]
      %v3818 = vld [vmem:[%s3812 + $0x28] sm:$0xff]
      %v3819 = vld [vmem:[%s3812 + $0x30] sm:$0xff]
      %v3820 = vld [vmem:[%s3812 + $0x38] sm:$0xff]
      %v3821 = vld [vmem:[%s3812 + $0x40] sm:$0xff]
      %v3822 = vld [vmem:[%s3812 + $0x48] sm:$0xff]
      %v3823 = vld [vmem:[%s3812 + $0x50] sm:$0xff]
      %v3824 = vld [vmem:[%s3812 + $0x58] sm:$0xff]
      %v3825 = vld [vmem:[%s3812 + $0x60] sm:$0xff]
      %v3826 = vld [vmem:[%s3812 + $0x68] sm:$0xff]
      %v3827 = vld [vmem:[%s3812 + $0x70] sm:$0xff]
      %v3828 = vld [vmem:[%s3812 + $0x78] sm:$0xff]
      %v3829 = vld [vmem:[%s3812 + $0x80] sm:$0xff]
      %v3830 = vld [vmem:[%s3812 + $0x88] sm:$0xff]
      %v3831 = vld [vmem:[%s3812 + $0x90] sm:$0xff]
      %v3832 = vld [vmem:[%s3812 + $0x98] sm:$0xff]
      %v3833 = vld [vmem:[%s3812 + $0xa0] sm:$0xff]
      %v3834 = vld [vmem:[%s3812 + $0xa8] sm:$0xff]
      %v3835 = vld [vmem:[%s3812 + $0xb0] sm:$0xff]
      %v3836 = vld [vmem:[%s3812 + $0xb8] sm:$0xff]
      %v3837 = vld [vmem:[%s3812 + $0xc0] sm:$0xff]
      %v3838 = vld [vmem:[%s3812 + $0xc8] sm:$0xff]
      %v3839 = vld [vmem:[%s3812 + $0xd0] sm:$0xff]
      %v3840 = vld [vmem:[%s3812 + $0xd8] sm:$0xff]
      %v3841 = vld [vmem:[%s3812 + $0xe0] sm:$0xff]
      %v3842 = vld [vmem:[%s3812 + $0xe8] sm:$0xff]
      %v3843 = vld [vmem:[%s3812 + $0xf0] sm:$0xff]
      %v3844 = vld [vmem:[%s3812 + $0xf8] sm:$0xff]
      %v3845 = vld [vmem:[%s3812 + $0x100] sm:$0xff]
      %v3846 = vld [vmem:[%s3812 + $0x108] sm:$0xff]
      %v3847 = vld [vmem:[%s3812 + $0x110] sm:$0xff]
      %v3848 = vld [vmem:[%s3812 + $0x118] sm:$0xff]
      %v3849 = vld [vmem:[%s3812 + $0x120] sm:$0xff]
      %v3850 = vld [vmem:[%s3812 + $0x128] sm:$0xff]
      %v3851 = vld [vmem:[%s3812 + $0x130] sm:$0xff]
      %v3852 = vld [vmem:[%s3812 + $0x138] sm:$0xff]
      %v3853 = vld [vmem:[%s3812 + $0x140] sm:$0xff]
      %v3854 = vld [vmem:[%s3812 + $0x148] sm:$0xff]
      %v3855 = vld [vmem:[%s3812 + $0x150] sm:$0xff]
      %v3856 = vld [vmem:[%s3812 + $0x158] sm:$0xff]
      %v3857 = vld [vmem:[%s3812 + $0x160] sm:$0xff]
      %v3858 = vld [vmem:[%s3812 + $0x168] sm:$0xff]
      %v3859 = vld [vmem:[%s3812 + $0x170] sm:$0xff]
      %v3860 = vld [vmem:[%s3812 + $0x178] sm:$0xff]
      %v3861 = vld [vmem:[%s3812 + $0x180] sm:$0xff]
      %v3862 = vld [vmem:[%s3812 + $0x188] sm:$0xff]
      %v3863 = vld [vmem:[%s3812 + $0x190] sm:$0xff]
      %v3864 = vld [vmem:[%s3812 + $0x198] sm:$0xff]
      %v3865 = vld [vmem:[%s3812 + $0x1a0] sm:$0xff]
      %v3866 = vld [vmem:[%s3812 + $0x1a8] sm:$0xff]
      %v3867 = vld [vmem:[%s3812 + $0x1b0] sm:$0xff]
      %v3868 = vld [vmem:[%s3812 + $0x1b8] sm:$0xff]
      %v3869 = vld [vmem:[%s3812 + $0x1c0] sm:$0xff]
      %v3870 = vld [vmem:[%s3812 + $0x1c8] sm:$0xff]
      %v3871 = vld [vmem:[%s3812 + $0x1d0] sm:$0xff]
      %v3872 = vld [vmem:[%s3812 + $0x1d8] sm:$0xff]
      %v3873 = vld [vmem:[%s3812 + $0x1e0] sm:$0xff]
      %v3874 = vld [vmem:[%s3812 + $0x1e8] sm:$0xff]
      %v3875 = vld [vmem:[%s3812 + $0x1f0] sm:$0xff]
      %v3876 = vld [vmem:[%s3812 + $0x1f8] sm:$0xff]
      %v3877 = vld [vmem:[%s3812 + $0x200] sm:$0xff]
      %v3878 = vld [vmem:[%s3812 + $0x208] sm:$0xff]
      %v3879 = vld [vmem:[%s3812 + $0x210] sm:$0xff]
      %v3880 = vld [vmem:[%s3812 + $0x218] sm:$0xff]
      %v3881 = vld [vmem:[%s3812 + $0x220] sm:$0xff]
      %v3882 = vld [vmem:[%s3812 + $0x228] sm:$0xff]
      %v3883 = vld [vmem:[%s3812 + $0x230] sm:$0xff]
      %v3884 = vld [vmem:[%s3812 + $0x238] sm:$0xff]
      %s3885 = scalar_lea.vmem %s2, 1
      %v3886 = vld [vmem:[%s3885] sm:$0x1]
      %v3888 = vperm.slane %v3886, 0
      %v3891 = vsel %vm304, %v3656, 0
      %v3894 = vsel %vm304, %v3661, 0
      %v3897 = vsel %vm304, %v3666, 0
      %v3900 = vsel %vm304, %v3671, 0
      %v3903 = vsel %vm304, %v3676, 0
      %v3906 = vsel %vm304, %v3681, 0
      %v3909 = vsel %vm304, %v3686, 0
      %v3912 = vsel %vm304, %v3691, 0
      %v3915 = vsel %vm304, %v3696, 0
      %v3918 = vsel %vm304, %v3701, 0
      %v3921 = vsel %vm304, %v3706, 0
      %v3924 = vsel %vm304, %v3711, 0
      %v3927 = vsel %vm304, %v3716, 0
      %v3930 = vsel %vm304, %v3721, 0
      %v3933 = vsel %vm304, %v3726, 0
      %v3936 = vsel %vm304, %v3731, 0
      %v3939 = vsel %vm304, %v3736, 0
      %v3942 = vsel %vm304, %v3741, 0
      %v3945 = vsel %vm304, %v3746, 0
      %v3948 = vsel %vm304, %v3751, 0
      %v3951 = vsel %vm304, %v3756, 0
      %v3954 = vsel %vm304, %v3761, 0
      %v3957 = vsel %vm304, %v3766, 0
      %v3960 = vsel %vm304, %v3771, 0
      %v3963 = vsel %vm304, %v3776, 0
      %v3966 = vsel %vm304, %v3781, 0
      %v3969 = vsel %vm304, %v3786, 0
      %v3972 = vsel %vm304, %v3791, 0
      %v3975 = vsel %vm304, %v3796, 0
      %v3978 = vsel %vm304, %v3801, 0
      %v3981 = vsel %vm304, %v3806, 0
      %v3984 = vsel %vm304, %v3811, 0
      %3986 = vmatpush.msra.mxu0 %v3828
      %3987 = vmatpush.msra.mxu0 %v3827
      %3988 = vmatpush.msra.mxu0 %v3826
      %3989 = vmatpush.msra.mxu0 %v3825
      %3990 = vmatpush.msra.mxu0 %v3824
      %3991 = vmatpush.msra.mxu0 %v3823
      %3992 = vmatpush.msra.mxu0 %v3822
      %3993 = vmatpush.msra.mxu0 %v3821
      %3994 = vmatpush.msra.mxu0 %v3820
      %3995 = vmatpush.msra.mxu0 %v3819
      %3996 = vmatpush.msra.mxu0 %v3818
      %3997 = vmatpush.msra.mxu0 %v3817
      %3998 = vmatpush.msra.mxu0 %v3816
      %3999 = vmatpush.msra.mxu0 %v3815
      %4000 = vmatpush.msra.mxu0 %v3814
      %4001 = vmatpush.msra.mxu0 %v3813
      %4002 = vmatmul.f32.gmra.mxu0 %v3652
      %v4003 = vpop.f32.mrf.mxu0
      %v4004 = vadd.f32 %v3888, %v4003
      %4005 = vmatmul.f32.gmra.mxu0 %v3657
      %v4006 = vpop.f32.mrf.mxu0
      %v4007 = vadd.f32 %v3888, %v4006
      %4008 = vmatmul.f32.gmra.mxu0 %v3662
      %v4009 = vpop.f32.mrf.mxu0
      %v4010 = vadd.f32 %v3888, %v4009
      %4011 = vmatmul.f32.gmra.mxu0 %v3667
      %v4012 = vpop.f32.mrf.mxu0
      %v4013 = vadd.f32 %v3888, %v4012
      %4014 = vmatmul.f32.gmra.mxu0 %v3672
      %v4015 = vpop.f32.mrf.mxu0
      %v4016 = vadd.f32 %v3888, %v4015
      %4017 = vmatmul.f32.gmra.mxu0 %v3677
      %v4018 = vpop.f32.mrf.mxu0
      %v4019 = vadd.f32 %v3888, %v4018
      %4020 = vmatmul.f32.gmra.mxu0 %v3682
      %v4021 = vpop.f32.mrf.mxu0
      %v4022 = vadd.f32 %v3888, %v4021
      %4023 = vmatmul.f32.gmra.mxu0 %v3687
      %v4024 = vpop.f32.mrf.mxu0
      %v4025 = vadd.f32 %v3888, %v4024
      %4026 = vmatmul.f32.gmra.mxu0 %v3692
      %v4027 = vpop.f32.mrf.mxu0
      %v4028 = vadd.f32 %v3888, %v4027
      %4029 = vmatmul.f32.gmra.mxu0 %v3697
      %v4030 = vpop.f32.mrf.mxu0
      %v4031 = vadd.f32 %v3888, %v4030
      %4032 = vmatmul.f32.gmra.mxu0 %v3702
      %v4033 = vpop.f32.mrf.mxu0
      %v4034 = vadd.f32 %v3888, %v4033
      %4035 = vmatmul.f32.gmra.mxu0 %v3707
      %v4036 = vpop.f32.mrf.mxu0
      %v4037 = vadd.f32 %v3888, %v4036
      %4038 = vmatmul.f32.gmra.mxu0 %v3712
      %v4039 = vpop.f32.mrf.mxu0
      %v4040 = vadd.f32 %v3888, %v4039
      %4041 = vmatmul.f32.gmra.mxu0 %v3717
      %v4042 = vpop.f32.mrf.mxu0
      %v4043 = vadd.f32 %v3888, %v4042
      %4044 = vmatmul.f32.gmra.mxu0 %v3722
      %v4045 = vpop.f32.mrf.mxu0
      %v4046 = vadd.f32 %v3888, %v4045
      %4047 = vmatmul.f32.gmra.mxu0 %v3727
      %v4048 = vpop.f32.mrf.mxu0
      %v4049 = vadd.f32 %v3888, %v4048
      %4050 = vmatmul.f32.gmra.mxu0 %v3732
      %v4051 = vpop.f32.mrf.mxu0
      %v4052 = vadd.f32 %v3888, %v4051
      %4053 = vmatmul.f32.gmra.mxu0 %v3737
      %v4054 = vpop.f32.mrf.mxu0
      %v4055 = vadd.f32 %v3888, %v4054
      %4056 = vmatmul.f32.gmra.mxu0 %v3742
      %v4057 = vpop.f32.mrf.mxu0
      %v4058 = vadd.f32 %v3888, %v4057
      %4059 = vmatmul.f32.gmra.mxu0 %v3747
      %v4060 = vpop.f32.mrf.mxu0
      %v4061 = vadd.f32 %v3888, %v4060
      %4062 = vmatmul.f32.gmra.mxu0 %v3752
      %v4063 = vpop.f32.mrf.mxu0
      %v4064 = vadd.f32 %v3888, %v4063
      %4065 = vmatmul.f32.gmra.mxu0 %v3757
      %v4066 = vpop.f32.mrf.mxu0
      %v4067 = vadd.f32 %v3888, %v4066
      %4068 = vmatmul.f32.gmra.mxu0 %v3762
      %v4069 = vpop.f32.mrf.mxu0
      %v4070 = vadd.f32 %v3888, %v4069
      %4071 = vmatmul.f32.gmra.mxu0 %v3767
      %v4072 = vpop.f32.mrf.mxu0
      %v4073 = vadd.f32 %v3888, %v4072
      %4074 = vmatmul.f32.gmra.mxu0 %v3772
      %v4075 = vpop.f32.mrf.mxu0
      %v4076 = vadd.f32 %v3888, %v4075
      %4077 = vmatmul.f32.gmra.mxu0 %v3777
      %v4078 = vpop.f32.mrf.mxu0
      %v4079 = vadd.f32 %v3888, %v4078
      %4080 = vmatmul.f32.gmra.mxu0 %v3782
      %v4081 = vpop.f32.mrf.mxu0
      %v4082 = vadd.f32 %v3888, %v4081
      %4083 = vmatmul.f32.gmra.mxu0 %v3787
      %v4084 = vpop.f32.mrf.mxu0
      %v4085 = vadd.f32 %v3888, %v4084
      %4086 = vmatmul.f32.gmra.mxu0 %v3792
      %v4087 = vpop.f32.mrf.mxu0
      %v4088 = vadd.f32 %v3888, %v4087
      %4089 = vmatmul.f32.gmra.mxu0 %v3797
      %v4090 = vpop.f32.mrf.mxu0
      %v4091 = vadd.f32 %v3888, %v4090
      %4092 = vmatmul.f32.gmra.mxu0 %v3802
      %v4093 = vpop.f32.mrf.mxu0
      %v4094 = vadd.f32 %v3888, %v4093
      %4095 = vmatmul.f32.gmra.mxu0 %v3807
      %v4096 = vpop.f32.mrf.mxu0
      %v4097 = vadd.f32 %v3888, %v4096
      %4098 = vdwg.mxu0
      %4099 = vmatpush.msra.mxu0 %v3844
      %4100 = vmatpush.msra.mxu0 %v3843
      %4101 = vmatpush.msra.mxu0 %v3842
      %4102 = vmatpush.msra.mxu0 %v3841
      %4103 = vmatpush.msra.mxu0 %v3840
      %4104 = vmatpush.msra.mxu0 %v3839
      %4105 = vmatpush.msra.mxu0 %v3838
      %4106 = vmatpush.msra.mxu0 %v3837
      %4107 = vmatpush.msra.mxu0 %v3836
      %4108 = vmatpush.msra.mxu0 %v3835
      %4109 = vmatpush.msra.mxu0 %v3834
      %4110 = vmatpush.msra.mxu0 %v3833
      %4111 = vmatpush.msra.mxu0 %v3832
      %4112 = vmatpush.msra.mxu0 %v3831
      %4113 = vmatpush.msra.mxu0 %v3830
      %4114 = vmatpush.msra.mxu0 %v3829
      %4115 = vmatmul.f32.gmra.mxu0 %v3653
      %v4116 = vpop.f32.mrf.mxu0
      %v4117 = vadd.f32 %v4004, %v4116
      %4118 = vmatmul.f32.gmra.mxu0 %v3658
      %v4119 = vpop.f32.mrf.mxu0
      %v4120 = vadd.f32 %v4007, %v4119
      %4121 = vmatmul.f32.gmra.mxu0 %v3663
      %v4122 = vpop.f32.mrf.mxu0
      %v4123 = vadd.f32 %v4010, %v4122
      %4124 = vmatmul.f32.gmra.mxu0 %v3668
      %v4125 = vpop.f32.mrf.mxu0
      %v4126 = vadd.f32 %v4013, %v4125
      %4127 = vmatmul.f32.gmra.mxu0 %v3673
      %v4128 = vpop.f32.mrf.mxu0
      %v4129 = vadd.f32 %v4016, %v4128
      %4130 = vmatmul.f32.gmra.mxu0 %v3678
      %v4131 = vpop.f32.mrf.mxu0
      %v4132 = vadd.f32 %v4019, %v4131
      %4133 = vmatmul.f32.gmra.mxu0 %v3683
      %v4134 = vpop.f32.mrf.mxu0
      %v4135 = vadd.f32 %v4022, %v4134
      %4136 = vmatmul.f32.gmra.mxu0 %v3688
      %v4137 = vpop.f32.mrf.mxu0
      %v4138 = vadd.f32 %v4025, %v4137
      %4139 = vmatmul.f32.gmra.mxu0 %v3693
      %v4140 = vpop.f32.mrf.mxu0
      %v4141 = vadd.f32 %v4028, %v4140
      %4142 = vmatmul.f32.gmra.mxu0 %v3698
      %v4143 = vpop.f32.mrf.mxu0
      %v4144 = vadd.f32 %v4031, %v4143
      %4145 = vmatmul.f32.gmra.mxu0 %v3703
      %v4146 = vpop.f32.mrf.mxu0
      %v4147 = vadd.f32 %v4034, %v4146
      %4148 = vmatmul.f32.gmra.mxu0 %v3708
      %v4149 = vpop.f32.mrf.mxu0
      %v4150 = vadd.f32 %v4037, %v4149
      %4151 = vmatmul.f32.gmra.mxu0 %v3713
      %v4152 = vpop.f32.mrf.mxu0
      %v4153 = vadd.f32 %v4040, %v4152
      %4154 = vmatmul.f32.gmra.mxu0 %v3718
      %v4155 = vpop.f32.mrf.mxu0
      %v4156 = vadd.f32 %v4043, %v4155
      %4157 = vmatmul.f32.gmra.mxu0 %v3723
      %v4158 = vpop.f32.mrf.mxu0
      %v4159 = vadd.f32 %v4046, %v4158
      %4160 = vmatmul.f32.gmra.mxu0 %v3728
      %v4161 = vpop.f32.mrf.mxu0
      %v4162 = vadd.f32 %v4049, %v4161
      %4163 = vmatmul.f32.gmra.mxu0 %v3733
      %v4164 = vpop.f32.mrf.mxu0
      %v4165 = vadd.f32 %v4052, %v4164
      %4166 = vmatmul.f32.gmra.mxu0 %v3738
      %v4167 = vpop.f32.mrf.mxu0
      %v4168 = vadd.f32 %v4055, %v4167
      %4169 = vmatmul.f32.gmra.mxu0 %v3743
      %v4170 = vpop.f32.mrf.mxu0
      %v4171 = vadd.f32 %v4058, %v4170
      %4172 = vmatmul.f32.gmra.mxu0 %v3748
      %v4173 = vpop.f32.mrf.mxu0
      %v4174 = vadd.f32 %v4061, %v4173
      %4175 = vmatmul.f32.gmra.mxu0 %v3753
      %v4176 = vpop.f32.mrf.mxu0
      %v4177 = vadd.f32 %v4064, %v4176
      %4178 = vmatmul.f32.gmra.mxu0 %v3758
      %v4179 = vpop.f32.mrf.mxu0
      %v4180 = vadd.f32 %v4067, %v4179
      %4181 = vmatmul.f32.gmra.mxu0 %v3763
      %v4182 = vpop.f32.mrf.mxu0
      %v4183 = vadd.f32 %v4070, %v4182
      %4184 = vmatmul.f32.gmra.mxu0 %v3768
      %v4185 = vpop.f32.mrf.mxu0
      %v4186 = vadd.f32 %v4073, %v4185
      %4187 = vmatmul.f32.gmra.mxu0 %v3773
      %v4188 = vpop.f32.mrf.mxu0
      %v4189 = vadd.f32 %v4076, %v4188
      %4190 = vmatmul.f32.gmra.mxu0 %v3778
      %v4191 = vpop.f32.mrf.mxu0
      %v4192 = vadd.f32 %v4079, %v4191
      %4193 = vmatmul.f32.gmra.mxu0 %v3783
      %v4194 = vpop.f32.mrf.mxu0
      %v4195 = vadd.f32 %v4082, %v4194
      %4196 = vmatmul.f32.gmra.mxu0 %v3788
      %v4197 = vpop.f32.mrf.mxu0
      %v4198 = vadd.f32 %v4085, %v4197
      %4199 = vmatmul.f32.gmra.mxu0 %v3793
      %v4200 = vpop.f32.mrf.mxu0
      %v4201 = vadd.f32 %v4088, %v4200
      %4202 = vmatmul.f32.gmra.mxu0 %v3798
      %v4203 = vpop.f32.mrf.mxu0
      %v4204 = vadd.f32 %v4091, %v4203
      %4205 = vmatmul.f32.gmra.mxu0 %v3803
      %v4206 = vpop.f32.mrf.mxu0
      %v4207 = vadd.f32 %v4094, %v4206
      %4208 = vmatmul.f32.gmra.mxu0 %v3808
      %v4209 = vpop.f32.mrf.mxu0
      %v4210 = vadd.f32 %v4097, %v4209
      %4211 = vdwg.mxu0
      %4212 = vmatpush.msra.mxu0 %v3860
      %4213 = vmatpush.msra.mxu0 %v3859
      %4214 = vmatpush.msra.mxu0 %v3858
      %4215 = vmatpush.msra.mxu0 %v3857
      %4216 = vmatpush.msra.mxu0 %v3856
      %4217 = vmatpush.msra.mxu0 %v3855
      %4218 = vmatpush.msra.mxu0 %v3854
      %4219 = vmatpush.msra.mxu0 %v3853
      %4220 = vmatpush.msra.mxu0 %v3852
      %4221 = vmatpush.msra.mxu0 %v3851
      %4222 = vmatpush.msra.mxu0 %v3850
      %4223 = vmatpush.msra.mxu0 %v3849
      %4224 = vmatpush.msra.mxu0 %v3848
      %4225 = vmatpush.msra.mxu0 %v3847
      %4226 = vmatpush.msra.mxu0 %v3846
      %4227 = vmatpush.msra.mxu0 %v3845
      %4228 = vmatmul.f32.gmra.mxu0 %v3654
      %v4229 = vpop.f32.mrf.mxu0
      %v4230 = vadd.f32 %v4117, %v4229
      %4231 = vmatmul.f32.gmra.mxu0 %v3659
      %v4232 = vpop.f32.mrf.mxu0
      %v4233 = vadd.f32 %v4120, %v4232
      %4234 = vmatmul.f32.gmra.mxu0 %v3664
      %v4235 = vpop.f32.mrf.mxu0
      %v4236 = vadd.f32 %v4123, %v4235
      %4237 = vmatmul.f32.gmra.mxu0 %v3669
      %v4238 = vpop.f32.mrf.mxu0
      %v4239 = vadd.f32 %v4126, %v4238
      %4240 = vmatmul.f32.gmra.mxu0 %v3674
      %v4241 = vpop.f32.mrf.mxu0
      %v4242 = vadd.f32 %v4129, %v4241
      %4243 = vmatmul.f32.gmra.mxu0 %v3679
      %v4244 = vpop.f32.mrf.mxu0
      %v4245 = vadd.f32 %v4132, %v4244
      %4246 = vmatmul.f32.gmra.mxu0 %v3684
      %v4247 = vpop.f32.mrf.mxu0
      %v4248 = vadd.f32 %v4135, %v4247
      %4249 = vmatmul.f32.gmra.mxu0 %v3689
      %v4250 = vpop.f32.mrf.mxu0
      %v4251 = vadd.f32 %v4138, %v4250
      %4252 = vmatmul.f32.gmra.mxu0 %v3694
      %v4253 = vpop.f32.mrf.mxu0
      %v4254 = vadd.f32 %v4141, %v4253
      %4255 = vmatmul.f32.gmra.mxu0 %v3699
      %v4256 = vpop.f32.mrf.mxu0
      %v4257 = vadd.f32 %v4144, %v4256
      %4258 = vmatmul.f32.gmra.mxu0 %v3704
      %v4259 = vpop.f32.mrf.mxu0
      %v4260 = vadd.f32 %v4147, %v4259
      %4261 = vmatmul.f32.gmra.mxu0 %v3709
      %v4262 = vpop.f32.mrf.mxu0
      %v4263 = vadd.f32 %v4150, %v4262
      %4264 = vmatmul.f32.gmra.mxu0 %v3714
      %v4265 = vpop.f32.mrf.mxu0
      %v4266 = vadd.f32 %v4153, %v4265
      %4267 = vmatmul.f32.gmra.mxu0 %v3719
      %v4268 = vpop.f32.mrf.mxu0
      %v4269 = vadd.f32 %v4156, %v4268
      %4270 = vmatmul.f32.gmra.mxu0 %v3724
      %v4271 = vpop.f32.mrf.mxu0
      %v4272 = vadd.f32 %v4159, %v4271
      %4273 = vmatmul.f32.gmra.mxu0 %v3729
      %v4274 = vpop.f32.mrf.mxu0
      %v4275 = vadd.f32 %v4162, %v4274
      %4276 = vmatmul.f32.gmra.mxu0 %v3734
      %v4277 = vpop.f32.mrf.mxu0
      %v4278 = vadd.f32 %v4165, %v4277
      %4279 = vmatmul.f32.gmra.mxu0 %v3739
      %v4280 = vpop.f32.mrf.mxu0
      %v4281 = vadd.f32 %v4168, %v4280
      %4282 = vmatmul.f32.gmra.mxu0 %v3744
      %v4283 = vpop.f32.mrf.mxu0
      %v4284 = vadd.f32 %v4171, %v4283
      %4285 = vmatmul.f32.gmra.mxu0 %v3749
      %v4286 = vpop.f32.mrf.mxu0
      %v4287 = vadd.f32 %v4174, %v4286
      %4288 = vmatmul.f32.gmra.mxu0 %v3754
      %v4289 = vpop.f32.mrf.mxu0
      %v4290 = vadd.f32 %v4177, %v4289
      %4291 = vmatmul.f32.gmra.mxu0 %v3759
      %v4292 = vpop.f32.mrf.mxu0
      %v4293 = vadd.f32 %v4180, %v4292
      %4294 = vmatmul.f32.gmra.mxu0 %v3764
      %v4295 = vpop.f32.mrf.mxu0
      %v4296 = vadd.f32 %v4183, %v4295
      %4297 = vmatmul.f32.gmra.mxu0 %v3769
      %v4298 = vpop.f32.mrf.mxu0
      %v4299 = vadd.f32 %v4186, %v4298
      %4300 = vmatmul.f32.gmra.mxu0 %v3774
      %v4301 = vpop.f32.mrf.mxu0
      %v4302 = vadd.f32 %v4189, %v4301
      %4303 = vmatmul.f32.gmra.mxu0 %v3779
      %v4304 = vpop.f32.mrf.mxu0
      %v4305 = vadd.f32 %v4192, %v4304
      %4306 = vmatmul.f32.gmra.mxu0 %v3784
      %v4307 = vpop.f32.mrf.mxu0
      %v4308 = vadd.f32 %v4195, %v4307
      %4309 = vmatmul.f32.gmra.mxu0 %v3789
      %v4310 = vpop.f32.mrf.mxu0
      %v4311 = vadd.f32 %v4198, %v4310
      %4312 = vmatmul.f32.gmra.mxu0 %v3794
      %v4313 = vpop.f32.mrf.mxu0
      %v4314 = vadd.f32 %v4201, %v4313
      %4315 = vmatmul.f32.gmra.mxu0 %v3799
      %v4316 = vpop.f32.mrf.mxu0
      %v4317 = vadd.f32 %v4204, %v4316
      %4318 = vmatmul.f32.gmra.mxu0 %v3804
      %v4319 = vpop.f32.mrf.mxu0
      %v4320 = vadd.f32 %v4207, %v4319
      %4321 = vmatmul.f32.gmra.mxu0 %v3809
      %v4322 = vpop.f32.mrf.mxu0
      %v4323 = vadd.f32 %v4210, %v4322
      %4324 = vdwg.mxu0
      %4325 = vmatpush.msra.mxu0 %v3876
      %4326 = vmatpush.msra.mxu0 %v3875
      %4327 = vmatpush.msra.mxu0 %v3874
      %4328 = vmatpush.msra.mxu0 %v3873
      %4329 = vmatpush.msra.mxu0 %v3872
      %4330 = vmatpush.msra.mxu0 %v3871
      %4331 = vmatpush.msra.mxu0 %v3870
      %4332 = vmatpush.msra.mxu0 %v3869
      %4333 = vmatpush.msra.mxu0 %v3868
      %4334 = vmatpush.msra.mxu0 %v3867
      %4335 = vmatpush.msra.mxu0 %v3866
      %4336 = vmatpush.msra.mxu0 %v3865
      %4337 = vmatpush.msra.mxu0 %v3864
      %4338 = vmatpush.msra.mxu0 %v3863
      %4339 = vmatpush.msra.mxu0 %v3862
      %4340 = vmatpush.msra.mxu0 %v3861
      %4341 = vmatmul.f32.gmra.mxu0 %v3655
      %v4342 = vpop.f32.mrf.mxu0
      %v4343 = vadd.f32 %v4230, %v4342
      %4344 = vmatmul.f32.gmra.mxu0 %v3660
      %v4345 = vpop.f32.mrf.mxu0
      %v4346 = vadd.f32 %v4233, %v4345
      %4347 = vmatmul.f32.gmra.mxu0 %v3665
      %v4348 = vpop.f32.mrf.mxu0
      %v4349 = vadd.f32 %v4236, %v4348
      %4350 = vmatmul.f32.gmra.mxu0 %v3670
      %v4351 = vpop.f32.mrf.mxu0
      %v4352 = vadd.f32 %v4239, %v4351
      %4353 = vmatmul.f32.gmra.mxu0 %v3675
      %v4354 = vpop.f32.mrf.mxu0
      %v4355 = vadd.f32 %v4242, %v4354
      %4356 = vmatmul.f32.gmra.mxu0 %v3680
      %v4357 = vpop.f32.mrf.mxu0
      %v4358 = vadd.f32 %v4245, %v4357
      %4359 = vmatmul.f32.gmra.mxu0 %v3685
      %v4360 = vpop.f32.mrf.mxu0
      %v4361 = vadd.f32 %v4248, %v4360
      %4362 = vmatmul.f32.gmra.mxu0 %v3690
      %v4363 = vpop.f32.mrf.mxu0
      %v4364 = vadd.f32 %v4251, %v4363
      %4365 = vmatmul.f32.gmra.mxu0 %v3695
      %v4366 = vpop.f32.mrf.mxu0
      %v4367 = vadd.f32 %v4254, %v4366
      %4368 = vmatmul.f32.gmra.mxu0 %v3700
      %v4369 = vpop.f32.mrf.mxu0
      %v4370 = vadd.f32 %v4257, %v4369
      %4371 = vmatmul.f32.gmra.mxu0 %v3705
      %v4372 = vpop.f32.mrf.mxu0
      %v4373 = vadd.f32 %v4260, %v4372
      %4374 = vmatmul.f32.gmra.mxu0 %v3710
      %v4375 = vpop.f32.mrf.mxu0
      %v4376 = vadd.f32 %v4263, %v4375
      %4377 = vmatmul.f32.gmra.mxu0 %v3715
      %v4378 = vpop.f32.mrf.mxu0
      %v4379 = vadd.f32 %v4266, %v4378
      %4380 = vmatmul.f32.gmra.mxu0 %v3720
      %v4381 = vpop.f32.mrf.mxu0
      %v4382 = vadd.f32 %v4269, %v4381
      %4383 = vmatmul.f32.gmra.mxu0 %v3725
      %v4384 = vpop.f32.mrf.mxu0
      %v4385 = vadd.f32 %v4272, %v4384
      %4386 = vmatmul.f32.gmra.mxu0 %v3730
      %v4387 = vpop.f32.mrf.mxu0
      %v4388 = vadd.f32 %v4275, %v4387
      %4389 = vmatmul.f32.gmra.mxu0 %v3735
      %v4390 = vpop.f32.mrf.mxu0
      %v4391 = vadd.f32 %v4278, %v4390
      %4392 = vmatmul.f32.gmra.mxu0 %v3740
      %v4393 = vpop.f32.mrf.mxu0
      %v4394 = vadd.f32 %v4281, %v4393
      %4395 = vmatmul.f32.gmra.mxu0 %v3745
      %v4396 = vpop.f32.mrf.mxu0
      %v4397 = vadd.f32 %v4284, %v4396
      %4398 = vmatmul.f32.gmra.mxu0 %v3750
      %v4399 = vpop.f32.mrf.mxu0
      %v4400 = vadd.f32 %v4287, %v4399
      %4401 = vmatmul.f32.gmra.mxu0 %v3755
      %v4402 = vpop.f32.mrf.mxu0
      %v4403 = vadd.f32 %v4290, %v4402
      %4404 = vmatmul.f32.gmra.mxu0 %v3760
      %v4405 = vpop.f32.mrf.mxu0
      %v4406 = vadd.f32 %v4293, %v4405
      %4407 = vmatmul.f32.gmra.mxu0 %v3765
      %v4408 = vpop.f32.mrf.mxu0
      %v4409 = vadd.f32 %v4296, %v4408
      %4410 = vmatmul.f32.gmra.mxu0 %v3770
      %v4411 = vpop.f32.mrf.mxu0
      %v4412 = vadd.f32 %v4299, %v4411
      %4413 = vmatmul.f32.gmra.mxu0 %v3775
      %v4414 = vpop.f32.mrf.mxu0
      %v4415 = vadd.f32 %v4302, %v4414
      %4416 = vmatmul.f32.gmra.mxu0 %v3780
      %v4417 = vpop.f32.mrf.mxu0
      %v4418 = vadd.f32 %v4305, %v4417
      %4419 = vmatmul.f32.gmra.mxu0 %v3785
      %v4420 = vpop.f32.mrf.mxu0
      %v4421 = vadd.f32 %v4308, %v4420
      %4422 = vmatmul.f32.gmra.mxu0 %v3790
      %v4423 = vpop.f32.mrf.mxu0
      %v4424 = vadd.f32 %v4311, %v4423
      %4425 = vmatmul.f32.gmra.mxu0 %v3795
      %v4426 = vpop.f32.mrf.mxu0
      %v4427 = vadd.f32 %v4314, %v4426
      %4428 = vmatmul.f32.gmra.mxu0 %v3800
      %v4429 = vpop.f32.mrf.mxu0
      %v4430 = vadd.f32 %v4317, %v4429
      %4431 = vmatmul.f32.gmra.mxu0 %v3805
      %v4432 = vpop.f32.mrf.mxu0
      %v4433 = vadd.f32 %v4320, %v4432
      %4434 = vmatmul.f32.gmra.mxu0 %v3810
      %v4435 = vpop.f32.mrf.mxu0
      %v4436 = vadd.f32 %v4323, %v4435
      %4437 = vdwg.mxu0
      %4438 = vmatpush.msra.mxu0 0.0
      %4439 = vmatpush.msra.mxu0 0.0
      %4440 = vmatpush.msra.mxu0 0.0
      %4441 = vmatpush.msra.mxu0 0.0
      %4442 = vmatpush.msra.mxu0 0.0
      %4443 = vmatpush.msra.mxu0 0.0
      %4444 = vmatpush.msra.mxu0 0.0
      %4445 = vmatpush.msra.mxu0 0.0
      %4446 = vmatpush.msra.mxu0 %v3884
      %4447 = vmatpush.msra.mxu0 %v3883
      %4448 = vmatpush.msra.mxu0 %v3882
      %4449 = vmatpush.msra.mxu0 %v3881
      %4450 = vmatpush.msra.mxu0 %v3880
      %4451 = vmatpush.msra.mxu0 %v3879
      %4452 = vmatpush.msra.mxu0 %v3878
      %4453 = vmatpush.msra.mxu0 %v3877
      %4454 = vmatmul.f32.gmra.mxu0 %v3891
      %v4455 = vpop.f32.mrf.mxu0
      %v4456 = vadd.f32 %v4343, %v4455
      %4457 = vmatmul.f32.gmra.mxu0 %v3894
      %v4458 = vpop.f32.mrf.mxu0
      %v4459 = vadd.f32 %v4346, %v4458
      %4460 = vmatmul.f32.gmra.mxu0 %v3897
      %v4461 = vpop.f32.mrf.mxu0
      %v4462 = vadd.f32 %v4349, %v4461
      %4463 = vmatmul.f32.gmra.mxu0 %v3900
      %v4464 = vpop.f32.mrf.mxu0
      %v4465 = vadd.f32 %v4352, %v4464
      %4466 = vmatmul.f32.gmra.mxu0 %v3903
      %v4467 = vpop.f32.mrf.mxu0
      %v4468 = vadd.f32 %v4355, %v4467
      %4469 = vmatmul.f32.gmra.mxu0 %v3906
      %v4470 = vpop.f32.mrf.mxu0
      %v4471 = vadd.f32 %v4358, %v4470
      %4472 = vmatmul.f32.gmra.mxu0 %v3909
      %v4473 = vpop.f32.mrf.mxu0
      %v4474 = vadd.f32 %v4361, %v4473
      %4475 = vmatmul.f32.gmra.mxu0 %v3912
      %v4476 = vpop.f32.mrf.mxu0
      %v4477 = vadd.f32 %v4364, %v4476
      %4478 = vmatmul.f32.gmra.mxu0 %v3915
      %v4479 = vpop.f32.mrf.mxu0
      %v4480 = vadd.f32 %v4367, %v4479
      %4481 = vmatmul.f32.gmra.mxu0 %v3918
      %v4482 = vpop.f32.mrf.mxu0
      %v4483 = vadd.f32 %v4370, %v4482
      %4484 = vmatmul.f32.gmra.mxu0 %v3921
      %v4485 = vpop.f32.mrf.mxu0
      %v4486 = vadd.f32 %v4373, %v4485
      %4487 = vmatmul.f32.gmra.mxu0 %v3924
      %v4488 = vpop.f32.mrf.mxu0
      %v4489 = vadd.f32 %v4376, %v4488
      %4490 = vmatmul.f32.gmra.mxu0 %v3927
      %v4491 = vpop.f32.mrf.mxu0
      %v4492 = vadd.f32 %v4379, %v4491
      %4493 = vmatmul.f32.gmra.mxu0 %v3930
      %v4494 = vpop.f32.mrf.mxu0
      %v4495 = vadd.f32 %v4382, %v4494
      %4496 = vmatmul.f32.gmra.mxu0 %v3933
      %v4497 = vpop.f32.mrf.mxu0
      %v4498 = vadd.f32 %v4385, %v4497
      %4499 = vmatmul.f32.gmra.mxu0 %v3936
      %v4500 = vpop.f32.mrf.mxu0
      %v4501 = vadd.f32 %v4388, %v4500
      %4502 = vmatmul.f32.gmra.mxu0 %v3939
      %v4503 = vpop.f32.mrf.mxu0
      %v4504 = vadd.f32 %v4391, %v4503
      %4505 = vmatmul.f32.gmra.mxu0 %v3942
      %v4506 = vpop.f32.mrf.mxu0
      %v4507 = vadd.f32 %v4394, %v4506
      %4508 = vmatmul.f32.gmra.mxu0 %v3945
      %v4509 = vpop.f32.mrf.mxu0
      %v4510 = vadd.f32 %v4397, %v4509
      %4511 = vmatmul.f32.gmra.mxu0 %v3948
      %v4512 = vpop.f32.mrf.mxu0
      %v4513 = vadd.f32 %v4400, %v4512
      %4514 = vmatmul.f32.gmra.mxu0 %v3951
      %v4515 = vpop.f32.mrf.mxu0
      %v4516 = vadd.f32 %v4403, %v4515
      %4517 = vmatmul.f32.gmra.mxu0 %v3954
      %v4518 = vpop.f32.mrf.mxu0
      %v4519 = vadd.f32 %v4406, %v4518
      %4520 = vmatmul.f32.gmra.mxu0 %v3957
      %v4521 = vpop.f32.mrf.mxu0
      %v4522 = vadd.f32 %v4409, %v4521
      %4523 = vmatmul.f32.gmra.mxu0 %v3960
      %v4524 = vpop.f32.mrf.mxu0
      %v4525 = vadd.f32 %v4412, %v4524
      %4526 = vmatmul.f32.gmra.mxu0 %v3963
      %v4527 = vpop.f32.mrf.mxu0
      %v4528 = vadd.f32 %v4415, %v4527
      %4529 = vmatmul.f32.gmra.mxu0 %v3966
      %v4530 = vpop.f32.mrf.mxu0
      %v4531 = vadd.f32 %v4418, %v4530
      %4532 = vmatmul.f32.gmra.mxu0 %v3969
      %v4533 = vpop.f32.mrf.mxu0
      %v4534 = vadd.f32 %v4421, %v4533
      %4535 = vmatmul.f32.gmra.mxu0 %v3972
      %v4536 = vpop.f32.mrf.mxu0
      %v4537 = vadd.f32 %v4424, %v4536
      %4538 = vmatmul.f32.gmra.mxu0 %v3975
      %v4539 = vpop.f32.mrf.mxu0
      %v4540 = vadd.f32 %v4427, %v4539
      %4541 = vmatmul.f32.gmra.mxu0 %v3978
      %v4542 = vpop.f32.mrf.mxu0
      %v4543 = vadd.f32 %v4430, %v4542
      %4544 = vmatmul.f32.gmra.mxu0 %v3981
      %v4545 = vpop.f32.mrf.mxu0
      %v4546 = vadd.f32 %v4433, %v4545
      %4547 = vmatmul.f32.gmra.mxu0 %v3984
      %v4548 = vpop.f32.mrf.mxu0
      %v4549 = vadd.f32 %v4436, %v4548
      %4550 = vdwg.mxu0
      %v4551 = vsel %vm304, %v4456, 0.0
      %v4552 = vsel %vm304, %v4459, 0.0
      %v4553 = vadd.f32 %v4551, %v4552
      %v4554 = vsel %vm304, %v4462, 0.0
      %v4555 = vadd.f32 %v4553, %v4554
      %v4556 = vsel %vm304, %v4465, 0.0
      %v4557 = vadd.f32 %v4555, %v4556
      %v4558 = vsel %vm304, %v4468, 0.0
      %v4559 = vadd.f32 %v4557, %v4558
      %v4560 = vsel %vm304, %v4471, 0.0
      %v4561 = vadd.f32 %v4559, %v4560
      %v4562 = vsel %vm304, %v4474, 0.0
      %v4563 = vadd.f32 %v4561, %v4562
      %v4564 = vsel %vm304, %v4477, 0.0
      %v4565 = vadd.f32 %v4563, %v4564
      %v4566 = vsel %vm304, %v4480, 0.0
      %v4567 = vadd.f32 %v4565, %v4566
      %v4568 = vsel %vm304, %v4483, 0.0
      %v4569 = vadd.f32 %v4567, %v4568
      %v4570 = vsel %vm304, %v4486, 0.0
      %v4571 = vadd.f32 %v4569, %v4570
      %v4572 = vsel %vm304, %v4489, 0.0
      %v4573 = vadd.f32 %v4571, %v4572
      %v4574 = vsel %vm304, %v4492, 0.0
      %v4575 = vadd.f32 %v4573, %v4574
      %v4576 = vsel %vm304, %v4495, 0.0
      %v4577 = vadd.f32 %v4575, %v4576
      %v4578 = vsel %vm304, %v4498, 0.0
      %v4579 = vadd.f32 %v4577, %v4578
      %v4580 = vsel %vm304, %v4501, 0.0
      %v4581 = vadd.f32 %v4579, %v4580
      %v4582 = vsel %vm304, %v4504, 0.0
      %v4583 = vadd.f32 %v4581, %v4582
      %v4584 = vsel %vm304, %v4507, 0.0
      %v4585 = vadd.f32 %v4583, %v4584
      %v4586 = vsel %vm304, %v4510, 0.0
      %v4587 = vadd.f32 %v4585, %v4586
      %v4588 = vsel %vm304, %v4513, 0.0
      %v4589 = vadd.f32 %v4587, %v4588
      %v4590 = vsel %vm304, %v4516, 0.0
      %v4591 = vadd.f32 %v4589, %v4590
      %v4592 = vsel %vm304, %v4519, 0.0
      %v4593 = vadd.f32 %v4591, %v4592
      %v4594 = vsel %vm304, %v4522, 0.0
      %v4595 = vadd.f32 %v4593, %v4594
      %v4596 = vsel %vm304, %v4525, 0.0
      %v4597 = vadd.f32 %v4595, %v4596
      %v4598 = vsel %vm304, %v4528, 0.0
      %v4599 = vadd.f32 %v4597, %v4598
      %v4600 = vsel %vm304, %v4531, 0.0
      %v4601 = vadd.f32 %v4599, %v4600
      %v4602 = vsel %vm304, %v4534, 0.0
      %v4603 = vadd.f32 %v4601, %v4602
      %v4604 = vsel %vm304, %v4537, 0.0
      %v4605 = vadd.f32 %v4603, %v4604
      %v4606 = vsel %vm304, %v4540, 0.0
      %v4607 = vadd.f32 %v4605, %v4606
      %v4608 = vsel %vm304, %v4543, 0.0
      %v4609 = vadd.f32 %v4607, %v4608
      %v4610 = vsel %vm304, %v4546, 0.0
      %v4611 = vadd.f32 %v4609, %v4610
      %v4612 = vsel %vm304, %v4549, 0.0
      %v4613 = vadd.f32 %v4611, %v4612
      %v4614 = vrot.slane %v4613, 4
      %v4615 = vadd.f32 %v4613, %v4614
      %v4616 = vrot.slane %v4615, 2
      %v4617 = vadd.f32 %v4615, %v4616
      %v4618 = vrot.slane %v4617, 1
      %v4619 = vadd.f32 %v4617, %v4618
      %v4621 = vsel %vm304, %v4619, 0
      %4623 = vmatpush.msra.mxu0 0.0
      %4624 = vmatpush.msra.mxu0 0.0
      %4625 = vmatpush.msra.mxu0 0.0
      %4626 = vmatpush.msra.mxu0 0.0
      %4627 = vmatpush.msra.mxu0 0.0
      %4628 = vmatpush.msra.mxu0 0.0
      %4629 = vmatpush.msra.mxu0 0.0
      %4630 = vmatpush.msra.mxu0 0.0
      %4631 = vmatpush.msra.mxu0 %v367
      %4632 = vmatpush.msra.mxu0 %v366
      %4633 = vmatpush.msra.mxu0 %v365
      %4634 = vmatpush.msra.mxu0 %v364
      %4635 = vmatpush.msra.mxu0 %v363
      %4636 = vmatpush.msra.mxu0 %v362
      %4637 = vmatpush.msra.mxu0 %v361
      %4638 = vmatpush.msra.mxu0 %v360
      %4639 = vmatmul.f32.gmra.mxu0 %v4621
      %v4640 = vpop.f32.mrf.mxu0
      %v4641 = vadd.f32 0.0, %v4640
      %4642 = vdwg.mxu0
      %v4643 = vmul.f32 %v4641, 0.001953125
      %v4644 = vperm.slane %v4643, 0
      %v4645 = vsub.f32 %v4456, %v4644
      %v4646 = vsub.f32 %v4459, %v4644
      %v4647 = vsub.f32 %v4462, %v4644
      %v4648 = vsub.f32 %v4465, %v4644
      %v4649 = vsub.f32 %v4468, %v4644
      %v4650 = vsub.f32 %v4471, %v4644
      %v4651 = vsub.f32 %v4474, %v4644
      %v4652 = vsub.f32 %v4477, %v4644
      %v4653 = vsub.f32 %v4480, %v4644
      %v4654 = vsub.f32 %v4483, %v4644
      %v4655 = vsub.f32 %v4486, %v4644
      %v4656 = vsub.f32 %v4489, %v4644
      %v4657 = vsub.f32 %v4492, %v4644
      %v4658 = vsub.f32 %v4495, %v4644
      %v4659 = vsub.f32 %v4498, %v4644
      %v4660 = vsub.f32 %v4501, %v4644
      %v4661 = vsub.f32 %v4504, %v4644
      %v4662 = vsub.f32 %v4507, %v4644
      %v4663 = vsub.f32 %v4510, %v4644
      %v4664 = vsub.f32 %v4513, %v4644
      %v4665 = vsub.f32 %v4516, %v4644
      %v4666 = vsub.f32 %v4519, %v4644
      %v4667 = vsub.f32 %v4522, %v4644
      %v4668 = vsub.f32 %v4525, %v4644
      %v4669 = vsub.f32 %v4528, %v4644
      %v4670 = vsub.f32 %v4531, %v4644
      %v4671 = vsub.f32 %v4534, %v4644
      %v4672 = vsub.f32 %v4537, %v4644
      %v4673 = vsub.f32 %v4540, %v4644
      %v4674 = vsub.f32 %v4543, %v4644
      %v4675 = vsub.f32 %v4546, %v4644
      %v4676 = vsub.f32 %v4549, %v4644
      %v4677 = vmul.f32 %v4645, %v4645
      %v4678 = vmul.f32 %v4646, %v4646
      %v4679 = vmul.f32 %v4647, %v4647
      %v4680 = vmul.f32 %v4648, %v4648
      %v4681 = vmul.f32 %v4649, %v4649
      %v4682 = vmul.f32 %v4650, %v4650
      %v4683 = vmul.f32 %v4651, %v4651
      %v4684 = vmul.f32 %v4652, %v4652
      %v4685 = vmul.f32 %v4653, %v4653
      %v4686 = vmul.f32 %v4654, %v4654
      %v4687 = vmul.f32 %v4655, %v4655
      %v4688 = vmul.f32 %v4656, %v4656
      %v4689 = vmul.f32 %v4657, %v4657
      %v4690 = vmul.f32 %v4658, %v4658
      %v4691 = vmul.f32 %v4659, %v4659
      %v4692 = vmul.f32 %v4660, %v4660
      %v4693 = vmul.f32 %v4661, %v4661
      %v4694 = vmul.f32 %v4662, %v4662
      %v4695 = vmul.f32 %v4663, %v4663
      %v4696 = vmul.f32 %v4664, %v4664
      %v4697 = vmul.f32 %v4665, %v4665
      %v4698 = vmul.f32 %v4666, %v4666
      %v4699 = vmul.f32 %v4667, %v4667
      %v4700 = vmul.f32 %v4668, %v4668
      %v4701 = vmul.f32 %v4669, %v4669
      %v4702 = vmul.f32 %v4670, %v4670
      %v4703 = vmul.f32 %v4671, %v4671
      %v4704 = vmul.f32 %v4672, %v4672
      %v4705 = vmul.f32 %v4673, %v4673
      %v4706 = vmul.f32 %v4674, %v4674
      %v4707 = vmul.f32 %v4675, %v4675
      %v4708 = vmul.f32 %v4676, %v4676
      %v4709 = vsel %vm304, %v4677, 0.0
      %v4710 = vsel %vm304, %v4678, 0.0
      %v4711 = vadd.f32 %v4709, %v4710
      %v4712 = vsel %vm304, %v4679, 0.0
      %v4713 = vadd.f32 %v4711, %v4712
      %v4714 = vsel %vm304, %v4680, 0.0
      %v4715 = vadd.f32 %v4713, %v4714
      %v4716 = vsel %vm304, %v4681, 0.0
      %v4717 = vadd.f32 %v4715, %v4716
      %v4718 = vsel %vm304, %v4682, 0.0
      %v4719 = vadd.f32 %v4717, %v4718
      %v4720 = vsel %vm304, %v4683, 0.0
      %v4721 = vadd.f32 %v4719, %v4720
      %v4722 = vsel %vm304, %v4684, 0.0
      %v4723 = vadd.f32 %v4721, %v4722
      %v4724 = vsel %vm304, %v4685, 0.0
      %v4725 = vadd.f32 %v4723, %v4724
      %v4726 = vsel %vm304, %v4686, 0.0
      %v4727 = vadd.f32 %v4725, %v4726
      %v4728 = vsel %vm304, %v4687, 0.0
      %v4729 = vadd.f32 %v4727, %v4728
      %v4730 = vsel %vm304, %v4688, 0.0
      %v4731 = vadd.f32 %v4729, %v4730
      %v4732 = vsel %vm304, %v4689, 0.0
      %v4733 = vadd.f32 %v4731, %v4732
      %v4734 = vsel %vm304, %v4690, 0.0
      %v4735 = vadd.f32 %v4733, %v4734
      %v4736 = vsel %vm304, %v4691, 0.0
      %v4737 = vadd.f32 %v4735, %v4736
      %v4738 = vsel %vm304, %v4692, 0.0
      %v4739 = vadd.f32 %v4737, %v4738
      %v4740 = vsel %vm304, %v4693, 0.0
      %v4741 = vadd.f32 %v4739, %v4740
      %v4742 = vsel %vm304, %v4694, 0.0
      %v4743 = vadd.f32 %v4741, %v4742
      %v4744 = vsel %vm304, %v4695, 0.0
      %v4745 = vadd.f32 %v4743, %v4744
      %v4746 = vsel %vm304, %v4696, 0.0
      %v4747 = vadd.f32 %v4745, %v4746
      %v4748 = vsel %vm304, %v4697, 0.0
      %v4749 = vadd.f32 %v4747, %v4748
      %v4750 = vsel %vm304, %v4698, 0.0
      %v4751 = vadd.f32 %v4749, %v4750
      %v4752 = vsel %vm304, %v4699, 0.0
      %v4753 = vadd.f32 %v4751, %v4752
      %v4754 = vsel %vm304, %v4700, 0.0
      %v4755 = vadd.f32 %v4753, %v4754
      %v4756 = vsel %vm304, %v4701, 0.0
      %v4757 = vadd.f32 %v4755, %v4756
      %v4758 = vsel %vm304, %v4702, 0.0
      %v4759 = vadd.f32 %v4757, %v4758
      %v4760 = vsel %vm304, %v4703, 0.0
      %v4761 = vadd.f32 %v4759, %v4760
      %v4762 = vsel %vm304, %v4704, 0.0
      %v4763 = vadd.f32 %v4761, %v4762
      %v4764 = vsel %vm304, %v4705, 0.0
      %v4765 = vadd.f32 %v4763, %v4764
      %v4766 = vsel %vm304, %v4706, 0.0
      %v4767 = vadd.f32 %v4765, %v4766
      %v4768 = vsel %vm304, %v4707, 0.0
      %v4769 = vadd.f32 %v4767, %v4768
      %v4770 = vsel %vm304, %v4708, 0.0
      %v4771 = vadd.f32 %v4769, %v4770
      %v4772 = vrot.slane %v4771, 4
      %v4773 = vadd.f32 %v4771, %v4772
      %v4774 = vrot.slane %v4773, 2
      %v4775 = vadd.f32 %v4773, %v4774
      %v4776 = vrot.slane %v4775, 1
      %v4777 = vadd.f32 %v4775, %v4776
      %v4779 = vsel %vm304, %v4777, 0
      %4781 = vmatpush.msra.mxu0 0.0
      %4782 = vmatpush.msra.mxu0 0.0
      %4783 = vmatpush.msra.mxu0 0.0
      %4784 = vmatpush.msra.mxu0 0.0
      %4785 = vmatpush.msra.mxu0 0.0
      %4786 = vmatpush.msra.mxu0 0.0
      %4787 = vmatpush.msra.mxu0 0.0
      %4788 = vmatpush.msra.mxu0 0.0
      %4789 = vmatpush.msra.mxu0 %v367
      %4790 = vmatpush.msra.mxu0 %v366
      %4791 = vmatpush.msra.mxu0 %v365
      %4792 = vmatpush.msra.mxu0 %v364
      %4793 = vmatpush.msra.mxu0 %v363
      %4794 = vmatpush.msra.mxu0 %v362
      %4795 = vmatpush.msra.mxu0 %v361
      %4796 = vmatpush.msra.mxu0 %v360
      %4797 = vmatmul.f32.gmra.mxu0 %v4779
      %v4798 = vpop.f32.mrf.mxu0
      %v4799 = vadd.f32 0.0, %v4798
      %4800 = vdwg.mxu0
      %v4801 = vmul.f32 %v4799, 0.001953125
      %v4802 = vadd.f32 %v4801, 1e-05
      %v4803 = vrsqrt.pop %v4802
      %v4804 = vmul.f32 %v4803, %v4802
      %v4805 = vmul.f32 %v4804, %v4803
      %v4806 = vmul.f32 0.5, %v4805
      %v4807 = vsub.f32 1.5, %v4806
      %v4808 = vmul.f32 %v4803, %v4807
      %vm4809 = vweird.f32 %v4802
      %vm4810 = vweird.f32 %v4803
      %vm4811 = vmor %vm4809, %vm4810
      %v4812 = vsel %vm4811, %v4803, %v4808
      %v4813 = vperm.slane %v4812, 0
      %v4814 = vmul.f32 %v4645, %v4813
      %v4815 = vmul.f32 %v4646, %v4813
      %v4816 = vmul.f32 %v4647, %v4813
      %v4817 = vmul.f32 %v4648, %v4813
      %v4818 = vmul.f32 %v4649, %v4813
      %v4819 = vmul.f32 %v4650, %v4813
      %v4820 = vmul.f32 %v4651, %v4813
      %v4821 = vmul.f32 %v4652, %v4813
      %v4822 = vmul.f32 %v4653, %v4813
      %v4823 = vmul.f32 %v4654, %v4813
      %v4824 = vmul.f32 %v4655, %v4813
      %v4825 = vmul.f32 %v4656, %v4813
      %v4826 = vmul.f32 %v4657, %v4813
      %v4827 = vmul.f32 %v4658, %v4813
      %v4828 = vmul.f32 %v4659, %v4813
      %v4829 = vmul.f32 %v4660, %v4813
      %v4830 = vmul.f32 %v4661, %v4813
      %v4831 = vmul.f32 %v4662, %v4813
      %v4832 = vmul.f32 %v4663, %v4813
      %v4833 = vmul.f32 %v4664, %v4813
      %v4834 = vmul.f32 %v4665, %v4813
      %v4835 = vmul.f32 %v4666, %v4813
      %v4836 = vmul.f32 %v4667, %v4813
      %v4837 = vmul.f32 %v4668, %v4813
      %v4838 = vmul.f32 %v4669, %v4813
      %v4839 = vmul.f32 %v4670, %v4813
      %v4840 = vmul.f32 %v4671, %v4813
      %v4841 = vmul.f32 %v4672, %v4813
      %v4842 = vmul.f32 %v4673, %v4813
      %v4843 = vmul.f32 %v4674, %v4813
      %v4844 = vmul.f32 %v4675, %v4813
      %v4845 = vmul.f32 %v4676, %v4813
      %s4846 = scalar_lea.vmem %s3, 1
      %v4847 = vld [vmem:[%s4846] sm:$0x1]
      %v4849 = vperm.slane %v4847, 0
      %v4851 = vmul.f32 %v4814, %v4849
      %v4852 = vmul.f32 %v4815, %v4849
      %v4853 = vmul.f32 %v4816, %v4849
      %v4854 = vmul.f32 %v4817, %v4849
      %v4855 = vmul.f32 %v4818, %v4849
      %v4856 = vmul.f32 %v4819, %v4849
      %v4857 = vmul.f32 %v4820, %v4849
      %v4858 = vmul.f32 %v4821, %v4849
      %v4859 = vmul.f32 %v4822, %v4849
      %v4860 = vmul.f32 %v4823, %v4849
      %v4861 = vmul.f32 %v4824, %v4849
      %v4862 = vmul.f32 %v4825, %v4849
      %v4863 = vmul.f32 %v4826, %v4849
      %v4864 = vmul.f32 %v4827, %v4849
      %v4865 = vmul.f32 %v4828, %v4849
      %v4866 = vmul.f32 %v4829, %v4849
      %v4867 = vmul.f32 %v4830, %v4849
      %v4868 = vmul.f32 %v4831, %v4849
      %v4869 = vmul.f32 %v4832, %v4849
      %v4870 = vmul.f32 %v4833, %v4849
      %v4871 = vmul.f32 %v4834, %v4849
      %v4872 = vmul.f32 %v4835, %v4849
      %v4873 = vmul.f32 %v4836, %v4849
      %v4874 = vmul.f32 %v4837, %v4849
      %v4875 = vmul.f32 %v4838, %v4849
      %v4876 = vmul.f32 %v4839, %v4849
      %v4877 = vmul.f32 %v4840, %v4849
      %v4878 = vmul.f32 %v4841, %v4849
      %v4879 = vmul.f32 %v4842, %v4849
      %v4880 = vmul.f32 %v4843, %v4849
      %v4881 = vmul.f32 %v4844, %v4849
      %v4882 = vmul.f32 %v4845, %v4849
      %s4883 = scalar_lea.vmem %s4, 1
      %v4884 = vld [vmem:[%s4883] sm:$0x1]
      %v4886 = vperm.slane %v4884, 0
      %v4888 = vadd.f32 %v4851, %v4886
      %v4889 = vadd.f32 %v4852, %v4886
      %v4890 = vadd.f32 %v4853, %v4886
      %v4891 = vadd.f32 %v4854, %v4886
      %v4892 = vadd.f32 %v4855, %v4886
      %v4893 = vadd.f32 %v4856, %v4886
      %v4894 = vadd.f32 %v4857, %v4886
      %v4895 = vadd.f32 %v4858, %v4886
      %v4896 = vadd.f32 %v4859, %v4886
      %v4897 = vadd.f32 %v4860, %v4886
      %v4898 = vadd.f32 %v4861, %v4886
      %v4899 = vadd.f32 %v4862, %v4886
      %v4900 = vadd.f32 %v4863, %v4886
      %v4901 = vadd.f32 %v4864, %v4886
      %v4902 = vadd.f32 %v4865, %v4886
      %v4903 = vadd.f32 %v4866, %v4886
      %v4904 = vadd.f32 %v4867, %v4886
      %v4905 = vadd.f32 %v4868, %v4886
      %v4906 = vadd.f32 %v4869, %v4886
      %v4907 = vadd.f32 %v4870, %v4886
      %v4908 = vadd.f32 %v4871, %v4886
      %v4909 = vadd.f32 %v4872, %v4886
      %v4910 = vadd.f32 %v4873, %v4886
      %v4911 = vadd.f32 %v4874, %v4886
      %v4912 = vadd.f32 %v4875, %v4886
      %v4913 = vadd.f32 %v4876, %v4886
      %v4914 = vadd.f32 %v4877, %v4886
      %v4915 = vadd.f32 %v4878, %v4886
      %v4916 = vadd.f32 %v4879, %v4886
      %v4917 = vadd.f32 %v4880, %v4886
      %v4918 = vadd.f32 %v4881, %v4886
      %v4919 = vadd.f32 %v4882, %v4886
      %v4920 = vmax.f32 %v4888, 0.0
      %v4921 = vmax.f32 %v4889, 0.0
      %v4922 = vmax.f32 %v4890, 0.0
      %v4923 = vmax.f32 %v4891, 0.0
      %v4924 = vmax.f32 %v4892, 0.0
      %v4925 = vmax.f32 %v4893, 0.0
      %v4926 = vmax.f32 %v4894, 0.0
      %v4927 = vmax.f32 %v4895, 0.0
      %v4928 = vmax.f32 %v4896, 0.0
      %v4929 = vmax.f32 %v4897, 0.0
      %v4930 = vmax.f32 %v4898, 0.0
      %v4931 = vmax.f32 %v4899, 0.0
      %v4932 = vmax.f32 %v4900, 0.0
      %v4933 = vmax.f32 %v4901, 0.0
      %v4934 = vmax.f32 %v4902, 0.0
      %v4935 = vmax.f32 %v4903, 0.0
      %v4936 = vmax.f32 %v4904, 0.0
      %v4937 = vmax.f32 %v4905, 0.0
      %v4938 = vmax.f32 %v4906, 0.0
      %v4939 = vmax.f32 %v4907, 0.0
      %v4940 = vmax.f32 %v4908, 0.0
      %v4941 = vmax.f32 %v4909, 0.0
      %v4942 = vmax.f32 %v4910, 0.0
      %v4943 = vmax.f32 %v4911, 0.0
      %v4944 = vmax.f32 %v4912, 0.0
      %v4945 = vmax.f32 %v4913, 0.0
      %v4946 = vmax.f32 %v4914, 0.0
      %v4947 = vmax.f32 %v4915, 0.0
      %v4948 = vmax.f32 %v4916, 0.0
      %v4949 = vmax.f32 %v4917, 0.0
      %v4950 = vmax.f32 %v4918, 0.0
      %v4951 = vmax.f32 %v4919, 0.0
      %4952 = vst.msk [vmem:[%s400 + $0x1] sm:$0xff] %vm304, %v4920
      %4953 = vst.msk [vmem:[%s400 + $0x9] sm:$0xff] %vm304, %v4921
      %4954 = vst.msk [vmem:[%s400 + $0x19] sm:$0xff] %vm304, %v4922
      %4955 = vst.msk [vmem:[%s400 + $0x21] sm:$0xff] %vm304, %v4923
      %4956 = vst.msk [vmem:[%s400 + $0x31] sm:$0xff] %vm304, %v4924
      %4957 = vst.msk [vmem:[%s400 + $0x39] sm:$0xff] %vm304, %v4925
      %4958 = vst.msk [vmem:[%s400 + $0x49] sm:$0xff] %vm304, %v4926
      %4959 = vst.msk [vmem:[%s400 + $0x51] sm:$0xff] %vm304, %v4927
      %4960 = vst.msk [vmem:[%s400 + $0x61] sm:$0xff] %vm304, %v4928
      %4961 = vst.msk [vmem:[%s400 + $0x69] sm:$0xff] %vm304, %v4929
      %4962 = vst.msk [vmem:[%s400 + $0x79] sm:$0xff] %vm304, %v4930
      %4963 = vst.msk [vmem:[%s400 + $0x81] sm:$0xff] %vm304, %v4931
      %4964 = vst.msk [vmem:[%s400 + $0x91] sm:$0xff] %vm304, %v4932
      %4965 = vst.msk [vmem:[%s400 + $0x99] sm:$0xff] %vm304, %v4933
      %4966 = vst.msk [vmem:[%s400 + $0xa9] sm:$0xff] %vm304, %v4934
      %4967 = vst.msk [vmem:[%s400 + $0xb1] sm:$0xff] %vm304, %v4935
      %4968 = vst.msk [vmem:[%s400 + $0xc1] sm:$0xff] %vm304, %v4936
      %4969 = vst.msk [vmem:[%s400 + $0xc9] sm:$0xff] %vm304, %v4937
      %4970 = vst.msk [vmem:[%s400 + $0xd9] sm:$0xff] %vm304, %v4938
      %4971 = vst.msk [vmem:[%s400 + $0xe1] sm:$0xff] %vm304, %v4939
      %4972 = vst.msk [vmem:[%s400 + $0xf1] sm:$0xff] %vm304, %v4940
      %4973 = vst.msk [vmem:[%s400 + $0xf9] sm:$0xff] %vm304, %v4941
      %4974 = vst.msk [vmem:[%s400 + $0x109] sm:$0xff] %vm304, %v4942
      %4975 = vst.msk [vmem:[%s400 + $0x111] sm:$0xff] %vm304, %v4943
      %4976 = vst.msk [vmem:[%s400 + $0x121] sm:$0xff] %vm304, %v4944
      %4977 = vst.msk [vmem:[%s400 + $0x129] sm:$0xff] %vm304, %v4945
      %4978 = vst.msk [vmem:[%s400 + $0x139] sm:$0xff] %vm304, %v4946
      %4979 = vst.msk [vmem:[%s400 + $0x141] sm:$0xff] %vm304, %v4947
      %4980 = vst.msk [vmem:[%s400 + $0x151] sm:$0xff] %vm304, %v4948
      %4981 = vst.msk [vmem:[%s400 + $0x159] sm:$0xff] %vm304, %v4949
      %4982 = vst.msk [vmem:[%s400 + $0x169] sm:$0xff] %vm304, %v4950
      %4983 = vst.msk [vmem:[%s400 + $0x171] sm:$0xff] %vm304, %v4951
      %v4984 = vld [vmem:[#allocation2] sm:$0xff]
      %v4985 = vld [vmem:[#allocation2 + $0x8] sm:$0xff]
      %v4986 = vld [vmem:[#allocation2 + $0x10] sm:$0x3]
      %v4987 = vld [vmem:[#allocation2 + $0x18] sm:$0xff]
      %v4988 = vld [vmem:[#allocation2 + $0x20] sm:$0xff]
      %v4989 = vld [vmem:[#allocation2 + $0x28] sm:$0x3]
      %v4990 = vld [vmem:[#allocation2 + $0x30] sm:$0xff]
      %v4991 = vld [vmem:[#allocation2 + $0x38] sm:$0xff]
      %v4992 = vld [vmem:[#allocation2 + $0x40] sm:$0x3]
      %v4993 = vld [vmem:[#allocation2 + $0x48] sm:$0xff]
      %v4994 = vld [vmem:[#allocation2 + $0x50] sm:$0xff]
      %v4995 = vld [vmem:[#allocation2 + $0x58] sm:$0x3]
      %v4996 = vld [vmem:[#allocation2 + $0x60] sm:$0xff]
      %v4997 = vld [vmem:[#allocation2 + $0x68] sm:$0xff]
      %v4998 = vld [vmem:[#allocation2 + $0x70] sm:$0x3]
      %v4999 = vld [vmem:[#allocation2 + $0x78] sm:$0xff]
      %v5000 = vld [vmem:[#allocation2 + $0x80] sm:$0xff]
      %v5001 = vld [vmem:[#allocation2 + $0x88] sm:$0x3]
      %v5002 = vld [vmem:[#allocation2 + $0x90] sm:$0xff]
      %v5003 = vld [vmem:[#allocation2 + $0x98] sm:$0xff]
      %v5004 = vld [vmem:[#allocation2 + $0xa0] sm:$0x3]
      %v5005 = vld [vmem:[#allocation2 + $0xa8] sm:$0xff]
      %v5006 = vld [vmem:[#allocation2 + $0xb0] sm:$0xff]
      %v5007 = vld [vmem:[#allocation2 + $0xb8] sm:$0x3]
      %v5008 = vld [vmem:[#allocation2 + $0xc0] sm:$0xff]
      %v5009 = vld [vmem:[#allocation2 + $0xc8] sm:$0xff]
      %v5010 = vld [vmem:[#allocation2 + $0xd0] sm:$0x3]
      %v5011 = vld [vmem:[#allocation2 + $0xd8] sm:$0xff]
      %v5012 = vld [vmem:[#allocation2 + $0xe0] sm:$0xff]
      %v5013 = vld [vmem:[#allocation2 + $0xe8] sm:$0x3]
      %v5014 = vld [vmem:[#allocation2 + $0xf0] sm:$0xff]
      %v5015 = vld [vmem:[#allocation2 + $0xf8] sm:$0xff]
      %v5016 = vld [vmem:[#allocation2 + $0x100] sm:$0x3]
      %v5017 = vld [vmem:[#allocation2 + $0x108] sm:$0xff]
      %v5018 = vld [vmem:[#allocation2 + $0x110] sm:$0xff]
      %v5019 = vld [vmem:[#allocation2 + $0x118] sm:$0x3]
      %v5020 = vld [vmem:[#allocation2 + $0x120] sm:$0xff]
      %v5021 = vld [vmem:[#allocation2 + $0x128] sm:$0xff]
      %v5022 = vld [vmem:[#allocation2 + $0x130] sm:$0x3]
      %v5023 = vld [vmem:[#allocation2 + $0x138] sm:$0xff]
      %v5024 = vld [vmem:[#allocation2 + $0x140] sm:$0xff]
      %v5025 = vld [vmem:[#allocation2 + $0x148] sm:$0x3]
      %v5026 = vld [vmem:[#allocation2 + $0x150] sm:$0xff]
      %v5027 = vld [vmem:[#allocation2 + $0x158] sm:$0xff]
      %v5028 = vld [vmem:[#allocation2 + $0x160] sm:$0x3]
      %v5029 = vld [vmem:[#allocation2 + $0x168] sm:$0xff]
      %v5030 = vld [vmem:[#allocation2 + $0x170] sm:$0xff]
      %v5031 = vld [vmem:[#allocation2 + $0x178] sm:$0x3]
      %v5032 = vld [vmem:[#allocation2 + $0x180] sm:$0xff]
      %v5033 = vld [vmem:[#allocation2 + $0x188] sm:$0xff]
      %v5034 = vld [vmem:[#allocation2 + $0x190] sm:$0x3]
      %v5035 = vld [vmem:[#allocation2 + $0x198] sm:$0xff]
      %v5036 = vld [vmem:[#allocation2 + $0x1a0] sm:$0xff]
      %v5037 = vld [vmem:[#allocation2 + $0x1a8] sm:$0x3]
      %5038 = vst.msk [vmem:[#allocation3] sm:$0xff] %vm304, %v4984
      %5039 = vst.msk [vmem:[#allocation3 + $0x28] sm:$0xff] %vm304, %v4985
      %5040 = vst.msk [vmem:[#allocation3 + $0x50] sm:$0xff] %vm304, %v4987
      %5041 = vst.msk [vmem:[#allocation3 + $0x78] sm:$0xff] %vm304, %v4988
      %5042 = vst.msk [vmem:[#allocation3 + $0xa0] sm:$0xff] %vm304, %v4990
      %5043 = vst.msk [vmem:[#allocation3 + $0xc8] sm:$0xff] %vm304, %v4991
      %5044 = vst.msk [vmem:[#allocation3 + $0xf0] sm:$0xff] %vm304, %v4993
      %5045 = vst.msk [vmem:[#allocation3 + $0x118] sm:$0xff] %vm304, %v4994
      %5046 = vst.msk [vmem:[#allocation3 + $0x140] sm:$0xff] %vm304, %v4996
      %5047 = vst.msk [vmem:[#allocation3 + $0x168] sm:$0xff] %vm304, %v4997
      %5048 = vst.msk [vmem:[#allocation3 + $0x190] sm:$0xff] %vm304, %v4999
      %5049 = vst.msk [vmem:[#allocation3 + $0x1b8] sm:$0xff] %vm304, %v5000
      %5050 = vst.msk [vmem:[#allocation3 + $0x1e0] sm:$0xff] %vm304, %v5002
      %5051 = vst.msk [vmem:[#allocation3 + $0x208] sm:$0xff] %vm304, %v5003
      %5052 = vst.msk [vmem:[#allocation3 + $0x230] sm:$0xff] %vm304, %v5005
      %5053 = vst.msk [vmem:[#allocation3 + $0x258] sm:$0xff] %vm304, %v5006
      %5054 = vst.msk [vmem:[#allocation3 + $0x280] sm:$0xff] %vm304, %v5008
      %5055 = vst.msk [vmem:[#allocation3 + $0x2a8] sm:$0xff] %vm304, %v5009
      %5056 = vst.msk [vmem:[#allocation3 + $0x2d0] sm:$0xff] %vm304, %v5011
      %5057 = vst.msk [vmem:[#allocation3 + $0x2f8] sm:$0xff] %vm304, %v5012
      %5058 = vst.msk [vmem:[#allocation3 + $0x320] sm:$0xff] %vm304, %v5014
      %5059 = vst.msk [vmem:[#allocation3 + $0x348] sm:$0xff] %vm304, %v5015
      %5060 = vst.msk [vmem:[#allocation3 + $0x370] sm:$0xff] %vm304, %v5017
      %5061 = vst.msk [vmem:[#allocation3 + $0x398] sm:$0xff] %vm304, %v5018
      %5062 = vst.msk [vmem:[#allocation3 + $0x3c0] sm:$0xff] %vm304, %v5020
      %5063 = vst.msk [vmem:[#allocation3 + $0x3e8] sm:$0xff] %vm304, %v5021
      %5064 = vst.msk [vmem:[#allocation3 + $0x410] sm:$0xff] %vm304, %v5023
      %5065 = vst.msk [vmem:[#allocation3 + $0x438] sm:$0xff] %vm304, %v5024
      %5066 = vst.msk [vmem:[#allocation3 + $0x460] sm:$0xff] %vm304, %v5026
      %5067 = vst.msk [vmem:[#allocation3 + $0x488] sm:$0xff] %vm304, %v5027
      %5068 = vst.msk [vmem:[#allocation3 + $0x4b0] sm:$0xff] %vm304, %v5029
      %5069 = vst.msk [vmem:[#allocation3 + $0x4d8] sm:$0xff] %vm304, %v5030
      %v5118 = vrot.slane %v4984, 1
      %v5119 = vrot.slane %v4985, 1
      %v5120 = vsel %vm567, %v5118, %v5119
      %v5121 = vrot.slane %v4986, 1
      %v5122 = vsel %vm567, %v5119, %v5121
      %v5123 = vrot.slane %v4987, 1
      %v5124 = vrot.slane %v4988, 1
      %v5125 = vsel %vm567, %v5123, %v5124
      %v5126 = vrot.slane %v4989, 1
      %v5127 = vsel %vm567, %v5124, %v5126
      %v5128 = vrot.slane %v4990, 1
      %v5129 = vrot.slane %v4991, 1
      %v5130 = vsel %vm567, %v5128, %v5129
      %v5131 = vrot.slane %v4992, 1
      %v5132 = vsel %vm567, %v5129, %v5131
      %v5133 = vrot.slane %v4993, 1
      %v5134 = vrot.slane %v4994, 1
      %v5135 = vsel %vm567, %v5133, %v5134
      %v5136 = vrot.slane %v4995, 1
      %v5137 = vsel %vm567, %v5134, %v5136
      %v5138 = vrot.slane %v4996, 1
      %v5139 = vrot.slane %v4997, 1
      %v5140 = vsel %vm567, %v5138, %v5139
      %v5141 = vrot.slane %v4998, 1
      %v5142 = vsel %vm567, %v5139, %v5141
      %v5143 = vrot.slane %v4999, 1
      %v5144 = vrot.slane %v5000, 1
      %v5145 = vsel %vm567, %v5143, %v5144
      %v5146 = vrot.slane %v5001, 1
      %v5147 = vsel %vm567, %v5144, %v5146
      %v5148 = vrot.slane %v5002, 1
      %v5149 = vrot.slane %v5003, 1
      %v5150 = vsel %vm567, %v5148, %v5149
      %v5151 = vrot.slane %v5004, 1
      %v5152 = vsel %vm567, %v5149, %v5151
      %v5153 = vrot.slane %v5005, 1
      %v5154 = vrot.slane %v5006, 1
      %v5155 = vsel %vm567, %v5153, %v5154
      %v5156 = vrot.slane %v5007, 1
      %v5157 = vsel %vm567, %v5154, %v5156
      %v5158 = vrot.slane %v5008, 1
      %v5159 = vrot.slane %v5009, 1
      %v5160 = vsel %vm567, %v5158, %v5159
      %v5161 = vrot.slane %v5010, 1
      %v5162 = vsel %vm567, %v5159, %v5161
      %v5163 = vrot.slane %v5011, 1
      %v5164 = vrot.slane %v5012, 1
      %v5165 = vsel %vm567, %v5163, %v5164
      %v5166 = vrot.slane %v5013, 1
      %v5167 = vsel %vm567, %v5164, %v5166
      %v5168 = vrot.slane %v5014, 1
      %v5169 = vrot.slane %v5015, 1
      %v5170 = vsel %vm567, %v5168, %v5169
      %v5171 = vrot.slane %v5016, 1
      %v5172 = vsel %vm567, %v5169, %v5171
      %v5173 = vrot.slane %v5017, 1
      %v5174 = vrot.slane %v5018, 1
      %v5175 = vsel %vm567, %v5173, %v5174
      %v5176 = vrot.slane %v5019, 1
      %v5177 = vsel %vm567, %v5174, %v5176
      %v5178 = vrot.slane %v5020, 1
      %v5179 = vrot.slane %v5021, 1
      %v5180 = vsel %vm567, %v5178, %v5179
      %v5181 = vrot.slane %v5022, 1
      %v5182 = vsel %vm567, %v5179, %v5181
      %v5183 = vrot.slane %v5023, 1
      %v5184 = vrot.slane %v5024, 1
      %v5185 = vsel %vm567, %v5183, %v5184
      %v5186 = vrot.slane %v5025, 1
      %v5187 = vsel %vm567, %v5184, %v5186
      %v5188 = vrot.slane %v5026, 1
      %v5189 = vrot.slane %v5027, 1
      %v5190 = vsel %vm567, %v5188, %v5189
      %v5191 = vrot.slane %v5028, 1
      %v5192 = vsel %vm567, %v5189, %v5191
      %v5193 = vrot.slane %v5029, 1
      %v5194 = vrot.slane %v5030, 1
      %v5195 = vsel %vm567, %v5193, %v5194
      %v5196 = vrot.slane %v5031, 1
      %v5197 = vsel %vm567, %v5194, %v5196
      %5198 = vrot.lane.b32.xlu0 %v5120, 64
      %v5199 = vpop.permute.xlu0 %5198
      %5200 = vrot.lane.b32.xlu0 %v5122, 64
      %v5201 = vpop.permute.xlu0 %5200
      %5202 = vrot.lane.b32.xlu0 %v5125, 64
      %v5203 = vpop.permute.xlu0 %5202
      %5204 = vrot.lane.b32.xlu0 %v5127, 64
      %v5205 = vpop.permute.xlu0 %5204
      %5206 = vrot.lane.b32.xlu0 %v5130, 64
      %v5207 = vpop.permute.xlu0 %5206
      %5208 = vrot.lane.b32.xlu0 %v5132, 64
      %v5209 = vpop.permute.xlu0 %5208
      %5210 = vrot.lane.b32.xlu0 %v5135, 64
      %v5211 = vpop.permute.xlu0 %5210
      %5212 = vrot.lane.b32.xlu0 %v5137, 64
      %v5213 = vpop.permute.xlu0 %5212
      %5214 = vrot.lane.b32.xlu0 %v5140, 64
      %v5215 = vpop.permute.xlu0 %5214
      %5216 = vrot.lane.b32.xlu0 %v5142, 64
      %v5217 = vpop.permute.xlu0 %5216
      %5218 = vrot.lane.b32.xlu0 %v5145, 64
      %v5219 = vpop.permute.xlu0 %5218
      %5220 = vrot.lane.b32.xlu0 %v5147, 64
      %v5221 = vpop.permute.xlu0 %5220
      %5222 = vrot.lane.b32.xlu0 %v5150, 64
      %v5223 = vpop.permute.xlu0 %5222
      %5224 = vrot.lane.b32.xlu0 %v5152, 64
      %v5225 = vpop.permute.xlu0 %5224
      %5226 = vrot.lane.b32.xlu0 %v5155, 64
      %v5227 = vpop.permute.xlu0 %5226
      %5228 = vrot.lane.b32.xlu0 %v5157, 64
      %v5229 = vpop.permute.xlu0 %5228
      %5230 = vrot.lane.b32.xlu0 %v5160, 64
      %v5231 = vpop.permute.xlu0 %5230
      %5232 = vrot.lane.b32.xlu0 %v5162, 64
      %v5233 = vpop.permute.xlu0 %5232
      %5234 = vrot.lane.b32.xlu0 %v5165, 64
      %v5235 = vpop.permute.xlu0 %5234
      %5236 = vrot.lane.b32.xlu0 %v5167, 64
      %v5237 = vpop.permute.xlu0 %5236
      %5238 = vrot.lane.b32.xlu0 %v5170, 64
      %v5239 = vpop.permute.xlu0 %5238
      %5240 = vrot.lane.b32.xlu0 %v5172, 64
      %v5241 = vpop.permute.xlu0 %5240
      %5242 = vrot.lane.b32.xlu0 %v5175, 64
      %v5243 = vpop.permute.xlu0 %5242
      %5244 = vrot.lane.b32.xlu0 %v5177, 64
      %v5245 = vpop.permute.xlu0 %5244
      %5246 = vrot.lane.b32.xlu0 %v5180, 64
      %v5247 = vpop.permute.xlu0 %5246
      %5248 = vrot.lane.b32.xlu0 %v5182, 64
      %v5249 = vpop.permute.xlu0 %5248
      %5250 = vrot.lane.b32.xlu0 %v5185, 64
      %v5251 = vpop.permute.xlu0 %5250
      %5252 = vrot.lane.b32.xlu0 %v5187, 64
      %v5253 = vpop.permute.xlu0 %5252
      %5254 = vrot.lane.b32.xlu0 %v5190, 64
      %v5255 = vpop.permute.xlu0 %5254
      %5256 = vrot.lane.b32.xlu0 %v5192, 64
      %v5257 = vpop.permute.xlu0 %5256
      %5258 = vrot.lane.b32.xlu0 %v5195, 64
      %v5259 = vpop.permute.xlu0 %5258
      %5260 = vrot.lane.b32.xlu0 %v5197, 64
      %v5261 = vpop.permute.xlu0 %5260
      %5294 = vst.msk [vmem:[#allocation3] sm:$0xff] %vm744, %v5199
      %5295 = vst.msk [vmem:[#allocation3 + $0x28] sm:$0xff] %vm744, %v5201
      %5296 = vst.msk [vmem:[#allocation3 + $0x50] sm:$0xff] %vm744, %v5203
      %5297 = vst.msk [vmem:[#allocation3 + $0x78] sm:$0xff] %vm744, %v5205
      %5298 = vst.msk [vmem:[#allocation3 + $0xa0] sm:$0xff] %vm744, %v5207
      %5299 = vst.msk [vmem:[#allocation3 + $0xc8] sm:$0xff] %vm744, %v5209
      %5300 = vst.msk [vmem:[#allocation3 + $0xf0] sm:$0xff] %vm744, %v5211
      %5301 = vst.msk [vmem:[#allocation3 + $0x118] sm:$0xff] %vm744, %v5213
      %5302 = vst.msk [vmem:[#allocation3 + $0x140] sm:$0xff] %vm744, %v5215
      %5303 = vst.msk [vmem:[#allocation3 + $0x168] sm:$0xff] %vm744, %v5217
      %5304 = vst.msk [vmem:[#allocation3 + $0x190] sm:$0xff] %vm744, %v5219
      %5305 = vst.msk [vmem:[#allocation3 + $0x1b8] sm:$0xff] %vm744, %v5221
      %5306 = vst.msk [vmem:[#allocation3 + $0x1e0] sm:$0xff] %vm744, %v5223
      %5307 = vst.msk [vmem:[#allocation3 + $0x208] sm:$0xff] %vm744, %v5225
      %5308 = vst.msk [vmem:[#allocation3 + $0x230] sm:$0xff] %vm744, %v5227
      %5309 = vst.msk [vmem:[#allocation3 + $0x258] sm:$0xff] %vm744, %v5229
      %5310 = vst.msk [vmem:[#allocation3 + $0x280] sm:$0xff] %vm744, %v5231
      %5311 = vst.msk [vmem:[#allocation3 + $0x2a8] sm:$0xff] %vm744, %v5233
      %5312 = vst.msk [vmem:[#allocation3 + $0x2d0] sm:$0xff] %vm744, %v5235
      %5313 = vst.msk [vmem:[#allocation3 + $0x2f8] sm:$0xff] %vm744, %v5237
      %5314 = vst.msk [vmem:[#allocation3 + $0x320] sm:$0xff] %vm744, %v5239
      %5315 = vst.msk [vmem:[#allocation3 + $0x348] sm:$0xff] %vm744, %v5241
      %5316 = vst.msk [vmem:[#allocation3 + $0x370] sm:$0xff] %vm744, %v5243
      %5317 = vst.msk [vmem:[#allocation3 + $0x398] sm:$0xff] %vm744, %v5245
      %5318 = vst.msk [vmem:[#allocation3 + $0x3c0] sm:$0xff] %vm744, %v5247
      %5319 = vst.msk [vmem:[#allocation3 + $0x3e8] sm:$0xff] %vm744, %v5249
      %5320 = vst.msk [vmem:[#allocation3 + $0x410] sm:$0xff] %vm744, %v5251
      %5321 = vst.msk [vmem:[#allocation3 + $0x438] sm:$0xff] %vm744, %v5253
      %5322 = vst.msk [vmem:[#allocation3 + $0x460] sm:$0xff] %vm744, %v5255
      %5323 = vst.msk [vmem:[#allocation3 + $0x488] sm:$0xff] %vm744, %v5257
      %5324 = vst.msk [vmem:[#allocation3 + $0x4b0] sm:$0xff] %vm744, %v5259
      %5325 = vst.msk [vmem:[#allocation3 + $0x4d8] sm:$0xff] %vm744, %v5261
      %v5326 = vrot.slane %v4984, 2
      %v5327 = vrot.slane %v4985, 2
      %v5328 = vsel %vm777, %v5326, %v5327
      %v5329 = vrot.slane %v4986, 2
      %v5330 = vsel %vm777, %v5327, %v5329
      %v5331 = vrot.slane %v4987, 2
      %v5332 = vrot.slane %v4988, 2
      %v5333 = vsel %vm777, %v5331, %v5332
      %v5334 = vrot.slane %v4989, 2
      %v5335 = vsel %vm777, %v5332, %v5334
      %v5336 = vrot.slane %v4990, 2
      %v5337 = vrot.slane %v4991, 2
      %v5338 = vsel %vm777, %v5336, %v5337
      %v5339 = vrot.slane %v4992, 2
      %v5340 = vsel %vm777, %v5337, %v5339
      %v5341 = vrot.slane %v4993, 2
      %v5342 = vrot.slane %v4994, 2
      %v5343 = vsel %vm777, %v5341, %v5342
      %v5344 = vrot.slane %v4995, 2
      %v5345 = vsel %vm777, %v5342, %v5344
      %v5346 = vrot.slane %v4996, 2
      %v5347 = vrot.slane %v4997, 2
      %v5348 = vsel %vm777, %v5346, %v5347
      %v5349 = vrot.slane %v4998, 2
      %v5350 = vsel %vm777, %v5347, %v5349
      %v5351 = vrot.slane %v4999, 2
      %v5352 = vrot.slane %v5000, 2
      %v5353 = vsel %vm777, %v5351, %v5352
      %v5354 = vrot.slane %v5001, 2
      %v5355 = vsel %vm777, %v5352, %v5354
      %v5356 = vrot.slane %v5002, 2
      %v5357 = vrot.slane %v5003, 2
      %v5358 = vsel %vm777, %v5356, %v5357
      %v5359 = vrot.slane %v5004, 2
      %v5360 = vsel %vm777, %v5357, %v5359
      %v5361 = vrot.slane %v5005, 2
      %v5362 = vrot.slane %v5006, 2
      %v5363 = vsel %vm777, %v5361, %v5362
      %v5364 = vrot.slane %v5007, 2
      %v5365 = vsel %vm777, %v5362, %v5364
      %v5366 = vrot.slane %v5008, 2
      %v5367 = vrot.slane %v5009, 2
      %v5368 = vsel %vm777, %v5366, %v5367
      %v5369 = vrot.slane %v5010, 2
      %v5370 = vsel %vm777, %v5367, %v5369
      %v5371 = vrot.slane %v5011, 2
      %v5372 = vrot.slane %v5012, 2
      %v5373 = vsel %vm777, %v5371, %v5372
      %v5374 = vrot.slane %v5013, 2
      %v5375 = vsel %vm777, %v5372, %v5374
      %v5376 = vrot.slane %v5014, 2
      %v5377 = vrot.slane %v5015, 2
      %v5378 = vsel %vm777, %v5376, %v5377
      %v5379 = vrot.slane %v5016, 2
      %v5380 = vsel %vm777, %v5377, %v5379
      %v5381 = vrot.slane %v5017, 2
      %v5382 = vrot.slane %v5018, 2
      %v5383 = vsel %vm777, %v5381, %v5382
      %v5384 = vrot.slane %v5019, 2
      %v5385 = vsel %vm777, %v5382, %v5384
      %v5386 = vrot.slane %v5020, 2
      %v5387 = vrot.slane %v5021, 2
      %v5388 = vsel %vm777, %v5386, %v5387
      %v5389 = vrot.slane %v5022, 2
      %v5390 = vsel %vm777, %v5387, %v5389
      %v5391 = vrot.slane %v5023, 2
      %v5392 = vrot.slane %v5024, 2
      %v5393 = vsel %vm777, %v5391, %v5392
      %v5394 = vrot.slane %v5025, 2
      %v5395 = vsel %vm777, %v5392, %v5394
      %v5396 = vrot.slane %v5026, 2
      %v5397 = vrot.slane %v5027, 2
      %v5398 = vsel %vm777, %v5396, %v5397
      %v5399 = vrot.slane %v5028, 2
      %v5400 = vsel %vm777, %v5397, %v5399
      %v5401 = vrot.slane %v5029, 2
      %v5402 = vrot.slane %v5030, 2
      %v5403 = vsel %vm777, %v5401, %v5402
      %v5404 = vrot.slane %v5031, 2
      %v5405 = vsel %vm777, %v5402, %v5404
      %5438 = vst.msk [vmem:[#allocation3 + $0x8] sm:$0xff] %vm304, %v5328
      %5439 = vst.msk [vmem:[#allocation3 + $0x30] sm:$0xff] %vm304, %v5330
      %5440 = vst.msk [vmem:[#allocation3 + $0x58] sm:$0xff] %vm304, %v5333
      %5441 = vst.msk [vmem:[#allocation3 + $0x80] sm:$0xff] %vm304, %v5335
      %5442 = vst.msk [vmem:[#allocation3 + $0xa8] sm:$0xff] %vm304, %v5338
      %5443 = vst.msk [vmem:[#allocation3 + $0xd0] sm:$0xff] %vm304, %v5340
      %5444 = vst.msk [vmem:[#allocation3 + $0xf8] sm:$0xff] %vm304, %v5343
      %5445 = vst.msk [vmem:[#allocation3 + $0x120] sm:$0xff] %vm304, %v5345
      %5446 = vst.msk [vmem:[#allocation3 + $0x148] sm:$0xff] %vm304, %v5348
      %5447 = vst.msk [vmem:[#allocation3 + $0x170] sm:$0xff] %vm304, %v5350
      %5448 = vst.msk [vmem:[#allocation3 + $0x198] sm:$0xff] %vm304, %v5353
      %5449 = vst.msk [vmem:[#allocation3 + $0x1c0] sm:$0xff] %vm304, %v5355
      %5450 = vst.msk [vmem:[#allocation3 + $0x1e8] sm:$0xff] %vm304, %v5358
      %5451 = vst.msk [vmem:[#allocation3 + $0x210] sm:$0xff] %vm304, %v5360
      %5452 = vst.msk [vmem:[#allocation3 + $0x238] sm:$0xff] %vm304, %v5363
      %5453 = vst.msk [vmem:[#allocation3 + $0x260] sm:$0xff] %vm304, %v5365
      %5454 = vst.msk [vmem:[#allocation3 + $0x288] sm:$0xff] %vm304, %v5368
      %5455 = vst.msk [vmem:[#allocation3 + $0x2b0] sm:$0xff] %vm304, %v5370
      %5456 = vst.msk [vmem:[#allocation3 + $0x2d8] sm:$0xff] %vm304, %v5373
      %5457 = vst.msk [vmem:[#allocation3 + $0x300] sm:$0xff] %vm304, %v5375
      %5458 = vst.msk [vmem:[#allocation3 + $0x328] sm:$0xff] %vm304, %v5378
      %5459 = vst.msk [vmem:[#allocation3 + $0x350] sm:$0xff] %vm304, %v5380
      %5460 = vst.msk [vmem:[#allocation3 + $0x378] sm:$0xff] %vm304, %v5383
      %5461 = vst.msk [vmem:[#allocation3 + $0x3a0] sm:$0xff] %vm304, %v5385
      %5462 = vst.msk [vmem:[#allocation3 + $0x3c8] sm:$0xff] %vm304, %v5388
      %5463 = vst.msk [vmem:[#allocation3 + $0x3f0] sm:$0xff] %vm304, %v5390
      %5464 = vst.msk [vmem:[#allocation3 + $0x418] sm:$0xff] %vm304, %v5393
      %5465 = vst.msk [vmem:[#allocation3 + $0x440] sm:$0xff] %vm304, %v5395
      %5466 = vst.msk [vmem:[#allocation3 + $0x468] sm:$0xff] %vm304, %v5398
      %5467 = vst.msk [vmem:[#allocation3 + $0x490] sm:$0xff] %vm304, %v5400
      %5468 = vst.msk [vmem:[#allocation3 + $0x4b8] sm:$0xff] %vm304, %v5403
      %5469 = vst.msk [vmem:[#allocation3 + $0x4e0] sm:$0xff] %vm304, %v5405
      %5472 = vrot.lane.b32.xlu0 %v4987, 64
      %v5473 = vpop.permute.xlu0 %5472
      %5474 = vrot.lane.b32.xlu0 %v4988, 64
      %v5475 = vpop.permute.xlu0 %5474
      %5476 = vrot.lane.b32.xlu0 %v4990, 64
      %v5477 = vpop.permute.xlu0 %5476
      %5478 = vrot.lane.b32.xlu0 %v4991, 64
      %v5479 = vpop.permute.xlu0 %5478
      %5480 = vrot.lane.b32.xlu0 %v4993, 64
      %v5481 = vpop.permute.xlu0 %5480
      %5482 = vrot.lane.b32.xlu0 %v4994, 64
      %v5483 = vpop.permute.xlu0 %5482
      %5484 = vrot.lane.b32.xlu0 %v4996, 64
      %v5485 = vpop.permute.xlu0 %5484
      %5486 = vrot.lane.b32.xlu0 %v4997, 64
      %v5487 = vpop.permute.xlu0 %5486
      %5488 = vrot.lane.b32.xlu0 %v4999, 64
      %v5489 = vpop.permute.xlu0 %5488
      %5490 = vrot.lane.b32.xlu0 %v5000, 64
      %v5491 = vpop.permute.xlu0 %5490
      %5492 = vrot.lane.b32.xlu0 %v5002, 64
      %v5493 = vpop.permute.xlu0 %5492
      %5494 = vrot.lane.b32.xlu0 %v5003, 64
      %v5495 = vpop.permute.xlu0 %5494
      %5496 = vrot.lane.b32.xlu0 %v5005, 64
      %v5497 = vpop.permute.xlu0 %5496
      %5498 = vrot.lane.b32.xlu0 %v5006, 64
      %v5499 = vpop.permute.xlu0 %5498
      %5500 = vrot.lane.b32.xlu0 %v5008, 64
      %v5501 = vpop.permute.xlu0 %5500
      %5502 = vrot.lane.b32.xlu0 %v5009, 64
      %v5503 = vpop.permute.xlu0 %5502
      %5504 = vrot.lane.b32.xlu0 %v5011, 64
      %v5505 = vpop.permute.xlu0 %5504
      %5506 = vrot.lane.b32.xlu0 %v5012, 64
      %v5507 = vpop.permute.xlu0 %5506
      %5508 = vrot.lane.b32.xlu0 %v5014, 64
      %v5509 = vpop.permute.xlu0 %5508
      %5510 = vrot.lane.b32.xlu0 %v5015, 64
      %v5511 = vpop.permute.xlu0 %5510
      %5512 = vrot.lane.b32.xlu0 %v5017, 64
      %v5513 = vpop.permute.xlu0 %5512
      %5514 = vrot.lane.b32.xlu0 %v5018, 64
      %v5515 = vpop.permute.xlu0 %5514
      %5516 = vrot.lane.b32.xlu0 %v5020, 64
      %v5517 = vpop.permute.xlu0 %5516
      %5518 = vrot.lane.b32.xlu0 %v5021, 64
      %v5519 = vpop.permute.xlu0 %5518
      %5520 = vrot.lane.b32.xlu0 %v5023, 64
      %v5521 = vpop.permute.xlu0 %5520
      %5522 = vrot.lane.b32.xlu0 %v5024, 64
      %v5523 = vpop.permute.xlu0 %5522
      %5524 = vrot.lane.b32.xlu0 %v5026, 64
      %v5525 = vpop.permute.xlu0 %5524
      %5526 = vrot.lane.b32.xlu0 %v5027, 64
      %v5527 = vpop.permute.xlu0 %5526
      %5528 = vrot.lane.b32.xlu0 %v5029, 64
      %v5529 = vpop.permute.xlu0 %5528
      %5530 = vrot.lane.b32.xlu0 %v5030, 64
      %v5531 = vpop.permute.xlu0 %5530
      %5532 = vrot.lane.b32.xlu0 %v5032, 64
      %v5533 = vpop.permute.xlu0 %5532
      %5534 = vrot.lane.b32.xlu0 %v5033, 64
      %v5535 = vpop.permute.xlu0 %5534
      %5568 = vst.msk [vmem:[#allocation3 + $0x8] sm:$0xff] %vm744, %v5473
      %5569 = vst.msk [vmem:[#allocation3 + $0x30] sm:$0xff] %vm744, %v5475
      %5570 = vst.msk [vmem:[#allocation3 + $0x58] sm:$0xff] %vm744, %v5477
      %5571 = vst.msk [vmem:[#allocation3 + $0x80] sm:$0xff] %vm744, %v5479
      %5572 = vst.msk [vmem:[#allocation3 + $0xa8] sm:$0xff] %vm744, %v5481
      %5573 = vst.msk [vmem:[#allocation3 + $0xd0] sm:$0xff] %vm744, %v5483
      %5574 = vst.msk [vmem:[#allocation3 + $0xf8] sm:$0xff] %vm744, %v5485
      %5575 = vst.msk [vmem:[#allocation3 + $0x120] sm:$0xff] %vm744, %v5487
      %5576 = vst.msk [vmem:[#allocation3 + $0x148] sm:$0xff] %vm744, %v5489
      %5577 = vst.msk [vmem:[#allocation3 + $0x170] sm:$0xff] %vm744, %v5491
      %5578 = vst.msk [vmem:[#allocation3 + $0x198] sm:$0xff] %vm744, %v5493
      %5579 = vst.msk [vmem:[#allocation3 + $0x1c0] sm:$0xff] %vm744, %v5495
      %5580 = vst.msk [vmem:[#allocation3 + $0x1e8] sm:$0xff] %vm744, %v5497
      %5581 = vst.msk [vmem:[#allocation3 + $0x210] sm:$0xff] %vm744, %v5499
      %5582 = vst.msk [vmem:[#allocation3 + $0x238] sm:$0xff] %vm744, %v5501
      %5583 = vst.msk [vmem:[#allocation3 + $0x260] sm:$0xff] %vm744, %v5503
      %5584 = vst.msk [vmem:[#allocation3 + $0x288] sm:$0xff] %vm744, %v5505
      %5585 = vst.msk [vmem:[#allocation3 + $0x2b0] sm:$0xff] %vm744, %v5507
      %5586 = vst.msk [vmem:[#allocation3 + $0x2d8] sm:$0xff] %vm744, %v5509
      %5587 = vst.msk [vmem:[#allocation3 + $0x300] sm:$0xff] %vm744, %v5511
      %5588 = vst.msk [vmem:[#allocation3 + $0x328] sm:$0xff] %vm744, %v5513
      %5589 = vst.msk [vmem:[#allocation3 + $0x350] sm:$0xff] %vm744, %v5515
      %5590 = vst.msk [vmem:[#allocation3 + $0x378] sm:$0xff] %vm744, %v5517
      %5591 = vst.msk [vmem:[#allocation3 + $0x3a0] sm:$0xff] %vm744, %v5519
      %5592 = vst.msk [vmem:[#allocation3 + $0x3c8] sm:$0xff] %vm744, %v5521
      %5593 = vst.msk [vmem:[#allocation3 + $0x3f0] sm:$0xff] %vm744, %v5523
      %5594 = vst.msk [vmem:[#allocation3 + $0x418] sm:$0xff] %vm744, %v5525
      %5595 = vst.msk [vmem:[#allocation3 + $0x440] sm:$0xff] %vm744, %v5527
      %5596 = vst.msk [vmem:[#allocation3 + $0x468] sm:$0xff] %vm744, %v5529
      %5597 = vst.msk [vmem:[#allocation3 + $0x490] sm:$0xff] %vm744, %v5531
      %5598 = vst.msk [vmem:[#allocation3 + $0x4b8] sm:$0xff] %vm744, %v5533
      %5599 = vst.msk [vmem:[#allocation3 + $0x4e0] sm:$0xff] %vm744, %v5535
      %v5601 = vrot.slane %v5032, 1
      %v5602 = vrot.slane %v5033, 1
      %v5603 = vsel %vm567, %v5601, %v5602
      %v5604 = vrot.slane %v5034, 1
      %v5605 = vsel %vm567, %v5602, %v5604
      %5638 = vst.msk [vmem:[#allocation3 + $0x10] sm:$0xff] %vm304, %v5125
      %5639 = vst.msk [vmem:[#allocation3 + $0x38] sm:$0xff] %vm304, %v5127
      %5640 = vst.msk [vmem:[#allocation3 + $0x60] sm:$0xff] %vm304, %v5130
      %5641 = vst.msk [vmem:[#allocation3 + $0x88] sm:$0xff] %vm304, %v5132
      %5642 = vst.msk [vmem:[#allocation3 + $0xb0] sm:$0xff] %vm304, %v5135
      %5643 = vst.msk [vmem:[#allocation3 + $0xd8] sm:$0xff] %vm304, %v5137
      %5644 = vst.msk [vmem:[#allocation3 + $0x100] sm:$0xff] %vm304, %v5140
      %5645 = vst.msk [vmem:[#allocation3 + $0x128] sm:$0xff] %vm304, %v5142
      %5646 = vst.msk [vmem:[#allocation3 + $0x150] sm:$0xff] %vm304, %v5145
      %5647 = vst.msk [vmem:[#allocation3 + $0x178] sm:$0xff] %vm304, %v5147
      %5648 = vst.msk [vmem:[#allocation3 + $0x1a0] sm:$0xff] %vm304, %v5150
      %5649 = vst.msk [vmem:[#allocation3 + $0x1c8] sm:$0xff] %vm304, %v5152
      %5650 = vst.msk [vmem:[#allocation3 + $0x1f0] sm:$0xff] %vm304, %v5155
      %5651 = vst.msk [vmem:[#allocation3 + $0x218] sm:$0xff] %vm304, %v5157
      %5652 = vst.msk [vmem:[#allocation3 + $0x240] sm:$0xff] %vm304, %v5160
      %5653 = vst.msk [vmem:[#allocation3 + $0x268] sm:$0xff] %vm304, %v5162
      %5654 = vst.msk [vmem:[#allocation3 + $0x290] sm:$0xff] %vm304, %v5165
      %5655 = vst.msk [vmem:[#allocation3 + $0x2b8] sm:$0xff] %vm304, %v5167
      %5656 = vst.msk [vmem:[#allocation3 + $0x2e0] sm:$0xff] %vm304, %v5170
      %5657 = vst.msk [vmem:[#allocation3 + $0x308] sm:$0xff] %vm304, %v5172
      %5658 = vst.msk [vmem:[#allocation3 + $0x330] sm:$0xff] %vm304, %v5175
      %5659 = vst.msk [vmem:[#allocation3 + $0x358] sm:$0xff] %vm304, %v5177
      %5660 = vst.msk [vmem:[#allocation3 + $0x380] sm:$0xff] %vm304, %v5180
      %5661 = vst.msk [vmem:[#allocation3 + $0x3a8] sm:$0xff] %vm304, %v5182
      %5662 = vst.msk [vmem:[#allocation3 + $0x3d0] sm:$0xff] %vm304, %v5185
      %5663 = vst.msk [vmem:[#allocation3 + $0x3f8] sm:$0xff] %vm304, %v5187
      %5664 = vst.msk [vmem:[#allocation3 + $0x420] sm:$0xff] %vm304, %v5190
      %5665 = vst.msk [vmem:[#allocation3 + $0x448] sm:$0xff] %vm304, %v5192
      %5666 = vst.msk [vmem:[#allocation3 + $0x470] sm:$0xff] %vm304, %v5195
      %5667 = vst.msk [vmem:[#allocation3 + $0x498] sm:$0xff] %vm304, %v5197
      %5668 = vst.msk [vmem:[#allocation3 + $0x4c0] sm:$0xff] %vm304, %v5603
      %5669 = vst.msk [vmem:[#allocation3 + $0x4e8] sm:$0xff] %vm304, %v5605
      %v5670 = vrot.slane %v5032, 2
      %v5671 = vrot.slane %v5033, 2
      %v5672 = vsel %vm777, %v5670, %v5671
      %v5673 = vrot.slane %v5034, 2
      %v5674 = vsel %vm777, %v5671, %v5673
      %5675 = vrot.lane.b32.xlu0 %v5333, 64
      %v5676 = vpop.permute.xlu0 %5675
      %5677 = vrot.lane.b32.xlu0 %v5335, 64
      %v5678 = vpop.permute.xlu0 %5677
      %5679 = vrot.lane.b32.xlu0 %v5338, 64
      %v5680 = vpop.permute.xlu0 %5679
      %5681 = vrot.lane.b32.xlu0 %v5340, 64
      %v5682 = vpop.permute.xlu0 %5681
      %5683 = vrot.lane.b32.xlu0 %v5343, 64
      %v5684 = vpop.permute.xlu0 %5683
      %5685 = vrot.lane.b32.xlu0 %v5345, 64
      %v5686 = vpop.permute.xlu0 %5685
      %5687 = vrot.lane.b32.xlu0 %v5348, 64
      %v5688 = vpop.permute.xlu0 %5687
      %5689 = vrot.lane.b32.xlu0 %v5350, 64
      %v5690 = vpop.permute.xlu0 %5689
      %5691 = vrot.lane.b32.xlu0 %v5353, 64
      %v5692 = vpop.permute.xlu0 %5691
      %5693 = vrot.lane.b32.xlu0 %v5355, 64
      %v5694 = vpop.permute.xlu0 %5693
      %5695 = vrot.lane.b32.xlu0 %v5358, 64
      %v5696 = vpop.permute.xlu0 %5695
      %5697 = vrot.lane.b32.xlu0 %v5360, 64
      %v5698 = vpop.permute.xlu0 %5697
      %5699 = vrot.lane.b32.xlu0 %v5363, 64
      %v5700 = vpop.permute.xlu0 %5699
      %5701 = vrot.lane.b32.xlu0 %v5365, 64
      %v5702 = vpop.permute.xlu0 %5701
      %5703 = vrot.lane.b32.xlu0 %v5368, 64
      %v5704 = vpop.permute.xlu0 %5703
      %5705 = vrot.lane.b32.xlu0 %v5370, 64
      %v5706 = vpop.permute.xlu0 %5705
      %5707 = vrot.lane.b32.xlu0 %v5373, 64
      %v5708 = vpop.permute.xlu0 %5707
      %5709 = vrot.lane.b32.xlu0 %v5375, 64
      %v5710 = vpop.permute.xlu0 %5709
      %5711 = vrot.lane.b32.xlu0 %v5378, 64
      %v5712 = vpop.permute.xlu0 %5711
      %5713 = vrot.lane.b32.xlu0 %v5380, 64
      %v5714 = vpop.permute.xlu0 %5713
      %5715 = vrot.lane.b32.xlu0 %v5383, 64
      %v5716 = vpop.permute.xlu0 %5715
      %5717 = vrot.lane.b32.xlu0 %v5385, 64
      %v5718 = vpop.permute.xlu0 %5717
      %5719 = vrot.lane.b32.xlu0 %v5388, 64
      %v5720 = vpop.permute.xlu0 %5719
      %5721 = vrot.lane.b32.xlu0 %v5390, 64
      %v5722 = vpop.permute.xlu0 %5721
      %5723 = vrot.lane.b32.xlu0 %v5393, 64
      %v5724 = vpop.permute.xlu0 %5723
      %5725 = vrot.lane.b32.xlu0 %v5395, 64
      %v5726 = vpop.permute.xlu0 %5725
      %5727 = vrot.lane.b32.xlu0 %v5398, 64
      %v5728 = vpop.permute.xlu0 %5727
      %5729 = vrot.lane.b32.xlu0 %v5400, 64
      %v5730 = vpop.permute.xlu0 %5729
      %5731 = vrot.lane.b32.xlu0 %v5403, 64
      %v5732 = vpop.permute.xlu0 %5731
      %5733 = vrot.lane.b32.xlu0 %v5405, 64
      %v5734 = vpop.permute.xlu0 %5733
      %5735 = vrot.lane.b32.xlu0 %v5672, 64
      %v5736 = vpop.permute.xlu0 %5735
      %5737 = vrot.lane.b32.xlu0 %v5674, 64
      %v5738 = vpop.permute.xlu0 %5737
      %5771 = vst.msk [vmem:[#allocation3 + $0x10] sm:$0xff] %vm744, %v5676
      %5772 = vst.msk [vmem:[#allocation3 + $0x38] sm:$0xff] %vm744, %v5678
      %5773 = vst.msk [vmem:[#allocation3 + $0x60] sm:$0xff] %vm744, %v5680
      %5774 = vst.msk [vmem:[#allocation3 + $0x88] sm:$0xff] %vm744, %v5682
      %5775 = vst.msk [vmem:[#allocation3 + $0xb0] sm:$0xff] %vm744, %v5684
      %5776 = vst.msk [vmem:[#allocation3 + $0xd8] sm:$0xff] %vm744, %v5686
      %5777 = vst.msk [vmem:[#allocation3 + $0x100] sm:$0xff] %vm744, %v5688
      %5778 = vst.msk [vmem:[#allocation3 + $0x128] sm:$0xff] %vm744, %v5690
      %5779 = vst.msk [vmem:[#allocation3 + $0x150] sm:$0xff] %vm744, %v5692
      %5780 = vst.msk [vmem:[#allocation3 + $0x178] sm:$0xff] %vm744, %v5694
      %5781 = vst.msk [vmem:[#allocation3 + $0x1a0] sm:$0xff] %vm744, %v5696
      %5782 = vst.msk [vmem:[#allocation3 + $0x1c8] sm:$0xff] %vm744, %v5698
      %5783 = vst.msk [vmem:[#allocation3 + $0x1f0] sm:$0xff] %vm744, %v5700
      %5784 = vst.msk [vmem:[#allocation3 + $0x218] sm:$0xff] %vm744, %v5702
      %5785 = vst.msk [vmem:[#allocation3 + $0x240] sm:$0xff] %vm744, %v5704
      %5786 = vst.msk [vmem:[#allocation3 + $0x268] sm:$0xff] %vm744, %v5706
      %5787 = vst.msk [vmem:[#allocation3 + $0x290] sm:$0xff] %vm744, %v5708
      %5788 = vst.msk [vmem:[#allocation3 + $0x2b8] sm:$0xff] %vm744, %v5710
      %5789 = vst.msk [vmem:[#allocation3 + $0x2e0] sm:$0xff] %vm744, %v5712
      %5790 = vst.msk [vmem:[#allocation3 + $0x308] sm:$0xff] %vm744, %v5714
      %5791 = vst.msk [vmem:[#allocation3 + $0x330] sm:$0xff] %vm744, %v5716
      %5792 = vst.msk [vmem:[#allocation3 + $0x358] sm:$0xff] %vm744, %v5718
      %5793 = vst.msk [vmem:[#allocation3 + $0x380] sm:$0xff] %vm744, %v5720
      %5794 = vst.msk [vmem:[#allocation3 + $0x3a8] sm:$0xff] %vm744, %v5722
      %5795 = vst.msk [vmem:[#allocation3 + $0x3d0] sm:$0xff] %vm744, %v5724
      %5796 = vst.msk [vmem:[#allocation3 + $0x3f8] sm:$0xff] %vm744, %v5726
      %5797 = vst.msk [vmem:[#allocation3 + $0x420] sm:$0xff] %vm744, %v5728
      %5798 = vst.msk [vmem:[#allocation3 + $0x448] sm:$0xff] %vm744, %v5730
      %5799 = vst.msk [vmem:[#allocation3 + $0x470] sm:$0xff] %vm744, %v5732
      %5800 = vst.msk [vmem:[#allocation3 + $0x498] sm:$0xff] %vm744, %v5734
      %5801 = vst.msk [vmem:[#allocation3 + $0x4c0] sm:$0xff] %vm744, %v5736
      %5802 = vst.msk [vmem:[#allocation3 + $0x4e8] sm:$0xff] %vm744, %v5738
      %5803 = vst.msk [vmem:[#allocation3 + $0x18] sm:$0xff] %vm304, %v4990
      %5804 = vst.msk [vmem:[#allocation3 + $0x40] sm:$0xff] %vm304, %v4991
      %5805 = vst.msk [vmem:[#allocation3 + $0x68] sm:$0xff] %vm304, %v4993
      %5806 = vst.msk [vmem:[#allocation3 + $0x90] sm:$0xff] %vm304, %v4994
      %5807 = vst.msk [vmem:[#allocation3 + $0xb8] sm:$0xff] %vm304, %v4996
      %5808 = vst.msk [vmem:[#allocation3 + $0xe0] sm:$0xff] %vm304, %v4997
      %5809 = vst.msk [vmem:[#allocation3 + $0x108] sm:$0xff] %vm304, %v4999
      %5810 = vst.msk [vmem:[#allocation3 + $0x130] sm:$0xff] %vm304, %v5000
      %5811 = vst.msk [vmem:[#allocation3 + $0x158] sm:$0xff] %vm304, %v5002
      %5812 = vst.msk [vmem:[#allocation3 + $0x180] sm:$0xff] %vm304, %v5003
      %5813 = vst.msk [vmem:[#allocation3 + $0x1a8] sm:$0xff] %vm304, %v5005
      %5814 = vst.msk [vmem:[#allocation3 + $0x1d0] sm:$0xff] %vm304, %v5006
      %5815 = vst.msk [vmem:[#allocation3 + $0x1f8] sm:$0xff] %vm304, %v5008
      %5816 = vst.msk [vmem:[#allocation3 + $0x220] sm:$0xff] %vm304, %v5009
      %5817 = vst.msk [vmem:[#allocation3 + $0x248] sm:$0xff] %vm304, %v5011
      %5818 = vst.msk [vmem:[#allocation3 + $0x270] sm:$0xff] %vm304, %v5012
      %5819 = vst.msk [vmem:[#allocation3 + $0x298] sm:$0xff] %vm304, %v5014
      %5820 = vst.msk [vmem:[#allocation3 + $0x2c0] sm:$0xff] %vm304, %v5015
      %5821 = vst.msk [vmem:[#allocation3 + $0x2e8] sm:$0xff] %vm304, %v5017
      %5822 = vst.msk [vmem:[#allocation3 + $0x310] sm:$0xff] %vm304, %v5018
      %5823 = vst.msk [vmem:[#allocation3 + $0x338] sm:$0xff] %vm304, %v5020
      %5824 = vst.msk [vmem:[#allocation3 + $0x360] sm:$0xff] %vm304, %v5021
      %5825 = vst.msk [vmem:[#allocation3 + $0x388] sm:$0xff] %vm304, %v5023
      %5826 = vst.msk [vmem:[#allocation3 + $0x3b0] sm:$0xff] %vm304, %v5024
      %5827 = vst.msk [vmem:[#allocation3 + $0x3d8] sm:$0xff] %vm304, %v5026
      %5828 = vst.msk [vmem:[#allocation3 + $0x400] sm:$0xff] %vm304, %v5027
      %5829 = vst.msk [vmem:[#allocation3 + $0x428] sm:$0xff] %vm304, %v5029
      %5830 = vst.msk [vmem:[#allocation3 + $0x450] sm:$0xff] %vm304, %v5030
      %5831 = vst.msk [vmem:[#allocation3 + $0x478] sm:$0xff] %vm304, %v5032
      %5832 = vst.msk [vmem:[#allocation3 + $0x4a0] sm:$0xff] %vm304, %v5033
      %5833 = vst.msk [vmem:[#allocation3 + $0x4c8] sm:$0xff] %vm304, %v5035
      %5834 = vst.msk [vmem:[#allocation3 + $0x4f0] sm:$0xff] %vm304, %v5036
      %v5838 = vrot.slane %v5035, 1
      %v5839 = vrot.slane %v5036, 1
      %v5840 = vsel %vm567, %v5838, %v5839
      %v5841 = vrot.slane %v5037, 1
      %v5842 = vsel %vm567, %v5839, %v5841
      %5843 = vrot.lane.b32.xlu0 %v5603, 64
      %v5844 = vpop.permute.xlu0 %5843
      %5845 = vrot.lane.b32.xlu0 %v5605, 64
      %v5846 = vpop.permute.xlu0 %5845
      %5847 = vrot.lane.b32.xlu0 %v5840, 64
      %v5848 = vpop.permute.xlu0 %5847
      %5849 = vrot.lane.b32.xlu0 %v5842, 64
      %v5850 = vpop.permute.xlu0 %5849
      %5855 = vst.msk [vmem:[#allocation3 + $0x18] sm:$0xff] %vm744, %v5207
      %5856 = vst.msk [vmem:[#allocation3 + $0x40] sm:$0xff] %vm744, %v5209
      %5857 = vst.msk [vmem:[#allocation3 + $0x68] sm:$0xff] %vm744, %v5211
      %5858 = vst.msk [vmem:[#allocation3 + $0x90] sm:$0xff] %vm744, %v5213
      %5859 = vst.msk [vmem:[#allocation3 + $0xb8] sm:$0xff] %vm744, %v5215
      %5860 = vst.msk [vmem:[#allocation3 + $0xe0] sm:$0xff] %vm744, %v5217
      %5861 = vst.msk [vmem:[#allocation3 + $0x108] sm:$0xff] %vm744, %v5219
      %5862 = vst.msk [vmem:[#allocation3 + $0x130] sm:$0xff] %vm744, %v5221
      %5863 = vst.msk [vmem:[#allocation3 + $0x158] sm:$0xff] %vm744, %v5223
      %5864 = vst.msk [vmem:[#allocation3 + $0x180] sm:$0xff] %vm744, %v5225
      %5865 = vst.msk [vmem:[#allocation3 + $0x1a8] sm:$0xff] %vm744, %v5227
      %5866 = vst.msk [vmem:[#allocation3 + $0x1d0] sm:$0xff] %vm744, %v5229
      %5867 = vst.msk [vmem:[#allocation3 + $0x1f8] sm:$0xff] %vm744, %v5231
      %5868 = vst.msk [vmem:[#allocation3 + $0x220] sm:$0xff] %vm744, %v5233
      %5869 = vst.msk [vmem:[#allocation3 + $0x248] sm:$0xff] %vm744, %v5235
      %5870 = vst.msk [vmem:[#allocation3 + $0x270] sm:$0xff] %vm744, %v5237
      %5871 = vst.msk [vmem:[#allocation3 + $0x298] sm:$0xff] %vm744, %v5239
      %5872 = vst.msk [vmem:[#allocation3 + $0x2c0] sm:$0xff] %vm744, %v5241
      %5873 = vst.msk [vmem:[#allocation3 + $0x2e8] sm:$0xff] %vm744, %v5243
      %5874 = vst.msk [vmem:[#allocation3 + $0x310] sm:$0xff] %vm744, %v5245
      %5875 = vst.msk [vmem:[#allocation3 + $0x338] sm:$0xff] %vm744, %v5247
      %5876 = vst.msk [vmem:[#allocation3 + $0x360] sm:$0xff] %vm744, %v5249
      %5877 = vst.msk [vmem:[#allocation3 + $0x388] sm:$0xff] %vm744, %v5251
      %5878 = vst.msk [vmem:[#allocation3 + $0x3b0] sm:$0xff] %vm744, %v5253
      %5879 = vst.msk [vmem:[#allocation3 + $0x3d8] sm:$0xff] %vm744, %v5255
      %5880 = vst.msk [vmem:[#allocation3 + $0x400] sm:$0xff] %vm744, %v5257
      %5881 = vst.msk [vmem:[#allocation3 + $0x428] sm:$0xff] %vm744, %v5259
      %5882 = vst.msk [vmem:[#allocation3 + $0x450] sm:$0xff] %vm744, %v5261
      %5883 = vst.msk [vmem:[#allocation3 + $0x478] sm:$0xff] %vm744, %v5844
      %5884 = vst.msk [vmem:[#allocation3 + $0x4a0] sm:$0xff] %vm744, %v5846
      %5885 = vst.msk [vmem:[#allocation3 + $0x4c8] sm:$0xff] %vm744, %v5848
      %5886 = vst.msk [vmem:[#allocation3 + $0x4f0] sm:$0xff] %vm744, %v5850
      %v5887 = vrot.slane %v5035, 2
      %v5888 = vrot.slane %v5036, 2
      %v5889 = vsel %vm777, %v5887, %v5888
      %v5890 = vrot.slane %v5037, 2
      %v5891 = vsel %vm777, %v5888, %v5890
      %5896 = vst.msk [vmem:[#allocation3 + $0x20] sm:$0xff] %vm304, %v5338
      %5897 = vst.msk [vmem:[#allocation3 + $0x48] sm:$0xff] %vm304, %v5340
      %5898 = vst.msk [vmem:[#allocation3 + $0x70] sm:$0xff] %vm304, %v5343
      %5899 = vst.msk [vmem:[#allocation3 + $0x98] sm:$0xff] %vm304, %v5345
      %5900 = vst.msk [vmem:[#allocation3 + $0xc0] sm:$0xff] %vm304, %v5348
      %5901 = vst.msk [vmem:[#allocation3 + $0xe8] sm:$0xff] %vm304, %v5350
      %5902 = vst.msk [vmem:[#allocation3 + $0x110] sm:$0xff] %vm304, %v5353
      %5903 = vst.msk [vmem:[#allocation3 + $0x138] sm:$0xff] %vm304, %v5355
      %5904 = vst.msk [vmem:[#allocation3 + $0x160] sm:$0xff] %vm304, %v5358
      %5905 = vst.msk [vmem:[#allocation3 + $0x188] sm:$0xff] %vm304, %v5360
      %5906 = vst.msk [vmem:[#allocation3 + $0x1b0] sm:$0xff] %vm304, %v5363
      %5907 = vst.msk [vmem:[#allocation3 + $0x1d8] sm:$0xff] %vm304, %v5365
      %5908 = vst.msk [vmem:[#allocation3 + $0x200] sm:$0xff] %vm304, %v5368
      %5909 = vst.msk [vmem:[#allocation3 + $0x228] sm:$0xff] %vm304, %v5370
      %5910 = vst.msk [vmem:[#allocation3 + $0x250] sm:$0xff] %vm304, %v5373
      %5911 = vst.msk [vmem:[#allocation3 + $0x278] sm:$0xff] %vm304, %v5375
      %5912 = vst.msk [vmem:[#allocation3 + $0x2a0] sm:$0xff] %vm304, %v5378
      %5913 = vst.msk [vmem:[#allocation3 + $0x2c8] sm:$0xff] %vm304, %v5380
      %5914 = vst.msk [vmem:[#allocation3 + $0x2f0] sm:$0xff] %vm304, %v5383
      %5915 = vst.msk [vmem:[#allocation3 + $0x318] sm:$0xff] %vm304, %v5385
      %5916 = vst.msk [vmem:[#allocation3 + $0x340] sm:$0xff] %vm304, %v5388
      %5917 = vst.msk [vmem:[#allocation3 + $0x368] sm:$0xff] %vm304, %v5390
      %5918 = vst.msk [vmem:[#allocation3 + $0x390] sm:$0xff] %vm304, %v5393
      %5919 = vst.msk [vmem:[#allocation3 + $0x3b8] sm:$0xff] %vm304, %v5395
      %5920 = vst.msk [vmem:[#allocation3 + $0x3e0] sm:$0xff] %vm304, %v5398
      %5921 = vst.msk [vmem:[#allocation3 + $0x408] sm:$0xff] %vm304, %v5400
      %5922 = vst.msk [vmem:[#allocation3 + $0x430] sm:$0xff] %vm304, %v5403
      %5923 = vst.msk [vmem:[#allocation3 + $0x458] sm:$0xff] %vm304, %v5405
      %5924 = vst.msk [vmem:[#allocation3 + $0x480] sm:$0xff] %vm304, %v5672
      %5925 = vst.msk [vmem:[#allocation3 + $0x4a8] sm:$0xff] %vm304, %v5674
      %5926 = vst.msk [vmem:[#allocation3 + $0x4d0] sm:$0xff] %vm304, %v5889
      %5927 = vst.msk [vmem:[#allocation3 + $0x4f8] sm:$0xff] %vm304, %v5891
      %v5928 = vld [vmem:[#allocation3] sm:$0xff]
      %v5929 = vld [vmem:[#allocation3 + $0x8] sm:$0xff]
      %v5930 = vld [vmem:[#allocation3 + $0x10] sm:$0xff]
      %v5931 = vld [vmem:[#allocation3 + $0x18] sm:$0xff]
      %v5932 = vld [vmem:[#allocation3 + $0x20] sm:$0xff]
      %v5933 = vld [vmem:[#allocation3 + $0x28] sm:$0xff]
      %v5934 = vld [vmem:[#allocation3 + $0x30] sm:$0xff]
      %v5935 = vld [vmem:[#allocation3 + $0x38] sm:$0xff]
      %v5936 = vld [vmem:[#allocation3 + $0x40] sm:$0xff]
      %v5937 = vld [vmem:[#allocation3 + $0x48] sm:$0xff]
      %v5938 = vld [vmem:[#allocation3 + $0x50] sm:$0xff]
      %v5939 = vld [vmem:[#allocation3 + $0x58] sm:$0xff]
      %v5940 = vld [vmem:[#allocation3 + $0x60] sm:$0xff]
      %v5941 = vld [vmem:[#allocation3 + $0x68] sm:$0xff]
      %v5942 = vld [vmem:[#allocation3 + $0x70] sm:$0xff]
      %v5943 = vld [vmem:[#allocation3 + $0x78] sm:$0xff]
      %v5944 = vld [vmem:[#allocation3 + $0x80] sm:$0xff]
      %v5945 = vld [vmem:[#allocation3 + $0x88] sm:$0xff]
      %v5946 = vld [vmem:[#allocation3 + $0x90] sm:$0xff]
      %v5947 = vld [vmem:[#allocation3 + $0x98] sm:$0xff]
      %v5948 = vld [vmem:[#allocation3 + $0xa0] sm:$0xff]
      %v5949 = vld [vmem:[#allocation3 + $0xa8] sm:$0xff]
      %v5950 = vld [vmem:[#allocation3 + $0xb0] sm:$0xff]
      %v5951 = vld [vmem:[#allocation3 + $0xb8] sm:$0xff]
      %v5952 = vld [vmem:[#allocation3 + $0xc0] sm:$0xff]
      %v5953 = vld [vmem:[#allocation3 + $0xc8] sm:$0xff]
      %v5954 = vld [vmem:[#allocation3 + $0xd0] sm:$0xff]
      %v5955 = vld [vmem:[#allocation3 + $0xd8] sm:$0xff]
      %v5956 = vld [vmem:[#allocation3 + $0xe0] sm:$0xff]
      %v5957 = vld [vmem:[#allocation3 + $0xe8] sm:$0xff]
      %v5958 = vld [vmem:[#allocation3 + $0xf0] sm:$0xff]
      %v5959 = vld [vmem:[#allocation3 + $0xf8] sm:$0xff]
      %v5960 = vld [vmem:[#allocation3 + $0x100] sm:$0xff]
      %v5961 = vld [vmem:[#allocation3 + $0x108] sm:$0xff]
      %v5962 = vld [vmem:[#allocation3 + $0x110] sm:$0xff]
      %v5963 = vld [vmem:[#allocation3 + $0x118] sm:$0xff]
      %v5964 = vld [vmem:[#allocation3 + $0x120] sm:$0xff]
      %v5965 = vld [vmem:[#allocation3 + $0x128] sm:$0xff]
      %v5966 = vld [vmem:[#allocation3 + $0x130] sm:$0xff]
      %v5967 = vld [vmem:[#allocation3 + $0x138] sm:$0xff]
      %v5968 = vld [vmem:[#allocation3 + $0x140] sm:$0xff]
      %v5969 = vld [vmem:[#allocation3 + $0x148] sm:$0xff]
      %v5970 = vld [vmem:[#allocation3 + $0x150] sm:$0xff]
      %v5971 = vld [vmem:[#allocation3 + $0x158] sm:$0xff]
      %v5972 = vld [vmem:[#allocation3 + $0x160] sm:$0xff]
      %v5973 = vld [vmem:[#allocation3 + $0x168] sm:$0xff]
      %v5974 = vld [vmem:[#allocation3 + $0x170] sm:$0xff]
      %v5975 = vld [vmem:[#allocation3 + $0x178] sm:$0xff]
      %v5976 = vld [vmem:[#allocation3 + $0x180] sm:$0xff]
      %v5977 = vld [vmem:[#allocation3 + $0x188] sm:$0xff]
      %v5978 = vld [vmem:[#allocation3 + $0x190] sm:$0xff]
      %v5979 = vld [vmem:[#allocation3 + $0x198] sm:$0xff]
      %v5980 = vld [vmem:[#allocation3 + $0x1a0] sm:$0xff]
      %v5981 = vld [vmem:[#allocation3 + $0x1a8] sm:$0xff]
      %v5982 = vld [vmem:[#allocation3 + $0x1b0] sm:$0xff]
      %v5983 = vld [vmem:[#allocation3 + $0x1b8] sm:$0xff]
      %v5984 = vld [vmem:[#allocation3 + $0x1c0] sm:$0xff]
      %v5985 = vld [vmem:[#allocation3 + $0x1c8] sm:$0xff]
      %v5986 = vld [vmem:[#allocation3 + $0x1d0] sm:$0xff]
      %v5987 = vld [vmem:[#allocation3 + $0x1d8] sm:$0xff]
      %v5988 = vld [vmem:[#allocation3 + $0x1e0] sm:$0xff]
      %v5989 = vld [vmem:[#allocation3 + $0x1e8] sm:$0xff]
      %v5990 = vld [vmem:[#allocation3 + $0x1f0] sm:$0xff]
      %v5991 = vld [vmem:[#allocation3 + $0x1f8] sm:$0xff]
      %v5992 = vld [vmem:[#allocation3 + $0x200] sm:$0xff]
      %v5993 = vld [vmem:[#allocation3 + $0x208] sm:$0xff]
      %v5994 = vld [vmem:[#allocation3 + $0x210] sm:$0xff]
      %v5995 = vld [vmem:[#allocation3 + $0x218] sm:$0xff]
      %v5996 = vld [vmem:[#allocation3 + $0x220] sm:$0xff]
      %v5997 = vld [vmem:[#allocation3 + $0x228] sm:$0xff]
      %v5998 = vld [vmem:[#allocation3 + $0x230] sm:$0xff]
      %v5999 = vld [vmem:[#allocation3 + $0x238] sm:$0xff]
      %v6000 = vld [vmem:[#allocation3 + $0x240] sm:$0xff]
      %v6001 = vld [vmem:[#allocation3 + $0x248] sm:$0xff]
      %v6002 = vld [vmem:[#allocation3 + $0x250] sm:$0xff]
      %v6003 = vld [vmem:[#allocation3 + $0x258] sm:$0xff]
      %v6004 = vld [vmem:[#allocation3 + $0x260] sm:$0xff]
      %v6005 = vld [vmem:[#allocation3 + $0x268] sm:$0xff]
      %v6006 = vld [vmem:[#allocation3 + $0x270] sm:$0xff]
      %v6007 = vld [vmem:[#allocation3 + $0x278] sm:$0xff]
      %v6008 = vld [vmem:[#allocation3 + $0x280] sm:$0xff]
      %v6009 = vld [vmem:[#allocation3 + $0x288] sm:$0xff]
      %v6010 = vld [vmem:[#allocation3 + $0x290] sm:$0xff]
      %v6011 = vld [vmem:[#allocation3 + $0x298] sm:$0xff]
      %v6012 = vld [vmem:[#allocation3 + $0x2a0] sm:$0xff]
      %v6013 = vld [vmem:[#allocation3 + $0x2a8] sm:$0xff]
      %v6014 = vld [vmem:[#allocation3 + $0x2b0] sm:$0xff]
      %v6015 = vld [vmem:[#allocation3 + $0x2b8] sm:$0xff]
      %v6016 = vld [vmem:[#allocation3 + $0x2c0] sm:$0xff]
      %v6017 = vld [vmem:[#allocation3 + $0x2c8] sm:$0xff]
      %v6018 = vld [vmem:[#allocation3 + $0x2d0] sm:$0xff]
      %v6019 = vld [vmem:[#allocation3 + $0x2d8] sm:$0xff]
      %v6020 = vld [vmem:[#allocation3 + $0x2e0] sm:$0xff]
      %v6021 = vld [vmem:[#allocation3 + $0x2e8] sm:$0xff]
      %v6022 = vld [vmem:[#allocation3 + $0x2f0] sm:$0xff]
      %v6023 = vld [vmem:[#allocation3 + $0x2f8] sm:$0xff]
      %v6024 = vld [vmem:[#allocation3 + $0x300] sm:$0xff]
      %v6025 = vld [vmem:[#allocation3 + $0x308] sm:$0xff]
      %v6026 = vld [vmem:[#allocation3 + $0x310] sm:$0xff]
      %v6027 = vld [vmem:[#allocation3 + $0x318] sm:$0xff]
      %v6028 = vld [vmem:[#allocation3 + $0x320] sm:$0xff]
      %v6029 = vld [vmem:[#allocation3 + $0x328] sm:$0xff]
      %v6030 = vld [vmem:[#allocation3 + $0x330] sm:$0xff]
      %v6031 = vld [vmem:[#allocation3 + $0x338] sm:$0xff]
      %v6032 = vld [vmem:[#allocation3 + $0x340] sm:$0xff]
      %v6033 = vld [vmem:[#allocation3 + $0x348] sm:$0xff]
      %v6034 = vld [vmem:[#allocation3 + $0x350] sm:$0xff]
      %v6035 = vld [vmem:[#allocation3 + $0x358] sm:$0xff]
      %v6036 = vld [vmem:[#allocation3 + $0x360] sm:$0xff]
      %v6037 = vld [vmem:[#allocation3 + $0x368] sm:$0xff]
      %v6038 = vld [vmem:[#allocation3 + $0x370] sm:$0xff]
      %v6039 = vld [vmem:[#allocation3 + $0x378] sm:$0xff]
      %v6040 = vld [vmem:[#allocation3 + $0x380] sm:$0xff]
      %v6041 = vld [vmem:[#allocation3 + $0x388] sm:$0xff]
      %v6042 = vld [vmem:[#allocation3 + $0x390] sm:$0xff]
      %v6043 = vld [vmem:[#allocation3 + $0x398] sm:$0xff]
      %v6044 = vld [vmem:[#allocation3 + $0x3a0] sm:$0xff]
      %v6045 = vld [vmem:[#allocation3 + $0x3a8] sm:$0xff]
      %v6046 = vld [vmem:[#allocation3 + $0x3b0] sm:$0xff]
      %v6047 = vld [vmem:[#allocation3 + $0x3b8] sm:$0xff]
      %v6048 = vld [vmem:[#allocation3 + $0x3c0] sm:$0xff]
      %v6049 = vld [vmem:[#allocation3 + $0x3c8] sm:$0xff]
      %v6050 = vld [vmem:[#allocation3 + $0x3d0] sm:$0xff]
      %v6051 = vld [vmem:[#allocation3 + $0x3d8] sm:$0xff]
      %v6052 = vld [vmem:[#allocation3 + $0x3e0] sm:$0xff]
      %v6053 = vld [vmem:[#allocation3 + $0x3e8] sm:$0xff]
      %v6054 = vld [vmem:[#allocation3 + $0x3f0] sm:$0xff]
      %v6055 = vld [vmem:[#allocation3 + $0x3f8] sm:$0xff]
      %v6056 = vld [vmem:[#allocation3 + $0x400] sm:$0xff]
      %v6057 = vld [vmem:[#allocation3 + $0x408] sm:$0xff]
      %v6058 = vld [vmem:[#allocation3 + $0x410] sm:$0xff]
      %v6059 = vld [vmem:[#allocation3 + $0x418] sm:$0xff]
      %v6060 = vld [vmem:[#allocation3 + $0x420] sm:$0xff]
      %v6061 = vld [vmem:[#allocation3 + $0x428] sm:$0xff]
      %v6062 = vld [vmem:[#allocation3 + $0x430] sm:$0xff]
      %v6063 = vld [vmem:[#allocation3 + $0x438] sm:$0xff]
      %v6064 = vld [vmem:[#allocation3 + $0x440] sm:$0xff]
      %v6065 = vld [vmem:[#allocation3 + $0x448] sm:$0xff]
      %v6066 = vld [vmem:[#allocation3 + $0x450] sm:$0xff]
      %v6067 = vld [vmem:[#allocation3 + $0x458] sm:$0xff]
      %v6068 = vld [vmem:[#allocation3 + $0x460] sm:$0xff]
      %v6069 = vld [vmem:[#allocation3 + $0x468] sm:$0xff]
      %v6070 = vld [vmem:[#allocation3 + $0x470] sm:$0xff]
      %v6071 = vld [vmem:[#allocation3 + $0x478] sm:$0xff]
      %v6072 = vld [vmem:[#allocation3 + $0x480] sm:$0xff]
      %v6073 = vld [vmem:[#allocation3 + $0x488] sm:$0xff]
      %v6074 = vld [vmem:[#allocation3 + $0x490] sm:$0xff]
      %v6075 = vld [vmem:[#allocation3 + $0x498] sm:$0xff]
      %v6076 = vld [vmem:[#allocation3 + $0x4a0] sm:$0xff]
      %v6077 = vld [vmem:[#allocation3 + $0x4a8] sm:$0xff]
      %v6078 = vld [vmem:[#allocation3 + $0x4b0] sm:$0xff]
      %v6079 = vld [vmem:[#allocation3 + $0x4b8] sm:$0xff]
      %v6080 = vld [vmem:[#allocation3 + $0x4c0] sm:$0xff]
      %v6081 = vld [vmem:[#allocation3 + $0x4c8] sm:$0xff]
      %v6082 = vld [vmem:[#allocation3 + $0x4d0] sm:$0xff]
      %v6083 = vld [vmem:[#allocation3 + $0x4d8] sm:$0xff]
      %v6084 = vld [vmem:[#allocation3 + $0x4e0] sm:$0xff]
      %v6085 = vld [vmem:[#allocation3 + $0x4e8] sm:$0xff]
      %v6086 = vld [vmem:[#allocation3 + $0x4f0] sm:$0xff]
      %v6087 = vld [vmem:[#allocation3 + $0x4f8] sm:$0xff]
      %v6088 = vld [vmem:[%s6] sm:$0x1f]
      %v6090 = vperm.slane %v6088, 0
      %v6091 = vperm.slane %v6088, 1
      %v6092 = vperm.slane %v6088, 2
      %v6093 = vperm.slane %v6088, 3
      %v6094 = vperm.slane %v6088, 4
      %v6100 = vmul.f32 %v5928, %v6090
      %v6101 = vmul.f32 %v5929, %v6091
      %v6102 = vmul.f32 %v5930, %v6092
      %v6103 = vmul.f32 %v5931, %v6093
      %v6104 = vmul.f32 %v5932, %v6094
      %v6105 = vmul.f32 %v5933, %v6090
      %v6106 = vmul.f32 %v5934, %v6091
      %v6107 = vmul.f32 %v5935, %v6092
      %v6108 = vmul.f32 %v5936, %v6093
      %v6109 = vmul.f32 %v5937, %v6094
      %v6110 = vmul.f32 %v5938, %v6090
      %v6111 = vmul.f32 %v5939, %v6091
      %v6112 = vmul.f32 %v5940, %v6092
      %v6113 = vmul.f32 %v5941, %v6093
      %v6114 = vmul.f32 %v5942, %v6094
      %v6115 = vmul.f32 %v5943, %v6090
      %v6116 = vmul.f32 %v5944, %v6091
      %v6117 = vmul.f32 %v5945, %v6092
      %v6118 = vmul.f32 %v5946, %v6093
      %v6119 = vmul.f32 %v5947, %v6094
      %v6120 = vmul.f32 %v5948, %v6090
      %v6121 = vmul.f32 %v5949, %v6091
      %v6122 = vmul.f32 %v5950, %v6092
      %v6123 = vmul.f32 %v5951, %v6093
      %v6124 = vmul.f32 %v5952, %v6094
      %v6125 = vmul.f32 %v5953, %v6090
      %v6126 = vmul.f32 %v5954, %v6091
      %v6127 = vmul.f32 %v5955, %v6092
      %v6128 = vmul.f32 %v5956, %v6093
      %v6129 = vmul.f32 %v5957, %v6094
      %v6130 = vmul.f32 %v5958, %v6090
      %v6131 = vmul.f32 %v5959, %v6091
      %v6132 = vmul.f32 %v5960, %v6092
      %v6133 = vmul.f32 %v5961, %v6093
      %v6134 = vmul.f32 %v5962, %v6094
      %v6135 = vmul.f32 %v5963, %v6090
      %v6136 = vmul.f32 %v5964, %v6091
      %v6137 = vmul.f32 %v5965, %v6092
      %v6138 = vmul.f32 %v5966, %v6093
      %v6139 = vmul.f32 %v5967, %v6094
      %v6140 = vmul.f32 %v5968, %v6090
      %v6141 = vmul.f32 %v5969, %v6091
      %v6142 = vmul.f32 %v5970, %v6092
      %v6143 = vmul.f32 %v5971, %v6093
      %v6144 = vmul.f32 %v5972, %v6094
      %v6145 = vmul.f32 %v5973, %v6090
      %v6146 = vmul.f32 %v5974, %v6091
      %v6147 = vmul.f32 %v5975, %v6092
      %v6148 = vmul.f32 %v5976, %v6093
      %v6149 = vmul.f32 %v5977, %v6094
      %v6150 = vmul.f32 %v5978, %v6090
      %v6151 = vmul.f32 %v5979, %v6091
      %v6152 = vmul.f32 %v5980, %v6092
      %v6153 = vmul.f32 %v5981, %v6093
      %v6154 = vmul.f32 %v5982, %v6094
      %v6155 = vmul.f32 %v5983, %v6090
      %v6156 = vmul.f32 %v5984, %v6091
      %v6157 = vmul.f32 %v5985, %v6092
      %v6158 = vmul.f32 %v5986, %v6093
      %v6159 = vmul.f32 %v5987, %v6094
      %v6160 = vmul.f32 %v5988, %v6090
      %v6161 = vmul.f32 %v5989, %v6091
      %v6162 = vmul.f32 %v5990, %v6092
      %v6163 = vmul.f32 %v5991, %v6093
      %v6164 = vmul.f32 %v5992, %v6094
      %v6165 = vmul.f32 %v5993, %v6090
      %v6166 = vmul.f32 %v5994, %v6091
      %v6167 = vmul.f32 %v5995, %v6092
      %v6168 = vmul.f32 %v5996, %v6093
      %v6169 = vmul.f32 %v5997, %v6094
      %v6170 = vmul.f32 %v5998, %v6090
      %v6171 = vmul.f32 %v5999, %v6091
      %v6172 = vmul.f32 %v6000, %v6092
      %v6173 = vmul.f32 %v6001, %v6093
      %v6174 = vmul.f32 %v6002, %v6094
      %v6175 = vmul.f32 %v6003, %v6090
      %v6176 = vmul.f32 %v6004, %v6091
      %v6177 = vmul.f32 %v6005, %v6092
      %v6178 = vmul.f32 %v6006, %v6093
      %v6179 = vmul.f32 %v6007, %v6094
      %v6180 = vmul.f32 %v6008, %v6090
      %v6181 = vmul.f32 %v6009, %v6091
      %v6182 = vmul.f32 %v6010, %v6092
      %v6183 = vmul.f32 %v6011, %v6093
      %v6184 = vmul.f32 %v6012, %v6094
      %v6185 = vmul.f32 %v6013, %v6090
      %v6186 = vmul.f32 %v6014, %v6091
      %v6187 = vmul.f32 %v6015, %v6092
      %v6188 = vmul.f32 %v6016, %v6093
      %v6189 = vmul.f32 %v6017, %v6094
      %v6190 = vmul.f32 %v6018, %v6090
      %v6191 = vmul.f32 %v6019, %v6091
      %v6192 = vmul.f32 %v6020, %v6092
      %v6193 = vmul.f32 %v6021, %v6093
      %v6194 = vmul.f32 %v6022, %v6094
      %v6195 = vmul.f32 %v6023, %v6090
      %v6196 = vmul.f32 %v6024, %v6091
      %v6197 = vmul.f32 %v6025, %v6092
      %v6198 = vmul.f32 %v6026, %v6093
      %v6199 = vmul.f32 %v6027, %v6094
      %v6200 = vmul.f32 %v6028, %v6090
      %v6201 = vmul.f32 %v6029, %v6091
      %v6202 = vmul.f32 %v6030, %v6092
      %v6203 = vmul.f32 %v6031, %v6093
      %v6204 = vmul.f32 %v6032, %v6094
      %v6205 = vmul.f32 %v6033, %v6090
      %v6206 = vmul.f32 %v6034, %v6091
      %v6207 = vmul.f32 %v6035, %v6092
      %v6208 = vmul.f32 %v6036, %v6093
      %v6209 = vmul.f32 %v6037, %v6094
      %v6210 = vmul.f32 %v6038, %v6090
      %v6211 = vmul.f32 %v6039, %v6091
      %v6212 = vmul.f32 %v6040, %v6092
      %v6213 = vmul.f32 %v6041, %v6093
      %v6214 = vmul.f32 %v6042, %v6094
      %v6215 = vmul.f32 %v6043, %v6090
      %v6216 = vmul.f32 %v6044, %v6091
      %v6217 = vmul.f32 %v6045, %v6092
      %v6218 = vmul.f32 %v6046, %v6093
      %v6219 = vmul.f32 %v6047, %v6094
      %v6220 = vmul.f32 %v6048, %v6090
      %v6221 = vmul.f32 %v6049, %v6091
      %v6222 = vmul.f32 %v6050, %v6092
      %v6223 = vmul.f32 %v6051, %v6093
      %v6224 = vmul.f32 %v6052, %v6094
      %v6225 = vmul.f32 %v6053, %v6090
      %v6226 = vmul.f32 %v6054, %v6091
      %v6227 = vmul.f32 %v6055, %v6092
      %v6228 = vmul.f32 %v6056, %v6093
      %v6229 = vmul.f32 %v6057, %v6094
      %v6230 = vmul.f32 %v6058, %v6090
      %v6231 = vmul.f32 %v6059, %v6091
      %v6232 = vmul.f32 %v6060, %v6092
      %v6233 = vmul.f32 %v6061, %v6093
      %v6234 = vmul.f32 %v6062, %v6094
      %v6235 = vmul.f32 %v6063, %v6090
      %v6236 = vmul.f32 %v6064, %v6091
      %v6237 = vmul.f32 %v6065, %v6092
      %v6238 = vmul.f32 %v6066, %v6093
      %v6239 = vmul.f32 %v6067, %v6094
      %v6240 = vmul.f32 %v6068, %v6090
      %v6241 = vmul.f32 %v6069, %v6091
      %v6242 = vmul.f32 %v6070, %v6092
      %v6243 = vmul.f32 %v6071, %v6093
      %v6244 = vmul.f32 %v6072, %v6094
      %v6245 = vmul.f32 %v6073, %v6090
      %v6246 = vmul.f32 %v6074, %v6091
      %v6247 = vmul.f32 %v6075, %v6092
      %v6248 = vmul.f32 %v6076, %v6093
      %v6249 = vmul.f32 %v6077, %v6094
      %v6250 = vmul.f32 %v6078, %v6090
      %v6251 = vmul.f32 %v6079, %v6091
      %v6252 = vmul.f32 %v6080, %v6092
      %v6253 = vmul.f32 %v6081, %v6093
      %v6254 = vmul.f32 %v6082, %v6094
      %v6255 = vmul.f32 %v6083, %v6090
      %v6256 = vmul.f32 %v6084, %v6091
      %v6257 = vmul.f32 %v6085, %v6092
      %v6258 = vmul.f32 %v6086, %v6093
      %v6259 = vmul.f32 %v6087, %v6094
      %v6260 = vadd.f32 %v6100, %v6101
      %v6261 = vadd.f32 %v6260, %v6102
      %v6262 = vadd.f32 %v6261, %v6103
      %v6263 = vsel %vm304, %v6104, 0.0
      %v6264 = vadd.f32 %v6262, %v6263
      %6265 = vadd.xlane.f32.xlu0 %v6264
      %v6266 = vpop.xlane.xlu0 %6265
      %v6267 = vadd.f32 %v6105, %v6106
      %v6268 = vadd.f32 %v6267, %v6107
      %v6269 = vadd.f32 %v6268, %v6108
      %v6270 = vsel %vm304, %v6109, 0.0
      %v6271 = vadd.f32 %v6269, %v6270
      %6272 = vadd.xlane.f32.xlu0 %v6271
      %v6273 = vpop.xlane.xlu0 %6272
      %v6274 = vadd.f32 %v6110, %v6111
      %v6275 = vadd.f32 %v6274, %v6112
      %v6276 = vadd.f32 %v6275, %v6113
      %v6277 = vsel %vm304, %v6114, 0.0
      %v6278 = vadd.f32 %v6276, %v6277
      %6279 = vadd.xlane.f32.xlu0 %v6278
      %v6280 = vpop.xlane.xlu0 %6279
      %v6281 = vadd.f32 %v6115, %v6116
      %v6282 = vadd.f32 %v6281, %v6117
      %v6283 = vadd.f32 %v6282, %v6118
      %v6284 = vsel %vm304, %v6119, 0.0
      %v6285 = vadd.f32 %v6283, %v6284
      %6286 = vadd.xlane.f32.xlu0 %v6285
      %v6287 = vpop.xlane.xlu0 %6286
      %v6288 = vadd.f32 %v6120, %v6121
      %v6289 = vadd.f32 %v6288, %v6122
      %v6290 = vadd.f32 %v6289, %v6123
      %v6291 = vsel %vm304, %v6124, 0.0
      %v6292 = vadd.f32 %v6290, %v6291
      %6293 = vadd.xlane.f32.xlu0 %v6292
      %v6294 = vpop.xlane.xlu0 %6293
      %v6295 = vadd.f32 %v6125, %v6126
      %v6296 = vadd.f32 %v6295, %v6127
      %v6297 = vadd.f32 %v6296, %v6128
      %v6298 = vsel %vm304, %v6129, 0.0
      %v6299 = vadd.f32 %v6297, %v6298
      %6300 = vadd.xlane.f32.xlu0 %v6299
      %v6301 = vpop.xlane.xlu0 %6300
      %v6302 = vadd.f32 %v6130, %v6131
      %v6303 = vadd.f32 %v6302, %v6132
      %v6304 = vadd.f32 %v6303, %v6133
      %v6305 = vsel %vm304, %v6134, 0.0
      %v6306 = vadd.f32 %v6304, %v6305
      %6307 = vadd.xlane.f32.xlu0 %v6306
      %v6308 = vpop.xlane.xlu0 %6307
      %v6309 = vadd.f32 %v6135, %v6136
      %v6310 = vadd.f32 %v6309, %v6137
      %v6311 = vadd.f32 %v6310, %v6138
      %v6312 = vsel %vm304, %v6139, 0.0
      %v6313 = vadd.f32 %v6311, %v6312
      %6314 = vadd.xlane.f32.xlu0 %v6313
      %v6315 = vpop.xlane.xlu0 %6314
      %v6316 = vadd.f32 %v6140, %v6141
      %v6317 = vadd.f32 %v6316, %v6142
      %v6318 = vadd.f32 %v6317, %v6143
      %v6319 = vsel %vm304, %v6144, 0.0
      %v6320 = vadd.f32 %v6318, %v6319
      %6321 = vadd.xlane.f32.xlu0 %v6320
      %v6322 = vpop.xlane.xlu0 %6321
      %v6323 = vadd.f32 %v6145, %v6146
      %v6324 = vadd.f32 %v6323, %v6147
      %v6325 = vadd.f32 %v6324, %v6148
      %v6326 = vsel %vm304, %v6149, 0.0
      %v6327 = vadd.f32 %v6325, %v6326
      %6328 = vadd.xlane.f32.xlu0 %v6327
      %v6329 = vpop.xlane.xlu0 %6328
      %v6330 = vadd.f32 %v6150, %v6151
      %v6331 = vadd.f32 %v6330, %v6152
      %v6332 = vadd.f32 %v6331, %v6153
      %v6333 = vsel %vm304, %v6154, 0.0
      %v6334 = vadd.f32 %v6332, %v6333
      %6335 = vadd.xlane.f32.xlu0 %v6334
      %v6336 = vpop.xlane.xlu0 %6335
      %v6337 = vadd.f32 %v6155, %v6156
      %v6338 = vadd.f32 %v6337, %v6157
      %v6339 = vadd.f32 %v6338, %v6158
      %v6340 = vsel %vm304, %v6159, 0.0
      %v6341 = vadd.f32 %v6339, %v6340
      %6342 = vadd.xlane.f32.xlu0 %v6341
      %v6343 = vpop.xlane.xlu0 %6342
      %v6344 = vadd.f32 %v6160, %v6161
      %v6345 = vadd.f32 %v6344, %v6162
      %v6346 = vadd.f32 %v6345, %v6163
      %v6347 = vsel %vm304, %v6164, 0.0
      %v6348 = vadd.f32 %v6346, %v6347
      %6349 = vadd.xlane.f32.xlu0 %v6348
      %v6350 = vpop.xlane.xlu0 %6349
      %v6351 = vadd.f32 %v6165, %v6166
      %v6352 = vadd.f32 %v6351, %v6167
      %v6353 = vadd.f32 %v6352, %v6168
      %v6354 = vsel %vm304, %v6169, 0.0
      %v6355 = vadd.f32 %v6353, %v6354
      %6356 = vadd.xlane.f32.xlu0 %v6355
      %v6357 = vpop.xlane.xlu0 %6356
      %v6358 = vadd.f32 %v6170, %v6171
      %v6359 = vadd.f32 %v6358, %v6172
      %v6360 = vadd.f32 %v6359, %v6173
      %v6361 = vsel %vm304, %v6174, 0.0
      %v6362 = vadd.f32 %v6360, %v6361
      %6363 = vadd.xlane.f32.xlu0 %v6362
      %v6364 = vpop.xlane.xlu0 %6363
      %v6365 = vadd.f32 %v6175, %v6176
      %v6366 = vadd.f32 %v6365, %v6177
      %v6367 = vadd.f32 %v6366, %v6178
      %v6368 = vsel %vm304, %v6179, 0.0
      %v6369 = vadd.f32 %v6367, %v6368
      %6370 = vadd.xlane.f32.xlu0 %v6369
      %v6371 = vpop.xlane.xlu0 %6370
      %v6372 = vadd.f32 %v6180, %v6181
      %v6373 = vadd.f32 %v6372, %v6182
      %v6374 = vadd.f32 %v6373, %v6183
      %v6375 = vsel %vm304, %v6184, 0.0
      %v6376 = vadd.f32 %v6374, %v6375
      %6377 = vadd.xlane.f32.xlu0 %v6376
      %v6378 = vpop.xlane.xlu0 %6377
      %v6379 = vadd.f32 %v6185, %v6186
      %v6380 = vadd.f32 %v6379, %v6187
      %v6381 = vadd.f32 %v6380, %v6188
      %v6382 = vsel %vm304, %v6189, 0.0
      %v6383 = vadd.f32 %v6381, %v6382
      %6384 = vadd.xlane.f32.xlu0 %v6383
      %v6385 = vpop.xlane.xlu0 %6384
      %v6386 = vadd.f32 %v6190, %v6191
      %v6387 = vadd.f32 %v6386, %v6192
      %v6388 = vadd.f32 %v6387, %v6193
      %v6389 = vsel %vm304, %v6194, 0.0
      %v6390 = vadd.f32 %v6388, %v6389
      %6391 = vadd.xlane.f32.xlu0 %v6390
      %v6392 = vpop.xlane.xlu0 %6391
      %v6393 = vadd.f32 %v6195, %v6196
      %v6394 = vadd.f32 %v6393, %v6197
      %v6395 = vadd.f32 %v6394, %v6198
      %v6396 = vsel %vm304, %v6199, 0.0
      %v6397 = vadd.f32 %v6395, %v6396
      %6398 = vadd.xlane.f32.xlu0 %v6397
      %v6399 = vpop.xlane.xlu0 %6398
      %v6400 = vadd.f32 %v6200, %v6201
      %v6401 = vadd.f32 %v6400, %v6202
      %v6402 = vadd.f32 %v6401, %v6203
      %v6403 = vsel %vm304, %v6204, 0.0
      %v6404 = vadd.f32 %v6402, %v6403
      %6405 = vadd.xlane.f32.xlu0 %v6404
      %v6406 = vpop.xlane.xlu0 %6405
      %v6407 = vadd.f32 %v6205, %v6206
      %v6408 = vadd.f32 %v6407, %v6207
      %v6409 = vadd.f32 %v6408, %v6208
      %v6410 = vsel %vm304, %v6209, 0.0
      %v6411 = vadd.f32 %v6409, %v6410
      %6412 = vadd.xlane.f32.xlu0 %v6411
      %v6413 = vpop.xlane.xlu0 %6412
      %v6414 = vadd.f32 %v6210, %v6211
      %v6415 = vadd.f32 %v6414, %v6212
      %v6416 = vadd.f32 %v6415, %v6213
      %v6417 = vsel %vm304, %v6214, 0.0
      %v6418 = vadd.f32 %v6416, %v6417
      %6419 = vadd.xlane.f32.xlu0 %v6418
      %v6420 = vpop.xlane.xlu0 %6419
      %v6421 = vadd.f32 %v6215, %v6216
      %v6422 = vadd.f32 %v6421, %v6217
      %v6423 = vadd.f32 %v6422, %v6218
      %v6424 = vsel %vm304, %v6219, 0.0
      %v6425 = vadd.f32 %v6423, %v6424
      %6426 = vadd.xlane.f32.xlu0 %v6425
      %v6427 = vpop.xlane.xlu0 %6426
      %v6428 = vadd.f32 %v6220, %v6221
      %v6429 = vadd.f32 %v6428, %v6222
      %v6430 = vadd.f32 %v6429, %v6223
      %v6431 = vsel %vm304, %v6224, 0.0
      %v6432 = vadd.f32 %v6430, %v6431
      %6433 = vadd.xlane.f32.xlu0 %v6432
      %v6434 = vpop.xlane.xlu0 %6433
      %v6435 = vadd.f32 %v6225, %v6226
      %v6436 = vadd.f32 %v6435, %v6227
      %v6437 = vadd.f32 %v6436, %v6228
      %v6438 = vsel %vm304, %v6229, 0.0
      %v6439 = vadd.f32 %v6437, %v6438
      %6440 = vadd.xlane.f32.xlu0 %v6439
      %v6441 = vpop.xlane.xlu0 %6440
      %v6442 = vadd.f32 %v6230, %v6231
      %v6443 = vadd.f32 %v6442, %v6232
      %v6444 = vadd.f32 %v6443, %v6233
      %v6445 = vsel %vm304, %v6234, 0.0
      %v6446 = vadd.f32 %v6444, %v6445
      %6447 = vadd.xlane.f32.xlu0 %v6446
      %v6448 = vpop.xlane.xlu0 %6447
      %v6449 = vadd.f32 %v6235, %v6236
      %v6450 = vadd.f32 %v6449, %v6237
      %v6451 = vadd.f32 %v6450, %v6238
      %v6452 = vsel %vm304, %v6239, 0.0
      %v6453 = vadd.f32 %v6451, %v6452
      %6454 = vadd.xlane.f32.xlu0 %v6453
      %v6455 = vpop.xlane.xlu0 %6454
      %v6456 = vadd.f32 %v6240, %v6241
      %v6457 = vadd.f32 %v6456, %v6242
      %v6458 = vadd.f32 %v6457, %v6243
      %v6459 = vsel %vm304, %v6244, 0.0
      %v6460 = vadd.f32 %v6458, %v6459
      %6461 = vadd.xlane.f32.xlu0 %v6460
      %v6462 = vpop.xlane.xlu0 %6461
      %v6463 = vadd.f32 %v6245, %v6246
      %v6464 = vadd.f32 %v6463, %v6247
      %v6465 = vadd.f32 %v6464, %v6248
      %v6466 = vsel %vm304, %v6249, 0.0
      %v6467 = vadd.f32 %v6465, %v6466
      %6468 = vadd.xlane.f32.xlu0 %v6467
      %v6469 = vpop.xlane.xlu0 %6468
      %v6470 = vadd.f32 %v6250, %v6251
      %v6471 = vadd.f32 %v6470, %v6252
      %v6472 = vadd.f32 %v6471, %v6253
      %v6473 = vsel %vm304, %v6254, 0.0
      %v6474 = vadd.f32 %v6472, %v6473
      %6475 = vadd.xlane.f32.xlu0 %v6474
      %v6476 = vpop.xlane.xlu0 %6475
      %v6477 = vadd.f32 %v6255, %v6256
      %v6478 = vadd.f32 %v6477, %v6257
      %v6479 = vadd.f32 %v6478, %v6258
      %v6480 = vsel %vm304, %v6259, 0.0
      %v6481 = vadd.f32 %v6479, %v6480
      %6482 = vadd.xlane.f32.xlu0 %v6481
      %v6483 = vpop.xlane.xlu0 %6482
      %v6484 = vld [vmem:[#allocation4] sm:$0x1]
      %v6486 = vperm.slane %v6484, 0
      %v6488 = vadd.f32 %v6266, %v6486
      %v6489 = vadd.f32 %v6273, %v6486
      %v6490 = vadd.f32 %v6280, %v6486
      %v6491 = vadd.f32 %v6287, %v6486
      %v6492 = vadd.f32 %v6294, %v6486
      %v6493 = vadd.f32 %v6301, %v6486
      %v6494 = vadd.f32 %v6308, %v6486
      %v6495 = vadd.f32 %v6315, %v6486
      %v6496 = vadd.f32 %v6322, %v6486
      %v6497 = vadd.f32 %v6329, %v6486
      %v6498 = vadd.f32 %v6336, %v6486
      %v6499 = vadd.f32 %v6343, %v6486
      %v6500 = vadd.f32 %v6350, %v6486
      %v6501 = vadd.f32 %v6357, %v6486
      %v6502 = vadd.f32 %v6364, %v6486
      %v6503 = vadd.f32 %v6371, %v6486
      %v6504 = vadd.f32 %v6378, %v6486
      %v6505 = vadd.f32 %v6385, %v6486
      %v6506 = vadd.f32 %v6392, %v6486
      %v6507 = vadd.f32 %v6399, %v6486
      %v6508 = vadd.f32 %v6406, %v6486
      %v6509 = vadd.f32 %v6413, %v6486
      %v6510 = vadd.f32 %v6420, %v6486
      %v6511 = vadd.f32 %v6427, %v6486
      %v6512 = vadd.f32 %v6434, %v6486
      %v6513 = vadd.f32 %v6441, %v6486
      %v6514 = vadd.f32 %v6448, %v6486
      %v6515 = vadd.f32 %v6455, %v6486
      %v6516 = vadd.f32 %v6462, %v6486
      %v6517 = vadd.f32 %v6469, %v6486
      %v6518 = vadd.f32 %v6476, %v6486
      %v6519 = vadd.f32 %v6483, %v6486
      %v6520 = vmax.f32 %v6488, 0.0
      %v6521 = vmax.f32 %v6489, 0.0
      %v6522 = vmax.f32 %v6490, 0.0
      %v6523 = vmax.f32 %v6491, 0.0
      %v6524 = vmax.f32 %v6492, 0.0
      %v6525 = vmax.f32 %v6493, 0.0
      %v6526 = vmax.f32 %v6494, 0.0
      %v6527 = vmax.f32 %v6495, 0.0
      %v6528 = vmax.f32 %v6496, 0.0
      %v6529 = vmax.f32 %v6497, 0.0
      %v6530 = vmax.f32 %v6498, 0.0
      %v6531 = vmax.f32 %v6499, 0.0
      %v6532 = vmax.f32 %v6500, 0.0
      %v6533 = vmax.f32 %v6501, 0.0
      %v6534 = vmax.f32 %v6502, 0.0
      %v6535 = vmax.f32 %v6503, 0.0
      %v6536 = vmax.f32 %v6504, 0.0
      %v6537 = vmax.f32 %v6505, 0.0
      %v6538 = vmax.f32 %v6506, 0.0
      %v6539 = vmax.f32 %v6507, 0.0
      %v6540 = vmax.f32 %v6508, 0.0
      %v6541 = vmax.f32 %v6509, 0.0
      %v6542 = vmax.f32 %v6510, 0.0
      %v6543 = vmax.f32 %v6511, 0.0
      %v6544 = vmax.f32 %v6512, 0.0
      %v6545 = vmax.f32 %v6513, 0.0
      %v6546 = vmax.f32 %v6514, 0.0
      %v6547 = vmax.f32 %v6515, 0.0
      %v6548 = vmax.f32 %v6516, 0.0
      %v6549 = vmax.f32 %v6517, 0.0
      %v6550 = vmax.f32 %v6518, 0.0
      %v6551 = vmax.f32 %v6519, 0.0
      %v6552 = vmul.f32 %v6488, 0.9
      %v6553 = vmul.f32 %v6489, 0.9
      %v6554 = vmul.f32 %v6490, 0.9
      %v6555 = vmul.f32 %v6491, 0.9
      %v6556 = vmul.f32 %v6492, 0.9
      %v6557 = vmul.f32 %v6493, 0.9
      %v6558 = vmul.f32 %v6494, 0.9
      %v6559 = vmul.f32 %v6495, 0.9
      %v6560 = vmul.f32 %v6496, 0.9
      %v6561 = vmul.f32 %v6497, 0.9
      %v6562 = vmul.f32 %v6498, 0.9
      %v6563 = vmul.f32 %v6499, 0.9
      %v6564 = vmul.f32 %v6500, 0.9
      %v6565 = vmul.f32 %v6501, 0.9
      %v6566 = vmul.f32 %v6502, 0.9
      %v6567 = vmul.f32 %v6503, 0.9
      %v6568 = vmul.f32 %v6504, 0.9
      %v6569 = vmul.f32 %v6505, 0.9
      %v6570 = vmul.f32 %v6506, 0.9
      %v6571 = vmul.f32 %v6507, 0.9
      %v6572 = vmul.f32 %v6508, 0.9
      %v6573 = vmul.f32 %v6509, 0.9
      %v6574 = vmul.f32 %v6510, 0.9
      %v6575 = vmul.f32 %v6511, 0.9
      %v6576 = vmul.f32 %v6512, 0.9
      %v6577 = vmul.f32 %v6513, 0.9
      %v6578 = vmul.f32 %v6514, 0.9
      %v6579 = vmul.f32 %v6515, 0.9
      %v6580 = vmul.f32 %v6516, 0.9
      %v6581 = vmul.f32 %v6517, 0.9
      %v6582 = vmul.f32 %v6518, 0.9
      %v6583 = vmul.f32 %v6519, 0.9
      %v6584 = vsub.f32 %v6520, %v6552
      %v6585 = vsub.f32 %v6521, %v6553
      %v6586 = vsub.f32 %v6522, %v6554
      %v6587 = vsub.f32 %v6523, %v6555
      %v6588 = vsub.f32 %v6524, %v6556
      %v6589 = vsub.f32 %v6525, %v6557
      %v6590 = vsub.f32 %v6526, %v6558
      %v6591 = vsub.f32 %v6527, %v6559
      %v6592 = vsub.f32 %v6528, %v6560
      %v6593 = vsub.f32 %v6529, %v6561
      %v6594 = vsub.f32 %v6530, %v6562
      %v6595 = vsub.f32 %v6531, %v6563
      %v6596 = vsub.f32 %v6532, %v6564
      %v6597 = vsub.f32 %v6533, %v6565
      %v6598 = vsub.f32 %v6534, %v6566
      %v6599 = vsub.f32 %v6535, %v6567
      %v6600 = vsub.f32 %v6536, %v6568
      %v6601 = vsub.f32 %v6537, %v6569
      %v6602 = vsub.f32 %v6538, %v6570
      %v6603 = vsub.f32 %v6539, %v6571
      %v6604 = vsub.f32 %v6540, %v6572
      %v6605 = vsub.f32 %v6541, %v6573
      %v6606 = vsub.f32 %v6542, %v6574
      %v6607 = vsub.f32 %v6543, %v6575
      %v6608 = vsub.f32 %v6544, %v6576
      %v6609 = vsub.f32 %v6545, %v6577
      %v6610 = vsub.f32 %v6546, %v6578
      %v6611 = vsub.f32 %v6547, %v6579
      %v6612 = vsub.f32 %v6548, %v6580
      %v6613 = vsub.f32 %v6549, %v6581
      %v6614 = vsub.f32 %v6550, %v6582
      %v6615 = vsub.f32 %v6551, %v6583
      %v6616 = vand.u32 2147483647, %v6488
      %v6617 = vand.u32 2147483647, %v6489
      %v6618 = vand.u32 2147483647, %v6490
      %v6619 = vand.u32 2147483647, %v6491
      %v6620 = vand.u32 2147483647, %v6492
      %v6621 = vand.u32 2147483647, %v6493
      %v6622 = vand.u32 2147483647, %v6494
      %v6623 = vand.u32 2147483647, %v6495
      %v6624 = vand.u32 2147483647, %v6496
      %v6625 = vand.u32 2147483647, %v6497
      %v6626 = vand.u32 2147483647, %v6498
      %v6627 = vand.u32 2147483647, %v6499
      %v6628 = vand.u32 2147483647, %v6500
      %v6629 = vand.u32 2147483647, %v6501
      %v6630 = vand.u32 2147483647, %v6502
      %v6631 = vand.u32 2147483647, %v6503
      %v6632 = vand.u32 2147483647, %v6504
      %v6633 = vand.u32 2147483647, %v6505
      %v6634 = vand.u32 2147483647, %v6506
      %v6635 = vand.u32 2147483647, %v6507
      %v6636 = vand.u32 2147483647, %v6508
      %v6637 = vand.u32 2147483647, %v6509
      %v6638 = vand.u32 2147483647, %v6510
      %v6639 = vand.u32 2147483647, %v6511
      %v6640 = vand.u32 2147483647, %v6512
      %v6641 = vand.u32 2147483647, %v6513
      %v6642 = vand.u32 2147483647, %v6514
      %v6643 = vand.u32 2147483647, %v6515
      %v6644 = vand.u32 2147483647, %v6516
      %v6645 = vand.u32 2147483647, %v6517
      %v6646 = vand.u32 2147483647, %v6518
      %v6647 = vand.u32 2147483647, %v6519
      %v6648 = vsub.f32 0.0, %v6616
      %v6649 = vsub.f32 0.0, %v6617
      %v6650 = vsub.f32 0.0, %v6618
      %v6651 = vsub.f32 0.0, %v6619
      %v6652 = vsub.f32 0.0, %v6620
      %v6653 = vsub.f32 0.0, %v6621
      %v6654 = vsub.f32 0.0, %v6622
      %v6655 = vsub.f32 0.0, %v6623
      %v6656 = vsub.f32 0.0, %v6624
      %v6657 = vsub.f32 0.0, %v6625
      %v6658 = vsub.f32 0.0, %v6626
      %v6659 = vsub.f32 0.0, %v6627
      %v6660 = vsub.f32 0.0, %v6628
      %v6661 = vsub.f32 0.0, %v6629
      %v6662 = vsub.f32 0.0, %v6630
      %v6663 = vsub.f32 0.0, %v6631
      %v6664 = vsub.f32 0.0, %v6632
      %v6665 = vsub.f32 0.0, %v6633
      %v6666 = vsub.f32 0.0, %v6634
      %v6667 = vsub.f32 0.0, %v6635
      %v6668 = vsub.f32 0.0, %v6636
      %v6669 = vsub.f32 0.0, %v6637
      %v6670 = vsub.f32 0.0, %v6638
      %v6671 = vsub.f32 0.0, %v6639
      %v6672 = vsub.f32 0.0, %v6640
      %v6673 = vsub.f32 0.0, %v6641
      %v6674 = vsub.f32 0.0, %v6642
      %v6675 = vsub.f32 0.0, %v6643
      %v6676 = vsub.f32 0.0, %v6644
      %v6677 = vsub.f32 0.0, %v6645
      %v6678 = vsub.f32 0.0, %v6646
      %v6679 = vsub.f32 0.0, %v6647
      %v6680 = vmul.f32 %v6648, 1.442695
      %v6681 = vpow.pop %v6680
      %v6682 = vmul.f32 %v6649, 1.442695
      %v6683 = vpow.pop %v6682
      %v6684 = vmul.f32 %v6650, 1.442695
      %v6685 = vpow.pop %v6684
      %v6686 = vmul.f32 %v6651, 1.442695
      %v6687 = vpow.pop %v6686
      %v6688 = vmul.f32 %v6652, 1.442695
      %v6689 = vpow.pop %v6688
      %v6690 = vmul.f32 %v6653, 1.442695
      %v6691 = vpow.pop %v6690
      %v6692 = vmul.f32 %v6654, 1.442695
      %v6693 = vpow.pop %v6692
      %v6694 = vmul.f32 %v6655, 1.442695
      %v6695 = vpow.pop %v6694
      %v6696 = vmul.f32 %v6656, 1.442695
      %v6697 = vpow.pop %v6696
      %v6698 = vmul.f32 %v6657, 1.442695
      %v6699 = vpow.pop %v6698
      %v6700 = vmul.f32 %v6658, 1.442695
      %v6701 = vpow.pop %v6700
      %v6702 = vmul.f32 %v6659, 1.442695
      %v6703 = vpow.pop %v6702
      %v6704 = vmul.f32 %v6660, 1.442695
      %v6705 = vpow.pop %v6704
      %v6706 = vmul.f32 %v6661, 1.442695
      %v6707 = vpow.pop %v6706
      %v6708 = vmul.f32 %v6662, 1.442695
      %v6709 = vpow.pop %v6708
      %v6710 = vmul.f32 %v6663, 1.442695
      %v6711 = vpow.pop %v6710
      %v6712 = vmul.f32 %v6664, 1.442695
      %v6713 = vpow.pop %v6712
      %v6714 = vmul.f32 %v6665, 1.442695
      %v6715 = vpow.pop %v6714
      %v6716 = vmul.f32 %v6666, 1.442695
      %v6717 = vpow.pop %v6716
      %v6718 = vmul.f32 %v6667, 1.442695
      %v6719 = vpow.pop %v6718
      %v6720 = vmul.f32 %v6668, 1.442695
      %v6721 = vpow.pop %v6720
      %v6722 = vmul.f32 %v6669, 1.442695
      %v6723 = vpow.pop %v6722
      %v6724 = vmul.f32 %v6670, 1.442695
      %v6725 = vpow.pop %v6724
      %v6726 = vmul.f32 %v6671, 1.442695
      %v6727 = vpow.pop %v6726
      %v6728 = vmul.f32 %v6672, 1.442695
      %v6729 = vpow.pop %v6728
      %v6730 = vmul.f32 %v6673, 1.442695
      %v6731 = vpow.pop %v6730
      %v6732 = vmul.f32 %v6674, 1.442695
      %v6733 = vpow.pop %v6732
      %v6734 = vmul.f32 %v6675, 1.442695
      %v6735 = vpow.pop %v6734
      %v6736 = vmul.f32 %v6676, 1.442695
      %v6737 = vpow.pop %v6736
      %v6738 = vmul.f32 %v6677, 1.442695
      %v6739 = vpow.pop %v6738
      %v6740 = vmul.f32 %v6678, 1.442695
      %v6741 = vpow.pop %v6740
      %v6742 = vmul.f32 %v6679, 1.442695
      %v6743 = vpow.pop %v6742
      %v6744 = vadd.f32 %v6681, 1.0
      %v6745 = vadd.f32 %v6683, 1.0
      %v6746 = vadd.f32 %v6685, 1.0
      %v6747 = vadd.f32 %v6687, 1.0
      %v6748 = vadd.f32 %v6689, 1.0
      %v6749 = vadd.f32 %v6691, 1.0
      %v6750 = vadd.f32 %v6693, 1.0
      %v6751 = vadd.f32 %v6695, 1.0
      %v6752 = vadd.f32 %v6697, 1.0
      %v6753 = vadd.f32 %v6699, 1.0
      %v6754 = vadd.f32 %v6701, 1.0
      %v6755 = vadd.f32 %v6703, 1.0
      %v6756 = vadd.f32 %v6705, 1.0
      %v6757 = vadd.f32 %v6707, 1.0
      %v6758 = vadd.f32 %v6709, 1.0
      %v6759 = vadd.f32 %v6711, 1.0
      %v6760 = vadd.f32 %v6713, 1.0
      %v6761 = vadd.f32 %v6715, 1.0
      %v6762 = vadd.f32 %v6717, 1.0
      %v6763 = vadd.f32 %v6719, 1.0
      %v6764 = vadd.f32 %v6721, 1.0
      %v6765 = vadd.f32 %v6723, 1.0
      %v6766 = vadd.f32 %v6725, 1.0
      %v6767 = vadd.f32 %v6727, 1.0
      %v6768 = vadd.f32 %v6729, 1.0
      %v6769 = vadd.f32 %v6731, 1.0
      %v6770 = vadd.f32 %v6733, 1.0
      %v6771 = vadd.f32 %v6735, 1.0
      %v6772 = vadd.f32 %v6737, 1.0
      %v6773 = vadd.f32 %v6739, 1.0
      %v6774 = vadd.f32 %v6741, 1.0
      %v6775 = vadd.f32 %v6743, 1.0
      %v6776 = vlog2.pop %v6744
      %v6777 = vmul.f32 %v6776, 0.6931472
      %v6778 = vlog2.pop %v6745
      %v6779 = vmul.f32 %v6778, 0.6931472
      %v6780 = vlog2.pop %v6746
      %v6781 = vmul.f32 %v6780, 0.6931472
      %v6782 = vlog2.pop %v6747
      %v6783 = vmul.f32 %v6782, 0.6931472
      %v6784 = vlog2.pop %v6748
      %v6785 = vmul.f32 %v6784, 0.6931472
      %v6786 = vlog2.pop %v6749
      %v6787 = vmul.f32 %v6786, 0.6931472
      %v6788 = vlog2.pop %v6750
      %v6789 = vmul.f32 %v6788, 0.6931472
      %v6790 = vlog2.pop %v6751
      %v6791 = vmul.f32 %v6790, 0.6931472
      %v6792 = vlog2.pop %v6752
      %v6793 = vmul.f32 %v6792, 0.6931472
      %v6794 = vlog2.pop %v6753
      %v6795 = vmul.f32 %v6794, 0.6931472
      %v6796 = vlog2.pop %v6754
      %v6797 = vmul.f32 %v6796, 0.6931472
      %v6798 = vlog2.pop %v6755
      %v6799 = vmul.f32 %v6798, 0.6931472
      %v6800 = vlog2.pop %v6756
      %v6801 = vmul.f32 %v6800, 0.6931472
      %v6802 = vlog2.pop %v6757
      %v6803 = vmul.f32 %v6802, 0.6931472
      %v6804 = vlog2.pop %v6758
      %v6805 = vmul.f32 %v6804, 0.6931472
      %v6806 = vlog2.pop %v6759
      %v6807 = vmul.f32 %v6806, 0.6931472
      %v6808 = vlog2.pop %v6760
      %v6809 = vmul.f32 %v6808, 0.6931472
      %v6810 = vlog2.pop %v6761
      %v6811 = vmul.f32 %v6810, 0.6931472
      %v6812 = vlog2.pop %v6762
      %v6813 = vmul.f32 %v6812, 0.6931472
      %v6814 = vlog2.pop %v6763
      %v6815 = vmul.f32 %v6814, 0.6931472
      %v6816 = vlog2.pop %v6764
      %v6817 = vmul.f32 %v6816, 0.6931472
      %v6818 = vlog2.pop %v6765
      %v6819 = vmul.f32 %v6818, 0.6931472
      %v6820 = vlog2.pop %v6766
      %v6821 = vmul.f32 %v6820, 0.6931472
      %v6822 = vlog2.pop %v6767
      %v6823 = vmul.f32 %v6822, 0.6931472
      %v6824 = vlog2.pop %v6768
      %v6825 = vmul.f32 %v6824, 0.6931472
      %v6826 = vlog2.pop %v6769
      %v6827 = vmul.f32 %v6826, 0.6931472
      %v6828 = vlog2.pop %v6770
      %v6829 = vmul.f32 %v6828, 0.6931472
      %v6830 = vlog2.pop %v6771
      %v6831 = vmul.f32 %v6830, 0.6931472
      %v6832 = vlog2.pop %v6772
      %v6833 = vmul.f32 %v6832, 0.6931472
      %v6834 = vlog2.pop %v6773
      %v6835 = vmul.f32 %v6834, 0.6931472
      %v6836 = vlog2.pop %v6774
      %v6837 = vmul.f32 %v6836, 0.6931472
      %v6838 = vlog2.pop %v6775
      %v6839 = vmul.f32 %v6838, 0.6931472
      %v6840 = vadd.f32 %v6584, %v6777
      %v6841 = vadd.f32 %v6585, %v6779
      %v6842 = vadd.f32 %v6586, %v6781
      %v6843 = vadd.f32 %v6587, %v6783
      %v6844 = vadd.f32 %v6588, %v6785
      %v6845 = vadd.f32 %v6589, %v6787
      %v6846 = vadd.f32 %v6590, %v6789
      %v6847 = vadd.f32 %v6591, %v6791
      %v6848 = vadd.f32 %v6592, %v6793
      %v6849 = vadd.f32 %v6593, %v6795
      %v6850 = vadd.f32 %v6594, %v6797
      %v6851 = vadd.f32 %v6595, %v6799
      %v6852 = vadd.f32 %v6596, %v6801
      %v6853 = vadd.f32 %v6597, %v6803
      %v6854 = vadd.f32 %v6598, %v6805
      %v6855 = vadd.f32 %v6599, %v6807
      %v6856 = vadd.f32 %v6600, %v6809
      %v6857 = vadd.f32 %v6601, %v6811
      %v6858 = vadd.f32 %v6602, %v6813
      %v6859 = vadd.f32 %v6603, %v6815
      %v6860 = vadd.f32 %v6604, %v6817
      %v6861 = vadd.f32 %v6605, %v6819
      %v6862 = vadd.f32 %v6606, %v6821
      %v6863 = vadd.f32 %v6607, %v6823
      %v6864 = vadd.f32 %v6608, %v6825
      %v6865 = vadd.f32 %v6609, %v6827
      %v6866 = vadd.f32 %v6610, %v6829
      %v6867 = vadd.f32 %v6611, %v6831
      %v6868 = vadd.f32 %v6612, %v6833
      %v6869 = vadd.f32 %v6613, %v6835
      %v6870 = vadd.f32 %v6614, %v6837
      %v6871 = vadd.f32 %v6615, %v6839
      %vm6872 = vcmask 7168
      %v6873 = vsel %vm6872, %v6840, 0.0
      %v6874 = vsel %vm6872, %v6841, 0.0
      %v6875 = vadd.f32 %v6873, %v6874
      %v6876 = vsel %vm6872, %v6842, 0.0
      %v6877 = vadd.f32 %v6875, %v6876
      %v6878 = vsel %vm6872, %v6843, 0.0
      %v6879 = vadd.f32 %v6877, %v6878
      %v6880 = vsel %vm6872, %v6844, 0.0
      %v6881 = vadd.f32 %v6879, %v6880
      %v6882 = vsel %vm6872, %v6845, 0.0
      %v6883 = vadd.f32 %v6881, %v6882
      %v6884 = vsel %vm6872, %v6846, 0.0
      %v6885 = vadd.f32 %v6883, %v6884
      %v6886 = vsel %vm6872, %v6847, 0.0
      %v6887 = vadd.f32 %v6885, %v6886
      %v6888 = vsel %vm6872, %v6848, 0.0
      %v6889 = vadd.f32 %v6887, %v6888
      %v6890 = vsel %vm6872, %v6849, 0.0
      %v6891 = vadd.f32 %v6889, %v6890
      %v6892 = vsel %vm6872, %v6850, 0.0
      %v6893 = vadd.f32 %v6891, %v6892
      %v6894 = vsel %vm6872, %v6851, 0.0
      %v6895 = vadd.f32 %v6893, %v6894
      %v6896 = vsel %vm6872, %v6852, 0.0
      %v6897 = vadd.f32 %v6895, %v6896
      %v6898 = vsel %vm6872, %v6853, 0.0
      %v6899 = vadd.f32 %v6897, %v6898
      %v6900 = vsel %vm6872, %v6854, 0.0
      %v6901 = vadd.f32 %v6899, %v6900
      %v6902 = vsel %vm6872, %v6855, 0.0
      %v6903 = vadd.f32 %v6901, %v6902
      %v6904 = vsel %vm6872, %v6856, 0.0
      %v6905 = vadd.f32 %v6903, %v6904
      %v6906 = vsel %vm6872, %v6857, 0.0
      %v6907 = vadd.f32 %v6905, %v6906
      %v6908 = vsel %vm6872, %v6858, 0.0
      %v6909 = vadd.f32 %v6907, %v6908
      %v6910 = vsel %vm6872, %v6859, 0.0
      %v6911 = vadd.f32 %v6909, %v6910
      %v6912 = vsel %vm6872, %v6860, 0.0
      %v6913 = vadd.f32 %v6911, %v6912
      %v6914 = vsel %vm6872, %v6861, 0.0
      %v6915 = vadd.f32 %v6913, %v6914
      %v6916 = vsel %vm6872, %v6862, 0.0
      %v6917 = vadd.f32 %v6915, %v6916
      %v6918 = vsel %vm6872, %v6863, 0.0
      %v6919 = vadd.f32 %v6917, %v6918
      %v6920 = vsel %vm6872, %v6864, 0.0
      %v6921 = vadd.f32 %v6919, %v6920
      %v6922 = vsel %vm6872, %v6865, 0.0
      %v6923 = vadd.f32 %v6921, %v6922
      %v6924 = vsel %vm6872, %v6866, 0.0
      %v6925 = vadd.f32 %v6923, %v6924
      %v6926 = vsel %vm6872, %v6867, 0.0
      %v6927 = vadd.f32 %v6925, %v6926
      %v6928 = vsel %vm6872, %v6868, 0.0
      %v6929 = vadd.f32 %v6927, %v6928
      %v6930 = vsel %vm6872, %v6869, 0.0
      %v6931 = vadd.f32 %v6929, %v6930
      %v6932 = vsel %vm6872, %v6870, 0.0
      %v6933 = vadd.f32 %v6931, %v6932
      %v6934 = vsel %vm6872, %v6871, 0.0
      %v6935 = vadd.f32 %v6933, %v6934
      %6936 = vadd.xlane.f32.xlu0 %v6935
      %v6937 = vpop.xlane.xlu0 %6936
      %v6938 = vrot.slane %v6937, 4
      %v6939 = vadd.f32 %v6937, %v6938
      %v6940 = vrot.slane %v6939, 2
      %v6941 = vadd.f32 %v6939, %v6940
      %v6942 = vrot.slane %v6941, 1
      %v6943 = vadd.f32 %v6941, %v6942
      %s6944 = vtos %v6943
      %v6945 = vstv %s6944
      %vm6946 = vcmask 0
      %6947 = vst.msk [vmem:[%s303] sm:$0x1] %vm6946, %v6945
      %p6948 = scmp.lt.s32.totalorder %s21, 1
      %s6949 = scalar_select %p6948, %s21, 1
      %s6950 = scalar_lea.vmem %s8, %s6949
      // Predicated region
      $region53: #{tpu_custom_call.1} parent=51 // pred_check
        %p6951 = pneg %p212
      $region54: #{tpu_custom_call.1} parent=51 // pred_check_branch
        %6953 = sbr.rel (%p6951) target = $region56
      $region55: #{tpu_custom_call.1} parent=51 // pred_region
        _
      $region56: #{tpu_custom_call.1} parent=51 // pred_fallthru
        _
    $region52: #{tpu_custom_call.1} parent=5 // pred_fallthru
      _
    %p6954 = scmp.le.s32.totalorder 2, %s16
    // Predicated region
    $region57: #{tpu_custom_call.1} parent=5 // pred_check
      %p6955 = pneg %p6954
    $region58: #{tpu_custom_call.1} parent=5 // pred_check_branch
      %6957 = sbr.rel (%p6955) target = $region60
    $region59: #{tpu_custom_call.1} parent=5 // pred_region
      %s6958 = ssub.s32 %s16, 2
      // Predicated region
      $region61: #{tpu_custom_call.1} parent=59 // pred_check
        %p6959 = pneg %p218
      $region62: #{tpu_custom_call.1} parent=59 // pred_check_branch
        %6961 = sbr.rel (%p6959) target = $region64
      $region63: #{tpu_custom_call.1} parent=59 // pred_region
        %p6962 = scmp.lt.s32.totalorder %s22, 1
        %s6963 = scalar_select %p6962, %s22, 1
        %s6964 = scalar_lea.vmem %s8, %s6963
      $region64: #{tpu_custom_call.1} parent=59 // pred_fallthru
        _
    $region60: #{tpu_custom_call.1} parent=5 // pred_fallthru
      _
  $region6: #{tpu_custom_call.1} parent=0 // loop_footer
    %s20 = sadd.s32 1, %s16
  $region7: #{tpu_custom_call.1} parent=0 // loop_footer_branch
    %15 = sbr.rel target = $region3
  $region8: #{tpu_custom_call.1} parent=0 // loop_exit
    _

</llo_original>
